<compile_context>
chip_gen: v5e
topology: v5e:2x2
jax: 0.10.0
libtpu: 0.0.40
codegen_flags: <defaults>
</compile_context>

<pallas_src>
import math

import jax
import jax.numpy as jnp
from jax import lax
from jax.experimental import pallas as pl
from jax.experimental.pallas import tpu as pltpu


# ----------------------------------------------------------------------------
# Fused two-stage conv3x3 + folded-BN + ReLU Pallas kernel (one batch per cell)
# ----------------------------------------------------------------------------
def _conv_block_kernel(x_ref, w1_ref, w2_ref, s1_ref, b1_ref, s2_ref, b2_ref,
                       o_ref, xpad_ref, hpad_ref):
    """One grid cell = one batch image, both conv stages.

    x_ref   : (H, W, Cin)        bf16 input tile (unpadded; halo built in VMEM)
    w1_ref  : (3, 3, Cin, C1)    bf16 conv1 weights, tap-major layout
    w2_ref  : (3, 3, C1, C2)     bf16 conv2 weights
    s*_ref  : (1, C*)            f32 folded BN scale
    b*_ref  : (1, C*)            f32 folded BN shift (includes conv bias)
    o_ref   : (H*W, C2)          f32 output block
    xpad_ref: (H+2, W+2, Cin)    bf16 VMEM scratch, zero-halo padded input
    hpad_ref: (H+2, W+2, C1)     bf16 VMEM scratch, zero-halo padded intermediate
    """
    H, W, _ = x_ref.shape
    C1 = hpad_ref.shape[-1]
    HW = H * W

    def conv3x3(src_pad_ref, w_ref):
        # 9 accumulated per-tap matmuls; tap order (dy, dx) matches the
        # (3, 3, Cin, Cout) host-side weight layout. No patch tensor is ever
        # materialized; the f32 accumulator rides the MXU result path.
        ci = src_pad_ref.shape[-1]
        acc = None
        for dy in range(3):
            for dx in range(3):
                lhs = src_pad_ref[dy:dy + H, dx:dx + W, :].reshape(HW, ci)
                t = jnp.dot(lhs, w_ref[dy, dx],
                            preferred_element_type=jnp.float32)
                acc = t if acc is None else acc + t
        return acc

    # Stage 0: build the zero-halo padded input tile in VMEM (no HBM pad copy).
    xpad_ref[...] = jnp.zeros_like(xpad_ref)
    xpad_ref[1:H + 1, 1:W + 1, :] = x_ref[...]

    # Stage 1: conv1 + folded BN + ReLU -> bf16 intermediate with zero halo.
    h = conv3x3(xpad_ref, w1_ref) * s1_ref[...] + b1_ref[...]
    h = jnp.maximum(h, 0.0)
    hpad_ref[...] = jnp.zeros_like(hpad_ref)
    hpad_ref[1:H + 1, 1:W + 1, :] = h.reshape(H, W, C1).astype(hpad_ref.dtype)

    # Stage 2: conv2 + folded BN + ReLU -> f32 output block.
    y = conv3x3(hpad_ref, w2_ref) * s2_ref[...] + b2_ref[...]
    o_ref[...] = jnp.maximum(y, 0.0).astype(o_ref.dtype)


# ----------------------------------------------------------------------------
# conv_block forward (single fused pallas_call)
# ----------------------------------------------------------------------------
def conv_block_forward(p, x_nchw, *, eps=1e-5):
    B, Cin, H, W = x_nchw.shape
    C1 = p["w1"].shape[0]
    C2 = p["w2"].shape[0]

    # Fold eval-mode BatchNorm (+ conv bias) into per-channel affine (f32).
    s1 = (p["g1"] / jnp.sqrt(p["v1"] + eps)).astype(jnp.float32)
    b1 = (p["be1"] + (p["b1"] - p["m1"]) * s1).astype(jnp.float32)
    s2 = (p["g2"] / jnp.sqrt(p["v2"] + eps)).astype(jnp.float32)
    b2 = (p["be2"] + (p["b2"] - p["m2"]) * s2).astype(jnp.float32)

    # (Cout, Cin, 3, 3) torch layout -> (3, 3, Cin, Cout) tap-major, bf16 MXU operands.
    w1 = jnp.transpose(p["w1"], (2, 3, 1, 0)).astype(jnp.bfloat16)
    w2 = jnp.transpose(p["w2"], (2, 3, 1, 0)).astype(jnp.bfloat16)

    # Single fused XLA op on the way in: NCHW -> NHWC + bf16 cast (no HBM pad).
    x = jnp.transpose(x_nchw, (0, 2, 3, 1)).astype(jnp.bfloat16)

    out = pl.pallas_call(
        _conv_block_kernel,
        out_shape=jax.ShapeDtypeStruct((B, H * W, C2), jnp.float32),
        grid_spec=pltpu.PrefetchScalarGridSpec(
            num_scalar_prefetch=0,
            grid=(B,),
            in_specs=[
                pl.BlockSpec((None, H, W, Cin), lambda b: (b, 0, 0, 0)),
                pl.BlockSpec((3, 3, Cin, C1), lambda b: (0, 0, 0, 0)),
                pl.BlockSpec((3, 3, C1, C2), lambda b: (0, 0, 0, 0)),
                pl.BlockSpec((1, C1), lambda b: (0, 0)),
                pl.BlockSpec((1, C1), lambda b: (0, 0)),
                pl.BlockSpec((1, C2), lambda b: (0, 0)),
                pl.BlockSpec((1, C2), lambda b: (0, 0)),
            ],
            out_specs=pl.BlockSpec((None, H * W, C2), lambda b: (b, 0, 0)),
            scratch_shapes=[
                pltpu.VMEM((H + 2, W + 2, Cin), jnp.bfloat16),
                pltpu.VMEM((H + 2, W + 2, C1), jnp.bfloat16),
            ],
        ),
        compiler_params=pltpu.CompilerParams(
            dimension_semantics=("parallel",)),
    )(x, w1, w2,
      s1.reshape(1, C1), b1.reshape(1, C1),
      s2.reshape(1, C2), b2.reshape(1, C2))

    # (B, H*W, C2) -> (B, C2, H*W) small transpose, then a free metadata reshape.
    return jnp.transpose(out, (0, 2, 1)).reshape(B, C2, H, W)


# ----------------------------------------------------------------------------
# deterministic parameter initialization (torch conv_block layout)
# ----------------------------------------------------------------------------
def make_conv_block_params(key, in_ch, out_ch):
    ks = jax.random.split(key, 6)

    def conv_w(k, ci, co):
        return jax.random.normal(k, (co, ci, 3, 3), jnp.float32) * math.sqrt(2.0 / (ci * 9))

    def bn(k, c):
        k1, k2, k3, k4 = jax.random.split(k, 4)
        return dict(
            g=1.0 + 0.1 * jax.random.normal(k1, (c,), jnp.float32),
            be=0.1 * jax.random.normal(k2, (c,), jnp.float32),
            m=0.1 * jax.random.normal(k3, (c,), jnp.float32),
            v=jax.random.uniform(k4, (c,), jnp.float32, minval=0.5, maxval=1.5),
        )

    bn1, bn2 = bn(ks[4], out_ch), bn(ks[5], out_ch)
    return dict(
        w1=conv_w(ks[0], in_ch, out_ch),
        b1=0.05 * jax.random.normal(ks[1], (out_ch,), jnp.float32),
        g1=bn1["g"], be1=bn1["be"], m1=bn1["m"], v1=bn1["v"],
        w2=conv_w(ks[2], out_ch, out_ch),
        b2=0.05 * jax.random.normal(ks[3], (out_ch,), jnp.float32),
        g2=bn2["g"], be2=bn2["be"], m2=bn2["m"], v2=bn2["v"],
    )


# ----------------------------------------------------------------------------
# pure-JAX reference (emulating the kernel's bf16 operands) for a sanity check
# ----------------------------------------------------------------------------
def _ref_conv3x3(x, w, b):
    xb = x.astype(jnp.bfloat16).astype(jnp.float32)
    wb = jnp.transpose(w, (2, 3, 1, 0)).astype(jnp.bfloat16).astype(jnp.float32)  # HWIO
    y = lax.conv_general_dilated(xb, wb, (1, 1), ((1, 1), (1, 1)),
                                 dimension_numbers=("NHWC", "HWIO", "NHWC"))
    return y + b


def _ref_bn_relu(y, g, be, m, v, eps=1e-5):
    return jnp.maximum((y - m) / jnp.sqrt(v + eps) * g + be, 0.0)


def conv_block_reference(p, x_nchw):
    x = jnp.transpose(x_nchw, (0, 2, 3, 1)).astype(jnp.float32)
    h = _ref_bn_relu(_ref_conv3x3(x, p["w1"], p["b1"]),
                     p["g1"], p["be1"], p["m1"], p["v1"])
    h = h.astype(jnp.bfloat16).astype(jnp.float32)   # kernel keeps a bf16 intermediate
    y = _ref_bn_relu(_ref_conv3x3(h, p["w2"], p["b2"]),
                     p["g2"], p["be2"], p["m2"], p["v2"])
    return jnp.transpose(y, (0, 3, 1, 2))


if __name__ == "__main__":
    key = jax.random.PRNGKey(0)
    pkey, xkey = jax.random.split(key)
    B, Cin, H, W, Cout = 2, 4, 16, 16, 32
    P = make_conv_block_params(pkey, Cin, Cout)
    x = jax.random.normal(xkey, (B, Cin, H, W), jnp.float32)      # NCHW, like the torch module

    fwd = jax.jit(conv_block_forward)
    out = jax.block_until_ready(fwd(P, x))

    assert out.shape == (B, Cout, H, W)
    assert bool(jnp.all(jnp.isfinite(out)))
    ref = conv_block_reference(P, x)
    err = float(jnp.max(jnp.abs(out - ref)))
    assert err < 5e-2, f"max abs error vs reference too large: {err}"
    print("KERNEL_OK")
</pallas_src>

<mosaic_0001>
module attributes {stable_mosaic.version = 11 : i64} {
  func.func @_conv_block_kernel(%arg0: i32, %arg1: memref<1x16x16x4xbf16, #tpu.memory_space<vmem>>, %arg2: memref<3x3x4x32xbf16, #tpu.memory_space<vmem>>, %arg3: memref<3x3x32x32xbf16, #tpu.memory_space<vmem>>, %arg4: memref<1x32xf32, #tpu.memory_space<vmem>>, %arg5: memref<1x32xf32, #tpu.memory_space<vmem>>, %arg6: memref<1x32xf32, #tpu.memory_space<vmem>>, %arg7: memref<1x32xf32, #tpu.memory_space<vmem>>, %arg8: memref<1x256x32xf32, #tpu.memory_space<vmem>>, %arg9: memref<18x18x4xbf16, #tpu.memory_space<vmem>>, %arg10: memref<18x18x32xbf16, #tpu.memory_space<vmem>>) attributes {dimension_semantics = [#tpu.dimension_semantics<parallel>], iteration_bounds = array<i64: 2>, scalar_prefetch = 0 : i64, scratch_operands = 2 : i64, tpu.core_type = #tpu.core_type<tc>, window_params = [{transform_indices = @transform_0, window_bounds = array<i64: 1, 16, 16, 4>}, {pipeline_mode = #tpu.pipeline_mode<synchronous>, transform_indices = @transform_1, window_bounds = array<i64: 3, 3, 4, 32>}, {pipeline_mode = #tpu.pipeline_mode<synchronous>, transform_indices = @transform_2, window_bounds = array<i64: 3, 3, 32, 32>}, {pipeline_mode = #tpu.pipeline_mode<synchronous>, transform_indices = @transform_3, window_bounds = array<i64: 1, 32>}, {pipeline_mode = #tpu.pipeline_mode<synchronous>, transform_indices = @transform_4, window_bounds = array<i64: 1, 32>}, {pipeline_mode = #tpu.pipeline_mode<synchronous>, transform_indices = @transform_5, window_bounds = array<i64: 1, 32>}, {pipeline_mode = #tpu.pipeline_mode<synchronous>, transform_indices = @transform_6, window_bounds = array<i64: 1, 32>}, {transform_indices = @transform_7, window_bounds = array<i64: 1, 256, 32>}]} {
    %cst = arith.constant 0.000000e+00 : bf16
    %0 = vector.broadcast %cst : bf16 to vector<18x18x4xbf16>
    %c0 = arith.constant 0 : index
    %c0_0 = arith.constant 0 : index
    %c0_1 = arith.constant 0 : index
    %1 = vector.load %arg9[%c0, %c0_0, %c0_1] : memref<18x18x4xbf16, #tpu.memory_space<vmem>>, vector<18x18x4xbf16>
    tpu.vector_store %arg9[%c0, %c0_0, %c0_1], %0 {strides = array<i32>} : memref<18x18x4xbf16, #tpu.memory_space<vmem>>, vector<18x18x4xbf16>,
    %c0_2 = arith.constant 0 : index
    %c0_3 = arith.constant 0 : index
    %c0_4 = arith.constant 0 : index
    %c0_5 = arith.constant 0 : index
    %2 = vector.load %arg1[%c0_2, %c0_3, %c0_4, %c0_5] : memref<1x16x16x4xbf16, #tpu.memory_space<vmem>>, vector<1x16x16x4xbf16>
    %3 = vector.shape_cast %2 : vector<1x16x16x4xbf16> to vector<16x16x4xbf16>
    %c1 = arith.constant 1 : index
    %c1_6 = arith.constant 1 : index
    %c0_7 = arith.constant 0 : index
    %4 = vector.load %arg9[%c1, %c1_6, %c0_7] : memref<18x18x4xbf16, #tpu.memory_space<vmem>>, vector<16x16x4xbf16>
    tpu.vector_store %arg9[%c1, %c1_6, %c0_7], %3 {strides = array<i32>} : memref<18x18x4xbf16, #tpu.memory_space<vmem>>, vector<16x16x4xbf16>,
    %c0_8 = arith.constant 0 : index
    %c0_9 = arith.constant 0 : index
    %c0_10 = arith.constant 0 : index
    %5 = vector.load %arg9[%c0_8, %c0_9, %c0_10] : memref<18x18x4xbf16, #tpu.memory_space<vmem>>, vector<16x16x4xbf16>
    %6 = vector.shape_cast %5 : vector<16x16x4xbf16> to vector<256x4xbf16>
    %c0_11 = arith.constant 0 : index
    %c0_12 = arith.constant 0 : index
    %c0_13 = arith.constant 0 : index
    %c0_14 = arith.constant 0 : index
    %7 = vector.load %arg2[%c0_11, %c0_12, %c0_13, %c0_14] : memref<3x3x4x32xbf16, #tpu.memory_space<vmem>>, vector<1x1x4x32xbf16>
    %8 = vector.shape_cast %7 : vector<1x1x4x32xbf16> to vector<4x32xbf16>
    %cst_15 = arith.constant dense<0.000000e+00> : vector<256x32xf32>
    %9 = tpu.matmul %6, %8, %cst_15 {dimension_numbers = #tpu.dot_dimension_numbers<[1], [0], [0], [1], [0, 0, 1, 1], [], []>} : vector<256x4xbf16>, vector<4x32xbf16>, vector<256x32xf32> -> vector<256x32xf32>
    %c0_16 = arith.constant 0 : index
    %c1_17 = arith.constant 1 : index
    %c0_18 = arith.constant 0 : index
    %10 = vector.load %arg9[%c0_16, %c1_17, %c0_18] : memref<18x18x4xbf16, #tpu.memory_space<vmem>>, vector<16x16x4xbf16>
    %11 = vector.shape_cast %10 : vector<16x16x4xbf16> to vector<256x4xbf16>
    %c0_19 = arith.constant 0 : index
    %c1_20 = arith.constant 1 : index
    %c0_21 = arith.constant 0 : index
    %c0_22 = arith.constant 0 : index
    %12 = vector.load %arg2[%c0_19, %c1_20, %c0_21, %c0_22] : memref<3x3x4x32xbf16, #tpu.memory_space<vmem>>, vector<1x1x4x32xbf16>
    %13 = vector.shape_cast %12 : vector<1x1x4x32xbf16> to vector<4x32xbf16>
    %cst_23 = arith.constant dense<0.000000e+00> : vector<256x32xf32>
    %14 = tpu.matmul %11, %13, %cst_23 {dimension_numbers = #tpu.dot_dimension_numbers<[1], [0], [0], [1], [0, 0, 1, 1], [], []>} : vector<256x4xbf16>, vector<4x32xbf16>, vector<256x32xf32> -> vector<256x32xf32>
    %15 = arith.addf %9, %14 : vector<256x32xf32>
    %c0_24 = arith.constant 0 : index
    %c2 = arith.constant 2 : index
    %c0_25 = arith.constant 0 : index
    %16 = vector.load %arg9[%c0_24, %c2, %c0_25] : memref<18x18x4xbf16, #tpu.memory_space<vmem>>, vector<16x16x4xbf16>
    %17 = vector.shape_cast %16 : vector<16x16x4xbf16> to vector<256x4xbf16>
    %c0_26 = arith.constant 0 : index
    %c2_27 = arith.constant 2 : index
    %c0_28 = arith.constant 0 : index
    %c0_29 = arith.constant 0 : index
    %18 = vector.load %arg2[%c0_26, %c2_27, %c0_28, %c0_29] : memref<3x3x4x32xbf16, #tpu.memory_space<vmem>>, vector<1x1x4x32xbf16>
    %19 = vector.shape_cast %18 : vector<1x1x4x32xbf16> to vector<4x32xbf16>
    %cst_30 = arith.constant dense<0.000000e+00> : vector<256x32xf32>
    %20 = tpu.matmul %17, %19, %cst_30 {dimension_numbers = #tpu.dot_dimension_numbers<[1], [0], [0], [1], [0, 0, 1, 1], [], []>} : vector<256x4xbf16>, vector<4x32xbf16>, vector<256x32xf32> -> vector<256x32xf32>
    %21 = arith.addf %15, %20 : vector<256x32xf32>
    %c1_31 = arith.constant 1 : index
    %c0_32 = arith.constant 0 : index
    %c0_33 = arith.constant 0 : index
    %22 = vector.load %arg9[%c1_31, %c0_32, %c0_33] : memref<18x18x4xbf16, #tpu.memory_space<vmem>>, vector<16x16x4xbf16>
    %23 = vector.shape_cast %22 : vector<16x16x4xbf16> to vector<256x4xbf16>
    %c1_34 = arith.constant 1 : index
    %c0_35 = arith.constant 0 : index
    %c0_36 = arith.constant 0 : index
    %c0_37 = arith.constant 0 : index
    %24 = vector.load %arg2[%c1_34, %c0_35, %c0_36, %c0_37] : memref<3x3x4x32xbf16, #tpu.memory_space<vmem>>, vector<1x1x4x32xbf16>
    %25 = vector.shape_cast %24 : vector<1x1x4x32xbf16> to vector<4x32xbf16>
    %cst_38 = arith.constant dense<0.000000e+00> : vector<256x32xf32>
    %26 = tpu.matmul %23, %25, %cst_38 {dimension_numbers = #tpu.dot_dimension_numbers<[1], [0], [0], [1], [0, 0, 1, 1], [], []>} : vector<256x4xbf16>, vector<4x32xbf16>, vector<256x32xf32> -> vector<256x32xf32>
    %27 = arith.addf %21, %26 : vector<256x32xf32>
    %c1_39 = arith.constant 1 : index
    %c1_40 = arith.constant 1 : index
    %c0_41 = arith.constant 0 : index
    %28 = vector.load %arg9[%c1_39, %c1_40, %c0_41] : memref<18x18x4xbf16, #tpu.memory_space<vmem>>, vector<16x16x4xbf16>
    %29 = vector.shape_cast %28 : vector<16x16x4xbf16> to vector<256x4xbf16>
    %c1_42 = arith.constant 1 : index
    %c1_43 = arith.constant 1 : index
    %c0_44 = arith.constant 0 : index
    %c0_45 = arith.constant 0 : index
    %30 = vector.load %arg2[%c1_42, %c1_43, %c0_44, %c0_45] : memref<3x3x4x32xbf16, #tpu.memory_space<vmem>>, vector<1x1x4x32xbf16>
    %31 = vector.shape_cast %30 : vector<1x1x4x32xbf16> to vector<4x32xbf16>
    %cst_46 = arith.constant dense<0.000000e+00> : vector<256x32xf32>
    %32 = tpu.matmul %29, %31, %cst_46 {dimension_numbers = #tpu.dot_dimension_numbers<[1], [0], [0], [1], [0, 0, 1, 1], [], []>} : vector<256x4xbf16>, vector<4x32xbf16>, vector<256x32xf32> -> vector<256x32xf32>
    %33 = arith.addf %27, %32 : vector<256x32xf32>
    %c1_47 = arith.constant 1 : index
    %c2_48 = arith.constant 2 : index
    %c0_49 = arith.constant 0 : index
    %34 = vector.load %arg9[%c1_47, %c2_48, %c0_49] : memref<18x18x4xbf16, #tpu.memory_space<vmem>>, vector<16x16x4xbf16>
    %35 = vector.shape_cast %34 : vector<16x16x4xbf16> to vector<256x4xbf16>
    %c1_50 = arith.constant 1 : index
    %c2_51 = arith.constant 2 : index
    %c0_52 = arith.constant 0 : index
    %c0_53 = arith.constant 0 : index
    %36 = vector.load %arg2[%c1_50, %c2_51, %c0_52, %c0_53] : memref<3x3x4x32xbf16, #tpu.memory_space<vmem>>, vector<1x1x4x32xbf16>
    %37 = vector.shape_cast %36 : vector<1x1x4x32xbf16> to vector<4x32xbf16>
    %cst_54 = arith.constant dense<0.000000e+00> : vector<256x32xf32>
    %38 = tpu.matmul %35, %37, %cst_54 {dimension_numbers = #tpu.dot_dimension_numbers<[1], [0], [0], [1], [0, 0, 1, 1], [], []>} : vector<256x4xbf16>, vector<4x32xbf16>, vector<256x32xf32> -> vector<256x32xf32>
    %39 = arith.addf %33, %38 : vector<256x32xf32>
    %c2_55 = arith.constant 2 : index
    %c0_56 = arith.constant 0 : index
    %c0_57 = arith.constant 0 : index
    %40 = vector.load %arg9[%c2_55, %c0_56, %c0_57] : memref<18x18x4xbf16, #tpu.memory_space<vmem>>, vector<16x16x4xbf16>
    %41 = vector.shape_cast %40 : vector<16x16x4xbf16> to vector<256x4xbf16>
    %c2_58 = arith.constant 2 : index
    %c0_59 = arith.constant 0 : index
    %c0_60 = arith.constant 0 : index
    %c0_61 = arith.constant 0 : index
    %42 = vector.load %arg2[%c2_58, %c0_59, %c0_60, %c0_61] : memref<3x3x4x32xbf16, #tpu.memory_space<vmem>>, vector<1x1x4x32xbf16>
    %43 = vector.shape_cast %42 : vector<1x1x4x32xbf16> to vector<4x32xbf16>
    %cst_62 = arith.constant dense<0.000000e+00> : vector<256x32xf32>
    %44 = tpu.matmul %41, %43, %cst_62 {dimension_numbers = #tpu.dot_dimension_numbers<[1], [0], [0], [1], [0, 0, 1, 1], [], []>} : vector<256x4xbf16>, vector<4x32xbf16>, vector<256x32xf32> -> vector<256x32xf32>
    %45 = arith.addf %39, %44 : vector<256x32xf32>
    %c2_63 = arith.constant 2 : index
    %c1_64 = arith.constant 1 : index
    %c0_65 = arith.constant 0 : index
    %46 = vector.load %arg9[%c2_63, %c1_64, %c0_65] : memref<18x18x4xbf16, #tpu.memory_space<vmem>>, vector<16x16x4xbf16>
    %47 = vector.shape_cast %46 : vector<16x16x4xbf16> to vector<256x4xbf16>
    %c2_66 = arith.constant 2 : index
    %c1_67 = arith.constant 1 : index
    %c0_68 = arith.constant 0 : index
    %c0_69 = arith.constant 0 : index
    %48 = vector.load %arg2[%c2_66, %c1_67, %c0_68, %c0_69] : memref<3x3x4x32xbf16, #tpu.memory_space<vmem>>, vector<1x1x4x32xbf16>
    %49 = vector.shape_cast %48 : vector<1x1x4x32xbf16> to vector<4x32xbf16>
    %cst_70 = arith.constant dense<0.000000e+00> : vector<256x32xf32>
    %50 = tpu.matmul %47, %49, %cst_70 {dimension_numbers = #tpu.dot_dimension_numbers<[1], [0], [0], [1], [0, 0, 1, 1], [], []>} : vector<256x4xbf16>, vector<4x32xbf16>, vector<256x32xf32> -> vector<256x32xf32>
    %51 = arith.addf %45, %50 : vector<256x32xf32>
    %c2_71 = arith.constant 2 : index
    %c2_72 = arith.constant 2 : index
    %c0_73 = arith.constant 0 : index
    %52 = vector.load %arg9[%c2_71, %c2_72, %c0_73] : memref<18x18x4xbf16, #tpu.memory_space<vmem>>, vector<16x16x4xbf16>
    %53 = vector.shape_cast %52 : vector<16x16x4xbf16> to vector<256x4xbf16>
    %c2_74 = arith.constant 2 : index
    %c2_75 = arith.constant 2 : index
    %c0_76 = arith.constant 0 : index
    %c0_77 = arith.constant 0 : index
    %54 = vector.load %arg2[%c2_74, %c2_75, %c0_76, %c0_77] : memref<3x3x4x32xbf16, #tpu.memory_space<vmem>>, vector<1x1x4x32xbf16>
    %55 = vector.shape_cast %54 : vector<1x1x4x32xbf16> to vector<4x32xbf16>
    %cst_78 = arith.constant dense<0.000000e+00> : vector<256x32xf32>
    %56 = tpu.matmul %53, %55, %cst_78 {dimension_numbers = #tpu.dot_dimension_numbers<[1], [0], [0], [1], [0, 0, 1, 1], [], []>} : vector<256x4xbf16>, vector<4x32xbf16>, vector<256x32xf32> -> vector<256x32xf32>
    %57 = arith.addf %51, %56 : vector<256x32xf32>
    %c0_79 = arith.constant 0 : index
    %c0_80 = arith.constant 0 : index
    %58 = vector.load %arg4[%c0_79, %c0_80] : memref<1x32xf32, #tpu.memory_space<vmem>>, vector<1x32xf32>
    %59 = vector.broadcast %58 : vector<1x32xf32> to vector<256x32xf32>
    %60 = arith.mulf %57, %59 : vector<256x32xf32>
    %c0_81 = arith.constant 0 : index
    %c0_82 = arith.constant 0 : index
    %61 = vector.load %arg5[%c0_81, %c0_82] : memref<1x32xf32, #tpu.memory_space<vmem>>, vector<1x32xf32>
    %62 = vector.broadcast %61 : vector<1x32xf32> to vector<256x32xf32>
    %63 = arith.addf %60, %62 : vector<256x32xf32>
    %cst_83 = arith.constant 0.000000e+00 : f32
    %64 = vector.broadcast %cst_83 : f32 to vector<256x32xf32>
    %65 = arith.maximumf %63, %64 : vector<256x32xf32>
    %cst_84 = arith.constant 0.000000e+00 : bf16
    %66 = vector.broadcast %cst_84 : bf16 to vector<18x18x32xbf16>
    %c0_85 = arith.constant 0 : index
    %c0_86 = arith.constant 0 : index
    %c0_87 = arith.constant 0 : index
    %67 = vector.load %arg10[%c0_85, %c0_86, %c0_87] : memref<18x18x32xbf16, #tpu.memory_space<vmem>>, vector<18x18x32xbf16>
    tpu.vector_store %arg10[%c0_85, %c0_86, %c0_87], %66 {strides = array<i32>} : memref<18x18x32xbf16, #tpu.memory_space<vmem>>, vector<18x18x32xbf16>,
    %68 = vector.shape_cast %65 : vector<256x32xf32> to vector<16x16x32xf32>
    %69 = arith.truncf %68 : vector<16x16x32xf32> to vector<16x16x32xbf16>
    %c1_88 = arith.constant 1 : index
    %c1_89 = arith.constant 1 : index
    %c0_90 = arith.constant 0 : index
    %70 = vector.load %arg10[%c1_88, %c1_89, %c0_90] : memref<18x18x32xbf16, #tpu.memory_space<vmem>>, vector<16x16x32xbf16>
    tpu.vector_store %arg10[%c1_88, %c1_89, %c0_90], %69 {strides = array<i32>} : memref<18x18x32xbf16, #tpu.memory_space<vmem>>, vector<16x16x32xbf16>,
    %c0_91 = arith.constant 0 : index
    %c0_92 = arith.constant 0 : index
    %c0_93 = arith.constant 0 : index
    %71 = vector.load %arg10[%c0_91, %c0_92, %c0_93] : memref<18x18x32xbf16, #tpu.memory_space<vmem>>, vector<16x16x32xbf16>
    %72 = vector.shape_cast %71 : vector<16x16x32xbf16> to vector<256x32xbf16>
    %c0_94 = arith.constant 0 : index
    %c0_95 = arith.constant 0 : index
    %c0_96 = arith.constant 0 : index
    %c0_97 = arith.constant 0 : index
    %73 = vector.load %arg3[%c0_94, %c0_95, %c0_96, %c0_97] : memref<3x3x32x32xbf16, #tpu.memory_space<vmem>>, vector<1x1x32x32xbf16>
    %74 = vector.shape_cast %73 : vector<1x1x32x32xbf16> to vector<32x32xbf16>
    %cst_98 = arith.constant dense<0.000000e+00> : vector<256x32xf32>
    %75 = tpu.matmul %72, %74, %cst_98 {dimension_numbers = #tpu.dot_dimension_numbers<[1], [0], [0], [1], [0, 0, 1, 1], [], []>} : vector<256x32xbf16>, vector<32x32xbf16>, vector<256x32xf32> -> vector<256x32xf32>
    %c0_99 = arith.constant 0 : index
    %c1_100 = arith.constant 1 : index
    %c0_101 = arith.constant 0 : index
    %76 = vector.load %arg10[%c0_99, %c1_100, %c0_101] : memref<18x18x32xbf16, #tpu.memory_space<vmem>>, vector<16x16x32xbf16>
    %77 = vector.shape_cast %76 : vector<16x16x32xbf16> to vector<256x32xbf16>
    %c0_102 = arith.constant 0 : index
    %c1_103 = arith.constant 1 : index
    %c0_104 = arith.constant 0 : index
    %c0_105 = arith.constant 0 : index
    %78 = vector.load %arg3[%c0_102, %c1_103, %c0_104, %c0_105] : memref<3x3x32x32xbf16, #tpu.memory_space<vmem>>, vector<1x1x32x32xbf16>
    %79 = vector.shape_cast %78 : vector<1x1x32x32xbf16> to vector<32x32xbf16>
    %cst_106 = arith.constant dense<0.000000e+00> : vector<256x32xf32>
    %80 = tpu.matmul %77, %79, %cst_106 {dimension_numbers = #tpu.dot_dimension_numbers<[1], [0], [0], [1], [0, 0, 1, 1], [], []>} : vector<256x32xbf16>, vector<32x32xbf16>, vector<256x32xf32> -> vector<256x32xf32>
    %81 = arith.addf %75, %80 : vector<256x32xf32>
    %c0_107 = arith.constant 0 : index
    %c2_108 = arith.constant 2 : index
    %c0_109 = arith.constant 0 : index
    %82 = vector.load %arg10[%c0_107, %c2_108, %c0_109] : memref<18x18x32xbf16, #tpu.memory_space<vmem>>, vector<16x16x32xbf16>
    %83 = vector.shape_cast %82 : vector<16x16x32xbf16> to vector<256x32xbf16>
    %c0_110 = arith.constant 0 : index
    %c2_111 = arith.constant 2 : index
    %c0_112 = arith.constant 0 : index
    %c0_113 = arith.constant 0 : index
    %84 = vector.load %arg3[%c0_110, %c2_111, %c0_112, %c0_113] : memref<3x3x32x32xbf16, #tpu.memory_space<vmem>>, vector<1x1x32x32xbf16>
    %85 = vector.shape_cast %84 : vector<1x1x32x32xbf16> to vector<32x32xbf16>
    %cst_114 = arith.constant dense<0.000000e+00> : vector<256x32xf32>
    %86 = tpu.matmul %83, %85, %cst_114 {dimension_numbers = #tpu.dot_dimension_numbers<[1], [0], [0], [1], [0, 0, 1, 1], [], []>} : vector<256x32xbf16>, vector<32x32xbf16>, vector<256x32xf32> -> vector<256x32xf32>
    %87 = arith.addf %81, %86 : vector<256x32xf32>
    %c1_115 = arith.constant 1 : index
    %c0_116 = arith.constant 0 : index
    %c0_117 = arith.constant 0 : index
    %88 = vector.load %arg10[%c1_115, %c0_116, %c0_117] : memref<18x18x32xbf16, #tpu.memory_space<vmem>>, vector<16x16x32xbf16>
    %89 = vector.shape_cast %88 : vector<16x16x32xbf16> to vector<256x32xbf16>
    %c1_118 = arith.constant 1 : index
    %c0_119 = arith.constant 0 : index
    %c0_120 = arith.constant 0 : index
    %c0_121 = arith.constant 0 : index
    %90 = vector.load %arg3[%c1_118, %c0_119, %c0_120, %c0_121] : memref<3x3x32x32xbf16, #tpu.memory_space<vmem>>, vector<1x1x32x32xbf16>
    %91 = vector.shape_cast %90 : vector<1x1x32x32xbf16> to vector<32x32xbf16>
    %cst_122 = arith.constant dense<0.000000e+00> : vector<256x32xf32>
    %92 = tpu.matmul %89, %91, %cst_122 {dimension_numbers = #tpu.dot_dimension_numbers<[1], [0], [0], [1], [0, 0, 1, 1], [], []>} : vector<256x32xbf16>, vector<32x32xbf16>, vector<256x32xf32> -> vector<256x32xf32>
    %93 = arith.addf %87, %92 : vector<256x32xf32>
    %c1_123 = arith.constant 1 : index
    %c1_124 = arith.constant 1 : index
    %c0_125 = arith.constant 0 : index
    %94 = vector.load %arg10[%c1_123, %c1_124, %c0_125] : memref<18x18x32xbf16, #tpu.memory_space<vmem>>, vector<16x16x32xbf16>
    %95 = vector.shape_cast %94 : vector<16x16x32xbf16> to vector<256x32xbf16>
    %c1_126 = arith.constant 1 : index
    %c1_127 = arith.constant 1 : index
    %c0_128 = arith.constant 0 : index
    %c0_129 = arith.constant 0 : index
    %96 = vector.load %arg3[%c1_126, %c1_127, %c0_128, %c0_129] : memref<3x3x32x32xbf16, #tpu.memory_space<vmem>>, vector<1x1x32x32xbf16>
    %97 = vector.shape_cast %96 : vector<1x1x32x32xbf16> to vector<32x32xbf16>
    %cst_130 = arith.constant dense<0.000000e+00> : vector<256x32xf32>
    %98 = tpu.matmul %95, %97, %cst_130 {dimension_numbers = #tpu.dot_dimension_numbers<[1], [0], [0], [1], [0, 0, 1, 1], [], []>} : vector<256x32xbf16>, vector<32x32xbf16>, vector<256x32xf32> -> vector<256x32xf32>
    %99 = arith.addf %93, %98 : vector<256x32xf32>
    %c1_131 = arith.constant 1 : index
    %c2_132 = arith.constant 2 : index
    %c0_133 = arith.constant 0 : index
    %100 = vector.load %arg10[%c1_131, %c2_132, %c0_133] : memref<18x18x32xbf16, #tpu.memory_space<vmem>>, vector<16x16x32xbf16>
    %101 = vector.shape_cast %100 : vector<16x16x32xbf16> to vector<256x32xbf16>
    %c1_134 = arith.constant 1 : index
    %c2_135 = arith.constant 2 : index
    %c0_136 = arith.constant 0 : index
    %c0_137 = arith.constant 0 : index
    %102 = vector.load %arg3[%c1_134, %c2_135, %c0_136, %c0_137] : memref<3x3x32x32xbf16, #tpu.memory_space<vmem>>, vector<1x1x32x32xbf16>
    %103 = vector.shape_cast %102 : vector<1x1x32x32xbf16> to vector<32x32xbf16>
    %cst_138 = arith.constant dense<0.000000e+00> : vector<256x32xf32>
    %104 = tpu.matmul %101, %103, %cst_138 {dimension_numbers = #tpu.dot_dimension_numbers<[1], [0], [0], [1], [0, 0, 1, 1], [], []>} : vector<256x32xbf16>, vector<32x32xbf16>, vector<256x32xf32> -> vector<256x32xf32>
    %105 = arith.addf %99, %104 : vector<256x32xf32>
    %c2_139 = arith.constant 2 : index
    %c0_140 = arith.constant 0 : index
    %c0_141 = arith.constant 0 : index
    %106 = vector.load %arg10[%c2_139, %c0_140, %c0_141] : memref<18x18x32xbf16, #tpu.memory_space<vmem>>, vector<16x16x32xbf16>
    %107 = vector.shape_cast %106 : vector<16x16x32xbf16> to vector<256x32xbf16>
    %c2_142 = arith.constant 2 : index
    %c0_143 = arith.constant 0 : index
    %c0_144 = arith.constant 0 : index
    %c0_145 = arith.constant 0 : index
    %108 = vector.load %arg3[%c2_142, %c0_143, %c0_144, %c0_145] : memref<3x3x32x32xbf16, #tpu.memory_space<vmem>>, vector<1x1x32x32xbf16>
    %109 = vector.shape_cast %108 : vector<1x1x32x32xbf16> to vector<32x32xbf16>
    %cst_146 = arith.constant dense<0.000000e+00> : vector<256x32xf32>
    %110 = tpu.matmul %107, %109, %cst_146 {dimension_numbers = #tpu.dot_dimension_numbers<[1], [0], [0], [1], [0, 0, 1, 1], [], []>} : vector<256x32xbf16>, vector<32x32xbf16>, vector<256x32xf32> -> vector<256x32xf32>
    %111 = arith.addf %105, %110 : vector<256x32xf32>
    %c2_147 = arith.constant 2 : index
    %c1_148 = arith.constant 1 : index
    %c0_149 = arith.constant 0 : index
    %112 = vector.load %arg10[%c2_147, %c1_148, %c0_149] : memref<18x18x32xbf16, #tpu.memory_space<vmem>>, vector<16x16x32xbf16>
    %113 = vector.shape_cast %112 : vector<16x16x32xbf16> to vector<256x32xbf16>
    %c2_150 = arith.constant 2 : index
    %c1_151 = arith.constant 1 : index
    %c0_152 = arith.constant 0 : index
    %c0_153 = arith.constant 0 : index
    %114 = vector.load %arg3[%c2_150, %c1_151, %c0_152, %c0_153] : memref<3x3x32x32xbf16, #tpu.memory_space<vmem>>, vector<1x1x32x32xbf16>
    %115 = vector.shape_cast %114 : vector<1x1x32x32xbf16> to vector<32x32xbf16>
    %cst_154 = arith.constant dense<0.000000e+00> : vector<256x32xf32>
    %116 = tpu.matmul %113, %115, %cst_154 {dimension_numbers = #tpu.dot_dimension_numbers<[1], [0], [0], [1], [0, 0, 1, 1], [], []>} : vector<256x32xbf16>, vector<32x32xbf16>, vector<256x32xf32> -> vector<256x32xf32>
    %117 = arith.addf %111, %116 : vector<256x32xf32>
    %c2_155 = arith.constant 2 : index
    %c2_156 = arith.constant 2 : index
    %c0_157 = arith.constant 0 : index
    %118 = vector.load %arg10[%c2_155, %c2_156, %c0_157] : memref<18x18x32xbf16, #tpu.memory_space<vmem>>, vector<16x16x32xbf16>
    %119 = vector.shape_cast %118 : vector<16x16x32xbf16> to vector<256x32xbf16>
    %c2_158 = arith.constant 2 : index
    %c2_159 = arith.constant 2 : index
    %c0_160 = arith.constant 0 : index
    %c0_161 = arith.constant 0 : index
    %120 = vector.load %arg3[%c2_158, %c2_159, %c0_160, %c0_161] : memref<3x3x32x32xbf16, #tpu.memory_space<vmem>>, vector<1x1x32x32xbf16>
    %121 = vector.shape_cast %120 : vector<1x1x32x32xbf16> to vector<32x32xbf16>
    %cst_162 = arith.constant dense<0.000000e+00> : vector<256x32xf32>
    %122 = tpu.matmul %119, %121, %cst_162 {dimension_numbers = #tpu.dot_dimension_numbers<[1], [0], [0], [1], [0, 0, 1, 1], [], []>} : vector<256x32xbf16>, vector<32x32xbf16>, vector<256x32xf32> -> vector<256x32xf32>
    %123 = arith.addf %117, %122 : vector<256x32xf32>
    %c0_163 = arith.constant 0 : index
    %c0_164 = arith.constant 0 : index
    %124 = vector.load %arg6[%c0_163, %c0_164] : memref<1x32xf32, #tpu.memory_space<vmem>>, vector<1x32xf32>
    %125 = vector.broadcast %124 : vector<1x32xf32> to vector<256x32xf32>
    %126 = arith.mulf %123, %125 : vector<256x32xf32>
    %c0_165 = arith.constant 0 : index
    %c0_166 = arith.constant 0 : index
    %127 = vector.load %arg7[%c0_165, %c0_166] : memref<1x32xf32, #tpu.memory_space<vmem>>, vector<1x32xf32>
    %128 = vector.broadcast %127 : vector<1x32xf32> to vector<256x32xf32>
    %129 = arith.addf %126, %128 : vector<256x32xf32>
    %cst_167 = arith.constant 0.000000e+00 : f32
    %130 = vector.broadcast %cst_167 : f32 to vector<256x32xf32>
    %131 = arith.maximumf %129, %130 : vector<256x32xf32>
    %c0_168 = arith.constant 0 : index
    %c0_169 = arith.constant 0 : index
    %c0_170 = arith.constant 0 : index
    %132 = vector.load %arg8[%c0_168, %c0_169, %c0_170] : memref<1x256x32xf32, #tpu.memory_space<vmem>>, vector<1x256x32xf32>
    %133 = vector.shape_cast %132 : vector<1x256x32xf32> to vector<256x32xf32>
    %134 = vector.shape_cast %131 : vector<256x32xf32> to vector<1x256x32xf32>
    tpu.vector_store %arg8[%c0_168, %c0_169, %c0_170], %134 {strides = array<i32>} : memref<1x256x32xf32, #tpu.memory_space<vmem>>, vector<1x256x32xf32>,
    return
  }
  func.func @transform_0(%arg0: i32) -> (i32, i32, i32, i32) {
    %c0_i32 = arith.constant 0 : i32
    %c0_i32_0 = arith.constant 0 : i32
    %c0_i32_1 = arith.constant 0 : i32
    %c0_i32_2 = arith.constant 0 : i32
    return %arg0, %c0_i32, %c0_i32_0, %c0_i32_1 : i32, i32, i32, i32
  }
  func.func @transform_1(%arg0: i32) -> (i32, i32, i32, i32) {
    %c0_i32 = arith.constant 0 : i32
    %c0_i32_0 = arith.constant 0 : i32
    %c0_i32_1 = arith.constant 0 : i32
    %c0_i32_2 = arith.constant 0 : i32
    %c0_i32_3 = arith.constant 0 : i32
    return %c0_i32, %c0_i32_0, %c0_i32_1, %c0_i32_2 : i32, i32, i32, i32
  }
  func.func @transform_2(%arg0: i32) -> (i32, i32, i32, i32) {
    %c0_i32 = arith.constant 0 : i32
    %c0_i32_0 = arith.constant 0 : i32
    %c0_i32_1 = arith.constant 0 : i32
    %c0_i32_2 = arith.constant 0 : i32
    %c0_i32_3 = arith.constant 0 : i32
    return %c0_i32, %c0_i32_0, %c0_i32_1, %c0_i32_2 : i32, i32, i32, i32
  }
  func.func @transform_3(%arg0: i32) -> (i32, i32) {
    %c0_i32 = arith.constant 0 : i32
    %c0_i32_0 = arith.constant 0 : i32
    %c0_i32_1 = arith.constant 0 : i32
    return %c0_i32, %c0_i32_0 : i32, i32
  }
  func.func @transform_4(%arg0: i32) -> (i32, i32) {
    %c0_i32 = arith.constant 0 : i32
    %c0_i32_0 = arith.constant 0 : i32
    %c0_i32_1 = arith.constant 0 : i32
    return %c0_i32, %c0_i32_0 : i32, i32
  }
  func.func @transform_5(%arg0: i32) -> (i32, i32) {
    %c0_i32 = arith.constant 0 : i32
    %c0_i32_0 = arith.constant 0 : i32
    %c0_i32_1 = arith.constant 0 : i32
    return %c0_i32, %c0_i32_0 : i32, i32
  }
  func.func @transform_6(%arg0: i32) -> (i32, i32) {
    %c0_i32 = arith.constant 0 : i32
    %c0_i32_0 = arith.constant 0 : i32
    %c0_i32_1 = arith.constant 0 : i32
    return %c0_i32, %c0_i32_0 : i32, i32
  }
  func.func @transform_7(%arg0: i32) -> (i32, i32, i32) {
    %c0_i32 = arith.constant 0 : i32
    %c0_i32_0 = arith.constant 0 : i32
    %c0_i32_1 = arith.constant 0 : i32
    return %arg0, %c0_i32, %c0_i32_0 : i32, i32, i32
  }
}

</mosaic_0001>

<llo_original>
// kernel: conv_block_forward.1
$region0: #{conv_block_forward.1}
  #allocation0 [shape = 'u32[]', space=smem, size = 0x4, offset = 0x4, fixed_abs, tag = 'smem constant byte address 0x4 - core index']
  #allocation1 [shape = 'u32[72,128]{1,0:T(1,128)}', space=vmem, size = 0x9000, scoped, tag = 'internal scratch']
  #allocation2 [shape = 'bf16[18,18,4]{2,1,0:T(8,128)(2,1)}', space=vmem, size = 0x1b000, scoped, tag = 'scratch operand']
  #allocation3 [shape = 'bf16[18,18,32]{2,1,0:T(8,128)(2,1)}', space=vmem, size = 0x1b000, scoped, tag = 'scratch operand']
  %s0 = inlined_call_operand.vmem [shape: bf16[2,16,16,4], index: 0, kind: input, shape index: {}]
  %s1 = inlined_call_operand.vmem [shape: bf16[3,3,4,32], index: 1, kind: input, shape index: {}]
  %s2 = inlined_call_operand.vmem [shape: bf16[3,3,32,32], index: 2, kind: input, shape index: {}]
  %s3 = inlined_call_operand.vmem [shape: f32[1,32], index: 3, kind: input, shape index: {}]
  %s4 = inlined_call_operand.vmem [shape: f32[1,32], index: 4, kind: input, shape index: {}]
  %s5 = inlined_call_operand.vmem [shape: f32[1,32], index: 5, kind: input, shape index: {}]
  %s6 = inlined_call_operand.vmem [shape: f32[1,32], index: 6, kind: input, shape index: {}]
  %s7 = inlined_call_operand.hbm [shape: f32[2,256,32], index: 7, kind: output, shape index: {}]
  %s8 = sld [smem:[#allocation0]]
  $region61: #{conv_block_forward.1} parent=0
    _
  %s10 = ssub.s32 1, %s8
  %s11 = scalar_select 0, %s10, %s8
  $region1: #{conv_block_forward.1} parent=0
    #allocation4 [shape = 'u8[262144]{0}', space=vmem, size = 0x40000, scoped, tag = 'output window, operand 0']
    #allocation5 [shape = 's32[2]{0}', space=sflag, size = 0x8, scoped, tag = 'scoped memory for conv_block_forward.1']
    %12 = vsyncpa [#allocation5], 0
    %s13 = scalar_lea.sflag [#allocation5], 1
    %14 = vsyncpa %s13, 0
    loop: start=0, step=1, limit=4
    $region2: #{conv_block_forward.1} parent=1 // loop_pre_header
      _
    $region3: #{conv_block_forward.1} parent=1 // loop_header
      %s16 = sphi 0, %s20
      %p17 = scmp.ge.s32.totalorder %s16, 4
      %s26 = sphi 0, %s28
      %s29 = sphi 0, %s26
      %s30 = sphi 0, %s29
      %s46 = sphi 0, %s30
      %s50 = sphi 0, %s50
      %s52 = sphi 0, %s50
      %s53 = sphi 0, %s52
      %s67 = sphi 0, %s53
      %s71 = sphi 0, %s71
      %s73 = sphi 0, %s71
      %s74 = sphi 0, %s73
      %s88 = sphi 0, %s74
      %s92 = sphi 0, %s92
      %s94 = sphi 0, %s92
      %s95 = sphi 0, %s94
      %s109 = sphi 0, %s95
      %s113 = sphi 0, %s113
      %s115 = sphi 0, %s113
      %s116 = sphi 0, %s115
      %s130 = sphi 0, %s116
      %s134 = sphi 0, %s134
      %s136 = sphi 0, %s134
      %s137 = sphi 0, %s136
      %s151 = sphi 0, %s137
      %s155 = sphi 0, %s155
      %s157 = sphi 0, %s155
      %s158 = sphi 0, %s157
      %s172 = sphi 0, %s158
      %s178 = sphi 0, %s180
      %s181 = sphi 0, %s178
      %s182 = sphi 0, %s181
      %s198 = sphi 0, %s182
    $region4: #{conv_block_forward.1} parent=1 // loop_header_branch
      %19 = sbr.rel (%p17) target = $region8
    $region5: #{conv_block_forward.1} parent=1 // loop_body
      %s21 = ssub.s32 %s16, 1
      %s22 = ssub.s32 %s16, 2
      %s23 = sadd.s32 %s16, 1
      %s24 = ssub.s32 %s16, %s23
      %p25 = scmp.eq.s32.totalorder %s24, 0
      %s27 = sadd.s32 %s26, 1
      %s28 = scalar_select %p25, %s26, %s27
      %p31 = pneg %p25
      %p32 = scmp.eq.s32.totalorder %s16, 1
      %p33 = por %p31, %p32
      %p34 = scmp.ne.s32.totalorder %s26, %s29
      %p35 = scmp.eq.s32.totalorder %s16, 0
      %p36 = por %p34, %p35
      %p37 = scmp.ne.s32.totalorder %s26, %s29
      %p38 = scmp.eq.s32.totalorder %s21, 1
      %p39 = por %p37, %p38
      %p40 = scmp.ne.s32.totalorder %s29, %s30
      %p41 = scmp.eq.s32.totalorder %s21, 0
      %p42 = por %p40, %p41
      %p43 = scmp.ne.s32.totalorder %s29, %s30
      %p44 = scmp.eq.s32.totalorder %s22, 1
      %p45 = por %p43, %p44
      %p47 = scmp.ne.s32.totalorder %s30, %s46
      %p48 = scmp.eq.s32.totalorder %s22, 0
      %p49 = por %p47, %p48
      %s51 = sadd.s32 %s50, 1
      %p54 = scmp.eq.s32.totalorder %s16, 1
      %p55 = scmp.ne.s32.totalorder %s50, %s52
      %p56 = scmp.eq.s32.totalorder %s16, 0
      %p57 = por %p55, %p56
      %p58 = scmp.ne.s32.totalorder %s50, %s52
      %p59 = scmp.eq.s32.totalorder %s21, 1
      %p60 = por %p58, %p59
      %p61 = scmp.ne.s32.totalorder %s52, %s53
      %p62 = scmp.eq.s32.totalorder %s21, 0
      %p63 = por %p61, %p62
      %p64 = scmp.ne.s32.totalorder %s52, %s53
      %p65 = scmp.eq.s32.totalorder %s22, 1
      %p66 = por %p64, %p65
      %p68 = scmp.ne.s32.totalorder %s53, %s67
      %p69 = scmp.eq.s32.totalorder %s22, 0
      %p70 = por %p68, %p69
      %s72 = sadd.s32 %s71, 1
      %p75 = scmp.eq.s32.totalorder %s16, 1
      %p76 = scmp.ne.s32.totalorder %s71, %s73
      %p77 = scmp.eq.s32.totalorder %s16, 0
      %p78 = por %p76, %p77
      %p79 = scmp.ne.s32.totalorder %s71, %s73
      %p80 = scmp.eq.s32.totalorder %s21, 1
      %p81 = por %p79, %p80
      %p82 = scmp.ne.s32.totalorder %s73, %s74
      %p83 = scmp.eq.s32.totalorder %s21, 0
      %p84 = por %p82, %p83
      %p85 = scmp.ne.s32.totalorder %s73, %s74
      %p86 = scmp.eq.s32.totalorder %s22, 1
      %p87 = por %p85, %p86
      %p89 = scmp.ne.s32.totalorder %s74, %s88
      %p90 = scmp.eq.s32.totalorder %s22, 0
      %p91 = por %p89, %p90
      %s93 = sadd.s32 %s92, 1
      %p96 = scmp.eq.s32.totalorder %s16, 1
      %p97 = scmp.ne.s32.totalorder %s92, %s94
      %p98 = scmp.eq.s32.totalorder %s16, 0
      %p99 = por %p97, %p98
      %p100 = scmp.ne.s32.totalorder %s92, %s94
      %p101 = scmp.eq.s32.totalorder %s21, 1
      %p102 = por %p100, %p101
      %p103 = scmp.ne.s32.totalorder %s94, %s95
      %p104 = scmp.eq.s32.totalorder %s21, 0
      %p105 = por %p103, %p104
      %p106 = scmp.ne.s32.totalorder %s94, %s95
      %p107 = scmp.eq.s32.totalorder %s22, 1
      %p108 = por %p106, %p107
      %p110 = scmp.ne.s32.totalorder %s95, %s109
      %p111 = scmp.eq.s32.totalorder %s22, 0
      %p112 = por %p110, %p111
      %s114 = sadd.s32 %s113, 1
      %p117 = scmp.eq.s32.totalorder %s16, 1
      %p118 = scmp.ne.s32.totalorder %s113, %s115
      %p119 = scmp.eq.s32.totalorder %s16, 0
      %p120 = por %p118, %p119
      %p121 = scmp.ne.s32.totalorder %s113, %s115
      %p122 = scmp.eq.s32.totalorder %s21, 1
      %p123 = por %p121, %p122
      %p124 = scmp.ne.s32.totalorder %s115, %s116
      %p125 = scmp.eq.s32.totalorder %s21, 0
      %p126 = por %p124, %p125
      %p127 = scmp.ne.s32.totalorder %s115, %s116
      %p128 = scmp.eq.s32.totalorder %s22, 1
      %p129 = por %p127, %p128
      %p131 = scmp.ne.s32.totalorder %s116, %s130
      %p132 = scmp.eq.s32.totalorder %s22, 0
      %p133 = por %p131, %p132
      %s135 = sadd.s32 %s134, 1
      %p138 = scmp.eq.s32.totalorder %s16, 1
      %p139 = scmp.ne.s32.totalorder %s134, %s136
      %p140 = scmp.eq.s32.totalorder %s16, 0
      %p141 = por %p139, %p140
      %p142 = scmp.ne.s32.totalorder %s134, %s136
      %p143 = scmp.eq.s32.totalorder %s21, 1
      %p144 = por %p142, %p143
      %p145 = scmp.ne.s32.totalorder %s136, %s137
      %p146 = scmp.eq.s32.totalorder %s21, 0
      %p147 = por %p145, %p146
      %p148 = scmp.ne.s32.totalorder %s136, %s137
      %p149 = scmp.eq.s32.totalorder %s22, 1
      %p150 = por %p148, %p149
      %p152 = scmp.ne.s32.totalorder %s137, %s151
      %p153 = scmp.eq.s32.totalorder %s22, 0
      %p154 = por %p152, %p153
      %s156 = sadd.s32 %s155, 1
      %p159 = scmp.eq.s32.totalorder %s16, 1
      %p160 = scmp.ne.s32.totalorder %s155, %s157
      %p161 = scmp.eq.s32.totalorder %s16, 0
      %p162 = por %p160, %p161
      %p163 = scmp.ne.s32.totalorder %s155, %s157
      %p164 = scmp.eq.s32.totalorder %s21, 1
      %p165 = por %p163, %p164
      %p166 = scmp.ne.s32.totalorder %s157, %s158
      %p167 = scmp.eq.s32.totalorder %s21, 0
      %p168 = por %p166, %p167
      %p169 = scmp.ne.s32.totalorder %s157, %s158
      %p170 = scmp.eq.s32.totalorder %s22, 1
      %p171 = por %p169, %p170
      %p173 = scmp.ne.s32.totalorder %s158, %s172
      %p174 = scmp.eq.s32.totalorder %s22, 0
      %p175 = por %p173, %p174
      %s176 = ssub.s32 %s16, %s23
      %p177 = scmp.eq.s32.totalorder %s176, 0
      %s179 = sadd.s32 %s178, 1
      %s180 = scalar_select %p177, %s178, %s179
      %p183 = pneg %p177
      %p184 = scmp.eq.s32.totalorder %s16, 1
      %p185 = por %p183, %p184
      %p186 = scmp.ne.s32.totalorder %s178, %s181
      %p187 = scmp.eq.s32.totalorder %s16, 0
      %p188 = por %p186, %p187
      %p189 = scmp.ne.s32.totalorder %s178, %s181
      %p190 = scmp.eq.s32.totalorder %s21, 1
      %p191 = por %p189, %p190
      %p192 = scmp.ne.s32.totalorder %s181, %s182
      %p193 = scmp.eq.s32.totalorder %s21, 0
      %p194 = por %p192, %p193
      %p195 = scmp.ne.s32.totalorder %s181, %s182
      %p196 = scmp.eq.s32.totalorder %s22, 1
      %p197 = por %p195, %p196
      %p199 = scmp.ne.s32.totalorder %s182, %s198
      %p200 = scmp.eq.s32.totalorder %s22, 0
      %p201 = por %p199, %p200
      %p202 = scmp.le.s32.totalorder 1, %s16
      %p203 = scmp.lt.s32.totalorder %s16, 3
      %p204 = pnand %p202, %p203
      %p205 = pneg %p204
      // Predicated region
      $region9: #{conv_block_forward.1} parent=5 // pred_check
        _
      $region10: #{conv_block_forward.1} parent=5 // pred_check_branch
        %207 = sbr.rel (%p204) target = $region12
      $region11: #{conv_block_forward.1} parent=5 // pred_region
        %s208 = ssub.s32 %s16, 1
        // Predicated region
        $region13: #{conv_block_forward.1} parent=11 // pred_check
          %p209 = pneg %p63
        $region14: #{conv_block_forward.1} parent=11 // pred_check_branch
          %211 = sbr.rel (%p209) target = $region16
        $region15: #{conv_block_forward.1} parent=11 // pred_region
          _
        $region16: #{conv_block_forward.1} parent=11 // pred_fallthru
          _
        // Predicated region
        $region17: #{conv_block_forward.1} parent=11 // pred_check
          %p212 = pneg %p84
        $region18: #{conv_block_forward.1} parent=11 // pred_check_branch
          %214 = sbr.rel (%p212) target = $region20
        $region19: #{conv_block_forward.1} parent=11 // pred_region
          _
        $region20: #{conv_block_forward.1} parent=11 // pred_fallthru
          _
        // Predicated region
        $region21: #{conv_block_forward.1} parent=11 // pred_check
          %p215 = pneg %p105
        $region22: #{conv_block_forward.1} parent=11 // pred_check_branch
          %217 = sbr.rel (%p215) target = $region24
        $region23: #{conv_block_forward.1} parent=11 // pred_region
          _
        $region24: #{conv_block_forward.1} parent=11 // pred_fallthru
          _
        // Predicated region
        $region25: #{conv_block_forward.1} parent=11 // pred_check
          %p218 = pneg %p126
        $region26: #{conv_block_forward.1} parent=11 // pred_check_branch
          %220 = sbr.rel (%p218) target = $region28
        $region27: #{conv_block_forward.1} parent=11 // pred_region
          _
        $region28: #{conv_block_forward.1} parent=11 // pred_fallthru
          _
        // Predicated region
        $region29: #{conv_block_forward.1} parent=11 // pred_check
          %p221 = pneg %p147
        $region30: #{conv_block_forward.1} parent=11 // pred_check_branch
          %223 = sbr.rel (%p221) target = $region32
        $region31: #{conv_block_forward.1} parent=11 // pred_region
          _
        $region32: #{conv_block_forward.1} parent=11 // pred_fallthru
          _
        // Predicated region
        $region33: #{conv_block_forward.1} parent=11 // pred_check
          %p224 = pneg %p168
        $region34: #{conv_block_forward.1} parent=11 // pred_check_branch
          %226 = sbr.rel (%p224) target = $region36
        $region35: #{conv_block_forward.1} parent=11 // pred_region
          _
        $region36: #{conv_block_forward.1} parent=11 // pred_fallthru
          _
      $region12: #{conv_block_forward.1} parent=5 // pred_fallthru
        _
      %p227 = scmp.lt.s32.totalorder %s16, 2
      // Predicated region
      $region37: #{conv_block_forward.1} parent=5 // pred_check
        %p228 = pneg %p227
      $region38: #{conv_block_forward.1} parent=5 // pred_check_branch
        %230 = sbr.rel (%p228) target = $region40
      $region39: #{conv_block_forward.1} parent=5 // pred_region
        // Predicated region
        $region41: #{conv_block_forward.1} parent=39 // pred_check
          %p231 = pneg %p36
        $region42: #{conv_block_forward.1} parent=39 // pred_check_branch
          %233 = sbr.rel (%p231) target = $region44
        $region43: #{conv_block_forward.1} parent=39 // pred_region
          %p234 = scmp.lt.s32.totalorder %s16, 1
          %s235 = scalar_select %p234, %s16, 1
          %s236 = smul.addr %s235, 32
          %s237 = smul.addr %s236, 4
          %s238 = scalar_lea.vmem %s0, %s237
        $region44: #{conv_block_forward.1} parent=39 // pred_fallthru
          _
      $region40: #{conv_block_forward.1} parent=5 // pred_fallthru
        _
      %p239 = scmp.le.s32.totalorder 1, %s16
      %p240 = scmp.lt.s32.totalorder %s16, 3
      %p241 = pnand %p239, %p240
      %p242 = pneg %p241
      // Predicated region
      $region45: #{conv_block_forward.1} parent=5 // pred_check
        _
      $region46: #{conv_block_forward.1} parent=5 // pred_check_branch
        %244 = sbr.rel (%p241) target = $region48
      $region47: #{conv_block_forward.1} parent=5 // pred_region
        %s245 = ssub.s32 %s16, 1
        %p246 = scmp.lt.s32.totalorder %s21, 1
        %s247 = scalar_select %p246, %s21, 1
        %s248 = smul.addr %s247, 32
        %s249 = smul.addr %s248, 4
        %s250 = scalar_lea.vmem %s0, %s249
        %p251 = pneg %p42
        %p252 = pneg %p39
        %p253 = pneg %p63
        %p254 = pneg %p60
        %p255 = pneg %p84
        %p256 = pneg %p81
        %p257 = pneg %p105
        %p258 = pneg %p102
        %p259 = pneg %p126
        %p260 = pneg %p123
        %p261 = pneg %p147
        %p262 = pneg %p144
        %p263 = pneg %p168
        %p264 = pneg %p165
        %p265 = pneg %p194
        %p266 = pneg %p191
        %s267 = sand.u32 %s181, 1
        %s268 = scalar_lea.sflag [#allocation5], %s267
        %s269 = sand.u32 %s181, 1
        %s270 = smul.addr %s269, 256
        %s271 = scalar_lea.vmem [#allocation4], %s270
        %p272 = scmp.lt.s32.totalorder %s21, 1
        %s273 = scalar_select %p272, %s21, 1
        %s274 = smul.addr %s273, 32
        %s275 = smul.addr %s274, 4
        %s276 = scalar_lea.vmem %s0, %s275
        %vm278 = vcmask 27648
        %279 = vst.msk [vmem:[#allocation2] sm:$0xf] %vm278, 0
        %280 = vst.msk [vmem:[#allocation2 + $0x4] sm:$0xf] %vm278, 0
        %vm281 = vcmask 24576
        %282 = vst.msk [vmem:[#allocation2 + $0x8] sm:$0x1] %vm281, 0
        %283 = vst.msk [vmem:[#allocation2 + $0xc] sm:$0xf] %vm278, 0
        %284 = vst.msk [vmem:[#allocation2 + $0x10] sm:$0xf] %vm278, 0
        %285 = vst.msk [vmem:[#allocation2 + $0x14] sm:$0x1] %vm281, 0
        %286 = vst.msk [vmem:[#allocation2 + $0x18] sm:$0xf] %vm278, 0
        %287 = vst.msk [vmem:[#allocation2 + $0x1c] sm:$0xf] %vm278, 0
        %288 = vst.msk [vmem:[#allocation2 + $0x20] sm:$0x1] %vm281, 0
        %289 = vst.msk [vmem:[#allocation2 + $0x24] sm:$0xf] %vm278, 0
        %290 = vst.msk [vmem:[#allocation2 + $0x28] sm:$0xf] %vm278, 0
        %291 = vst.msk [vmem:[#allocation2 + $0x2c] sm:$0x1] %vm281, 0
        %292 = vst.msk [vmem:[#allocation2 + $0x30] sm:$0xf] %vm278, 0
        %293 = vst.msk [vmem:[#allocation2 + $0x34] sm:$0xf] %vm278, 0
        %294 = vst.msk [vmem:[#allocation2 + $0x38] sm:$0x1] %vm281, 0
        %295 = vst.msk [vmem:[#allocation2 + $0x3c] sm:$0xf] %vm278, 0
        %296 = vst.msk [vmem:[#allocation2 + $0x40] sm:$0xf] %vm278, 0
        %297 = vst.msk [vmem:[#allocation2 + $0x44] sm:$0x1] %vm281, 0
        %298 = vst.msk [vmem:[#allocation2 + $0x48] sm:$0xf] %vm278, 0
        %299 = vst.msk [vmem:[#allocation2 + $0x4c] sm:$0xf] %vm278, 0
        %300 = vst.msk [vmem:[#allocation2 + $0x50] sm:$0x1] %vm281, 0
        %301 = vst.msk [vmem:[#allocation2 + $0x54] sm:$0xf] %vm278, 0
        %302 = vst.msk [vmem:[#allocation2 + $0x58] sm:$0xf] %vm278, 0
        %303 = vst.msk [vmem:[#allocation2 + $0x5c] sm:$0x1] %vm281, 0
        %304 = vst.msk [vmem:[#allocation2 + $0x60] sm:$0xf] %vm278, 0
        %305 = vst.msk [vmem:[#allocation2 + $0x64] sm:$0xf] %vm278, 0
        %306 = vst.msk [vmem:[#allocation2 + $0x68] sm:$0x1] %vm281, 0
        %307 = vst.msk [vmem:[#allocation2 + $0x6c] sm:$0xf] %vm278, 0
        %308 = vst.msk [vmem:[#allocation2 + $0x70] sm:$0xf] %vm278, 0
        %309 = vst.msk [vmem:[#allocation2 + $0x74] sm:$0x1] %vm281, 0
        %310 = vst.msk [vmem:[#allocation2 + $0x78] sm:$0xf] %vm278, 0
        %311 = vst.msk [vmem:[#allocation2 + $0x7c] sm:$0xf] %vm278, 0
        %312 = vst.msk [vmem:[#allocation2 + $0x80] sm:$0x1] %vm281, 0
        %313 = vst.msk [vmem:[#allocation2 + $0x84] sm:$0xf] %vm278, 0
        %314 = vst.msk [vmem:[#allocation2 + $0x88] sm:$0xf] %vm278, 0
        %315 = vst.msk [vmem:[#allocation2 + $0x8c] sm:$0x1] %vm281, 0
        %316 = vst.msk [vmem:[#allocation2 + $0x90] sm:$0xf] %vm278, 0
        %317 = vst.msk [vmem:[#allocation2 + $0x94] sm:$0xf] %vm278, 0
        %318 = vst.msk [vmem:[#allocation2 + $0x98] sm:$0x1] %vm281, 0
        %319 = vst.msk [vmem:[#allocation2 + $0x9c] sm:$0xf] %vm278, 0
        %320 = vst.msk [vmem:[#allocation2 + $0xa0] sm:$0xf] %vm278, 0
        %321 = vst.msk [vmem:[#allocation2 + $0xa4] sm:$0x1] %vm281, 0
        %322 = vst.msk [vmem:[#allocation2 + $0xa8] sm:$0xf] %vm278, 0
        %323 = vst.msk [vmem:[#allocation2 + $0xac] sm:$0xf] %vm278, 0
        %324 = vst.msk [vmem:[#allocation2 + $0xb0] sm:$0x1] %vm281, 0
        %325 = vst.msk [vmem:[#allocation2 + $0xb4] sm:$0xf] %vm278, 0
        %326 = vst.msk [vmem:[#allocation2 + $0xb8] sm:$0xf] %vm278, 0
        %327 = vst.msk [vmem:[#allocation2 + $0xbc] sm:$0x1] %vm281, 0
        %328 = vst.msk [vmem:[#allocation2 + $0xc0] sm:$0xf] %vm278, 0
        %329 = vst.msk [vmem:[#allocation2 + $0xc4] sm:$0xf] %vm278, 0
        %330 = vst.msk [vmem:[#allocation2 + $0xc8] sm:$0x1] %vm281, 0
        %331 = vst.msk [vmem:[#allocation2 + $0xcc] sm:$0xf] %vm278, 0
        %332 = vst.msk [vmem:[#allocation2 + $0xd0] sm:$0xf] %vm278, 0
        %333 = vst.msk [vmem:[#allocation2 + $0xd4] sm:$0x1] %vm281, 0
        %v334 = vld [vmem:[%s276] sm:$0xf]
        %v335 = vld [vmem:[%s276 + $0x4] sm:$0xf]
        %v336 = vld [vmem:[%s276 + $0x8] sm:$0xf]
        %v337 = vld [vmem:[%s276 + $0xc] sm:$0xf]
        %v338 = vld [vmem:[%s276 + $0x10] sm:$0xf]
        %v339 = vld [vmem:[%s276 + $0x14] sm:$0xf]
        %v340 = vld [vmem:[%s276 + $0x18] sm:$0xf]
        %v341 = vld [vmem:[%s276 + $0x1c] sm:$0xf]
        %v342 = vld [vmem:[%s276 + $0x20] sm:$0xf]
        %v343 = vld [vmem:[%s276 + $0x24] sm:$0xf]
        %v344 = vld [vmem:[%s276 + $0x28] sm:$0xf]
        %v345 = vld [vmem:[%s276 + $0x2c] sm:$0xf]
        %v346 = vld [vmem:[%s276 + $0x30] sm:$0xf]
        %v347 = vld [vmem:[%s276 + $0x34] sm:$0xf]
        %v348 = vld [vmem:[%s276 + $0x38] sm:$0xf]
        %v349 = vld [vmem:[%s276 + $0x3c] sm:$0xf]
        %v350 = vld [vmem:[%s276 + $0x40] sm:$0xf]
        %v351 = vld [vmem:[%s276 + $0x44] sm:$0xf]
        %v352 = vld [vmem:[%s276 + $0x48] sm:$0xf]
        %v353 = vld [vmem:[%s276 + $0x4c] sm:$0xf]
        %v354 = vld [vmem:[%s276 + $0x50] sm:$0xf]
        %v355 = vld [vmem:[%s276 + $0x54] sm:$0xf]
        %v356 = vld [vmem:[%s276 + $0x58] sm:$0xf]
        %v357 = vld [vmem:[%s276 + $0x5c] sm:$0xf]
        %v358 = vld [vmem:[%s276 + $0x60] sm:$0xf]
        %v359 = vld [vmem:[%s276 + $0x64] sm:$0xf]
        %v360 = vld [vmem:[%s276 + $0x68] sm:$0xf]
        %v361 = vld [vmem:[%s276 + $0x6c] sm:$0xf]
        %v362 = vld [vmem:[%s276 + $0x70] sm:$0xf]
        %v363 = vld [vmem:[%s276 + $0x74] sm:$0xf]
        %v364 = vld [vmem:[%s276 + $0x78] sm:$0xf]
        %v365 = vld [vmem:[%s276 + $0x7c] sm:$0xf]
        %vm366 = vsmask.f32 256
        %vm367 = vsmask.f32 4368
        %vm368 = vmor %vm366, %vm367
        %v370 = vshrl.u32 %v334, 16
        %v372 = vrot.slane %v370, 7
        %v373 = vshll.u32 %v334, 16
        %v375 = vor.u32 %v372, %v373
        %v376 = vrot.slane %v372, 4
        %v378 = vshrl.u32 %v335, 16
        %v380 = vrot.slane %v378, 7
        %v381 = vshll.u32 %v335, 16
        %v383 = vor.u32 %v380, %v381
        %v384 = vsel %vm368, %v376, %v383
        %v385 = vrot.slane %v380, 4
        %v387 = vshrl.u32 %v336, 16
        %v389 = vrot.slane %v387, 7
        %v390 = vshll.u32 %v336, 16
        %v392 = vor.u32 %v389, %v390
        %v393 = vrot.slane %v389, 4
        %v395 = vshrl.u32 %v337, 16
        %v397 = vrot.slane %v395, 7
        %v398 = vshll.u32 %v337, 16
        %v400 = vor.u32 %v397, %v398
        %v401 = vsel %vm368, %v393, %v400
        %v402 = vrot.slane %v397, 4
        %v404 = vshrl.u32 %v338, 16
        %v406 = vrot.slane %v404, 7
        %v407 = vshll.u32 %v338, 16
        %v409 = vor.u32 %v406, %v407
        %v410 = vrot.slane %v406, 4
        %v412 = vshrl.u32 %v339, 16
        %v414 = vrot.slane %v412, 7
        %v415 = vshll.u32 %v339, 16
        %v417 = vor.u32 %v414, %v415
        %v418 = vsel %vm368, %v410, %v417
        %v419 = vrot.slane %v414, 4
        %v421 = vshrl.u32 %v340, 16
        %v423 = vrot.slane %v421, 7
        %v424 = vshll.u32 %v340, 16
        %v426 = vor.u32 %v423, %v424
        %v427 = vrot.slane %v423, 4
        %v429 = vshrl.u32 %v341, 16
        %v431 = vrot.slane %v429, 7
        %v432 = vshll.u32 %v341, 16
        %v434 = vor.u32 %v431, %v432
        %v435 = vsel %vm368, %v427, %v434
        %v436 = vrot.slane %v431, 4
        %v438 = vshrl.u32 %v342, 16
        %v440 = vrot.slane %v438, 7
        %v441 = vshll.u32 %v342, 16
        %v443 = vor.u32 %v440, %v441
        %v444 = vrot.slane %v440, 4
        %v446 = vshrl.u32 %v343, 16
        %v448 = vrot.slane %v446, 7
        %v449 = vshll.u32 %v343, 16
        %v451 = vor.u32 %v448, %v449
        %v452 = vsel %vm368, %v444, %v451
        %v453 = vrot.slane %v448, 4
        %v455 = vshrl.u32 %v344, 16
        %v457 = vrot.slane %v455, 7
        %v458 = vshll.u32 %v344, 16
        %v460 = vor.u32 %v457, %v458
        %v461 = vrot.slane %v457, 4
        %v463 = vshrl.u32 %v345, 16
        %v465 = vrot.slane %v463, 7
        %v466 = vshll.u32 %v345, 16
        %v468 = vor.u32 %v465, %v466
        %v469 = vsel %vm368, %v461, %v468
        %v470 = vrot.slane %v465, 4
        %v472 = vshrl.u32 %v346, 16
        %v474 = vrot.slane %v472, 7
        %v475 = vshll.u32 %v346, 16
        %v477 = vor.u32 %v474, %v475
        %v478 = vrot.slane %v474, 4
        %v480 = vshrl.u32 %v347, 16
        %v482 = vrot.slane %v480, 7
        %v483 = vshll.u32 %v347, 16
        %v485 = vor.u32 %v482, %v483
        %v486 = vsel %vm368, %v478, %v485
        %v487 = vrot.slane %v482, 4
        %v489 = vshrl.u32 %v348, 16
        %v491 = vrot.slane %v489, 7
        %v492 = vshll.u32 %v348, 16
        %v494 = vor.u32 %v491, %v492
        %v495 = vrot.slane %v491, 4
        %v497 = vshrl.u32 %v349, 16
        %v499 = vrot.slane %v497, 7
        %v500 = vshll.u32 %v349, 16
        %v502 = vor.u32 %v499, %v500
        %v503 = vsel %vm368, %v495, %v502
        %v504 = vrot.slane %v499, 4
        %v506 = vshrl.u32 %v350, 16
        %v508 = vrot.slane %v506, 7
        %v509 = vshll.u32 %v350, 16
        %v511 = vor.u32 %v508, %v509
        %v512 = vrot.slane %v508, 4
        %v514 = vshrl.u32 %v351, 16
        %v516 = vrot.slane %v514, 7
        %v517 = vshll.u32 %v351, 16
        %v519 = vor.u32 %v516, %v517
        %v520 = vsel %vm368, %v512, %v519
        %v521 = vrot.slane %v516, 4
        %v523 = vshrl.u32 %v352, 16
        %v525 = vrot.slane %v523, 7
        %v526 = vshll.u32 %v352, 16
        %v528 = vor.u32 %v525, %v526
        %v529 = vrot.slane %v525, 4
        %v531 = vshrl.u32 %v353, 16
        %v533 = vrot.slane %v531, 7
        %v534 = vshll.u32 %v353, 16
        %v536 = vor.u32 %v533, %v534
        %v537 = vsel %vm368, %v529, %v536
        %v538 = vrot.slane %v533, 4
        %v540 = vshrl.u32 %v354, 16
        %v542 = vrot.slane %v540, 7
        %v543 = vshll.u32 %v354, 16
        %v545 = vor.u32 %v542, %v543
        %v546 = vrot.slane %v542, 4
        %v548 = vshrl.u32 %v355, 16
        %v550 = vrot.slane %v548, 7
        %v551 = vshll.u32 %v355, 16
        %v553 = vor.u32 %v550, %v551
        %v554 = vsel %vm368, %v546, %v553
        %v555 = vrot.slane %v550, 4
        %v557 = vshrl.u32 %v356, 16
        %v559 = vrot.slane %v557, 7
        %v560 = vshll.u32 %v356, 16
        %v562 = vor.u32 %v559, %v560
        %v563 = vrot.slane %v559, 4
        %v565 = vshrl.u32 %v357, 16
        %v567 = vrot.slane %v565, 7
        %v568 = vshll.u32 %v357, 16
        %v570 = vor.u32 %v567, %v568
        %v571 = vsel %vm368, %v563, %v570
        %v572 = vrot.slane %v567, 4
        %v574 = vshrl.u32 %v358, 16
        %v576 = vrot.slane %v574, 7
        %v577 = vshll.u32 %v358, 16
        %v579 = vor.u32 %v576, %v577
        %v580 = vrot.slane %v576, 4
        %v582 = vshrl.u32 %v359, 16
        %v584 = vrot.slane %v582, 7
        %v585 = vshll.u32 %v359, 16
        %v587 = vor.u32 %v584, %v585
        %v588 = vsel %vm368, %v580, %v587
        %v589 = vrot.slane %v584, 4
        %v591 = vshrl.u32 %v360, 16
        %v593 = vrot.slane %v591, 7
        %v594 = vshll.u32 %v360, 16
        %v596 = vor.u32 %v593, %v594
        %v597 = vrot.slane %v593, 4
        %v599 = vshrl.u32 %v361, 16
        %v601 = vrot.slane %v599, 7
        %v602 = vshll.u32 %v361, 16
        %v604 = vor.u32 %v601, %v602
        %v605 = vsel %vm368, %v597, %v604
        %v606 = vrot.slane %v601, 4
        %v608 = vshrl.u32 %v362, 16
        %v610 = vrot.slane %v608, 7
        %v611 = vshll.u32 %v362, 16
        %v613 = vor.u32 %v610, %v611
        %v614 = vrot.slane %v610, 4
        %v616 = vshrl.u32 %v363, 16
        %v618 = vrot.slane %v616, 7
        %v619 = vshll.u32 %v363, 16
        %v621 = vor.u32 %v618, %v619
        %v622 = vsel %vm368, %v614, %v621
        %v623 = vrot.slane %v618, 4
        %v625 = vshrl.u32 %v364, 16
        %v627 = vrot.slane %v625, 7
        %v628 = vshll.u32 %v364, 16
        %v630 = vor.u32 %v627, %v628
        %v631 = vrot.slane %v627, 4
        %v633 = vshrl.u32 %v365, 16
        %v635 = vrot.slane %v633, 7
        %v636 = vshll.u32 %v365, 16
        %v638 = vor.u32 %v635, %v636
        %v639 = vsel %vm368, %v631, %v638
        %v640 = vrot.slane %v635, 4
        %s689 = scalar_lea.vmem [#allocation2], 12
        %vm690 = vcmask 27648
        %vm691 = vsmask.f32 7938
        %vm692 = vmand %vm690, %vm691
        %v693 = vld [vmem:[%s689] sm:$0xf]
        %v694 = vsel %vm692, %v375, %v693
        %695 = vst [vmem:[%s689] sm:$0xf] %v694
        %696 = vst.msk [vmem:[%s689 + $0x4] sm:$0xf] %vm278, %v384
        %vm697 = vcmask 24576
        %vm698 = vmand %vm697, %vm366
        %v699 = vld [vmem:[%s689 + $0x8] sm:$0x1]
        %v700 = vsel %vm698, %v385, %v699
        %701 = vst [vmem:[%s689 + $0x8] sm:$0x1] %v700
        %v702 = vld [vmem:[%s689 + $0xc] sm:$0xf]
        %v703 = vsel %vm692, %v392, %v702
        %704 = vst [vmem:[%s689 + $0xc] sm:$0xf] %v703
        %705 = vst.msk [vmem:[%s689 + $0x10] sm:$0xf] %vm278, %v401
        %v706 = vld [vmem:[%s689 + $0x14] sm:$0x1]
        %v707 = vsel %vm698, %v402, %v706
        %708 = vst [vmem:[%s689 + $0x14] sm:$0x1] %v707
        %v709 = vld [vmem:[%s689 + $0x18] sm:$0xf]
        %v710 = vsel %vm692, %v409, %v709
        %711 = vst [vmem:[%s689 + $0x18] sm:$0xf] %v710
        %712 = vst.msk [vmem:[%s689 + $0x1c] sm:$0xf] %vm278, %v418
        %v713 = vld [vmem:[%s689 + $0x20] sm:$0x1]
        %v714 = vsel %vm698, %v419, %v713
        %715 = vst [vmem:[%s689 + $0x20] sm:$0x1] %v714
        %v716 = vld [vmem:[%s689 + $0x24] sm:$0xf]
        %v717 = vsel %vm692, %v426, %v716
        %718 = vst [vmem:[%s689 + $0x24] sm:$0xf] %v717
        %719 = vst.msk [vmem:[%s689 + $0x28] sm:$0xf] %vm278, %v435
        %v720 = vld [vmem:[%s689 + $0x2c] sm:$0x1]
        %v721 = vsel %vm698, %v436, %v720
        %722 = vst [vmem:[%s689 + $0x2c] sm:$0x1] %v721
        %v723 = vld [vmem:[%s689 + $0x30] sm:$0xf]
        %v724 = vsel %vm692, %v443, %v723
        %725 = vst [vmem:[%s689 + $0x30] sm:$0xf] %v724
        %726 = vst.msk [vmem:[%s689 + $0x34] sm:$0xf] %vm278, %v452
        %v727 = vld [vmem:[%s689 + $0x38] sm:$0x1]
        %v728 = vsel %vm698, %v453, %v727
        %729 = vst [vmem:[%s689 + $0x38] sm:$0x1] %v728
        %v730 = vld [vmem:[%s689 + $0x3c] sm:$0xf]
        %v731 = vsel %vm692, %v460, %v730
        %732 = vst [vmem:[%s689 + $0x3c] sm:$0xf] %v731
        %733 = vst.msk [vmem:[%s689 + $0x40] sm:$0xf] %vm278, %v469
        %v734 = vld [vmem:[%s689 + $0x44] sm:$0x1]
        %v735 = vsel %vm698, %v470, %v734
        %736 = vst [vmem:[%s689 + $0x44] sm:$0x1] %v735
        %v737 = vld [vmem:[%s689 + $0x48] sm:$0xf]
        %v738 = vsel %vm692, %v477, %v737
        %739 = vst [vmem:[%s689 + $0x48] sm:$0xf] %v738
        %740 = vst.msk [vmem:[%s689 + $0x4c] sm:$0xf] %vm278, %v486
        %v741 = vld [vmem:[%s689 + $0x50] sm:$0x1]
        %v742 = vsel %vm698, %v487, %v741
        %743 = vst [vmem:[%s689 + $0x50] sm:$0x1] %v742
        %v744 = vld [vmem:[%s689 + $0x54] sm:$0xf]
        %v745 = vsel %vm692, %v494, %v744
        %746 = vst [vmem:[%s689 + $0x54] sm:$0xf] %v745
        %747 = vst.msk [vmem:[%s689 + $0x58] sm:$0xf] %vm278, %v503
        %v748 = vld [vmem:[%s689 + $0x5c] sm:$0x1]
        %v749 = vsel %vm698, %v504, %v748
        %750 = vst [vmem:[%s689 + $0x5c] sm:$0x1] %v749
        %v751 = vld [vmem:[%s689 + $0x60] sm:$0xf]
        %v752 = vsel %vm692, %v511, %v751
        %753 = vst [vmem:[%s689 + $0x60] sm:$0xf] %v752
        %754 = vst.msk [vmem:[%s689 + $0x64] sm:$0xf] %vm278, %v520
        %v755 = vld [vmem:[%s689 + $0x68] sm:$0x1]
        %v756 = vsel %vm698, %v521, %v755
        %757 = vst [vmem:[%s689 + $0x68] sm:$0x1] %v756
        %v758 = vld [vmem:[%s689 + $0x6c] sm:$0xf]
        %v759 = vsel %vm692, %v528, %v758
        %760 = vst [vmem:[%s689 + $0x6c] sm:$0xf] %v759
        %761 = vst.msk [vmem:[%s689 + $0x70] sm:$0xf] %vm278, %v537
        %v762 = vld [vmem:[%s689 + $0x74] sm:$0x1]
        %v763 = vsel %vm698, %v538, %v762
        %764 = vst [vmem:[%s689 + $0x74] sm:$0x1] %v763
        %v765 = vld [vmem:[%s689 + $0x78] sm:$0xf]
        %v766 = vsel %vm692, %v545, %v765
        %767 = vst [vmem:[%s689 + $0x78] sm:$0xf] %v766
        %768 = vst.msk [vmem:[%s689 + $0x7c] sm:$0xf] %vm278, %v554
        %v769 = vld [vmem:[%s689 + $0x80] sm:$0x1]
        %v770 = vsel %vm698, %v555, %v769
        %771 = vst [vmem:[%s689 + $0x80] sm:$0x1] %v770
        %v772 = vld [vmem:[%s689 + $0x84] sm:$0xf]
        %v773 = vsel %vm692, %v562, %v772
        %774 = vst [vmem:[%s689 + $0x84] sm:$0xf] %v773
        %775 = vst.msk [vmem:[%s689 + $0x88] sm:$0xf] %vm278, %v571
        %v776 = vld [vmem:[%s689 + $0x8c] sm:$0x1]
        %v777 = vsel %vm698, %v572, %v776
        %778 = vst [vmem:[%s689 + $0x8c] sm:$0x1] %v777
        %v779 = vld [vmem:[%s689 + $0x90] sm:$0xf]
        %v780 = vsel %vm692, %v579, %v779
        %781 = vst [vmem:[%s689 + $0x90] sm:$0xf] %v780
        %782 = vst.msk [vmem:[%s689 + $0x94] sm:$0xf] %vm278, %v588
        %v783 = vld [vmem:[%s689 + $0x98] sm:$0x1]
        %v784 = vsel %vm698, %v589, %v783
        %785 = vst [vmem:[%s689 + $0x98] sm:$0x1] %v784
        %v786 = vld [vmem:[%s689 + $0x9c] sm:$0xf]
        %v787 = vsel %vm692, %v596, %v786
        %788 = vst [vmem:[%s689 + $0x9c] sm:$0xf] %v787
        %789 = vst.msk [vmem:[%s689 + $0xa0] sm:$0xf] %vm278, %v605
        %v790 = vld [vmem:[%s689 + $0xa4] sm:$0x1]
        %v791 = vsel %vm698, %v606, %v790
        %792 = vst [vmem:[%s689 + $0xa4] sm:$0x1] %v791
        %v793 = vld [vmem:[%s689 + $0xa8] sm:$0xf]
        %v794 = vsel %vm692, %v613, %v793
        %795 = vst [vmem:[%s689 + $0xa8] sm:$0xf] %v794
        %796 = vst.msk [vmem:[%s689 + $0xac] sm:$0xf] %vm278, %v622
        %v797 = vld [vmem:[%s689 + $0xb0] sm:$0x1]
        %v798 = vsel %vm698, %v623, %v797
        %799 = vst [vmem:[%s689 + $0xb0] sm:$0x1] %v798
        %v800 = vld [vmem:[%s689 + $0xb4] sm:$0xf]
        %v801 = vsel %vm692, %v630, %v800
        %802 = vst [vmem:[%s689 + $0xb4] sm:$0xf] %v801
        %803 = vst.msk [vmem:[%s689 + $0xb8] sm:$0xf] %vm278, %v639
        %v804 = vld [vmem:[%s689 + $0xbc] sm:$0x1]
        %v805 = vsel %vm698, %v640, %v804
        %806 = vst [vmem:[%s689 + $0xbc] sm:$0x1] %v805
        %v807 = vld [vmem:[#allocation2] sm:$0xf]
        %v808 = vld [vmem:[#allocation2 + $0x4] sm:$0xf]
        %v809 = vld [vmem:[#allocation2 + $0xc] sm:$0xf]
        %v810 = vld [vmem:[#allocation2 + $0x10] sm:$0xf]
        %v811 = vld [vmem:[#allocation2 + $0x18] sm:$0xf]
        %v812 = vld [vmem:[#allocation2 + $0x1c] sm:$0xf]
        %v813 = vld [vmem:[#allocation2 + $0x24] sm:$0xf]
        %v814 = vld [vmem:[#allocation2 + $0x28] sm:$0xf]
        %v815 = vld [vmem:[#allocation2 + $0x30] sm:$0xf]
        %v816 = vld [vmem:[#allocation2 + $0x34] sm:$0xf]
        %v817 = vld [vmem:[#allocation2 + $0x3c] sm:$0xf]
        %v818 = vld [vmem:[#allocation2 + $0x40] sm:$0xf]
        %v819 = vld [vmem:[#allocation2 + $0x48] sm:$0xf]
        %v820 = vld [vmem:[#allocation2 + $0x4c] sm:$0xf]
        %v821 = vld [vmem:[#allocation2 + $0x54] sm:$0xf]
        %v822 = vld [vmem:[#allocation2 + $0x58] sm:$0xf]
        %v823 = vld [vmem:[#allocation2 + $0x60] sm:$0xf]
        %v824 = vld [vmem:[#allocation2 + $0x64] sm:$0xf]
        %v825 = vld [vmem:[#allocation2 + $0x6c] sm:$0xf]
        %v826 = vld [vmem:[#allocation2 + $0x70] sm:$0xf]
        %v827 = vld [vmem:[#allocation2 + $0x78] sm:$0xf]
        %v828 = vld [vmem:[#allocation2 + $0x7c] sm:$0xf]
        %v829 = vld [vmem:[#allocation2 + $0x84] sm:$0xf]
        %v830 = vld [vmem:[#allocation2 + $0x88] sm:$0xf]
        %v831 = vld [vmem:[#allocation2 + $0x90] sm:$0xf]
        %v832 = vld [vmem:[#allocation2 + $0x94] sm:$0xf]
        %v833 = vld [vmem:[#allocation2 + $0x9c] sm:$0xf]
        %v834 = vld [vmem:[#allocation2 + $0xa0] sm:$0xf]
        %v835 = vld [vmem:[#allocation2 + $0xa8] sm:$0xf]
        %v836 = vld [vmem:[#allocation2 + $0xac] sm:$0xf]
        %v837 = vld [vmem:[#allocation2 + $0xb4] sm:$0xf]
        %v838 = vld [vmem:[#allocation2 + $0xb8] sm:$0xf]
        %v839 = vld [vmem:[%s1] sm:$0x3]
        %v840 = vld [vmem:[#allocation2 + $0x8] sm:$0x1]
        %v841 = vld [vmem:[#allocation2 + $0x14] sm:$0x1]
        %v842 = vld [vmem:[#allocation2 + $0x20] sm:$0x1]
        %v843 = vld [vmem:[#allocation2 + $0x2c] sm:$0x1]
        %v844 = vld [vmem:[#allocation2 + $0x38] sm:$0x1]
        %v845 = vld [vmem:[#allocation2 + $0x44] sm:$0x1]
        %v846 = vld [vmem:[#allocation2 + $0x50] sm:$0x1]
        %v847 = vld [vmem:[#allocation2 + $0x5c] sm:$0x1]
        %v848 = vld [vmem:[#allocation2 + $0x68] sm:$0x1]
        %v849 = vld [vmem:[#allocation2 + $0x74] sm:$0x1]
        %v850 = vld [vmem:[#allocation2 + $0x80] sm:$0x1]
        %v851 = vld [vmem:[#allocation2 + $0x8c] sm:$0x1]
        %v852 = vld [vmem:[#allocation2 + $0x98] sm:$0x1]
        %v853 = vld [vmem:[#allocation2 + $0xa4] sm:$0x1]
        %v854 = vld [vmem:[#allocation2 + $0xb0] sm:$0x1]
        %v855 = vld [vmem:[#allocation2 + $0xbc] sm:$0x1]
        %vm856 = vsmask.f32 3328
        %vm857 = vsmask.f32 7440
        %vm858 = vmor %vm856, %vm857
        %v860 = vshrl.u32 %v807, 16
        %v862 = vrot.slane %v860, 4
        %v863 = vshll.u32 %v807, 16
        %v865 = vrot.slane %v863, 5
        %v866 = vor.u32 %v862, %v865
        %v867 = vrot.slane %v866, 4
        %v869 = vshll.u32 %v808, 16
        %v871 = vrot.slane %v869, 5
        %v872 = vsel %vm858, %v867, %v871
        %v873 = vshrl.u32 %v808, 16
        %v875 = vrot.slane %v873, 4
        %v876 = vor.u32 %v875, %v871
        %v877 = vrot.slane %v876, 4
        %v879 = vshll.u32 %v840, 16
        %v881 = vrot.slane %v879, 5
        %v882 = vsel %vm858, %v877, %v881
        %v884 = vshrl.u32 %v809, 16
        %v886 = vrot.slane %v884, 4
        %v887 = vshll.u32 %v809, 16
        %v889 = vrot.slane %v887, 5
        %v890 = vor.u32 %v886, %v889
        %v891 = vrot.slane %v890, 4
        %v893 = vshll.u32 %v810, 16
        %v895 = vrot.slane %v893, 5
        %v896 = vsel %vm858, %v891, %v895
        %v897 = vshrl.u32 %v810, 16
        %v899 = vrot.slane %v897, 4
        %v900 = vor.u32 %v899, %v895
        %v901 = vrot.slane %v900, 4
        %v903 = vshll.u32 %v841, 16
        %v905 = vrot.slane %v903, 5
        %v906 = vsel %vm858, %v901, %v905
        %v908 = vshrl.u32 %v811, 16
        %v910 = vrot.slane %v908, 4
        %v911 = vshll.u32 %v811, 16
        %v913 = vrot.slane %v911, 5
        %v914 = vor.u32 %v910, %v913
        %v915 = vrot.slane %v914, 4
        %v917 = vshll.u32 %v812, 16
        %v919 = vrot.slane %v917, 5
        %v920 = vsel %vm858, %v915, %v919
        %v921 = vshrl.u32 %v812, 16
        %v923 = vrot.slane %v921, 4
        %v924 = vor.u32 %v923, %v919
        %v925 = vrot.slane %v924, 4
        %v927 = vshll.u32 %v842, 16
        %v929 = vrot.slane %v927, 5
        %v930 = vsel %vm858, %v925, %v929
        %v932 = vshrl.u32 %v813, 16
        %v934 = vrot.slane %v932, 4
        %v935 = vshll.u32 %v813, 16
        %v937 = vrot.slane %v935, 5
        %v938 = vor.u32 %v934, %v937
        %v939 = vrot.slane %v938, 4
        %v941 = vshll.u32 %v814, 16
        %v943 = vrot.slane %v941, 5
        %v944 = vsel %vm858, %v939, %v943
        %v945 = vshrl.u32 %v814, 16
        %v947 = vrot.slane %v945, 4
        %v948 = vor.u32 %v947, %v943
        %v949 = vrot.slane %v948, 4
        %v951 = vshll.u32 %v843, 16
        %v953 = vrot.slane %v951, 5
        %v954 = vsel %vm858, %v949, %v953
        %v956 = vshrl.u32 %v815, 16
        %v958 = vrot.slane %v956, 4
        %v959 = vshll.u32 %v815, 16
        %v961 = vrot.slane %v959, 5
        %v962 = vor.u32 %v958, %v961
        %v963 = vrot.slane %v962, 4
        %v965 = vshll.u32 %v816, 16
        %v967 = vrot.slane %v965, 5
        %v968 = vsel %vm858, %v963, %v967
        %v969 = vshrl.u32 %v816, 16
        %v971 = vrot.slane %v969, 4
        %v972 = vor.u32 %v971, %v967
        %v973 = vrot.slane %v972, 4
        %v975 = vshll.u32 %v844, 16
        %v977 = vrot.slane %v975, 5
        %v978 = vsel %vm858, %v973, %v977
        %v980 = vshrl.u32 %v817, 16
        %v982 = vrot.slane %v980, 4
        %v983 = vshll.u32 %v817, 16
        %v985 = vrot.slane %v983, 5
        %v986 = vor.u32 %v982, %v985
        %v987 = vrot.slane %v986, 4
        %v989 = vshll.u32 %v818, 16
        %v991 = vrot.slane %v989, 5
        %v992 = vsel %vm858, %v987, %v991
        %v993 = vshrl.u32 %v818, 16
        %v995 = vrot.slane %v993, 4
        %v996 = vor.u32 %v995, %v991
        %v997 = vrot.slane %v996, 4
        %v999 = vshll.u32 %v845, 16
        %v1001 = vrot.slane %v999, 5
        %v1002 = vsel %vm858, %v997, %v1001
        %v1004 = vshrl.u32 %v819, 16
        %v1006 = vrot.slane %v1004, 4
        %v1007 = vshll.u32 %v819, 16
        %v1009 = vrot.slane %v1007, 5
        %v1010 = vor.u32 %v1006, %v1009
        %v1011 = vrot.slane %v1010, 4
        %v1013 = vshll.u32 %v820, 16
        %v1015 = vrot.slane %v1013, 5
        %v1016 = vsel %vm858, %v1011, %v1015
        %v1017 = vshrl.u32 %v820, 16
        %v1019 = vrot.slane %v1017, 4
        %v1020 = vor.u32 %v1019, %v1015
        %v1021 = vrot.slane %v1020, 4
        %v1023 = vshll.u32 %v846, 16
        %v1025 = vrot.slane %v1023, 5
        %v1026 = vsel %vm858, %v1021, %v1025
        %v1028 = vshrl.u32 %v821, 16
        %v1030 = vrot.slane %v1028, 4
        %v1031 = vshll.u32 %v821, 16
        %v1033 = vrot.slane %v1031, 5
        %v1034 = vor.u32 %v1030, %v1033
        %v1035 = vrot.slane %v1034, 4
        %v1037 = vshll.u32 %v822, 16
        %v1039 = vrot.slane %v1037, 5
        %v1040 = vsel %vm858, %v1035, %v1039
        %v1041 = vshrl.u32 %v822, 16
        %v1043 = vrot.slane %v1041, 4
        %v1044 = vor.u32 %v1043, %v1039
        %v1045 = vrot.slane %v1044, 4
        %v1047 = vshll.u32 %v847, 16
        %v1049 = vrot.slane %v1047, 5
        %v1050 = vsel %vm858, %v1045, %v1049
        %v1052 = vshrl.u32 %v823, 16
        %v1054 = vrot.slane %v1052, 4
        %v1055 = vshll.u32 %v823, 16
        %v1057 = vrot.slane %v1055, 5
        %v1058 = vor.u32 %v1054, %v1057
        %v1059 = vrot.slane %v1058, 4
        %v1061 = vshll.u32 %v824, 16
        %v1063 = vrot.slane %v1061, 5
        %v1064 = vsel %vm858, %v1059, %v1063
        %v1065 = vshrl.u32 %v824, 16
        %v1067 = vrot.slane %v1065, 4
        %v1068 = vor.u32 %v1067, %v1063
        %v1069 = vrot.slane %v1068, 4
        %v1071 = vshll.u32 %v848, 16
        %v1073 = vrot.slane %v1071, 5
        %v1074 = vsel %vm858, %v1069, %v1073
        %v1076 = vshrl.u32 %v825, 16
        %v1078 = vrot.slane %v1076, 4
        %v1079 = vshll.u32 %v825, 16
        %v1081 = vrot.slane %v1079, 5
        %v1082 = vor.u32 %v1078, %v1081
        %v1083 = vrot.slane %v1082, 4
        %v1085 = vshll.u32 %v826, 16
        %v1087 = vrot.slane %v1085, 5
        %v1088 = vsel %vm858, %v1083, %v1087
        %v1089 = vshrl.u32 %v826, 16
        %v1091 = vrot.slane %v1089, 4
        %v1092 = vor.u32 %v1091, %v1087
        %v1093 = vrot.slane %v1092, 4
        %v1095 = vshll.u32 %v849, 16
        %v1097 = vrot.slane %v1095, 5
        %v1098 = vsel %vm858, %v1093, %v1097
        %v1100 = vshrl.u32 %v827, 16
        %v1102 = vrot.slane %v1100, 4
        %v1103 = vshll.u32 %v827, 16
        %v1105 = vrot.slane %v1103, 5
        %v1106 = vor.u32 %v1102, %v1105
        %v1107 = vrot.slane %v1106, 4
        %v1109 = vshll.u32 %v828, 16
        %v1111 = vrot.slane %v1109, 5
        %v1112 = vsel %vm858, %v1107, %v1111
        %v1113 = vshrl.u32 %v828, 16
        %v1115 = vrot.slane %v1113, 4
        %v1116 = vor.u32 %v1115, %v1111
        %v1117 = vrot.slane %v1116, 4
        %v1119 = vshll.u32 %v850, 16
        %v1121 = vrot.slane %v1119, 5
        %v1122 = vsel %vm858, %v1117, %v1121
        %v1124 = vshrl.u32 %v829, 16
        %v1126 = vrot.slane %v1124, 4
        %v1127 = vshll.u32 %v829, 16
        %v1129 = vrot.slane %v1127, 5
        %v1130 = vor.u32 %v1126, %v1129
        %v1131 = vrot.slane %v1130, 4
        %v1133 = vshll.u32 %v830, 16
        %v1135 = vrot.slane %v1133, 5
        %v1136 = vsel %vm858, %v1131, %v1135
        %v1137 = vshrl.u32 %v830, 16
        %v1139 = vrot.slane %v1137, 4
        %v1140 = vor.u32 %v1139, %v1135
        %v1141 = vrot.slane %v1140, 4
        %v1143 = vshll.u32 %v851, 16
        %v1145 = vrot.slane %v1143, 5
        %v1146 = vsel %vm858, %v1141, %v1145
        %v1148 = vshrl.u32 %v831, 16
        %v1150 = vrot.slane %v1148, 4
        %v1151 = vshll.u32 %v831, 16
        %v1153 = vrot.slane %v1151, 5
        %v1154 = vor.u32 %v1150, %v1153
        %v1155 = vrot.slane %v1154, 4
        %v1157 = vshll.u32 %v832, 16
        %v1159 = vrot.slane %v1157, 5
        %v1160 = vsel %vm858, %v1155, %v1159
        %v1161 = vshrl.u32 %v832, 16
        %v1163 = vrot.slane %v1161, 4
        %v1164 = vor.u32 %v1163, %v1159
        %v1165 = vrot.slane %v1164, 4
        %v1167 = vshll.u32 %v852, 16
        %v1169 = vrot.slane %v1167, 5
        %v1170 = vsel %vm858, %v1165, %v1169
        %v1172 = vshrl.u32 %v833, 16
        %v1174 = vrot.slane %v1172, 4
        %v1175 = vshll.u32 %v833, 16
        %v1177 = vrot.slane %v1175, 5
        %v1178 = vor.u32 %v1174, %v1177
        %v1179 = vrot.slane %v1178, 4
        %v1181 = vshll.u32 %v834, 16
        %v1183 = vrot.slane %v1181, 5
        %v1184 = vsel %vm858, %v1179, %v1183
        %v1185 = vshrl.u32 %v834, 16
        %v1187 = vrot.slane %v1185, 4
        %v1188 = vor.u32 %v1187, %v1183
        %v1189 = vrot.slane %v1188, 4
        %v1191 = vshll.u32 %v853, 16
        %v1193 = vrot.slane %v1191, 5
        %v1194 = vsel %vm858, %v1189, %v1193
        %v1196 = vshrl.u32 %v835, 16
        %v1198 = vrot.slane %v1196, 4
        %v1199 = vshll.u32 %v835, 16
        %v1201 = vrot.slane %v1199, 5
        %v1202 = vor.u32 %v1198, %v1201
        %v1203 = vrot.slane %v1202, 4
        %v1205 = vshll.u32 %v836, 16
        %v1207 = vrot.slane %v1205, 5
        %v1208 = vsel %vm858, %v1203, %v1207
        %v1209 = vshrl.u32 %v836, 16
        %v1211 = vrot.slane %v1209, 4
        %v1212 = vor.u32 %v1211, %v1207
        %v1213 = vrot.slane %v1212, 4
        %v1215 = vshll.u32 %v854, 16
        %v1217 = vrot.slane %v1215, 5
        %v1218 = vsel %vm858, %v1213, %v1217
        %v1220 = vshrl.u32 %v837, 16
        %v1222 = vrot.slane %v1220, 4
        %v1223 = vshll.u32 %v837, 16
        %v1225 = vrot.slane %v1223, 5
        %v1226 = vor.u32 %v1222, %v1225
        %v1227 = vrot.slane %v1226, 4
        %v1229 = vshll.u32 %v838, 16
        %v1231 = vrot.slane %v1229, 5
        %v1232 = vsel %vm858, %v1227, %v1231
        %v1233 = vshrl.u32 %v838, 16
        %v1235 = vrot.slane %v1233, 4
        %v1236 = vor.u32 %v1235, %v1231
        %v1237 = vrot.slane %v1236, 4
        %v1239 = vshll.u32 %v855, 16
        %v1241 = vrot.slane %v1239, 5
        %v1242 = vsel %vm858, %v1237, %v1241
        %s1243 = scalar_lea.vmem %s1, 2
        %v1244 = vld [vmem:[%s1243] sm:$0x3]
        %v1245 = vunpack.c.l.b16 %v872
        %v1246 = vunpack.c.l.b16 %v882
        %v1247 = vunpack.c.l.b16 %v896
        %v1248 = vunpack.c.l.b16 %v906
        %v1249 = vunpack.c.l.b16 %v920
        %v1250 = vunpack.c.l.b16 %v930
        %v1251 = vunpack.c.l.b16 %v944
        %v1252 = vunpack.c.l.b16 %v954
        %v1253 = vunpack.c.l.b16 %v968
        %v1254 = vunpack.c.l.b16 %v978
        %v1255 = vunpack.c.l.b16 %v992
        %v1256 = vunpack.c.l.b16 %v1002
        %v1257 = vunpack.c.l.b16 %v1016
        %v1258 = vunpack.c.l.b16 %v1026
        %v1259 = vunpack.c.l.b16 %v1040
        %v1260 = vunpack.c.l.b16 %v1050
        %v1261 = vunpack.c.l.b16 %v1064
        %v1262 = vunpack.c.l.b16 %v1074
        %v1263 = vunpack.c.l.b16 %v1088
        %v1264 = vunpack.c.l.b16 %v1098
        %v1265 = vunpack.c.l.b16 %v1112
        %v1266 = vunpack.c.l.b16 %v1122
        %v1267 = vunpack.c.l.b16 %v1136
        %v1268 = vunpack.c.l.b16 %v1146
        %v1269 = vunpack.c.l.b16 %v1160
        %v1270 = vunpack.c.l.b16 %v1170
        %v1271 = vunpack.c.l.b16 %v1184
        %v1272 = vunpack.c.l.b16 %v1194
        %v1273 = vunpack.c.l.b16 %v1208
        %v1274 = vunpack.c.l.b16 %v1218
        %v1275 = vunpack.c.l.b16 %v1232
        %v1276 = vunpack.c.l.b16 %v1242
        %v1277 = vpack.c.b16 %v1246, %v1245
        %v1278 = vpack.c.b16 %v1248, %v1247
        %v1279 = vpack.c.b16 %v1250, %v1249
        %v1280 = vpack.c.b16 %v1252, %v1251
        %v1281 = vpack.c.b16 %v1254, %v1253
        %v1282 = vpack.c.b16 %v1256, %v1255
        %v1283 = vpack.c.b16 %v1258, %v1257
        %v1284 = vpack.c.b16 %v1260, %v1259
        %v1285 = vpack.c.b16 %v1262, %v1261
        %v1286 = vpack.c.b16 %v1264, %v1263
        %v1287 = vpack.c.b16 %v1266, %v1265
        %v1288 = vpack.c.b16 %v1268, %v1267
        %v1289 = vpack.c.b16 %v1270, %v1269
        %v1290 = vpack.c.b16 %v1272, %v1271
        %v1291 = vpack.c.b16 %v1274, %v1273
        %v1292 = vpack.c.b16 %v1276, %v1275
        %vm1293 = vcmask 31744
        %v1295 = vsel %vm1293, %v1277, 0
        %v1298 = vsel %vm1293, %v1278, 0
        %v1301 = vsel %vm1293, %v1279, 0
        %v1304 = vsel %vm1293, %v1280, 0
        %v1307 = vsel %vm1293, %v1281, 0
        %v1310 = vsel %vm1293, %v1282, 0
        %v1313 = vsel %vm1293, %v1283, 0
        %v1316 = vsel %vm1293, %v1284, 0
        %v1319 = vsel %vm1293, %v1285, 0
        %v1322 = vsel %vm1293, %v1286, 0
        %v1325 = vsel %vm1293, %v1287, 0
        %v1328 = vsel %vm1293, %v1288, 0
        %v1331 = vsel %vm1293, %v1289, 0
        %v1334 = vsel %vm1293, %v1290, 0
        %v1337 = vsel %vm1293, %v1291, 0
        %v1340 = vsel %vm1293, %v1292, 0
        %vm1342 = vcmask 1041408
        %v1344 = vsel %vm1342, %v1244, 0
        %1346 = vmatpush.bf16.msra.mxu0 0
        %1347 = vmatpush.bf16.msra.mxu0 0
        %1348 = vmatpush.bf16.msra.mxu0 0
        %1349 = vmatpush.bf16.msra.mxu0 0
        %1350 = vmatpush.bf16.msra.mxu0 0
        %1351 = vmatpush.bf16.msra.mxu0 0
        %1352 = vmatpush.bf16.msra.mxu0 0
        %1353 = vmatpush.bf16.msra.mxu0 %v1344
        %1354 = vmatmul.bf16.gmra.mxu0 %v1295
        %v1355 = vpop.f32.mrf.mxu0
        %v1356 = vadd.f32 0.0, %v1355
        %v1357 = vpop.f32.mrf.mxu0
        %v1358 = vadd.f32 0.0, %v1357
        %1359 = vmatmul.bf16.gmra.mxu0 %v1298
        %v1360 = vpop.f32.mrf.mxu0
        %v1361 = vadd.f32 0.0, %v1360
        %v1362 = vpop.f32.mrf.mxu0
        %v1363 = vadd.f32 0.0, %v1362
        %1364 = vmatmul.bf16.gmra.mxu0 %v1301
        %v1365 = vpop.f32.mrf.mxu0
        %v1366 = vadd.f32 0.0, %v1365
        %v1367 = vpop.f32.mrf.mxu0
        %v1368 = vadd.f32 0.0, %v1367
        %1369 = vmatmul.bf16.gmra.mxu0 %v1304
        %v1370 = vpop.f32.mrf.mxu0
        %v1371 = vadd.f32 0.0, %v1370
        %v1372 = vpop.f32.mrf.mxu0
        %v1373 = vadd.f32 0.0, %v1372
        %1374 = vmatmul.bf16.gmra.mxu0 %v1307
        %v1375 = vpop.f32.mrf.mxu0
        %v1376 = vadd.f32 0.0, %v1375
        %v1377 = vpop.f32.mrf.mxu0
        %v1378 = vadd.f32 0.0, %v1377
        %1379 = vmatmul.bf16.gmra.mxu0 %v1310
        %v1380 = vpop.f32.mrf.mxu0
        %v1381 = vadd.f32 0.0, %v1380
        %v1382 = vpop.f32.mrf.mxu0
        %v1383 = vadd.f32 0.0, %v1382
        %1384 = vmatmul.bf16.gmra.mxu0 %v1313
        %v1385 = vpop.f32.mrf.mxu0
        %v1386 = vadd.f32 0.0, %v1385
        %v1387 = vpop.f32.mrf.mxu0
        %v1388 = vadd.f32 0.0, %v1387
        %1389 = vmatmul.bf16.gmra.mxu0 %v1316
        %v1390 = vpop.f32.mrf.mxu0
        %v1391 = vadd.f32 0.0, %v1390
        %v1392 = vpop.f32.mrf.mxu0
        %v1393 = vadd.f32 0.0, %v1392
        %1394 = vmatmul.bf16.gmra.mxu0 %v1319
        %v1395 = vpop.f32.mrf.mxu0
        %v1396 = vadd.f32 0.0, %v1395
        %v1397 = vpop.f32.mrf.mxu0
        %v1398 = vadd.f32 0.0, %v1397
        %1399 = vmatmul.bf16.gmra.mxu0 %v1322
        %v1400 = vpop.f32.mrf.mxu0
        %v1401 = vadd.f32 0.0, %v1400
        %v1402 = vpop.f32.mrf.mxu0
        %v1403 = vadd.f32 0.0, %v1402
        %1404 = vmatmul.bf16.gmra.mxu0 %v1325
        %v1405 = vpop.f32.mrf.mxu0
        %v1406 = vadd.f32 0.0, %v1405
        %v1407 = vpop.f32.mrf.mxu0
        %v1408 = vadd.f32 0.0, %v1407
        %1409 = vmatmul.bf16.gmra.mxu0 %v1328
        %v1410 = vpop.f32.mrf.mxu0
        %v1411 = vadd.f32 0.0, %v1410
        %v1412 = vpop.f32.mrf.mxu0
        %v1413 = vadd.f32 0.0, %v1412
        %1414 = vmatmul.bf16.gmra.mxu0 %v1331
        %v1415 = vpop.f32.mrf.mxu0
        %v1416 = vadd.f32 0.0, %v1415
        %v1417 = vpop.f32.mrf.mxu0
        %v1418 = vadd.f32 0.0, %v1417
        %1419 = vmatmul.bf16.gmra.mxu0 %v1334
        %v1420 = vpop.f32.mrf.mxu0
        %v1421 = vadd.f32 0.0, %v1420
        %v1422 = vpop.f32.mrf.mxu0
        %v1423 = vadd.f32 0.0, %v1422
        %1424 = vmatmul.bf16.gmra.mxu0 %v1337
        %v1425 = vpop.f32.mrf.mxu0
        %v1426 = vadd.f32 0.0, %v1425
        %v1427 = vpop.f32.mrf.mxu0
        %v1428 = vadd.f32 0.0, %v1427
        %1429 = vmatmul.bf16.gmra.mxu0 %v1340
        %v1430 = vpop.f32.mrf.mxu0
        %v1431 = vadd.f32 0.0, %v1430
        %v1432 = vpop.f32.mrf.mxu0
        %v1433 = vadd.f32 0.0, %v1432
        %1434 = vdwg.mxu0
        %v1467 = vunpack.c.l.b16 %v807
        %v1468 = vunpack.c.l.b16 %v808
        %v1469 = vunpack.c.l.b16 %v809
        %v1470 = vunpack.c.l.b16 %v810
        %v1471 = vunpack.c.l.b16 %v811
        %v1472 = vunpack.c.l.b16 %v812
        %v1473 = vunpack.c.l.b16 %v813
        %v1474 = vunpack.c.l.b16 %v814
        %v1475 = vunpack.c.l.b16 %v815
        %v1476 = vunpack.c.l.b16 %v816
        %v1477 = vunpack.c.l.b16 %v817
        %v1478 = vunpack.c.l.b16 %v818
        %v1479 = vunpack.c.l.b16 %v819
        %v1480 = vunpack.c.l.b16 %v820
        %v1481 = vunpack.c.l.b16 %v821
        %v1482 = vunpack.c.l.b16 %v822
        %v1483 = vunpack.c.l.b16 %v823
        %v1484 = vunpack.c.l.b16 %v824
        %v1485 = vunpack.c.l.b16 %v825
        %v1486 = vunpack.c.l.b16 %v826
        %v1487 = vunpack.c.l.b16 %v827
        %v1488 = vunpack.c.l.b16 %v828
        %v1489 = vunpack.c.l.b16 %v829
        %v1490 = vunpack.c.l.b16 %v830
        %v1491 = vunpack.c.l.b16 %v831
        %v1492 = vunpack.c.l.b16 %v832
        %v1493 = vunpack.c.l.b16 %v833
        %v1494 = vunpack.c.l.b16 %v834
        %v1495 = vunpack.c.l.b16 %v835
        %v1496 = vunpack.c.l.b16 %v836
        %v1497 = vunpack.c.l.b16 %v837
        %v1498 = vunpack.c.l.b16 %v838
        %v1499 = vpack.c.b16 %v1468, %v1467
        %v1500 = vpack.c.b16 %v1470, %v1469
        %v1501 = vpack.c.b16 %v1472, %v1471
        %v1502 = vpack.c.b16 %v1474, %v1473
        %v1503 = vpack.c.b16 %v1476, %v1475
        %v1504 = vpack.c.b16 %v1478, %v1477
        %v1505 = vpack.c.b16 %v1480, %v1479
        %v1506 = vpack.c.b16 %v1482, %v1481
        %v1507 = vpack.c.b16 %v1484, %v1483
        %v1508 = vpack.c.b16 %v1486, %v1485
        %v1509 = vpack.c.b16 %v1488, %v1487
        %v1510 = vpack.c.b16 %v1490, %v1489
        %v1511 = vpack.c.b16 %v1492, %v1491
        %v1512 = vpack.c.b16 %v1494, %v1493
        %v1513 = vpack.c.b16 %v1496, %v1495
        %v1514 = vpack.c.b16 %v1498, %v1497
        %v1516 = vsel %vm1293, %v1499, 0
        %v1519 = vsel %vm1293, %v1500, 0
        %v1522 = vsel %vm1293, %v1501, 0
        %v1525 = vsel %vm1293, %v1502, 0
        %v1528 = vsel %vm1293, %v1503, 0
        %v1531 = vsel %vm1293, %v1504, 0
        %v1534 = vsel %vm1293, %v1505, 0
        %v1537 = vsel %vm1293, %v1506, 0
        %v1540 = vsel %vm1293, %v1507, 0
        %v1543 = vsel %vm1293, %v1508, 0
        %v1546 = vsel %vm1293, %v1509, 0
        %v1549 = vsel %vm1293, %v1510, 0
        %v1552 = vsel %vm1293, %v1511, 0
        %v1555 = vsel %vm1293, %v1512, 0
        %v1558 = vsel %vm1293, %v1513, 0
        %v1561 = vsel %vm1293, %v1514, 0
        %v1564 = vsel %vm1342, %v839, 0
        %1566 = vmatpush.bf16.msra.mxu0 0
        %1567 = vmatpush.bf16.msra.mxu0 0
        %1568 = vmatpush.bf16.msra.mxu0 0
        %1569 = vmatpush.bf16.msra.mxu0 0
        %1570 = vmatpush.bf16.msra.mxu0 0
        %1571 = vmatpush.bf16.msra.mxu0 0
        %1572 = vmatpush.bf16.msra.mxu0 0
        %1573 = vmatpush.bf16.msra.mxu0 %v1564
        %1574 = vmatmul.bf16.gmra.mxu0 %v1516
        %v1575 = vpop.f32.mrf.mxu0
        %v1576 = vadd.f32 %v1356, %v1575
        %v1577 = vpop.f32.mrf.mxu0
        %v1578 = vadd.f32 %v1358, %v1577
        %1579 = vmatmul.bf16.gmra.mxu0 %v1519
        %v1580 = vpop.f32.mrf.mxu0
        %v1581 = vadd.f32 %v1361, %v1580
        %v1582 = vpop.f32.mrf.mxu0
        %v1583 = vadd.f32 %v1363, %v1582
        %1584 = vmatmul.bf16.gmra.mxu0 %v1522
        %v1585 = vpop.f32.mrf.mxu0
        %v1586 = vadd.f32 %v1366, %v1585
        %v1587 = vpop.f32.mrf.mxu0
        %v1588 = vadd.f32 %v1368, %v1587
        %1589 = vmatmul.bf16.gmra.mxu0 %v1525
        %v1590 = vpop.f32.mrf.mxu0
        %v1591 = vadd.f32 %v1371, %v1590
        %v1592 = vpop.f32.mrf.mxu0
        %v1593 = vadd.f32 %v1373, %v1592
        %1594 = vmatmul.bf16.gmra.mxu0 %v1528
        %v1595 = vpop.f32.mrf.mxu0
        %v1596 = vadd.f32 %v1376, %v1595
        %v1597 = vpop.f32.mrf.mxu0
        %v1598 = vadd.f32 %v1378, %v1597
        %1599 = vmatmul.bf16.gmra.mxu0 %v1531
        %v1600 = vpop.f32.mrf.mxu0
        %v1601 = vadd.f32 %v1381, %v1600
        %v1602 = vpop.f32.mrf.mxu0
        %v1603 = vadd.f32 %v1383, %v1602
        %1604 = vmatmul.bf16.gmra.mxu0 %v1534
        %v1605 = vpop.f32.mrf.mxu0
        %v1606 = vadd.f32 %v1386, %v1605
        %v1607 = vpop.f32.mrf.mxu0
        %v1608 = vadd.f32 %v1388, %v1607
        %1609 = vmatmul.bf16.gmra.mxu0 %v1537
        %v1610 = vpop.f32.mrf.mxu0
        %v1611 = vadd.f32 %v1391, %v1610
        %v1612 = vpop.f32.mrf.mxu0
        %v1613 = vadd.f32 %v1393, %v1612
        %1614 = vmatmul.bf16.gmra.mxu0 %v1540
        %v1615 = vpop.f32.mrf.mxu0
        %v1616 = vadd.f32 %v1396, %v1615
        %v1617 = vpop.f32.mrf.mxu0
        %v1618 = vadd.f32 %v1398, %v1617
        %1619 = vmatmul.bf16.gmra.mxu0 %v1543
        %v1620 = vpop.f32.mrf.mxu0
        %v1621 = vadd.f32 %v1401, %v1620
        %v1622 = vpop.f32.mrf.mxu0
        %v1623 = vadd.f32 %v1403, %v1622
        %1624 = vmatmul.bf16.gmra.mxu0 %v1546
        %v1625 = vpop.f32.mrf.mxu0
        %v1626 = vadd.f32 %v1406, %v1625
        %v1627 = vpop.f32.mrf.mxu0
        %v1628 = vadd.f32 %v1408, %v1627
        %1629 = vmatmul.bf16.gmra.mxu0 %v1549
        %v1630 = vpop.f32.mrf.mxu0
        %v1631 = vadd.f32 %v1411, %v1630
        %v1632 = vpop.f32.mrf.mxu0
        %v1633 = vadd.f32 %v1413, %v1632
        %1634 = vmatmul.bf16.gmra.mxu0 %v1552
        %v1635 = vpop.f32.mrf.mxu0
        %v1636 = vadd.f32 %v1416, %v1635
        %v1637 = vpop.f32.mrf.mxu0
        %v1638 = vadd.f32 %v1418, %v1637
        %1639 = vmatmul.bf16.gmra.mxu0 %v1555
        %v1640 = vpop.f32.mrf.mxu0
        %v1641 = vadd.f32 %v1421, %v1640
        %v1642 = vpop.f32.mrf.mxu0
        %v1643 = vadd.f32 %v1423, %v1642
        %1644 = vmatmul.bf16.gmra.mxu0 %v1558
        %v1645 = vpop.f32.mrf.mxu0
        %v1646 = vadd.f32 %v1426, %v1645
        %v1647 = vpop.f32.mrf.mxu0
        %v1648 = vadd.f32 %v1428, %v1647
        %1649 = vmatmul.bf16.gmra.mxu0 %v1561
        %v1650 = vpop.f32.mrf.mxu0
        %v1651 = vadd.f32 %v1431, %v1650
        %v1652 = vpop.f32.mrf.mxu0
        %v1653 = vadd.f32 %v1433, %v1652
        %1654 = vdwg.mxu0
        %v1655 = vld [vmem:[#allocation2] sm:$0xe]
        %v1656 = vld [vmem:[#allocation2 + $0xc] sm:$0xe]
        %v1657 = vld [vmem:[#allocation2 + $0x18] sm:$0xe]
        %v1658 = vld [vmem:[#allocation2 + $0x24] sm:$0xe]
        %v1659 = vld [vmem:[#allocation2 + $0x30] sm:$0xe]
        %v1660 = vld [vmem:[#allocation2 + $0x3c] sm:$0xe]
        %v1661 = vld [vmem:[#allocation2 + $0x48] sm:$0xe]
        %v1662 = vld [vmem:[#allocation2 + $0x54] sm:$0xe]
        %v1663 = vld [vmem:[#allocation2 + $0x60] sm:$0xe]
        %v1664 = vld [vmem:[#allocation2 + $0x6c] sm:$0xe]
        %v1665 = vld [vmem:[#allocation2 + $0x78] sm:$0xe]
        %v1666 = vld [vmem:[#allocation2 + $0x84] sm:$0xe]
        %v1667 = vld [vmem:[#allocation2 + $0x90] sm:$0xe]
        %v1668 = vld [vmem:[#allocation2 + $0x9c] sm:$0xe]
        %v1669 = vld [vmem:[#allocation2 + $0xa8] sm:$0xe]
        %v1670 = vld [vmem:[#allocation2 + $0xb4] sm:$0xe]
        %vm1703 = vcmask 1042432
        %vm1704 = vcmask 1046532
        %vm1705 = vmor %vm1703, %vm1704
        %v1706 = vrot.slane %v1655, 5
        %v1707 = vrot.slane %v1706, 4
        %v1708 = vrot.slane %v808, 5
        %v1709 = vsel %vm1705, %v1707, %v1708
        %v1710 = vrot.slane %v1708, 4
        %v1711 = vrot.slane %v840, 5
        %v1712 = vsel %vm1705, %v1710, %v1711
        %v1713 = vrot.slane %v1656, 5
        %v1714 = vrot.slane %v1713, 4
        %v1715 = vrot.slane %v810, 5
        %v1716 = vsel %vm1705, %v1714, %v1715
        %v1717 = vrot.slane %v1715, 4
        %v1718 = vrot.slane %v841, 5
        %v1719 = vsel %vm1705, %v1717, %v1718
        %v1720 = vrot.slane %v1657, 5
        %v1721 = vrot.slane %v1720, 4
        %v1722 = vrot.slane %v812, 5
        %v1723 = vsel %vm1705, %v1721, %v1722
        %v1724 = vrot.slane %v1722, 4
        %v1725 = vrot.slane %v842, 5
        %v1726 = vsel %vm1705, %v1724, %v1725
        %v1727 = vrot.slane %v1658, 5
        %v1728 = vrot.slane %v1727, 4
        %v1729 = vrot.slane %v814, 5
        %v1730 = vsel %vm1705, %v1728, %v1729
        %v1731 = vrot.slane %v1729, 4
        %v1732 = vrot.slane %v843, 5
        %v1733 = vsel %vm1705, %v1731, %v1732
        %v1734 = vrot.slane %v1659, 5
        %v1735 = vrot.slane %v1734, 4
        %v1736 = vrot.slane %v816, 5
        %v1737 = vsel %vm1705, %v1735, %v1736
        %v1738 = vrot.slane %v1736, 4
        %v1739 = vrot.slane %v844, 5
        %v1740 = vsel %vm1705, %v1738, %v1739
        %v1741 = vrot.slane %v1660, 5
        %v1742 = vrot.slane %v1741, 4
        %v1743 = vrot.slane %v818, 5
        %v1744 = vsel %vm1705, %v1742, %v1743
        %v1745 = vrot.slane %v1743, 4
        %v1746 = vrot.slane %v845, 5
        %v1747 = vsel %vm1705, %v1745, %v1746
        %v1748 = vrot.slane %v1661, 5
        %v1749 = vrot.slane %v1748, 4
        %v1750 = vrot.slane %v820, 5
        %v1751 = vsel %vm1705, %v1749, %v1750
        %v1752 = vrot.slane %v1750, 4
        %v1753 = vrot.slane %v846, 5
        %v1754 = vsel %vm1705, %v1752, %v1753
        %v1755 = vrot.slane %v1662, 5
        %v1756 = vrot.slane %v1755, 4
        %v1757 = vrot.slane %v822, 5
        %v1758 = vsel %vm1705, %v1756, %v1757
        %v1759 = vrot.slane %v1757, 4
        %v1760 = vrot.slane %v847, 5
        %v1761 = vsel %vm1705, %v1759, %v1760
        %v1762 = vrot.slane %v1663, 5
        %v1763 = vrot.slane %v1762, 4
        %v1764 = vrot.slane %v824, 5
        %v1765 = vsel %vm1705, %v1763, %v1764
        %v1766 = vrot.slane %v1764, 4
        %v1767 = vrot.slane %v848, 5
        %v1768 = vsel %vm1705, %v1766, %v1767
        %v1769 = vrot.slane %v1664, 5
        %v1770 = vrot.slane %v1769, 4
        %v1771 = vrot.slane %v826, 5
        %v1772 = vsel %vm1705, %v1770, %v1771
        %v1773 = vrot.slane %v1771, 4
        %v1774 = vrot.slane %v849, 5
        %v1775 = vsel %vm1705, %v1773, %v1774
        %v1776 = vrot.slane %v1665, 5
        %v1777 = vrot.slane %v1776, 4
        %v1778 = vrot.slane %v828, 5
        %v1779 = vsel %vm1705, %v1777, %v1778
        %v1780 = vrot.slane %v1778, 4
        %v1781 = vrot.slane %v850, 5
        %v1782 = vsel %vm1705, %v1780, %v1781
        %v1783 = vrot.slane %v1666, 5
        %v1784 = vrot.slane %v1783, 4
        %v1785 = vrot.slane %v830, 5
        %v1786 = vsel %vm1705, %v1784, %v1785
        %v1787 = vrot.slane %v1785, 4
        %v1788 = vrot.slane %v851, 5
        %v1789 = vsel %vm1705, %v1787, %v1788
        %v1790 = vrot.slane %v1667, 5
        %v1791 = vrot.slane %v1790, 4
        %v1792 = vrot.slane %v832, 5
        %v1793 = vsel %vm1705, %v1791, %v1792
        %v1794 = vrot.slane %v1792, 4
        %v1795 = vrot.slane %v852, 5
        %v1796 = vsel %vm1705, %v1794, %v1795
        %v1797 = vrot.slane %v1668, 5
        %v1798 = vrot.slane %v1797, 4
        %v1799 = vrot.slane %v834, 5
        %v1800 = vsel %vm1705, %v1798, %v1799
        %v1801 = vrot.slane %v1799, 4
        %v1802 = vrot.slane %v853, 5
        %v1803 = vsel %vm1705, %v1801, %v1802
        %v1804 = vrot.slane %v1669, 5
        %v1805 = vrot.slane %v1804, 4
        %v1806 = vrot.slane %v836, 5
        %v1807 = vsel %vm1705, %v1805, %v1806
        %v1808 = vrot.slane %v1806, 4
        %v1809 = vrot.slane %v854, 5
        %v1810 = vsel %vm1705, %v1808, %v1809
        %v1811 = vrot.slane %v1670, 5
        %v1812 = vrot.slane %v1811, 4
        %v1813 = vrot.slane %v838, 5
        %v1814 = vsel %vm1705, %v1812, %v1813
        %v1815 = vrot.slane %v1813, 4
        %v1816 = vrot.slane %v855, 5
        %v1817 = vsel %vm1705, %v1815, %v1816
        %s1818 = scalar_lea.vmem %s1, 4
        %v1819 = vld [vmem:[%s1818] sm:$0x3]
        %v1820 = vunpack.c.l.b16 %v1709
        %v1821 = vunpack.c.l.b16 %v1712
        %v1822 = vunpack.c.l.b16 %v1716
        %v1823 = vunpack.c.l.b16 %v1719
        %v1824 = vunpack.c.l.b16 %v1723
        %v1825 = vunpack.c.l.b16 %v1726
        %v1826 = vunpack.c.l.b16 %v1730
        %v1827 = vunpack.c.l.b16 %v1733
        %v1828 = vunpack.c.l.b16 %v1737
        %v1829 = vunpack.c.l.b16 %v1740
        %v1830 = vunpack.c.l.b16 %v1744
        %v1831 = vunpack.c.l.b16 %v1747
        %v1832 = vunpack.c.l.b16 %v1751
        %v1833 = vunpack.c.l.b16 %v1754
        %v1834 = vunpack.c.l.b16 %v1758
        %v1835 = vunpack.c.l.b16 %v1761
        %v1836 = vunpack.c.l.b16 %v1765
        %v1837 = vunpack.c.l.b16 %v1768
        %v1838 = vunpack.c.l.b16 %v1772
        %v1839 = vunpack.c.l.b16 %v1775
        %v1840 = vunpack.c.l.b16 %v1779
        %v1841 = vunpack.c.l.b16 %v1782
        %v1842 = vunpack.c.l.b16 %v1786
        %v1843 = vunpack.c.l.b16 %v1789
        %v1844 = vunpack.c.l.b16 %v1793
        %v1845 = vunpack.c.l.b16 %v1796
        %v1846 = vunpack.c.l.b16 %v1800
        %v1847 = vunpack.c.l.b16 %v1803
        %v1848 = vunpack.c.l.b16 %v1807
        %v1849 = vunpack.c.l.b16 %v1810
        %v1850 = vunpack.c.l.b16 %v1814
        %v1851 = vunpack.c.l.b16 %v1817
        %v1852 = vpack.c.b16 %v1821, %v1820
        %v1853 = vpack.c.b16 %v1823, %v1822
        %v1854 = vpack.c.b16 %v1825, %v1824
        %v1855 = vpack.c.b16 %v1827, %v1826
        %v1856 = vpack.c.b16 %v1829, %v1828
        %v1857 = vpack.c.b16 %v1831, %v1830
        %v1858 = vpack.c.b16 %v1833, %v1832
        %v1859 = vpack.c.b16 %v1835, %v1834
        %v1860 = vpack.c.b16 %v1837, %v1836
        %v1861 = vpack.c.b16 %v1839, %v1838
        %v1862 = vpack.c.b16 %v1841, %v1840
        %v1863 = vpack.c.b16 %v1843, %v1842
        %v1864 = vpack.c.b16 %v1845, %v1844
        %v1865 = vpack.c.b16 %v1847, %v1846
        %v1866 = vpack.c.b16 %v1849, %v1848
        %v1867 = vpack.c.b16 %v1851, %v1850
        %v1869 = vsel %vm1293, %v1852, 0
        %v1872 = vsel %vm1293, %v1853, 0
        %v1875 = vsel %vm1293, %v1854, 0
        %v1878 = vsel %vm1293, %v1855, 0
        %v1881 = vsel %vm1293, %v1856, 0
        %v1884 = vsel %vm1293, %v1857, 0
        %v1887 = vsel %vm1293, %v1858, 0
        %v1890 = vsel %vm1293, %v1859, 0
        %v1893 = vsel %vm1293, %v1860, 0
        %v1896 = vsel %vm1293, %v1861, 0
        %v1899 = vsel %vm1293, %v1862, 0
        %v1902 = vsel %vm1293, %v1863, 0
        %v1905 = vsel %vm1293, %v1864, 0
        %v1908 = vsel %vm1293, %v1865, 0
        %v1911 = vsel %vm1293, %v1866, 0
        %v1914 = vsel %vm1293, %v1867, 0
        %v1917 = vsel %vm1342, %v1819, 0
        %1919 = vmatpush.bf16.msra.mxu0 0
        %1920 = vmatpush.bf16.msra.mxu0 0
        %1921 = vmatpush.bf16.msra.mxu0 0
        %1922 = vmatpush.bf16.msra.mxu0 0
        %1923 = vmatpush.bf16.msra.mxu0 0
        %1924 = vmatpush.bf16.msra.mxu0 0
        %1925 = vmatpush.bf16.msra.mxu0 0
        %1926 = vmatpush.bf16.msra.mxu0 %v1917
        %1927 = vmatmul.bf16.gmra.mxu0 %v1869
        %v1928 = vpop.f32.mrf.mxu0
        %v1929 = vadd.f32 0.0, %v1928
        %v1930 = vpop.f32.mrf.mxu0
        %v1931 = vadd.f32 0.0, %v1930
        %1932 = vmatmul.bf16.gmra.mxu0 %v1872
        %v1933 = vpop.f32.mrf.mxu0
        %v1934 = vadd.f32 0.0, %v1933
        %v1935 = vpop.f32.mrf.mxu0
        %v1936 = vadd.f32 0.0, %v1935
        %1937 = vmatmul.bf16.gmra.mxu0 %v1875
        %v1938 = vpop.f32.mrf.mxu0
        %v1939 = vadd.f32 0.0, %v1938
        %v1940 = vpop.f32.mrf.mxu0
        %v1941 = vadd.f32 0.0, %v1940
        %1942 = vmatmul.bf16.gmra.mxu0 %v1878
        %v1943 = vpop.f32.mrf.mxu0
        %v1944 = vadd.f32 0.0, %v1943
        %v1945 = vpop.f32.mrf.mxu0
        %v1946 = vadd.f32 0.0, %v1945
        %1947 = vmatmul.bf16.gmra.mxu0 %v1881
        %v1948 = vpop.f32.mrf.mxu0
        %v1949 = vadd.f32 0.0, %v1948
        %v1950 = vpop.f32.mrf.mxu0
        %v1951 = vadd.f32 0.0, %v1950
        %1952 = vmatmul.bf16.gmra.mxu0 %v1884
        %v1953 = vpop.f32.mrf.mxu0
        %v1954 = vadd.f32 0.0, %v1953
        %v1955 = vpop.f32.mrf.mxu0
        %v1956 = vadd.f32 0.0, %v1955
        %1957 = vmatmul.bf16.gmra.mxu0 %v1887
        %v1958 = vpop.f32.mrf.mxu0
        %v1959 = vadd.f32 0.0, %v1958
        %v1960 = vpop.f32.mrf.mxu0
        %v1961 = vadd.f32 0.0, %v1960
        %1962 = vmatmul.bf16.gmra.mxu0 %v1890
        %v1963 = vpop.f32.mrf.mxu0
        %v1964 = vadd.f32 0.0, %v1963
        %v1965 = vpop.f32.mrf.mxu0
        %v1966 = vadd.f32 0.0, %v1965
        %1967 = vmatmul.bf16.gmra.mxu0 %v1893
        %v1968 = vpop.f32.mrf.mxu0
        %v1969 = vadd.f32 0.0, %v1968
        %v1970 = vpop.f32.mrf.mxu0
        %v1971 = vadd.f32 0.0, %v1970
        %1972 = vmatmul.bf16.gmra.mxu0 %v1896
        %v1973 = vpop.f32.mrf.mxu0
        %v1974 = vadd.f32 0.0, %v1973
        %v1975 = vpop.f32.mrf.mxu0
        %v1976 = vadd.f32 0.0, %v1975
        %1977 = vmatmul.bf16.gmra.mxu0 %v1899
        %v1978 = vpop.f32.mrf.mxu0
        %v1979 = vadd.f32 0.0, %v1978
        %v1980 = vpop.f32.mrf.mxu0
        %v1981 = vadd.f32 0.0, %v1980
        %1982 = vmatmul.bf16.gmra.mxu0 %v1902
        %v1983 = vpop.f32.mrf.mxu0
        %v1984 = vadd.f32 0.0, %v1983
        %v1985 = vpop.f32.mrf.mxu0
        %v1986 = vadd.f32 0.0, %v1985
        %1987 = vmatmul.bf16.gmra.mxu0 %v1905
        %v1988 = vpop.f32.mrf.mxu0
        %v1989 = vadd.f32 0.0, %v1988
        %v1990 = vpop.f32.mrf.mxu0
        %v1991 = vadd.f32 0.0, %v1990
        %1992 = vmatmul.bf16.gmra.mxu0 %v1908
        %v1993 = vpop.f32.mrf.mxu0
        %v1994 = vadd.f32 0.0, %v1993
        %v1995 = vpop.f32.mrf.mxu0
        %v1996 = vadd.f32 0.0, %v1995
        %1997 = vmatmul.bf16.gmra.mxu0 %v1911
        %v1998 = vpop.f32.mrf.mxu0
        %v1999 = vadd.f32 0.0, %v1998
        %v2000 = vpop.f32.mrf.mxu0
        %v2001 = vadd.f32 0.0, %v2000
        %2002 = vmatmul.bf16.gmra.mxu0 %v1914
        %v2003 = vpop.f32.mrf.mxu0
        %v2004 = vadd.f32 0.0, %v2003
        %v2005 = vpop.f32.mrf.mxu0
        %v2006 = vadd.f32 0.0, %v2005
        %2007 = vdwg.mxu0
        %v2008 = vadd.f32 %v1576, %v1929
        %v2009 = vadd.f32 %v1578, %v1931
        %v2010 = vadd.f32 %v1581, %v1934
        %v2011 = vadd.f32 %v1583, %v1936
        %v2012 = vadd.f32 %v1586, %v1939
        %v2013 = vadd.f32 %v1588, %v1941
        %v2014 = vadd.f32 %v1591, %v1944
        %v2015 = vadd.f32 %v1593, %v1946
        %v2016 = vadd.f32 %v1596, %v1949
        %v2017 = vadd.f32 %v1598, %v1951
        %v2018 = vadd.f32 %v1601, %v1954
        %v2019 = vadd.f32 %v1603, %v1956
        %v2020 = vadd.f32 %v1606, %v1959
        %v2021 = vadd.f32 %v1608, %v1961
        %v2022 = vadd.f32 %v1611, %v1964
        %v2023 = vadd.f32 %v1613, %v1966
        %v2024 = vadd.f32 %v1616, %v1969
        %v2025 = vadd.f32 %v1618, %v1971
        %v2026 = vadd.f32 %v1621, %v1974
        %v2027 = vadd.f32 %v1623, %v1976
        %v2028 = vadd.f32 %v1626, %v1979
        %v2029 = vadd.f32 %v1628, %v1981
        %v2030 = vadd.f32 %v1631, %v1984
        %v2031 = vadd.f32 %v1633, %v1986
        %v2032 = vadd.f32 %v1636, %v1989
        %v2033 = vadd.f32 %v1638, %v1991
        %v2034 = vadd.f32 %v1641, %v1994
        %v2035 = vadd.f32 %v1643, %v1996
        %v2036 = vadd.f32 %v1646, %v1999
        %v2037 = vadd.f32 %v1648, %v2001
        %v2038 = vadd.f32 %v1651, %v2004
        %v2039 = vadd.f32 %v1653, %v2006
        %v2040 = vld [vmem:[%s689] sm:$0xf]
        %v2041 = vld [vmem:[%s689 + $0x4] sm:$0xf]
        %v2042 = vld [vmem:[%s689 + $0xc] sm:$0xf]
        %v2043 = vld [vmem:[%s689 + $0x10] sm:$0xf]
        %v2044 = vld [vmem:[%s689 + $0x18] sm:$0xf]
        %v2045 = vld [vmem:[%s689 + $0x1c] sm:$0xf]
        %v2046 = vld [vmem:[%s689 + $0x24] sm:$0xf]
        %v2047 = vld [vmem:[%s689 + $0x28] sm:$0xf]
        %v2048 = vld [vmem:[%s689 + $0x30] sm:$0xf]
        %v2049 = vld [vmem:[%s689 + $0x34] sm:$0xf]
        %v2050 = vld [vmem:[%s689 + $0x3c] sm:$0xf]
        %v2051 = vld [vmem:[%s689 + $0x40] sm:$0xf]
        %v2052 = vld [vmem:[%s689 + $0x48] sm:$0xf]
        %v2053 = vld [vmem:[%s689 + $0x4c] sm:$0xf]
        %v2054 = vld [vmem:[%s689 + $0x54] sm:$0xf]
        %v2055 = vld [vmem:[%s689 + $0x58] sm:$0xf]
        %v2056 = vld [vmem:[%s689 + $0x60] sm:$0xf]
        %v2057 = vld [vmem:[%s689 + $0x64] sm:$0xf]
        %v2058 = vld [vmem:[%s689 + $0x6c] sm:$0xf]
        %v2059 = vld [vmem:[%s689 + $0x70] sm:$0xf]
        %v2060 = vld [vmem:[%s689 + $0x78] sm:$0xf]
        %v2061 = vld [vmem:[%s689 + $0x7c] sm:$0xf]
        %v2062 = vld [vmem:[%s689 + $0x84] sm:$0xf]
        %v2063 = vld [vmem:[%s689 + $0x88] sm:$0xf]
        %v2064 = vld [vmem:[%s689 + $0x90] sm:$0xf]
        %v2065 = vld [vmem:[%s689 + $0x94] sm:$0xf]
        %v2066 = vld [vmem:[%s689 + $0x9c] sm:$0xf]
        %v2067 = vld [vmem:[%s689 + $0xa0] sm:$0xf]
        %v2068 = vld [vmem:[%s689 + $0xa8] sm:$0xf]
        %v2069 = vld [vmem:[%s689 + $0xac] sm:$0xf]
        %v2070 = vld [vmem:[%s689 + $0xb4] sm:$0xf]
        %v2071 = vld [vmem:[%s689 + $0xb8] sm:$0xf]
        %s2072 = scalar_lea.vmem %s1, 6
        %v2073 = vld [vmem:[%s2072] sm:$0x3]
        %v2106 = vunpack.c.l.b16 %v2040
        %v2107 = vunpack.c.l.b16 %v2041
        %v2108 = vunpack.c.l.b16 %v2042
        %v2109 = vunpack.c.l.b16 %v2043
        %v2110 = vunpack.c.l.b16 %v2044
        %v2111 = vunpack.c.l.b16 %v2045
        %v2112 = vunpack.c.l.b16 %v2046
        %v2113 = vunpack.c.l.b16 %v2047
        %v2114 = vunpack.c.l.b16 %v2048
        %v2115 = vunpack.c.l.b16 %v2049
        %v2116 = vunpack.c.l.b16 %v2050
        %v2117 = vunpack.c.l.b16 %v2051
        %v2118 = vunpack.c.l.b16 %v2052
        %v2119 = vunpack.c.l.b16 %v2053
        %v2120 = vunpack.c.l.b16 %v2054
        %v2121 = vunpack.c.l.b16 %v2055
        %v2122 = vunpack.c.l.b16 %v2056
        %v2123 = vunpack.c.l.b16 %v2057
        %v2124 = vunpack.c.l.b16 %v2058
        %v2125 = vunpack.c.l.b16 %v2059
        %v2126 = vunpack.c.l.b16 %v2060
        %v2127 = vunpack.c.l.b16 %v2061
        %v2128 = vunpack.c.l.b16 %v2062
        %v2129 = vunpack.c.l.b16 %v2063
        %v2130 = vunpack.c.l.b16 %v2064
        %v2131 = vunpack.c.l.b16 %v2065
        %v2132 = vunpack.c.l.b16 %v2066
        %v2133 = vunpack.c.l.b16 %v2067
        %v2134 = vunpack.c.l.b16 %v2068
        %v2135 = vunpack.c.l.b16 %v2069
        %v2136 = vunpack.c.l.b16 %v2070
        %v2137 = vunpack.c.l.b16 %v2071
        %v2138 = vpack.c.b16 %v2107, %v2106
        %v2139 = vpack.c.b16 %v2109, %v2108
        %v2140 = vpack.c.b16 %v2111, %v2110
        %v2141 = vpack.c.b16 %v2113, %v2112
        %v2142 = vpack.c.b16 %v2115, %v2114
        %v2143 = vpack.c.b16 %v2117, %v2116
        %v2144 = vpack.c.b16 %v2119, %v2118
        %v2145 = vpack.c.b16 %v2121, %v2120
        %v2146 = vpack.c.b16 %v2123, %v2122
        %v2147 = vpack.c.b16 %v2125, %v2124
        %v2148 = vpack.c.b16 %v2127, %v2126
        %v2149 = vpack.c.b16 %v2129, %v2128
        %v2150 = vpack.c.b16 %v2131, %v2130
        %v2151 = vpack.c.b16 %v2133, %v2132
        %v2152 = vpack.c.b16 %v2135, %v2134
        %v2153 = vpack.c.b16 %v2137, %v2136
        %v2155 = vsel %vm1293, %v2138, 0
        %v2158 = vsel %vm1293, %v2139, 0
        %v2161 = vsel %vm1293, %v2140, 0
        %v2164 = vsel %vm1293, %v2141, 0
        %v2167 = vsel %vm1293, %v2142, 0
        %v2170 = vsel %vm1293, %v2143, 0
        %v2173 = vsel %vm1293, %v2144, 0
        %v2176 = vsel %vm1293, %v2145, 0
        %v2179 = vsel %vm1293, %v2146, 0
        %v2182 = vsel %vm1293, %v2147, 0
        %v2185 = vsel %vm1293, %v2148, 0
        %v2188 = vsel %vm1293, %v2149, 0
        %v2191 = vsel %vm1293, %v2150, 0
        %v2194 = vsel %vm1293, %v2151, 0
        %v2197 = vsel %vm1293, %v2152, 0
        %v2200 = vsel %vm1293, %v2153, 0
        %v2203 = vsel %vm1342, %v2073, 0
        %2205 = vmatpush.bf16.msra.mxu0 0
        %2206 = vmatpush.bf16.msra.mxu0 0
        %2207 = vmatpush.bf16.msra.mxu0 0
        %2208 = vmatpush.bf16.msra.mxu0 0
        %2209 = vmatpush.bf16.msra.mxu0 0
        %2210 = vmatpush.bf16.msra.mxu0 0
        %2211 = vmatpush.bf16.msra.mxu0 0
        %2212 = vmatpush.bf16.msra.mxu0 %v2203
        %2213 = vmatmul.bf16.gmra.mxu0 %v2155
        %v2214 = vpop.f32.mrf.mxu0
        %v2215 = vadd.f32 0.0, %v2214
        %v2216 = vpop.f32.mrf.mxu0
        %v2217 = vadd.f32 0.0, %v2216
        %2218 = vmatmul.bf16.gmra.mxu0 %v2158
        %v2219 = vpop.f32.mrf.mxu0
        %v2220 = vadd.f32 0.0, %v2219
        %v2221 = vpop.f32.mrf.mxu0
        %v2222 = vadd.f32 0.0, %v2221
        %2223 = vmatmul.bf16.gmra.mxu0 %v2161
        %v2224 = vpop.f32.mrf.mxu0
        %v2225 = vadd.f32 0.0, %v2224
        %v2226 = vpop.f32.mrf.mxu0
        %v2227 = vadd.f32 0.0, %v2226
        %2228 = vmatmul.bf16.gmra.mxu0 %v2164
        %v2229 = vpop.f32.mrf.mxu0
        %v2230 = vadd.f32 0.0, %v2229
        %v2231 = vpop.f32.mrf.mxu0
        %v2232 = vadd.f32 0.0, %v2231
        %2233 = vmatmul.bf16.gmra.mxu0 %v2167
        %v2234 = vpop.f32.mrf.mxu0
        %v2235 = vadd.f32 0.0, %v2234
        %v2236 = vpop.f32.mrf.mxu0
        %v2237 = vadd.f32 0.0, %v2236
        %2238 = vmatmul.bf16.gmra.mxu0 %v2170
        %v2239 = vpop.f32.mrf.mxu0
        %v2240 = vadd.f32 0.0, %v2239
        %v2241 = vpop.f32.mrf.mxu0
        %v2242 = vadd.f32 0.0, %v2241
        %2243 = vmatmul.bf16.gmra.mxu0 %v2173
        %v2244 = vpop.f32.mrf.mxu0
        %v2245 = vadd.f32 0.0, %v2244
        %v2246 = vpop.f32.mrf.mxu0
        %v2247 = vadd.f32 0.0, %v2246
        %2248 = vmatmul.bf16.gmra.mxu0 %v2176
        %v2249 = vpop.f32.mrf.mxu0
        %v2250 = vadd.f32 0.0, %v2249
        %v2251 = vpop.f32.mrf.mxu0
        %v2252 = vadd.f32 0.0, %v2251
        %2253 = vmatmul.bf16.gmra.mxu0 %v2179
        %v2254 = vpop.f32.mrf.mxu0
        %v2255 = vadd.f32 0.0, %v2254
        %v2256 = vpop.f32.mrf.mxu0
        %v2257 = vadd.f32 0.0, %v2256
        %2258 = vmatmul.bf16.gmra.mxu0 %v2182
        %v2259 = vpop.f32.mrf.mxu0
        %v2260 = vadd.f32 0.0, %v2259
        %v2261 = vpop.f32.mrf.mxu0
        %v2262 = vadd.f32 0.0, %v2261
        %2263 = vmatmul.bf16.gmra.mxu0 %v2185
        %v2264 = vpop.f32.mrf.mxu0
        %v2265 = vadd.f32 0.0, %v2264
        %v2266 = vpop.f32.mrf.mxu0
        %v2267 = vadd.f32 0.0, %v2266
        %2268 = vmatmul.bf16.gmra.mxu0 %v2188
        %v2269 = vpop.f32.mrf.mxu0
        %v2270 = vadd.f32 0.0, %v2269
        %v2271 = vpop.f32.mrf.mxu0
        %v2272 = vadd.f32 0.0, %v2271
        %2273 = vmatmul.bf16.gmra.mxu0 %v2191
        %v2274 = vpop.f32.mrf.mxu0
        %v2275 = vadd.f32 0.0, %v2274
        %v2276 = vpop.f32.mrf.mxu0
        %v2277 = vadd.f32 0.0, %v2276
        %2278 = vmatmul.bf16.gmra.mxu0 %v2194
        %v2279 = vpop.f32.mrf.mxu0
        %v2280 = vadd.f32 0.0, %v2279
        %v2281 = vpop.f32.mrf.mxu0
        %v2282 = vadd.f32 0.0, %v2281
        %2283 = vmatmul.bf16.gmra.mxu0 %v2197
        %v2284 = vpop.f32.mrf.mxu0
        %v2285 = vadd.f32 0.0, %v2284
        %v2286 = vpop.f32.mrf.mxu0
        %v2287 = vadd.f32 0.0, %v2286
        %2288 = vmatmul.bf16.gmra.mxu0 %v2200
        %v2289 = vpop.f32.mrf.mxu0
        %v2290 = vadd.f32 0.0, %v2289
        %v2291 = vpop.f32.mrf.mxu0
        %v2292 = vadd.f32 0.0, %v2291
        %2293 = vdwg.mxu0
        %v2294 = vadd.f32 %v2008, %v2215
        %v2295 = vadd.f32 %v2009, %v2217
        %v2296 = vadd.f32 %v2010, %v2220
        %v2297 = vadd.f32 %v2011, %v2222
        %v2298 = vadd.f32 %v2012, %v2225
        %v2299 = vadd.f32 %v2013, %v2227
        %v2300 = vadd.f32 %v2014, %v2230
        %v2301 = vadd.f32 %v2015, %v2232
        %v2302 = vadd.f32 %v2016, %v2235
        %v2303 = vadd.f32 %v2017, %v2237
        %v2304 = vadd.f32 %v2018, %v2240
        %v2305 = vadd.f32 %v2019, %v2242
        %v2306 = vadd.f32 %v2020, %v2245
        %v2307 = vadd.f32 %v2021, %v2247
        %v2308 = vadd.f32 %v2022, %v2250
        %v2309 = vadd.f32 %v2023, %v2252
        %v2310 = vadd.f32 %v2024, %v2255
        %v2311 = vadd.f32 %v2025, %v2257
        %v2312 = vadd.f32 %v2026, %v2260
        %v2313 = vadd.f32 %v2027, %v2262
        %v2314 = vadd.f32 %v2028, %v2265
        %v2315 = vadd.f32 %v2029, %v2267
        %v2316 = vadd.f32 %v2030, %v2270
        %v2317 = vadd.f32 %v2031, %v2272
        %v2318 = vadd.f32 %v2032, %v2275
        %v2319 = vadd.f32 %v2033, %v2277
        %v2320 = vadd.f32 %v2034, %v2280
        %v2321 = vadd.f32 %v2035, %v2282
        %v2322 = vadd.f32 %v2036, %v2285
        %v2323 = vadd.f32 %v2037, %v2287
        %v2324 = vadd.f32 %v2038, %v2290
        %v2325 = vadd.f32 %v2039, %v2292
        %v2326 = vld [vmem:[%s689] sm:$0xf]
        %v2327 = vld [vmem:[%s689 + $0x4] sm:$0xf]
        %v2328 = vld [vmem:[%s689 + $0x8] sm:$0x1]
        %v2329 = vld [vmem:[%s689 + $0xc] sm:$0xf]
        %v2330 = vld [vmem:[%s689 + $0x10] sm:$0xf]
        %v2331 = vld [vmem:[%s689 + $0x14] sm:$0x1]
        %v2332 = vld [vmem:[%s689 + $0x18] sm:$0xf]
        %v2333 = vld [vmem:[%s689 + $0x1c] sm:$0xf]
        %v2334 = vld [vmem:[%s689 + $0x20] sm:$0x1]
        %v2335 = vld [vmem:[%s689 + $0x24] sm:$0xf]
        %v2336 = vld [vmem:[%s689 + $0x28] sm:$0xf]
        %v2337 = vld [vmem:[%s689 + $0x2c] sm:$0x1]
        %v2338 = vld [vmem:[%s689 + $0x30] sm:$0xf]
        %v2339 = vld [vmem:[%s689 + $0x34] sm:$0xf]
        %v2340 = vld [vmem:[%s689 + $0x38] sm:$0x1]
        %v2341 = vld [vmem:[%s689 + $0x3c] sm:$0xf]
        %v2342 = vld [vmem:[%s689 + $0x40] sm:$0xf]
        %v2343 = vld [vmem:[%s689 + $0x44] sm:$0x1]
        %v2344 = vld [vmem:[%s689 + $0x48] sm:$0xf]
        %v2345 = vld [vmem:[%s689 + $0x4c] sm:$0xf]
        %v2346 = vld [vmem:[%s689 + $0x50] sm:$0x1]
        %v2347 = vld [vmem:[%s689 + $0x54] sm:$0xf]
        %v2348 = vld [vmem:[%s689 + $0x58] sm:$0xf]
        %v2349 = vld [vmem:[%s689 + $0x5c] sm:$0x1]
        %v2350 = vld [vmem:[%s689 + $0x60] sm:$0xf]
        %v2351 = vld [vmem:[%s689 + $0x64] sm:$0xf]
        %v2352 = vld [vmem:[%s689 + $0x68] sm:$0x1]
        %v2353 = vld [vmem:[%s689 + $0x6c] sm:$0xf]
        %v2354 = vld [vmem:[%s689 + $0x70] sm:$0xf]
        %v2355 = vld [vmem:[%s689 + $0x74] sm:$0x1]
        %v2356 = vld [vmem:[%s689 + $0x78] sm:$0xf]
        %v2357 = vld [vmem:[%s689 + $0x7c] sm:$0xf]
        %v2358 = vld [vmem:[%s689 + $0x80] sm:$0x1]
        %v2359 = vld [vmem:[%s689 + $0x84] sm:$0xf]
        %v2360 = vld [vmem:[%s689 + $0x88] sm:$0xf]
        %v2361 = vld [vmem:[%s689 + $0x8c] sm:$0x1]
        %v2362 = vld [vmem:[%s689 + $0x90] sm:$0xf]
        %v2363 = vld [vmem:[%s689 + $0x94] sm:$0xf]
        %v2364 = vld [vmem:[%s689 + $0x98] sm:$0x1]
        %v2365 = vld [vmem:[%s689 + $0x9c] sm:$0xf]
        %v2366 = vld [vmem:[%s689 + $0xa0] sm:$0xf]
        %v2367 = vld [vmem:[%s689 + $0xa4] sm:$0x1]
        %v2368 = vld [vmem:[%s689 + $0xa8] sm:$0xf]
        %v2369 = vld [vmem:[%s689 + $0xac] sm:$0xf]
        %v2370 = vld [vmem:[%s689 + $0xb0] sm:$0x1]
        %v2371 = vld [vmem:[%s689 + $0xb4] sm:$0xf]
        %v2372 = vld [vmem:[%s689 + $0xb8] sm:$0xf]
        %v2373 = vld [vmem:[%s689 + $0xbc] sm:$0x1]
        %v2375 = vshrl.u32 %v2326, 16
        %v2377 = vrot.slane %v2375, 4
        %v2378 = vshll.u32 %v2326, 16
        %v2380 = vrot.slane %v2378, 5
        %v2381 = vor.u32 %v2377, %v2380
        %v2382 = vrot.slane %v2381, 4
        %v2384 = vshll.u32 %v2327, 16
        %v2386 = vrot.slane %v2384, 5
        %v2387 = vsel %vm858, %v2382, %v2386
        %v2388 = vshrl.u32 %v2327, 16
        %v2390 = vrot.slane %v2388, 4
        %v2391 = vor.u32 %v2390, %v2386
        %v2392 = vrot.slane %v2391, 4
        %v2394 = vshll.u32 %v2328, 16
        %v2396 = vrot.slane %v2394, 5
        %v2397 = vsel %vm858, %v2392, %v2396
        %v2399 = vshrl.u32 %v2329, 16
        %v2401 = vrot.slane %v2399, 4
        %v2402 = vshll.u32 %v2329, 16
        %v2404 = vrot.slane %v2402, 5
        %v2405 = vor.u32 %v2401, %v2404
        %v2406 = vrot.slane %v2405, 4
        %v2408 = vshll.u32 %v2330, 16
        %v2410 = vrot.slane %v2408, 5
        %v2411 = vsel %vm858, %v2406, %v2410
        %v2412 = vshrl.u32 %v2330, 16
        %v2414 = vrot.slane %v2412, 4
        %v2415 = vor.u32 %v2414, %v2410
        %v2416 = vrot.slane %v2415, 4
        %v2418 = vshll.u32 %v2331, 16
        %v2420 = vrot.slane %v2418, 5
        %v2421 = vsel %vm858, %v2416, %v2420
        %v2423 = vshrl.u32 %v2332, 16
        %v2425 = vrot.slane %v2423, 4
        %v2426 = vshll.u32 %v2332, 16
        %v2428 = vrot.slane %v2426, 5
        %v2429 = vor.u32 %v2425, %v2428
        %v2430 = vrot.slane %v2429, 4
        %v2432 = vshll.u32 %v2333, 16
        %v2434 = vrot.slane %v2432, 5
        %v2435 = vsel %vm858, %v2430, %v2434
        %v2436 = vshrl.u32 %v2333, 16
        %v2438 = vrot.slane %v2436, 4
        %v2439 = vor.u32 %v2438, %v2434
        %v2440 = vrot.slane %v2439, 4
        %v2442 = vshll.u32 %v2334, 16
        %v2444 = vrot.slane %v2442, 5
        %v2445 = vsel %vm858, %v2440, %v2444
        %v2447 = vshrl.u32 %v2335, 16
        %v2449 = vrot.slane %v2447, 4
        %v2450 = vshll.u32 %v2335, 16
        %v2452 = vrot.slane %v2450, 5
        %v2453 = vor.u32 %v2449, %v2452
        %v2454 = vrot.slane %v2453, 4
        %v2456 = vshll.u32 %v2336, 16
        %v2458 = vrot.slane %v2456, 5
        %v2459 = vsel %vm858, %v2454, %v2458
        %v2460 = vshrl.u32 %v2336, 16
        %v2462 = vrot.slane %v2460, 4
        %v2463 = vor.u32 %v2462, %v2458
        %v2464 = vrot.slane %v2463, 4
        %v2466 = vshll.u32 %v2337, 16
        %v2468 = vrot.slane %v2466, 5
        %v2469 = vsel %vm858, %v2464, %v2468
        %v2471 = vshrl.u32 %v2338, 16
        %v2473 = vrot.slane %v2471, 4
        %v2474 = vshll.u32 %v2338, 16
        %v2476 = vrot.slane %v2474, 5
        %v2477 = vor.u32 %v2473, %v2476
        %v2478 = vrot.slane %v2477, 4
        %v2480 = vshll.u32 %v2339, 16
        %v2482 = vrot.slane %v2480, 5
        %v2483 = vsel %vm858, %v2478, %v2482
        %v2484 = vshrl.u32 %v2339, 16
        %v2486 = vrot.slane %v2484, 4
        %v2487 = vor.u32 %v2486, %v2482
        %v2488 = vrot.slane %v2487, 4
        %v2490 = vshll.u32 %v2340, 16
        %v2492 = vrot.slane %v2490, 5
        %v2493 = vsel %vm858, %v2488, %v2492
        %v2495 = vshrl.u32 %v2341, 16
        %v2497 = vrot.slane %v2495, 4
        %v2498 = vshll.u32 %v2341, 16
        %v2500 = vrot.slane %v2498, 5
        %v2501 = vor.u32 %v2497, %v2500
        %v2502 = vrot.slane %v2501, 4
        %v2504 = vshll.u32 %v2342, 16
        %v2506 = vrot.slane %v2504, 5
        %v2507 = vsel %vm858, %v2502, %v2506
        %v2508 = vshrl.u32 %v2342, 16
        %v2510 = vrot.slane %v2508, 4
        %v2511 = vor.u32 %v2510, %v2506
        %v2512 = vrot.slane %v2511, 4
        %v2514 = vshll.u32 %v2343, 16
        %v2516 = vrot.slane %v2514, 5
        %v2517 = vsel %vm858, %v2512, %v2516
        %v2519 = vshrl.u32 %v2344, 16
        %v2521 = vrot.slane %v2519, 4
        %v2522 = vshll.u32 %v2344, 16
        %v2524 = vrot.slane %v2522, 5
        %v2525 = vor.u32 %v2521, %v2524
        %v2526 = vrot.slane %v2525, 4
        %v2528 = vshll.u32 %v2345, 16
        %v2530 = vrot.slane %v2528, 5
        %v2531 = vsel %vm858, %v2526, %v2530
        %v2532 = vshrl.u32 %v2345, 16
        %v2534 = vrot.slane %v2532, 4
        %v2535 = vor.u32 %v2534, %v2530
        %v2536 = vrot.slane %v2535, 4
        %v2538 = vshll.u32 %v2346, 16
        %v2540 = vrot.slane %v2538, 5
        %v2541 = vsel %vm858, %v2536, %v2540
        %v2543 = vshrl.u32 %v2347, 16
        %v2545 = vrot.slane %v2543, 4
        %v2546 = vshll.u32 %v2347, 16
        %v2548 = vrot.slane %v2546, 5
        %v2549 = vor.u32 %v2545, %v2548
        %v2550 = vrot.slane %v2549, 4
        %v2552 = vshll.u32 %v2348, 16
        %v2554 = vrot.slane %v2552, 5
        %v2555 = vsel %vm858, %v2550, %v2554
        %v2556 = vshrl.u32 %v2348, 16
        %v2558 = vrot.slane %v2556, 4
        %v2559 = vor.u32 %v2558, %v2554
        %v2560 = vrot.slane %v2559, 4
        %v2562 = vshll.u32 %v2349, 16
        %v2564 = vrot.slane %v2562, 5
        %v2565 = vsel %vm858, %v2560, %v2564
        %v2567 = vshrl.u32 %v2350, 16
        %v2569 = vrot.slane %v2567, 4
        %v2570 = vshll.u32 %v2350, 16
        %v2572 = vrot.slane %v2570, 5
        %v2573 = vor.u32 %v2569, %v2572
        %v2574 = vrot.slane %v2573, 4
        %v2576 = vshll.u32 %v2351, 16
        %v2578 = vrot.slane %v2576, 5
        %v2579 = vsel %vm858, %v2574, %v2578
        %v2580 = vshrl.u32 %v2351, 16
        %v2582 = vrot.slane %v2580, 4
        %v2583 = vor.u32 %v2582, %v2578
        %v2584 = vrot.slane %v2583, 4
        %v2586 = vshll.u32 %v2352, 16
        %v2588 = vrot.slane %v2586, 5
        %v2589 = vsel %vm858, %v2584, %v2588
        %v2591 = vshrl.u32 %v2353, 16
        %v2593 = vrot.slane %v2591, 4
        %v2594 = vshll.u32 %v2353, 16
        %v2596 = vrot.slane %v2594, 5
        %v2597 = vor.u32 %v2593, %v2596
        %v2598 = vrot.slane %v2597, 4
        %v2600 = vshll.u32 %v2354, 16
        %v2602 = vrot.slane %v2600, 5
        %v2603 = vsel %vm858, %v2598, %v2602
        %v2604 = vshrl.u32 %v2354, 16
        %v2606 = vrot.slane %v2604, 4
        %v2607 = vor.u32 %v2606, %v2602
        %v2608 = vrot.slane %v2607, 4
        %v2610 = vshll.u32 %v2355, 16
        %v2612 = vrot.slane %v2610, 5
        %v2613 = vsel %vm858, %v2608, %v2612
        %v2615 = vshrl.u32 %v2356, 16
        %v2617 = vrot.slane %v2615, 4
        %v2618 = vshll.u32 %v2356, 16
        %v2620 = vrot.slane %v2618, 5
        %v2621 = vor.u32 %v2617, %v2620
        %v2622 = vrot.slane %v2621, 4
        %v2624 = vshll.u32 %v2357, 16
        %v2626 = vrot.slane %v2624, 5
        %v2627 = vsel %vm858, %v2622, %v2626
        %v2628 = vshrl.u32 %v2357, 16
        %v2630 = vrot.slane %v2628, 4
        %v2631 = vor.u32 %v2630, %v2626
        %v2632 = vrot.slane %v2631, 4
        %v2634 = vshll.u32 %v2358, 16
        %v2636 = vrot.slane %v2634, 5
        %v2637 = vsel %vm858, %v2632, %v2636
        %v2639 = vshrl.u32 %v2359, 16
        %v2641 = vrot.slane %v2639, 4
        %v2642 = vshll.u32 %v2359, 16
        %v2644 = vrot.slane %v2642, 5
        %v2645 = vor.u32 %v2641, %v2644
        %v2646 = vrot.slane %v2645, 4
        %v2648 = vshll.u32 %v2360, 16
        %v2650 = vrot.slane %v2648, 5
        %v2651 = vsel %vm858, %v2646, %v2650
        %v2652 = vshrl.u32 %v2360, 16
        %v2654 = vrot.slane %v2652, 4
        %v2655 = vor.u32 %v2654, %v2650
        %v2656 = vrot.slane %v2655, 4
        %v2658 = vshll.u32 %v2361, 16
        %v2660 = vrot.slane %v2658, 5
        %v2661 = vsel %vm858, %v2656, %v2660
        %v2663 = vshrl.u32 %v2362, 16
        %v2665 = vrot.slane %v2663, 4
        %v2666 = vshll.u32 %v2362, 16
        %v2668 = vrot.slane %v2666, 5
        %v2669 = vor.u32 %v2665, %v2668
        %v2670 = vrot.slane %v2669, 4
        %v2672 = vshll.u32 %v2363, 16
        %v2674 = vrot.slane %v2672, 5
        %v2675 = vsel %vm858, %v2670, %v2674
        %v2676 = vshrl.u32 %v2363, 16
        %v2678 = vrot.slane %v2676, 4
        %v2679 = vor.u32 %v2678, %v2674
        %v2680 = vrot.slane %v2679, 4
        %v2682 = vshll.u32 %v2364, 16
        %v2684 = vrot.slane %v2682, 5
        %v2685 = vsel %vm858, %v2680, %v2684
        %v2687 = vshrl.u32 %v2365, 16
        %v2689 = vrot.slane %v2687, 4
        %v2690 = vshll.u32 %v2365, 16
        %v2692 = vrot.slane %v2690, 5
        %v2693 = vor.u32 %v2689, %v2692
        %v2694 = vrot.slane %v2693, 4
        %v2696 = vshll.u32 %v2366, 16
        %v2698 = vrot.slane %v2696, 5
        %v2699 = vsel %vm858, %v2694, %v2698
        %v2700 = vshrl.u32 %v2366, 16
        %v2702 = vrot.slane %v2700, 4
        %v2703 = vor.u32 %v2702, %v2698
        %v2704 = vrot.slane %v2703, 4
        %v2706 = vshll.u32 %v2367, 16
        %v2708 = vrot.slane %v2706, 5
        %v2709 = vsel %vm858, %v2704, %v2708
        %v2711 = vshrl.u32 %v2368, 16
        %v2713 = vrot.slane %v2711, 4
        %v2714 = vshll.u32 %v2368, 16
        %v2716 = vrot.slane %v2714, 5
        %v2717 = vor.u32 %v2713, %v2716
        %v2718 = vrot.slane %v2717, 4
        %v2720 = vshll.u32 %v2369, 16
        %v2722 = vrot.slane %v2720, 5
        %v2723 = vsel %vm858, %v2718, %v2722
        %v2724 = vshrl.u32 %v2369, 16
        %v2726 = vrot.slane %v2724, 4
        %v2727 = vor.u32 %v2726, %v2722
        %v2728 = vrot.slane %v2727, 4
        %v2730 = vshll.u32 %v2370, 16
        %v2732 = vrot.slane %v2730, 5
        %v2733 = vsel %vm858, %v2728, %v2732
        %v2735 = vshrl.u32 %v2371, 16
        %v2737 = vrot.slane %v2735, 4
        %v2738 = vshll.u32 %v2371, 16
        %v2740 = vrot.slane %v2738, 5
        %v2741 = vor.u32 %v2737, %v2740
        %v2742 = vrot.slane %v2741, 4
        %v2744 = vshll.u32 %v2372, 16
        %v2746 = vrot.slane %v2744, 5
        %v2747 = vsel %vm858, %v2742, %v2746
        %v2748 = vshrl.u32 %v2372, 16
        %v2750 = vrot.slane %v2748, 4
        %v2751 = vor.u32 %v2750, %v2746
        %v2752 = vrot.slane %v2751, 4
        %v2754 = vshll.u32 %v2373, 16
        %v2756 = vrot.slane %v2754, 5
        %v2757 = vsel %vm858, %v2752, %v2756
        %s2758 = scalar_lea.vmem %s1, 8
        %v2759 = vld [vmem:[%s2758] sm:$0x3]
        %v2760 = vunpack.c.l.b16 %v2387
        %v2761 = vunpack.c.l.b16 %v2397
        %v2762 = vunpack.c.l.b16 %v2411
        %v2763 = vunpack.c.l.b16 %v2421
        %v2764 = vunpack.c.l.b16 %v2435
        %v2765 = vunpack.c.l.b16 %v2445
        %v2766 = vunpack.c.l.b16 %v2459
        %v2767 = vunpack.c.l.b16 %v2469
        %v2768 = vunpack.c.l.b16 %v2483
        %v2769 = vunpack.c.l.b16 %v2493
        %v2770 = vunpack.c.l.b16 %v2507
        %v2771 = vunpack.c.l.b16 %v2517
        %v2772 = vunpack.c.l.b16 %v2531
        %v2773 = vunpack.c.l.b16 %v2541
        %v2774 = vunpack.c.l.b16 %v2555
        %v2775 = vunpack.c.l.b16 %v2565
        %v2776 = vunpack.c.l.b16 %v2579
        %v2777 = vunpack.c.l.b16 %v2589
        %v2778 = vunpack.c.l.b16 %v2603
        %v2779 = vunpack.c.l.b16 %v2613
        %v2780 = vunpack.c.l.b16 %v2627
        %v2781 = vunpack.c.l.b16 %v2637
        %v2782 = vunpack.c.l.b16 %v2651
        %v2783 = vunpack.c.l.b16 %v2661
        %v2784 = vunpack.c.l.b16 %v2675
        %v2785 = vunpack.c.l.b16 %v2685
        %v2786 = vunpack.c.l.b16 %v2699
        %v2787 = vunpack.c.l.b16 %v2709
        %v2788 = vunpack.c.l.b16 %v2723
        %v2789 = vunpack.c.l.b16 %v2733
        %v2790 = vunpack.c.l.b16 %v2747
        %v2791 = vunpack.c.l.b16 %v2757
        %v2792 = vpack.c.b16 %v2761, %v2760
        %v2793 = vpack.c.b16 %v2763, %v2762
        %v2794 = vpack.c.b16 %v2765, %v2764
        %v2795 = vpack.c.b16 %v2767, %v2766
        %v2796 = vpack.c.b16 %v2769, %v2768
        %v2797 = vpack.c.b16 %v2771, %v2770
        %v2798 = vpack.c.b16 %v2773, %v2772
        %v2799 = vpack.c.b16 %v2775, %v2774
        %v2800 = vpack.c.b16 %v2777, %v2776
        %v2801 = vpack.c.b16 %v2779, %v2778
        %v2802 = vpack.c.b16 %v2781, %v2780
        %v2803 = vpack.c.b16 %v2783, %v2782
        %v2804 = vpack.c.b16 %v2785, %v2784
        %v2805 = vpack.c.b16 %v2787, %v2786
        %v2806 = vpack.c.b16 %v2789, %v2788
        %v2807 = vpack.c.b16 %v2791, %v2790
        %v2809 = vsel %vm1293, %v2792, 0
        %v2812 = vsel %vm1293, %v2793, 0
        %v2815 = vsel %vm1293, %v2794, 0
        %v2818 = vsel %vm1293, %v2795, 0
        %v2821 = vsel %vm1293, %v2796, 0
        %v2824 = vsel %vm1293, %v2797, 0
        %v2827 = vsel %vm1293, %v2798, 0
        %v2830 = vsel %vm1293, %v2799, 0
        %v2833 = vsel %vm1293, %v2800, 0
        %v2836 = vsel %vm1293, %v2801, 0
        %v2839 = vsel %vm1293, %v2802, 0
        %v2842 = vsel %vm1293, %v2803, 0
        %v2845 = vsel %vm1293, %v2804, 0
        %v2848 = vsel %vm1293, %v2805, 0
        %v2851 = vsel %vm1293, %v2806, 0
        %v2854 = vsel %vm1293, %v2807, 0
        %v2857 = vsel %vm1342, %v2759, 0
        %2859 = vmatpush.bf16.msra.mxu0 0
        %2860 = vmatpush.bf16.msra.mxu0 0
        %2861 = vmatpush.bf16.msra.mxu0 0
        %2862 = vmatpush.bf16.msra.mxu0 0
        %2863 = vmatpush.bf16.msra.mxu0 0
        %2864 = vmatpush.bf16.msra.mxu0 0
        %2865 = vmatpush.bf16.msra.mxu0 0
        %2866 = vmatpush.bf16.msra.mxu0 %v2857
        %2867 = vmatmul.bf16.gmra.mxu0 %v2809
        %v2868 = vpop.f32.mrf.mxu0
        %v2869 = vadd.f32 0.0, %v2868
        %v2870 = vpop.f32.mrf.mxu0
        %v2871 = vadd.f32 0.0, %v2870
        %2872 = vmatmul.bf16.gmra.mxu0 %v2812
        %v2873 = vpop.f32.mrf.mxu0
        %v2874 = vadd.f32 0.0, %v2873
        %v2875 = vpop.f32.mrf.mxu0
        %v2876 = vadd.f32 0.0, %v2875
        %2877 = vmatmul.bf16.gmra.mxu0 %v2815
        %v2878 = vpop.f32.mrf.mxu0
        %v2879 = vadd.f32 0.0, %v2878
        %v2880 = vpop.f32.mrf.mxu0
        %v2881 = vadd.f32 0.0, %v2880
        %2882 = vmatmul.bf16.gmra.mxu0 %v2818
        %v2883 = vpop.f32.mrf.mxu0
        %v2884 = vadd.f32 0.0, %v2883
        %v2885 = vpop.f32.mrf.mxu0
        %v2886 = vadd.f32 0.0, %v2885
        %2887 = vmatmul.bf16.gmra.mxu0 %v2821
        %v2888 = vpop.f32.mrf.mxu0
        %v2889 = vadd.f32 0.0, %v2888
        %v2890 = vpop.f32.mrf.mxu0
        %v2891 = vadd.f32 0.0, %v2890
        %2892 = vmatmul.bf16.gmra.mxu0 %v2824
        %v2893 = vpop.f32.mrf.mxu0
        %v2894 = vadd.f32 0.0, %v2893
        %v2895 = vpop.f32.mrf.mxu0
        %v2896 = vadd.f32 0.0, %v2895
        %2897 = vmatmul.bf16.gmra.mxu0 %v2827
        %v2898 = vpop.f32.mrf.mxu0
        %v2899 = vadd.f32 0.0, %v2898
        %v2900 = vpop.f32.mrf.mxu0
        %v2901 = vadd.f32 0.0, %v2900
        %2902 = vmatmul.bf16.gmra.mxu0 %v2830
        %v2903 = vpop.f32.mrf.mxu0
        %v2904 = vadd.f32 0.0, %v2903
        %v2905 = vpop.f32.mrf.mxu0
        %v2906 = vadd.f32 0.0, %v2905
        %2907 = vmatmul.bf16.gmra.mxu0 %v2833
        %v2908 = vpop.f32.mrf.mxu0
        %v2909 = vadd.f32 0.0, %v2908
        %v2910 = vpop.f32.mrf.mxu0
        %v2911 = vadd.f32 0.0, %v2910
        %2912 = vmatmul.bf16.gmra.mxu0 %v2836
        %v2913 = vpop.f32.mrf.mxu0
        %v2914 = vadd.f32 0.0, %v2913
        %v2915 = vpop.f32.mrf.mxu0
        %v2916 = vadd.f32 0.0, %v2915
        %2917 = vmatmul.bf16.gmra.mxu0 %v2839
        %v2918 = vpop.f32.mrf.mxu0
        %v2919 = vadd.f32 0.0, %v2918
        %v2920 = vpop.f32.mrf.mxu0
        %v2921 = vadd.f32 0.0, %v2920
        %2922 = vmatmul.bf16.gmra.mxu0 %v2842
        %v2923 = vpop.f32.mrf.mxu0
        %v2924 = vadd.f32 0.0, %v2923
        %v2925 = vpop.f32.mrf.mxu0
        %v2926 = vadd.f32 0.0, %v2925
        %2927 = vmatmul.bf16.gmra.mxu0 %v2845
        %v2928 = vpop.f32.mrf.mxu0
        %v2929 = vadd.f32 0.0, %v2928
        %v2930 = vpop.f32.mrf.mxu0
        %v2931 = vadd.f32 0.0, %v2930
        %2932 = vmatmul.bf16.gmra.mxu0 %v2848
        %v2933 = vpop.f32.mrf.mxu0
        %v2934 = vadd.f32 0.0, %v2933
        %v2935 = vpop.f32.mrf.mxu0
        %v2936 = vadd.f32 0.0, %v2935
        %2937 = vmatmul.bf16.gmra.mxu0 %v2851
        %v2938 = vpop.f32.mrf.mxu0
        %v2939 = vadd.f32 0.0, %v2938
        %v2940 = vpop.f32.mrf.mxu0
        %v2941 = vadd.f32 0.0, %v2940
        %2942 = vmatmul.bf16.gmra.mxu0 %v2854
        %v2943 = vpop.f32.mrf.mxu0
        %v2944 = vadd.f32 0.0, %v2943
        %v2945 = vpop.f32.mrf.mxu0
        %v2946 = vadd.f32 0.0, %v2945
        %2947 = vdwg.mxu0
        %v2948 = vadd.f32 %v2294, %v2869
        %v2949 = vadd.f32 %v2295, %v2871
        %v2950 = vadd.f32 %v2296, %v2874
        %v2951 = vadd.f32 %v2297, %v2876
        %v2952 = vadd.f32 %v2298, %v2879
        %v2953 = vadd.f32 %v2299, %v2881
        %v2954 = vadd.f32 %v2300, %v2884
        %v2955 = vadd.f32 %v2301, %v2886
        %v2956 = vadd.f32 %v2302, %v2889
        %v2957 = vadd.f32 %v2303, %v2891
        %v2958 = vadd.f32 %v2304, %v2894
        %v2959 = vadd.f32 %v2305, %v2896
        %v2960 = vadd.f32 %v2306, %v2899
        %v2961 = vadd.f32 %v2307, %v2901
        %v2962 = vadd.f32 %v2308, %v2904
        %v2963 = vadd.f32 %v2309, %v2906
        %v2964 = vadd.f32 %v2310, %v2909
        %v2965 = vadd.f32 %v2311, %v2911
        %v2966 = vadd.f32 %v2312, %v2914
        %v2967 = vadd.f32 %v2313, %v2916
        %v2968 = vadd.f32 %v2314, %v2919
        %v2969 = vadd.f32 %v2315, %v2921
        %v2970 = vadd.f32 %v2316, %v2924
        %v2971 = vadd.f32 %v2317, %v2926
        %v2972 = vadd.f32 %v2318, %v2929
        %v2973 = vadd.f32 %v2319, %v2931
        %v2974 = vadd.f32 %v2320, %v2934
        %v2975 = vadd.f32 %v2321, %v2936
        %v2976 = vadd.f32 %v2322, %v2939
        %v2977 = vadd.f32 %v2323, %v2941
        %v2978 = vadd.f32 %v2324, %v2944
        %v2979 = vadd.f32 %v2325, %v2946
        %v2980 = vld [vmem:[%s689] sm:$0xe]
        %v2981 = vld [vmem:[%s689 + $0xc] sm:$0xe]
        %v2982 = vld [vmem:[%s689 + $0x18] sm:$0xe]
        %v2983 = vld [vmem:[%s689 + $0x24] sm:$0xe]
        %v2984 = vld [vmem:[%s689 + $0x30] sm:$0xe]
        %v2985 = vld [vmem:[%s689 + $0x3c] sm:$0xe]
        %v2986 = vld [vmem:[%s689 + $0x48] sm:$0xe]
        %v2987 = vld [vmem:[%s689 + $0x54] sm:$0xe]
        %v2988 = vld [vmem:[%s689 + $0x60] sm:$0xe]
        %v2989 = vld [vmem:[%s689 + $0x6c] sm:$0xe]
        %v2990 = vld [vmem:[%s689 + $0x78] sm:$0xe]
        %v2991 = vld [vmem:[%s689 + $0x84] sm:$0xe]
        %v2992 = vld [vmem:[%s689 + $0x90] sm:$0xe]
        %v2993 = vld [vmem:[%s689 + $0x9c] sm:$0xe]
        %v2994 = vld [vmem:[%s689 + $0xa8] sm:$0xe]
        %v2995 = vld [vmem:[%s689 + $0xb4] sm:$0xe]
        %v3044 = vrot.slane %v2980, 5
        %v3045 = vrot.slane %v3044, 4
        %v3046 = vrot.slane %v2327, 5
        %v3047 = vsel %vm1705, %v3045, %v3046
        %v3048 = vrot.slane %v3046, 4
        %v3049 = vrot.slane %v2328, 5
        %v3050 = vsel %vm1705, %v3048, %v3049
        %v3051 = vrot.slane %v2981, 5
        %v3052 = vrot.slane %v3051, 4
        %v3053 = vrot.slane %v2330, 5
        %v3054 = vsel %vm1705, %v3052, %v3053
        %v3055 = vrot.slane %v3053, 4
        %v3056 = vrot.slane %v2331, 5
        %v3057 = vsel %vm1705, %v3055, %v3056
        %v3058 = vrot.slane %v2982, 5
        %v3059 = vrot.slane %v3058, 4
        %v3060 = vrot.slane %v2333, 5
        %v3061 = vsel %vm1705, %v3059, %v3060
        %v3062 = vrot.slane %v3060, 4
        %v3063 = vrot.slane %v2334, 5
        %v3064 = vsel %vm1705, %v3062, %v3063
        %v3065 = vrot.slane %v2983, 5
        %v3066 = vrot.slane %v3065, 4
        %v3067 = vrot.slane %v2336, 5
        %v3068 = vsel %vm1705, %v3066, %v3067
        %v3069 = vrot.slane %v3067, 4
        %v3070 = vrot.slane %v2337, 5
        %v3071 = vsel %vm1705, %v3069, %v3070
        %v3072 = vrot.slane %v2984, 5
        %v3073 = vrot.slane %v3072, 4
        %v3074 = vrot.slane %v2339, 5
        %v3075 = vsel %vm1705, %v3073, %v3074
        %v3076 = vrot.slane %v3074, 4
        %v3077 = vrot.slane %v2340, 5
        %v3078 = vsel %vm1705, %v3076, %v3077
        %v3079 = vrot.slane %v2985, 5
        %v3080 = vrot.slane %v3079, 4
        %v3081 = vrot.slane %v2342, 5
        %v3082 = vsel %vm1705, %v3080, %v3081
        %v3083 = vrot.slane %v3081, 4
        %v3084 = vrot.slane %v2343, 5
        %v3085 = vsel %vm1705, %v3083, %v3084
        %v3086 = vrot.slane %v2986, 5
        %v3087 = vrot.slane %v3086, 4
        %v3088 = vrot.slane %v2345, 5
        %v3089 = vsel %vm1705, %v3087, %v3088
        %v3090 = vrot.slane %v3088, 4
        %v3091 = vrot.slane %v2346, 5
        %v3092 = vsel %vm1705, %v3090, %v3091
        %v3093 = vrot.slane %v2987, 5
        %v3094 = vrot.slane %v3093, 4
        %v3095 = vrot.slane %v2348, 5
        %v3096 = vsel %vm1705, %v3094, %v3095
        %v3097 = vrot.slane %v3095, 4
        %v3098 = vrot.slane %v2349, 5
        %v3099 = vsel %vm1705, %v3097, %v3098
        %v3100 = vrot.slane %v2988, 5
        %v3101 = vrot.slane %v3100, 4
        %v3102 = vrot.slane %v2351, 5
        %v3103 = vsel %vm1705, %v3101, %v3102
        %v3104 = vrot.slane %v3102, 4
        %v3105 = vrot.slane %v2352, 5
        %v3106 = vsel %vm1705, %v3104, %v3105
        %v3107 = vrot.slane %v2989, 5
        %v3108 = vrot.slane %v3107, 4
        %v3109 = vrot.slane %v2354, 5
        %v3110 = vsel %vm1705, %v3108, %v3109
        %v3111 = vrot.slane %v3109, 4
        %v3112 = vrot.slane %v2355, 5
        %v3113 = vsel %vm1705, %v3111, %v3112
        %v3114 = vrot.slane %v2990, 5
        %v3115 = vrot.slane %v3114, 4
        %v3116 = vrot.slane %v2357, 5
        %v3117 = vsel %vm1705, %v3115, %v3116
        %v3118 = vrot.slane %v3116, 4
        %v3119 = vrot.slane %v2358, 5
        %v3120 = vsel %vm1705, %v3118, %v3119
        %v3121 = vrot.slane %v2991, 5
        %v3122 = vrot.slane %v3121, 4
        %v3123 = vrot.slane %v2360, 5
        %v3124 = vsel %vm1705, %v3122, %v3123
        %v3125 = vrot.slane %v3123, 4
        %v3126 = vrot.slane %v2361, 5
        %v3127 = vsel %vm1705, %v3125, %v3126
        %v3128 = vrot.slane %v2992, 5
        %v3129 = vrot.slane %v3128, 4
        %v3130 = vrot.slane %v2363, 5
        %v3131 = vsel %vm1705, %v3129, %v3130
        %v3132 = vrot.slane %v3130, 4
        %v3133 = vrot.slane %v2364, 5
        %v3134 = vsel %vm1705, %v3132, %v3133
        %v3135 = vrot.slane %v2993, 5
        %v3136 = vrot.slane %v3135, 4
        %v3137 = vrot.slane %v2366, 5
        %v3138 = vsel %vm1705, %v3136, %v3137
        %v3139 = vrot.slane %v3137, 4
        %v3140 = vrot.slane %v2367, 5
        %v3141 = vsel %vm1705, %v3139, %v3140
        %v3142 = vrot.slane %v2994, 5
        %v3143 = vrot.slane %v3142, 4
        %v3144 = vrot.slane %v2369, 5
        %v3145 = vsel %vm1705, %v3143, %v3144
        %v3146 = vrot.slane %v3144, 4
        %v3147 = vrot.slane %v2370, 5
        %v3148 = vsel %vm1705, %v3146, %v3147
        %v3149 = vrot.slane %v2995, 5
        %v3150 = vrot.slane %v3149, 4
        %v3151 = vrot.slane %v2372, 5
        %v3152 = vsel %vm1705, %v3150, %v3151
        %v3153 = vrot.slane %v3151, 4
        %v3154 = vrot.slane %v2373, 5
        %v3155 = vsel %vm1705, %v3153, %v3154
        %s3156 = scalar_lea.vmem %s1, 10
        %v3157 = vld [vmem:[%s3156] sm:$0x3]
        %v3158 = vunpack.c.l.b16 %v3047
        %v3159 = vunpack.c.l.b16 %v3050
        %v3160 = vunpack.c.l.b16 %v3054
        %v3161 = vunpack.c.l.b16 %v3057
        %v3162 = vunpack.c.l.b16 %v3061
        %v3163 = vunpack.c.l.b16 %v3064
        %v3164 = vunpack.c.l.b16 %v3068
        %v3165 = vunpack.c.l.b16 %v3071
        %v3166 = vunpack.c.l.b16 %v3075
        %v3167 = vunpack.c.l.b16 %v3078
        %v3168 = vunpack.c.l.b16 %v3082
        %v3169 = vunpack.c.l.b16 %v3085
        %v3170 = vunpack.c.l.b16 %v3089
        %v3171 = vunpack.c.l.b16 %v3092
        %v3172 = vunpack.c.l.b16 %v3096
        %v3173 = vunpack.c.l.b16 %v3099
        %v3174 = vunpack.c.l.b16 %v3103
        %v3175 = vunpack.c.l.b16 %v3106
        %v3176 = vunpack.c.l.b16 %v3110
        %v3177 = vunpack.c.l.b16 %v3113
        %v3178 = vunpack.c.l.b16 %v3117
        %v3179 = vunpack.c.l.b16 %v3120
        %v3180 = vunpack.c.l.b16 %v3124
        %v3181 = vunpack.c.l.b16 %v3127
        %v3182 = vunpack.c.l.b16 %v3131
        %v3183 = vunpack.c.l.b16 %v3134
        %v3184 = vunpack.c.l.b16 %v3138
        %v3185 = vunpack.c.l.b16 %v3141
        %v3186 = vunpack.c.l.b16 %v3145
        %v3187 = vunpack.c.l.b16 %v3148
        %v3188 = vunpack.c.l.b16 %v3152
        %v3189 = vunpack.c.l.b16 %v3155
        %v3190 = vpack.c.b16 %v3159, %v3158
        %v3191 = vpack.c.b16 %v3161, %v3160
        %v3192 = vpack.c.b16 %v3163, %v3162
        %v3193 = vpack.c.b16 %v3165, %v3164
        %v3194 = vpack.c.b16 %v3167, %v3166
        %v3195 = vpack.c.b16 %v3169, %v3168
        %v3196 = vpack.c.b16 %v3171, %v3170
        %v3197 = vpack.c.b16 %v3173, %v3172
        %v3198 = vpack.c.b16 %v3175, %v3174
        %v3199 = vpack.c.b16 %v3177, %v3176
        %v3200 = vpack.c.b16 %v3179, %v3178
        %v3201 = vpack.c.b16 %v3181, %v3180
        %v3202 = vpack.c.b16 %v3183, %v3182
        %v3203 = vpack.c.b16 %v3185, %v3184
        %v3204 = vpack.c.b16 %v3187, %v3186
        %v3205 = vpack.c.b16 %v3189, %v3188
        %v3207 = vsel %vm1293, %v3190, 0
        %v3210 = vsel %vm1293, %v3191, 0
        %v3213 = vsel %vm1293, %v3192, 0
        %v3216 = vsel %vm1293, %v3193, 0
        %v3219 = vsel %vm1293, %v3194, 0
        %v3222 = vsel %vm1293, %v3195, 0
        %v3225 = vsel %vm1293, %v3196, 0
        %v3228 = vsel %vm1293, %v3197, 0
        %v3231 = vsel %vm1293, %v3198, 0
        %v3234 = vsel %vm1293, %v3199, 0
        %v3237 = vsel %vm1293, %v3200, 0
        %v3240 = vsel %vm1293, %v3201, 0
        %v3243 = vsel %vm1293, %v3202, 0
        %v3246 = vsel %vm1293, %v3203, 0
        %v3249 = vsel %vm1293, %v3204, 0
        %v3252 = vsel %vm1293, %v3205, 0
        %v3255 = vsel %vm1342, %v3157, 0
        %3257 = vmatpush.bf16.msra.mxu0 0
        %3258 = vmatpush.bf16.msra.mxu0 0
        %3259 = vmatpush.bf16.msra.mxu0 0
        %3260 = vmatpush.bf16.msra.mxu0 0
        %3261 = vmatpush.bf16.msra.mxu0 0
        %3262 = vmatpush.bf16.msra.mxu0 0
        %3263 = vmatpush.bf16.msra.mxu0 0
        %3264 = vmatpush.bf16.msra.mxu0 %v3255
        %3265 = vmatmul.bf16.gmra.mxu0 %v3207
        %v3266 = vpop.f32.mrf.mxu0
        %v3267 = vadd.f32 0.0, %v3266
        %v3268 = vpop.f32.mrf.mxu0
        %v3269 = vadd.f32 0.0, %v3268
        %3270 = vmatmul.bf16.gmra.mxu0 %v3210
        %v3271 = vpop.f32.mrf.mxu0
        %v3272 = vadd.f32 0.0, %v3271
        %v3273 = vpop.f32.mrf.mxu0
        %v3274 = vadd.f32 0.0, %v3273
        %3275 = vmatmul.bf16.gmra.mxu0 %v3213
        %v3276 = vpop.f32.mrf.mxu0
        %v3277 = vadd.f32 0.0, %v3276
        %v3278 = vpop.f32.mrf.mxu0
        %v3279 = vadd.f32 0.0, %v3278
        %3280 = vmatmul.bf16.gmra.mxu0 %v3216
        %v3281 = vpop.f32.mrf.mxu0
        %v3282 = vadd.f32 0.0, %v3281
        %v3283 = vpop.f32.mrf.mxu0
        %v3284 = vadd.f32 0.0, %v3283
        %3285 = vmatmul.bf16.gmra.mxu0 %v3219
        %v3286 = vpop.f32.mrf.mxu0
        %v3287 = vadd.f32 0.0, %v3286
        %v3288 = vpop.f32.mrf.mxu0
        %v3289 = vadd.f32 0.0, %v3288
        %3290 = vmatmul.bf16.gmra.mxu0 %v3222
        %v3291 = vpop.f32.mrf.mxu0
        %v3292 = vadd.f32 0.0, %v3291
        %v3293 = vpop.f32.mrf.mxu0
        %v3294 = vadd.f32 0.0, %v3293
        %3295 = vmatmul.bf16.gmra.mxu0 %v3225
        %v3296 = vpop.f32.mrf.mxu0
        %v3297 = vadd.f32 0.0, %v3296
        %v3298 = vpop.f32.mrf.mxu0
        %v3299 = vadd.f32 0.0, %v3298
        %3300 = vmatmul.bf16.gmra.mxu0 %v3228
        %v3301 = vpop.f32.mrf.mxu0
        %v3302 = vadd.f32 0.0, %v3301
        %v3303 = vpop.f32.mrf.mxu0
        %v3304 = vadd.f32 0.0, %v3303
        %3305 = vmatmul.bf16.gmra.mxu0 %v3231
        %v3306 = vpop.f32.mrf.mxu0
        %v3307 = vadd.f32 0.0, %v3306
        %v3308 = vpop.f32.mrf.mxu0
        %v3309 = vadd.f32 0.0, %v3308
        %3310 = vmatmul.bf16.gmra.mxu0 %v3234
        %v3311 = vpop.f32.mrf.mxu0
        %v3312 = vadd.f32 0.0, %v3311
        %v3313 = vpop.f32.mrf.mxu0
        %v3314 = vadd.f32 0.0, %v3313
        %3315 = vmatmul.bf16.gmra.mxu0 %v3237
        %v3316 = vpop.f32.mrf.mxu0
        %v3317 = vadd.f32 0.0, %v3316
        %v3318 = vpop.f32.mrf.mxu0
        %v3319 = vadd.f32 0.0, %v3318
        %3320 = vmatmul.bf16.gmra.mxu0 %v3240
        %v3321 = vpop.f32.mrf.mxu0
        %v3322 = vadd.f32 0.0, %v3321
        %v3323 = vpop.f32.mrf.mxu0
        %v3324 = vadd.f32 0.0, %v3323
        %3325 = vmatmul.bf16.gmra.mxu0 %v3243
        %v3326 = vpop.f32.mrf.mxu0
        %v3327 = vadd.f32 0.0, %v3326
        %v3328 = vpop.f32.mrf.mxu0
        %v3329 = vadd.f32 0.0, %v3328
        %3330 = vmatmul.bf16.gmra.mxu0 %v3246
        %v3331 = vpop.f32.mrf.mxu0
        %v3332 = vadd.f32 0.0, %v3331
        %v3333 = vpop.f32.mrf.mxu0
        %v3334 = vadd.f32 0.0, %v3333
        %3335 = vmatmul.bf16.gmra.mxu0 %v3249
        %v3336 = vpop.f32.mrf.mxu0
        %v3337 = vadd.f32 0.0, %v3336
        %v3338 = vpop.f32.mrf.mxu0
        %v3339 = vadd.f32 0.0, %v3338
        %3340 = vmatmul.bf16.gmra.mxu0 %v3252
        %v3341 = vpop.f32.mrf.mxu0
        %v3342 = vadd.f32 0.0, %v3341
        %v3343 = vpop.f32.mrf.mxu0
        %v3344 = vadd.f32 0.0, %v3343
        %3345 = vdwg.mxu0
        %v3346 = vadd.f32 %v2948, %v3267
        %v3347 = vadd.f32 %v2949, %v3269
        %v3348 = vadd.f32 %v2950, %v3272
        %v3349 = vadd.f32 %v2951, %v3274
        %v3350 = vadd.f32 %v2952, %v3277
        %v3351 = vadd.f32 %v2953, %v3279
        %v3352 = vadd.f32 %v2954, %v3282
        %v3353 = vadd.f32 %v2955, %v3284
        %v3354 = vadd.f32 %v2956, %v3287
        %v3355 = vadd.f32 %v2957, %v3289
        %v3356 = vadd.f32 %v2958, %v3292
        %v3357 = vadd.f32 %v2959, %v3294
        %v3358 = vadd.f32 %v2960, %v3297
        %v3359 = vadd.f32 %v2961, %v3299
        %v3360 = vadd.f32 %v2962, %v3302
        %v3361 = vadd.f32 %v2963, %v3304
        %v3362 = vadd.f32 %v2964, %v3307
        %v3363 = vadd.f32 %v2965, %v3309
        %v3364 = vadd.f32 %v2966, %v3312
        %v3365 = vadd.f32 %v2967, %v3314
        %v3366 = vadd.f32 %v2968, %v3317
        %v3367 = vadd.f32 %v2969, %v3319
        %v3368 = vadd.f32 %v2970, %v3322
        %v3369 = vadd.f32 %v2971, %v3324
        %v3370 = vadd.f32 %v2972, %v3327
        %v3371 = vadd.f32 %v2973, %v3329
        %v3372 = vadd.f32 %v2974, %v3332
        %v3373 = vadd.f32 %v2975, %v3334
        %v3374 = vadd.f32 %v2976, %v3337
        %v3375 = vadd.f32 %v2977, %v3339
        %v3376 = vadd.f32 %v2978, %v3342
        %v3377 = vadd.f32 %v2979, %v3344
        %s3378 = scalar_lea.vmem [#allocation2], 24
        %v3379 = vld [vmem:[%s3378] sm:$0xf]
        %v3380 = vld [vmem:[%s3378 + $0x4] sm:$0xf]
        %v3381 = vld [vmem:[%s3378 + $0xc] sm:$0xf]
        %v3382 = vld [vmem:[%s3378 + $0x10] sm:$0xf]
        %v3383 = vld [vmem:[%s3378 + $0x18] sm:$0xf]
        %v3384 = vld [vmem:[%s3378 + $0x1c] sm:$0xf]
        %v3385 = vld [vmem:[%s3378 + $0x24] sm:$0xf]
        %v3386 = vld [vmem:[%s3378 + $0x28] sm:$0xf]
        %v3387 = vld [vmem:[%s3378 + $0x30] sm:$0xf]
        %v3388 = vld [vmem:[%s3378 + $0x34] sm:$0xf]
        %v3389 = vld [vmem:[%s3378 + $0x3c] sm:$0xf]
        %v3390 = vld [vmem:[%s3378 + $0x40] sm:$0xf]
        %v3391 = vld [vmem:[%s3378 + $0x48] sm:$0xf]
        %v3392 = vld [vmem:[%s3378 + $0x4c] sm:$0xf]
        %v3393 = vld [vmem:[%s3378 + $0x54] sm:$0xf]
        %v3394 = vld [vmem:[%s3378 + $0x58] sm:$0xf]
        %v3395 = vld [vmem:[%s3378 + $0x60] sm:$0xf]
        %v3396 = vld [vmem:[%s3378 + $0x64] sm:$0xf]
        %v3397 = vld [vmem:[%s3378 + $0x6c] sm:$0xf]
        %v3398 = vld [vmem:[%s3378 + $0x70] sm:$0xf]
        %v3399 = vld [vmem:[%s3378 + $0x78] sm:$0xf]
        %v3400 = vld [vmem:[%s3378 + $0x7c] sm:$0xf]
        %v3401 = vld [vmem:[%s3378 + $0x84] sm:$0xf]
        %v3402 = vld [vmem:[%s3378 + $0x88] sm:$0xf]
        %v3403 = vld [vmem:[%s3378 + $0x90] sm:$0xf]
        %v3404 = vld [vmem:[%s3378 + $0x94] sm:$0xf]
        %v3405 = vld [vmem:[%s3378 + $0x9c] sm:$0xf]
        %v3406 = vld [vmem:[%s3378 + $0xa0] sm:$0xf]
        %v3407 = vld [vmem:[%s3378 + $0xa8] sm:$0xf]
        %v3408 = vld [vmem:[%s3378 + $0xac] sm:$0xf]
        %v3409 = vld [vmem:[%s3378 + $0xb4] sm:$0xf]
        %v3410 = vld [vmem:[%s3378 + $0xb8] sm:$0xf]
        %s3411 = scalar_lea.vmem %s1, 12
        %v3412 = vld [vmem:[%s3411] sm:$0x3]
        %v3445 = vunpack.c.l.b16 %v3379
        %v3446 = vunpack.c.l.b16 %v3380
        %v3447 = vunpack.c.l.b16 %v3381
        %v3448 = vunpack.c.l.b16 %v3382
        %v3449 = vunpack.c.l.b16 %v3383
        %v3450 = vunpack.c.l.b16 %v3384
        %v3451 = vunpack.c.l.b16 %v3385
        %v3452 = vunpack.c.l.b16 %v3386
        %v3453 = vunpack.c.l.b16 %v3387
        %v3454 = vunpack.c.l.b16 %v3388
        %v3455 = vunpack.c.l.b16 %v3389
        %v3456 = vunpack.c.l.b16 %v3390
        %v3457 = vunpack.c.l.b16 %v3391
        %v3458 = vunpack.c.l.b16 %v3392
        %v3459 = vunpack.c.l.b16 %v3393
        %v3460 = vunpack.c.l.b16 %v3394
        %v3461 = vunpack.c.l.b16 %v3395
        %v3462 = vunpack.c.l.b16 %v3396
        %v3463 = vunpack.c.l.b16 %v3397
        %v3464 = vunpack.c.l.b16 %v3398
        %v3465 = vunpack.c.l.b16 %v3399
        %v3466 = vunpack.c.l.b16 %v3400
        %v3467 = vunpack.c.l.b16 %v3401
        %v3468 = vunpack.c.l.b16 %v3402
        %v3469 = vunpack.c.l.b16 %v3403
        %v3470 = vunpack.c.l.b16 %v3404
        %v3471 = vunpack.c.l.b16 %v3405
        %v3472 = vunpack.c.l.b16 %v3406
        %v3473 = vunpack.c.l.b16 %v3407
        %v3474 = vunpack.c.l.b16 %v3408
        %v3475 = vunpack.c.l.b16 %v3409
        %v3476 = vunpack.c.l.b16 %v3410
        %v3477 = vpack.c.b16 %v3446, %v3445
        %v3478 = vpack.c.b16 %v3448, %v3447
        %v3479 = vpack.c.b16 %v3450, %v3449
        %v3480 = vpack.c.b16 %v3452, %v3451
        %v3481 = vpack.c.b16 %v3454, %v3453
        %v3482 = vpack.c.b16 %v3456, %v3455
        %v3483 = vpack.c.b16 %v3458, %v3457
        %v3484 = vpack.c.b16 %v3460, %v3459
        %v3485 = vpack.c.b16 %v3462, %v3461
        %v3486 = vpack.c.b16 %v3464, %v3463
        %v3487 = vpack.c.b16 %v3466, %v3465
        %v3488 = vpack.c.b16 %v3468, %v3467
        %v3489 = vpack.c.b16 %v3470, %v3469
        %v3490 = vpack.c.b16 %v3472, %v3471
        %v3491 = vpack.c.b16 %v3474, %v3473
        %v3492 = vpack.c.b16 %v3476, %v3475
        %v3494 = vsel %vm1293, %v3477, 0
        %v3497 = vsel %vm1293, %v3478, 0
        %v3500 = vsel %vm1293, %v3479, 0
        %v3503 = vsel %vm1293, %v3480, 0
        %v3506 = vsel %vm1293, %v3481, 0
        %v3509 = vsel %vm1293, %v3482, 0
        %v3512 = vsel %vm1293, %v3483, 0
        %v3515 = vsel %vm1293, %v3484, 0
        %v3518 = vsel %vm1293, %v3485, 0
        %v3521 = vsel %vm1293, %v3486, 0
        %v3524 = vsel %vm1293, %v3487, 0
        %v3527 = vsel %vm1293, %v3488, 0
        %v3530 = vsel %vm1293, %v3489, 0
        %v3533 = vsel %vm1293, %v3490, 0
        %v3536 = vsel %vm1293, %v3491, 0
        %v3539 = vsel %vm1293, %v3492, 0
        %v3542 = vsel %vm1342, %v3412, 0
        %3544 = vmatpush.bf16.msra.mxu0 0
        %3545 = vmatpush.bf16.msra.mxu0 0
        %3546 = vmatpush.bf16.msra.mxu0 0
        %3547 = vmatpush.bf16.msra.mxu0 0
        %3548 = vmatpush.bf16.msra.mxu0 0
        %3549 = vmatpush.bf16.msra.mxu0 0
        %3550 = vmatpush.bf16.msra.mxu0 0
        %3551 = vmatpush.bf16.msra.mxu0 %v3542
        %3552 = vmatmul.bf16.gmra.mxu0 %v3494
        %v3553 = vpop.f32.mrf.mxu0
        %v3554 = vadd.f32 0.0, %v3553
        %v3555 = vpop.f32.mrf.mxu0
        %v3556 = vadd.f32 0.0, %v3555
        %3557 = vmatmul.bf16.gmra.mxu0 %v3497
        %v3558 = vpop.f32.mrf.mxu0
        %v3559 = vadd.f32 0.0, %v3558
        %v3560 = vpop.f32.mrf.mxu0
        %v3561 = vadd.f32 0.0, %v3560
        %3562 = vmatmul.bf16.gmra.mxu0 %v3500
        %v3563 = vpop.f32.mrf.mxu0
        %v3564 = vadd.f32 0.0, %v3563
        %v3565 = vpop.f32.mrf.mxu0
        %v3566 = vadd.f32 0.0, %v3565
        %3567 = vmatmul.bf16.gmra.mxu0 %v3503
        %v3568 = vpop.f32.mrf.mxu0
        %v3569 = vadd.f32 0.0, %v3568
        %v3570 = vpop.f32.mrf.mxu0
        %v3571 = vadd.f32 0.0, %v3570
        %3572 = vmatmul.bf16.gmra.mxu0 %v3506
        %v3573 = vpop.f32.mrf.mxu0
        %v3574 = vadd.f32 0.0, %v3573
        %v3575 = vpop.f32.mrf.mxu0
        %v3576 = vadd.f32 0.0, %v3575
        %3577 = vmatmul.bf16.gmra.mxu0 %v3509
        %v3578 = vpop.f32.mrf.mxu0
        %v3579 = vadd.f32 0.0, %v3578
        %v3580 = vpop.f32.mrf.mxu0
        %v3581 = vadd.f32 0.0, %v3580
        %3582 = vmatmul.bf16.gmra.mxu0 %v3512
        %v3583 = vpop.f32.mrf.mxu0
        %v3584 = vadd.f32 0.0, %v3583
        %v3585 = vpop.f32.mrf.mxu0
        %v3586 = vadd.f32 0.0, %v3585
        %3587 = vmatmul.bf16.gmra.mxu0 %v3515
        %v3588 = vpop.f32.mrf.mxu0
        %v3589 = vadd.f32 0.0, %v3588
        %v3590 = vpop.f32.mrf.mxu0
        %v3591 = vadd.f32 0.0, %v3590
        %3592 = vmatmul.bf16.gmra.mxu0 %v3518
        %v3593 = vpop.f32.mrf.mxu0
        %v3594 = vadd.f32 0.0, %v3593
        %v3595 = vpop.f32.mrf.mxu0
        %v3596 = vadd.f32 0.0, %v3595
        %3597 = vmatmul.bf16.gmra.mxu0 %v3521
        %v3598 = vpop.f32.mrf.mxu0
        %v3599 = vadd.f32 0.0, %v3598
        %v3600 = vpop.f32.mrf.mxu0
        %v3601 = vadd.f32 0.0, %v3600
        %3602 = vmatmul.bf16.gmra.mxu0 %v3524
        %v3603 = vpop.f32.mrf.mxu0
        %v3604 = vadd.f32 0.0, %v3603
        %v3605 = vpop.f32.mrf.mxu0
        %v3606 = vadd.f32 0.0, %v3605
        %3607 = vmatmul.bf16.gmra.mxu0 %v3527
        %v3608 = vpop.f32.mrf.mxu0
        %v3609 = vadd.f32 0.0, %v3608
        %v3610 = vpop.f32.mrf.mxu0
        %v3611 = vadd.f32 0.0, %v3610
        %3612 = vmatmul.bf16.gmra.mxu0 %v3530
        %v3613 = vpop.f32.mrf.mxu0
        %v3614 = vadd.f32 0.0, %v3613
        %v3615 = vpop.f32.mrf.mxu0
        %v3616 = vadd.f32 0.0, %v3615
        %3617 = vmatmul.bf16.gmra.mxu0 %v3533
        %v3618 = vpop.f32.mrf.mxu0
        %v3619 = vadd.f32 0.0, %v3618
        %v3620 = vpop.f32.mrf.mxu0
        %v3621 = vadd.f32 0.0, %v3620
        %3622 = vmatmul.bf16.gmra.mxu0 %v3536
        %v3623 = vpop.f32.mrf.mxu0
        %v3624 = vadd.f32 0.0, %v3623
        %v3625 = vpop.f32.mrf.mxu0
        %v3626 = vadd.f32 0.0, %v3625
        %3627 = vmatmul.bf16.gmra.mxu0 %v3539
        %v3628 = vpop.f32.mrf.mxu0
        %v3629 = vadd.f32 0.0, %v3628
        %v3630 = vpop.f32.mrf.mxu0
        %v3631 = vadd.f32 0.0, %v3630
        %3632 = vdwg.mxu0
        %v3633 = vadd.f32 %v3346, %v3554
        %v3634 = vadd.f32 %v3347, %v3556
        %v3635 = vadd.f32 %v3348, %v3559
        %v3636 = vadd.f32 %v3349, %v3561
        %v3637 = vadd.f32 %v3350, %v3564
        %v3638 = vadd.f32 %v3351, %v3566
        %v3639 = vadd.f32 %v3352, %v3569
        %v3640 = vadd.f32 %v3353, %v3571
        %v3641 = vadd.f32 %v3354, %v3574
        %v3642 = vadd.f32 %v3355, %v3576
        %v3643 = vadd.f32 %v3356, %v3579
        %v3644 = vadd.f32 %v3357, %v3581
        %v3645 = vadd.f32 %v3358, %v3584
        %v3646 = vadd.f32 %v3359, %v3586
        %v3647 = vadd.f32 %v3360, %v3589
        %v3648 = vadd.f32 %v3361, %v3591
        %v3649 = vadd.f32 %v3362, %v3594
        %v3650 = vadd.f32 %v3363, %v3596
        %v3651 = vadd.f32 %v3364, %v3599
        %v3652 = vadd.f32 %v3365, %v3601
        %v3653 = vadd.f32 %v3366, %v3604
        %v3654 = vadd.f32 %v3367, %v3606
        %v3655 = vadd.f32 %v3368, %v3609
        %v3656 = vadd.f32 %v3369, %v3611
        %v3657 = vadd.f32 %v3370, %v3614
        %v3658 = vadd.f32 %v3371, %v3616
        %v3659 = vadd.f32 %v3372, %v3619
        %v3660 = vadd.f32 %v3373, %v3621
        %v3661 = vadd.f32 %v3374, %v3624
        %v3662 = vadd.f32 %v3375, %v3626
        %v3663 = vadd.f32 %v3376, %v3629
        %v3664 = vadd.f32 %v3377, %v3631
        %v3665 = vld [vmem:[%s3378] sm:$0xf]
        %v3666 = vld [vmem:[%s3378 + $0x4] sm:$0xf]
        %v3667 = vld [vmem:[%s3378 + $0x8] sm:$0x1]
        %v3668 = vld [vmem:[%s3378 + $0xc] sm:$0xf]
        %v3669 = vld [vmem:[%s3378 + $0x10] sm:$0xf]
        %v3670 = vld [vmem:[%s3378 + $0x14] sm:$0x1]
        %v3671 = vld [vmem:[%s3378 + $0x18] sm:$0xf]
        %v3672 = vld [vmem:[%s3378 + $0x1c] sm:$0xf]
        %v3673 = vld [vmem:[%s3378 + $0x20] sm:$0x1]
        %v3674 = vld [vmem:[%s3378 + $0x24] sm:$0xf]
        %v3675 = vld [vmem:[%s3378 + $0x28] sm:$0xf]
        %v3676 = vld [vmem:[%s3378 + $0x2c] sm:$0x1]
        %v3677 = vld [vmem:[%s3378 + $0x30] sm:$0xf]
        %v3678 = vld [vmem:[%s3378 + $0x34] sm:$0xf]
        %v3679 = vld [vmem:[%s3378 + $0x38] sm:$0x1]
        %v3680 = vld [vmem:[%s3378 + $0x3c] sm:$0xf]
        %v3681 = vld [vmem:[%s3378 + $0x40] sm:$0xf]
        %v3682 = vld [vmem:[%s3378 + $0x44] sm:$0x1]
        %v3683 = vld [vmem:[%s3378 + $0x48] sm:$0xf]
        %v3684 = vld [vmem:[%s3378 + $0x4c] sm:$0xf]
        %v3685 = vld [vmem:[%s3378 + $0x50] sm:$0x1]
        %v3686 = vld [vmem:[%s3378 + $0x54] sm:$0xf]
        %v3687 = vld [vmem:[%s3378 + $0x58] sm:$0xf]
        %v3688 = vld [vmem:[%s3378 + $0x5c] sm:$0x1]
        %v3689 = vld [vmem:[%s3378 + $0x60] sm:$0xf]
        %v3690 = vld [vmem:[%s3378 + $0x64] sm:$0xf]
        %v3691 = vld [vmem:[%s3378 + $0x68] sm:$0x1]
        %v3692 = vld [vmem:[%s3378 + $0x6c] sm:$0xf]
        %v3693 = vld [vmem:[%s3378 + $0x70] sm:$0xf]
        %v3694 = vld [vmem:[%s3378 + $0x74] sm:$0x1]
        %v3695 = vld [vmem:[%s3378 + $0x78] sm:$0xf]
        %v3696 = vld [vmem:[%s3378 + $0x7c] sm:$0xf]
        %v3697 = vld [vmem:[%s3378 + $0x80] sm:$0x1]
        %v3698 = vld [vmem:[%s3378 + $0x84] sm:$0xf]
        %v3699 = vld [vmem:[%s3378 + $0x88] sm:$0xf]
        %v3700 = vld [vmem:[%s3378 + $0x8c] sm:$0x1]
        %v3701 = vld [vmem:[%s3378 + $0x90] sm:$0xf]
        %v3702 = vld [vmem:[%s3378 + $0x94] sm:$0xf]
        %v3703 = vld [vmem:[%s3378 + $0x98] sm:$0x1]
        %v3704 = vld [vmem:[%s3378 + $0x9c] sm:$0xf]
        %v3705 = vld [vmem:[%s3378 + $0xa0] sm:$0xf]
        %v3706 = vld [vmem:[%s3378 + $0xa4] sm:$0x1]
        %v3707 = vld [vmem:[%s3378 + $0xa8] sm:$0xf]
        %v3708 = vld [vmem:[%s3378 + $0xac] sm:$0xf]
        %v3709 = vld [vmem:[%s3378 + $0xb0] sm:$0x1]
        %v3710 = vld [vmem:[%s3378 + $0xb4] sm:$0xf]
        %v3711 = vld [vmem:[%s3378 + $0xb8] sm:$0xf]
        %v3712 = vld [vmem:[%s3378 + $0xbc] sm:$0x1]
        %v3714 = vshrl.u32 %v3665, 16
        %v3716 = vrot.slane %v3714, 4
        %v3717 = vshll.u32 %v3665, 16
        %v3719 = vrot.slane %v3717, 5
        %v3720 = vor.u32 %v3716, %v3719
        %v3721 = vrot.slane %v3720, 4
        %v3723 = vshll.u32 %v3666, 16
        %v3725 = vrot.slane %v3723, 5
        %v3726 = vsel %vm858, %v3721, %v3725
        %v3727 = vshrl.u32 %v3666, 16
        %v3729 = vrot.slane %v3727, 4
        %v3730 = vor.u32 %v3729, %v3725
        %v3731 = vrot.slane %v3730, 4
        %v3733 = vshll.u32 %v3667, 16
        %v3735 = vrot.slane %v3733, 5
        %v3736 = vsel %vm858, %v3731, %v3735
        %v3738 = vshrl.u32 %v3668, 16
        %v3740 = vrot.slane %v3738, 4
        %v3741 = vshll.u32 %v3668, 16
        %v3743 = vrot.slane %v3741, 5
        %v3744 = vor.u32 %v3740, %v3743
        %v3745 = vrot.slane %v3744, 4
        %v3747 = vshll.u32 %v3669, 16
        %v3749 = vrot.slane %v3747, 5
        %v3750 = vsel %vm858, %v3745, %v3749
        %v3751 = vshrl.u32 %v3669, 16
        %v3753 = vrot.slane %v3751, 4
        %v3754 = vor.u32 %v3753, %v3749
        %v3755 = vrot.slane %v3754, 4
        %v3757 = vshll.u32 %v3670, 16
        %v3759 = vrot.slane %v3757, 5
        %v3760 = vsel %vm858, %v3755, %v3759
        %v3762 = vshrl.u32 %v3671, 16
        %v3764 = vrot.slane %v3762, 4
        %v3765 = vshll.u32 %v3671, 16
        %v3767 = vrot.slane %v3765, 5
        %v3768 = vor.u32 %v3764, %v3767
        %v3769 = vrot.slane %v3768, 4
        %v3771 = vshll.u32 %v3672, 16
        %v3773 = vrot.slane %v3771, 5
        %v3774 = vsel %vm858, %v3769, %v3773
        %v3775 = vshrl.u32 %v3672, 16
        %v3777 = vrot.slane %v3775, 4
        %v3778 = vor.u32 %v3777, %v3773
        %v3779 = vrot.slane %v3778, 4
        %v3781 = vshll.u32 %v3673, 16
        %v3783 = vrot.slane %v3781, 5
        %v3784 = vsel %vm858, %v3779, %v3783
        %v3786 = vshrl.u32 %v3674, 16
        %v3788 = vrot.slane %v3786, 4
        %v3789 = vshll.u32 %v3674, 16
        %v3791 = vrot.slane %v3789, 5
        %v3792 = vor.u32 %v3788, %v3791
        %v3793 = vrot.slane %v3792, 4
        %v3795 = vshll.u32 %v3675, 16
        %v3797 = vrot.slane %v3795, 5
        %v3798 = vsel %vm858, %v3793, %v3797
        %v3799 = vshrl.u32 %v3675, 16
        %v3801 = vrot.slane %v3799, 4
        %v3802 = vor.u32 %v3801, %v3797
        %v3803 = vrot.slane %v3802, 4
        %v3805 = vshll.u32 %v3676, 16
        %v3807 = vrot.slane %v3805, 5
        %v3808 = vsel %vm858, %v3803, %v3807
        %v3810 = vshrl.u32 %v3677, 16
        %v3812 = vrot.slane %v3810, 4
        %v3813 = vshll.u32 %v3677, 16
        %v3815 = vrot.slane %v3813, 5
        %v3816 = vor.u32 %v3812, %v3815
        %v3817 = vrot.slane %v3816, 4
        %v3819 = vshll.u32 %v3678, 16
        %v3821 = vrot.slane %v3819, 5
        %v3822 = vsel %vm858, %v3817, %v3821
        %v3823 = vshrl.u32 %v3678, 16
        %v3825 = vrot.slane %v3823, 4
        %v3826 = vor.u32 %v3825, %v3821
        %v3827 = vrot.slane %v3826, 4
        %v3829 = vshll.u32 %v3679, 16
        %v3831 = vrot.slane %v3829, 5
        %v3832 = vsel %vm858, %v3827, %v3831
        %v3834 = vshrl.u32 %v3680, 16
        %v3836 = vrot.slane %v3834, 4
        %v3837 = vshll.u32 %v3680, 16
        %v3839 = vrot.slane %v3837, 5
        %v3840 = vor.u32 %v3836, %v3839
        %v3841 = vrot.slane %v3840, 4
        %v3843 = vshll.u32 %v3681, 16
        %v3845 = vrot.slane %v3843, 5
        %v3846 = vsel %vm858, %v3841, %v3845
        %v3847 = vshrl.u32 %v3681, 16
        %v3849 = vrot.slane %v3847, 4
        %v3850 = vor.u32 %v3849, %v3845
        %v3851 = vrot.slane %v3850, 4
        %v3853 = vshll.u32 %v3682, 16
        %v3855 = vrot.slane %v3853, 5
        %v3856 = vsel %vm858, %v3851, %v3855
        %v3858 = vshrl.u32 %v3683, 16
        %v3860 = vrot.slane %v3858, 4
        %v3861 = vshll.u32 %v3683, 16
        %v3863 = vrot.slane %v3861, 5
        %v3864 = vor.u32 %v3860, %v3863
        %v3865 = vrot.slane %v3864, 4
        %v3867 = vshll.u32 %v3684, 16
        %v3869 = vrot.slane %v3867, 5
        %v3870 = vsel %vm858, %v3865, %v3869
        %v3871 = vshrl.u32 %v3684, 16
        %v3873 = vrot.slane %v3871, 4
        %v3874 = vor.u32 %v3873, %v3869
        %v3875 = vrot.slane %v3874, 4
        %v3877 = vshll.u32 %v3685, 16
        %v3879 = vrot.slane %v3877, 5
        %v3880 = vsel %vm858, %v3875, %v3879
        %v3882 = vshrl.u32 %v3686, 16
        %v3884 = vrot.slane %v3882, 4
        %v3885 = vshll.u32 %v3686, 16
        %v3887 = vrot.slane %v3885, 5
        %v3888 = vor.u32 %v3884, %v3887
        %v3889 = vrot.slane %v3888, 4
        %v3891 = vshll.u32 %v3687, 16
        %v3893 = vrot.slane %v3891, 5
        %v3894 = vsel %vm858, %v3889, %v3893
        %v3895 = vshrl.u32 %v3687, 16
        %v3897 = vrot.slane %v3895, 4
        %v3898 = vor.u32 %v3897, %v3893
        %v3899 = vrot.slane %v3898, 4
        %v3901 = vshll.u32 %v3688, 16
        %v3903 = vrot.slane %v3901, 5
        %v3904 = vsel %vm858, %v3899, %v3903
        %v3906 = vshrl.u32 %v3689, 16
        %v3908 = vrot.slane %v3906, 4
        %v3909 = vshll.u32 %v3689, 16
        %v3911 = vrot.slane %v3909, 5
        %v3912 = vor.u32 %v3908, %v3911
        %v3913 = vrot.slane %v3912, 4
        %v3915 = vshll.u32 %v3690, 16
        %v3917 = vrot.slane %v3915, 5
        %v3918 = vsel %vm858, %v3913, %v3917
        %v3919 = vshrl.u32 %v3690, 16
        %v3921 = vrot.slane %v3919, 4
        %v3922 = vor.u32 %v3921, %v3917
        %v3923 = vrot.slane %v3922, 4
        %v3925 = vshll.u32 %v3691, 16
        %v3927 = vrot.slane %v3925, 5
        %v3928 = vsel %vm858, %v3923, %v3927
        %v3930 = vshrl.u32 %v3692, 16
        %v3932 = vrot.slane %v3930, 4
        %v3933 = vshll.u32 %v3692, 16
        %v3935 = vrot.slane %v3933, 5
        %v3936 = vor.u32 %v3932, %v3935
        %v3937 = vrot.slane %v3936, 4
        %v3939 = vshll.u32 %v3693, 16
        %v3941 = vrot.slane %v3939, 5
        %v3942 = vsel %vm858, %v3937, %v3941
        %v3943 = vshrl.u32 %v3693, 16
        %v3945 = vrot.slane %v3943, 4
        %v3946 = vor.u32 %v3945, %v3941
        %v3947 = vrot.slane %v3946, 4
        %v3949 = vshll.u32 %v3694, 16
        %v3951 = vrot.slane %v3949, 5
        %v3952 = vsel %vm858, %v3947, %v3951
        %v3954 = vshrl.u32 %v3695, 16
        %v3956 = vrot.slane %v3954, 4
        %v3957 = vshll.u32 %v3695, 16
        %v3959 = vrot.slane %v3957, 5
        %v3960 = vor.u32 %v3956, %v3959
        %v3961 = vrot.slane %v3960, 4
        %v3963 = vshll.u32 %v3696, 16
        %v3965 = vrot.slane %v3963, 5
        %v3966 = vsel %vm858, %v3961, %v3965
        %v3967 = vshrl.u32 %v3696, 16
        %v3969 = vrot.slane %v3967, 4
        %v3970 = vor.u32 %v3969, %v3965
        %v3971 = vrot.slane %v3970, 4
        %v3973 = vshll.u32 %v3697, 16
        %v3975 = vrot.slane %v3973, 5
        %v3976 = vsel %vm858, %v3971, %v3975
        %v3978 = vshrl.u32 %v3698, 16
        %v3980 = vrot.slane %v3978, 4
        %v3981 = vshll.u32 %v3698, 16
        %v3983 = vrot.slane %v3981, 5
        %v3984 = vor.u32 %v3980, %v3983
        %v3985 = vrot.slane %v3984, 4
        %v3987 = vshll.u32 %v3699, 16
        %v3989 = vrot.slane %v3987, 5
        %v3990 = vsel %vm858, %v3985, %v3989
        %v3991 = vshrl.u32 %v3699, 16
        %v3993 = vrot.slane %v3991, 4
        %v3994 = vor.u32 %v3993, %v3989
        %v3995 = vrot.slane %v3994, 4
        %v3997 = vshll.u32 %v3700, 16
        %v3999 = vrot.slane %v3997, 5
        %v4000 = vsel %vm858, %v3995, %v3999
        %v4002 = vshrl.u32 %v3701, 16
        %v4004 = vrot.slane %v4002, 4
        %v4005 = vshll.u32 %v3701, 16
        %v4007 = vrot.slane %v4005, 5
        %v4008 = vor.u32 %v4004, %v4007
        %v4009 = vrot.slane %v4008, 4
        %v4011 = vshll.u32 %v3702, 16
        %v4013 = vrot.slane %v4011, 5
        %v4014 = vsel %vm858, %v4009, %v4013
        %v4015 = vshrl.u32 %v3702, 16
        %v4017 = vrot.slane %v4015, 4
        %v4018 = vor.u32 %v4017, %v4013
        %v4019 = vrot.slane %v4018, 4
        %v4021 = vshll.u32 %v3703, 16
        %v4023 = vrot.slane %v4021, 5
        %v4024 = vsel %vm858, %v4019, %v4023
        %v4026 = vshrl.u32 %v3704, 16
        %v4028 = vrot.slane %v4026, 4
        %v4029 = vshll.u32 %v3704, 16
        %v4031 = vrot.slane %v4029, 5
        %v4032 = vor.u32 %v4028, %v4031
        %v4033 = vrot.slane %v4032, 4
        %v4035 = vshll.u32 %v3705, 16
        %v4037 = vrot.slane %v4035, 5
        %v4038 = vsel %vm858, %v4033, %v4037
        %v4039 = vshrl.u32 %v3705, 16
        %v4041 = vrot.slane %v4039, 4
        %v4042 = vor.u32 %v4041, %v4037
        %v4043 = vrot.slane %v4042, 4
        %v4045 = vshll.u32 %v3706, 16
        %v4047 = vrot.slane %v4045, 5
        %v4048 = vsel %vm858, %v4043, %v4047
        %v4050 = vshrl.u32 %v3707, 16
        %v4052 = vrot.slane %v4050, 4
        %v4053 = vshll.u32 %v3707, 16
        %v4055 = vrot.slane %v4053, 5
        %v4056 = vor.u32 %v4052, %v4055
        %v4057 = vrot.slane %v4056, 4
        %v4059 = vshll.u32 %v3708, 16
        %v4061 = vrot.slane %v4059, 5
        %v4062 = vsel %vm858, %v4057, %v4061
        %v4063 = vshrl.u32 %v3708, 16
        %v4065 = vrot.slane %v4063, 4
        %v4066 = vor.u32 %v4065, %v4061
        %v4067 = vrot.slane %v4066, 4
        %v4069 = vshll.u32 %v3709, 16
        %v4071 = vrot.slane %v4069, 5
        %v4072 = vsel %vm858, %v4067, %v4071
        %v4074 = vshrl.u32 %v3710, 16
        %v4076 = vrot.slane %v4074, 4
        %v4077 = vshll.u32 %v3710, 16
        %v4079 = vrot.slane %v4077, 5
        %v4080 = vor.u32 %v4076, %v4079
        %v4081 = vrot.slane %v4080, 4
        %v4083 = vshll.u32 %v3711, 16
        %v4085 = vrot.slane %v4083, 5
        %v4086 = vsel %vm858, %v4081, %v4085
        %v4087 = vshrl.u32 %v3711, 16
        %v4089 = vrot.slane %v4087, 4
        %v4090 = vor.u32 %v4089, %v4085
        %v4091 = vrot.slane %v4090, 4
        %v4093 = vshll.u32 %v3712, 16
        %v4095 = vrot.slane %v4093, 5
        %v4096 = vsel %vm858, %v4091, %v4095
        %s4097 = scalar_lea.vmem %s1, 14
        %v4098 = vld [vmem:[%s4097] sm:$0x3]
        %v4099 = vunpack.c.l.b16 %v3726
        %v4100 = vunpack.c.l.b16 %v3736
        %v4101 = vunpack.c.l.b16 %v3750
        %v4102 = vunpack.c.l.b16 %v3760
        %v4103 = vunpack.c.l.b16 %v3774
        %v4104 = vunpack.c.l.b16 %v3784
        %v4105 = vunpack.c.l.b16 %v3798
        %v4106 = vunpack.c.l.b16 %v3808
        %v4107 = vunpack.c.l.b16 %v3822
        %v4108 = vunpack.c.l.b16 %v3832
        %v4109 = vunpack.c.l.b16 %v3846
        %v4110 = vunpack.c.l.b16 %v3856
        %v4111 = vunpack.c.l.b16 %v3870
        %v4112 = vunpack.c.l.b16 %v3880
        %v4113 = vunpack.c.l.b16 %v3894
        %v4114 = vunpack.c.l.b16 %v3904
        %v4115 = vunpack.c.l.b16 %v3918
        %v4116 = vunpack.c.l.b16 %v3928
        %v4117 = vunpack.c.l.b16 %v3942
        %v4118 = vunpack.c.l.b16 %v3952
        %v4119 = vunpack.c.l.b16 %v3966
        %v4120 = vunpack.c.l.b16 %v3976
        %v4121 = vunpack.c.l.b16 %v3990
        %v4122 = vunpack.c.l.b16 %v4000
        %v4123 = vunpack.c.l.b16 %v4014
        %v4124 = vunpack.c.l.b16 %v4024
        %v4125 = vunpack.c.l.b16 %v4038
        %v4126 = vunpack.c.l.b16 %v4048
        %v4127 = vunpack.c.l.b16 %v4062
        %v4128 = vunpack.c.l.b16 %v4072
        %v4129 = vunpack.c.l.b16 %v4086
        %v4130 = vunpack.c.l.b16 %v4096
        %v4131 = vpack.c.b16 %v4100, %v4099
        %v4132 = vpack.c.b16 %v4102, %v4101
        %v4133 = vpack.c.b16 %v4104, %v4103
        %v4134 = vpack.c.b16 %v4106, %v4105
        %v4135 = vpack.c.b16 %v4108, %v4107
        %v4136 = vpack.c.b16 %v4110, %v4109
        %v4137 = vpack.c.b16 %v4112, %v4111
        %v4138 = vpack.c.b16 %v4114, %v4113
        %v4139 = vpack.c.b16 %v4116, %v4115
        %v4140 = vpack.c.b16 %v4118, %v4117
        %v4141 = vpack.c.b16 %v4120, %v4119
        %v4142 = vpack.c.b16 %v4122, %v4121
        %v4143 = vpack.c.b16 %v4124, %v4123
        %v4144 = vpack.c.b16 %v4126, %v4125
        %v4145 = vpack.c.b16 %v4128, %v4127
        %v4146 = vpack.c.b16 %v4130, %v4129
        %v4148 = vsel %vm1293, %v4131, 0
        %v4151 = vsel %vm1293, %v4132, 0
        %v4154 = vsel %vm1293, %v4133, 0
        %v4157 = vsel %vm1293, %v4134, 0
        %v4160 = vsel %vm1293, %v4135, 0
        %v4163 = vsel %vm1293, %v4136, 0
        %v4166 = vsel %vm1293, %v4137, 0
        %v4169 = vsel %vm1293, %v4138, 0
        %v4172 = vsel %vm1293, %v4139, 0
        %v4175 = vsel %vm1293, %v4140, 0
        %v4178 = vsel %vm1293, %v4141, 0
        %v4181 = vsel %vm1293, %v4142, 0
        %v4184 = vsel %vm1293, %v4143, 0
        %v4187 = vsel %vm1293, %v4144, 0
        %v4190 = vsel %vm1293, %v4145, 0
        %v4193 = vsel %vm1293, %v4146, 0
        %v4196 = vsel %vm1342, %v4098, 0
        %4198 = vmatpush.bf16.msra.mxu0 0
        %4199 = vmatpush.bf16.msra.mxu0 0
        %4200 = vmatpush.bf16.msra.mxu0 0
        %4201 = vmatpush.bf16.msra.mxu0 0
        %4202 = vmatpush.bf16.msra.mxu0 0
        %4203 = vmatpush.bf16.msra.mxu0 0
        %4204 = vmatpush.bf16.msra.mxu0 0
        %4205 = vmatpush.bf16.msra.mxu0 %v4196
        %4206 = vmatmul.bf16.gmra.mxu0 %v4148
        %v4207 = vpop.f32.mrf.mxu0
        %v4208 = vadd.f32 0.0, %v4207
        %v4209 = vpop.f32.mrf.mxu0
        %v4210 = vadd.f32 0.0, %v4209
        %4211 = vmatmul.bf16.gmra.mxu0 %v4151
        %v4212 = vpop.f32.mrf.mxu0
        %v4213 = vadd.f32 0.0, %v4212
        %v4214 = vpop.f32.mrf.mxu0
        %v4215 = vadd.f32 0.0, %v4214
        %4216 = vmatmul.bf16.gmra.mxu0 %v4154
        %v4217 = vpop.f32.mrf.mxu0
        %v4218 = vadd.f32 0.0, %v4217
        %v4219 = vpop.f32.mrf.mxu0
        %v4220 = vadd.f32 0.0, %v4219
        %4221 = vmatmul.bf16.gmra.mxu0 %v4157
        %v4222 = vpop.f32.mrf.mxu0
        %v4223 = vadd.f32 0.0, %v4222
        %v4224 = vpop.f32.mrf.mxu0
        %v4225 = vadd.f32 0.0, %v4224
        %4226 = vmatmul.bf16.gmra.mxu0 %v4160
        %v4227 = vpop.f32.mrf.mxu0
        %v4228 = vadd.f32 0.0, %v4227
        %v4229 = vpop.f32.mrf.mxu0
        %v4230 = vadd.f32 0.0, %v4229
        %4231 = vmatmul.bf16.gmra.mxu0 %v4163
        %v4232 = vpop.f32.mrf.mxu0
        %v4233 = vadd.f32 0.0, %v4232
        %v4234 = vpop.f32.mrf.mxu0
        %v4235 = vadd.f32 0.0, %v4234
        %4236 = vmatmul.bf16.gmra.mxu0 %v4166
        %v4237 = vpop.f32.mrf.mxu0
        %v4238 = vadd.f32 0.0, %v4237
        %v4239 = vpop.f32.mrf.mxu0
        %v4240 = vadd.f32 0.0, %v4239
        %4241 = vmatmul.bf16.gmra.mxu0 %v4169
        %v4242 = vpop.f32.mrf.mxu0
        %v4243 = vadd.f32 0.0, %v4242
        %v4244 = vpop.f32.mrf.mxu0
        %v4245 = vadd.f32 0.0, %v4244
        %4246 = vmatmul.bf16.gmra.mxu0 %v4172
        %v4247 = vpop.f32.mrf.mxu0
        %v4248 = vadd.f32 0.0, %v4247
        %v4249 = vpop.f32.mrf.mxu0
        %v4250 = vadd.f32 0.0, %v4249
        %4251 = vmatmul.bf16.gmra.mxu0 %v4175
        %v4252 = vpop.f32.mrf.mxu0
        %v4253 = vadd.f32 0.0, %v4252
        %v4254 = vpop.f32.mrf.mxu0
        %v4255 = vadd.f32 0.0, %v4254
        %4256 = vmatmul.bf16.gmra.mxu0 %v4178
        %v4257 = vpop.f32.mrf.mxu0
        %v4258 = vadd.f32 0.0, %v4257
        %v4259 = vpop.f32.mrf.mxu0
        %v4260 = vadd.f32 0.0, %v4259
        %4261 = vmatmul.bf16.gmra.mxu0 %v4181
        %v4262 = vpop.f32.mrf.mxu0
        %v4263 = vadd.f32 0.0, %v4262
        %v4264 = vpop.f32.mrf.mxu0
        %v4265 = vadd.f32 0.0, %v4264
        %4266 = vmatmul.bf16.gmra.mxu0 %v4184
        %v4267 = vpop.f32.mrf.mxu0
        %v4268 = vadd.f32 0.0, %v4267
        %v4269 = vpop.f32.mrf.mxu0
        %v4270 = vadd.f32 0.0, %v4269
        %4271 = vmatmul.bf16.gmra.mxu0 %v4187
        %v4272 = vpop.f32.mrf.mxu0
        %v4273 = vadd.f32 0.0, %v4272
        %v4274 = vpop.f32.mrf.mxu0
        %v4275 = vadd.f32 0.0, %v4274
        %4276 = vmatmul.bf16.gmra.mxu0 %v4190
        %v4277 = vpop.f32.mrf.mxu0
        %v4278 = vadd.f32 0.0, %v4277
        %v4279 = vpop.f32.mrf.mxu0
        %v4280 = vadd.f32 0.0, %v4279
        %4281 = vmatmul.bf16.gmra.mxu0 %v4193
        %v4282 = vpop.f32.mrf.mxu0
        %v4283 = vadd.f32 0.0, %v4282
        %v4284 = vpop.f32.mrf.mxu0
        %v4285 = vadd.f32 0.0, %v4284
        %4286 = vdwg.mxu0
        %v4287 = vadd.f32 %v3633, %v4208
        %v4288 = vadd.f32 %v3634, %v4210
        %v4289 = vadd.f32 %v3635, %v4213
        %v4290 = vadd.f32 %v3636, %v4215
        %v4291 = vadd.f32 %v3637, %v4218
        %v4292 = vadd.f32 %v3638, %v4220
        %v4293 = vadd.f32 %v3639, %v4223
        %v4294 = vadd.f32 %v3640, %v4225
        %v4295 = vadd.f32 %v3641, %v4228
        %v4296 = vadd.f32 %v3642, %v4230
        %v4297 = vadd.f32 %v3643, %v4233
        %v4298 = vadd.f32 %v3644, %v4235
        %v4299 = vadd.f32 %v3645, %v4238
        %v4300 = vadd.f32 %v3646, %v4240
        %v4301 = vadd.f32 %v3647, %v4243
        %v4302 = vadd.f32 %v3648, %v4245
        %v4303 = vadd.f32 %v3649, %v4248
        %v4304 = vadd.f32 %v3650, %v4250
        %v4305 = vadd.f32 %v3651, %v4253
        %v4306 = vadd.f32 %v3652, %v4255
        %v4307 = vadd.f32 %v3653, %v4258
        %v4308 = vadd.f32 %v3654, %v4260
        %v4309 = vadd.f32 %v3655, %v4263
        %v4310 = vadd.f32 %v3656, %v4265
        %v4311 = vadd.f32 %v3657, %v4268
        %v4312 = vadd.f32 %v3658, %v4270
        %v4313 = vadd.f32 %v3659, %v4273
        %v4314 = vadd.f32 %v3660, %v4275
        %v4315 = vadd.f32 %v3661, %v4278
        %v4316 = vadd.f32 %v3662, %v4280
        %v4317 = vadd.f32 %v3663, %v4283
        %v4318 = vadd.f32 %v3664, %v4285
        %v4319 = vld [vmem:[%s3378] sm:$0xe]
        %v4320 = vld [vmem:[%s3378 + $0xc] sm:$0xe]
        %v4321 = vld [vmem:[%s3378 + $0x18] sm:$0xe]
        %v4322 = vld [vmem:[%s3378 + $0x24] sm:$0xe]
        %v4323 = vld [vmem:[%s3378 + $0x30] sm:$0xe]
        %v4324 = vld [vmem:[%s3378 + $0x3c] sm:$0xe]
        %v4325 = vld [vmem:[%s3378 + $0x48] sm:$0xe]
        %v4326 = vld [vmem:[%s3378 + $0x54] sm:$0xe]
        %v4327 = vld [vmem:[%s3378 + $0x60] sm:$0xe]
        %v4328 = vld [vmem:[%s3378 + $0x6c] sm:$0xe]
        %v4329 = vld [vmem:[%s3378 + $0x78] sm:$0xe]
        %v4330 = vld [vmem:[%s3378 + $0x84] sm:$0xe]
        %v4331 = vld [vmem:[%s3378 + $0x90] sm:$0xe]
        %v4332 = vld [vmem:[%s3378 + $0x9c] sm:$0xe]
        %v4333 = vld [vmem:[%s3378 + $0xa8] sm:$0xe]
        %v4334 = vld [vmem:[%s3378 + $0xb4] sm:$0xe]
        %v4383 = vrot.slane %v4319, 5
        %v4384 = vrot.slane %v4383, 4
        %v4385 = vrot.slane %v3666, 5
        %v4386 = vsel %vm1705, %v4384, %v4385
        %v4387 = vrot.slane %v4385, 4
        %v4388 = vrot.slane %v3667, 5
        %v4389 = vsel %vm1705, %v4387, %v4388
        %v4390 = vrot.slane %v4320, 5
        %v4391 = vrot.slane %v4390, 4
        %v4392 = vrot.slane %v3669, 5
        %v4393 = vsel %vm1705, %v4391, %v4392
        %v4394 = vrot.slane %v4392, 4
        %v4395 = vrot.slane %v3670, 5
        %v4396 = vsel %vm1705, %v4394, %v4395
        %v4397 = vrot.slane %v4321, 5
        %v4398 = vrot.slane %v4397, 4
        %v4399 = vrot.slane %v3672, 5
        %v4400 = vsel %vm1705, %v4398, %v4399
        %v4401 = vrot.slane %v4399, 4
        %v4402 = vrot.slane %v3673, 5
        %v4403 = vsel %vm1705, %v4401, %v4402
        %v4404 = vrot.slane %v4322, 5
        %v4405 = vrot.slane %v4404, 4
        %v4406 = vrot.slane %v3675, 5
        %v4407 = vsel %vm1705, %v4405, %v4406
        %v4408 = vrot.slane %v4406, 4
        %v4409 = vrot.slane %v3676, 5
        %v4410 = vsel %vm1705, %v4408, %v4409
        %v4411 = vrot.slane %v4323, 5
        %v4412 = vrot.slane %v4411, 4
        %v4413 = vrot.slane %v3678, 5
        %v4414 = vsel %vm1705, %v4412, %v4413
        %v4415 = vrot.slane %v4413, 4
        %v4416 = vrot.slane %v3679, 5
        %v4417 = vsel %vm1705, %v4415, %v4416
        %v4418 = vrot.slane %v4324, 5
        %v4419 = vrot.slane %v4418, 4
        %v4420 = vrot.slane %v3681, 5
        %v4421 = vsel %vm1705, %v4419, %v4420
        %v4422 = vrot.slane %v4420, 4
        %v4423 = vrot.slane %v3682, 5
        %v4424 = vsel %vm1705, %v4422, %v4423
        %v4425 = vrot.slane %v4325, 5
        %v4426 = vrot.slane %v4425, 4
        %v4427 = vrot.slane %v3684, 5
        %v4428 = vsel %vm1705, %v4426, %v4427
        %v4429 = vrot.slane %v4427, 4
        %v4430 = vrot.slane %v3685, 5
        %v4431 = vsel %vm1705, %v4429, %v4430
        %v4432 = vrot.slane %v4326, 5
        %v4433 = vrot.slane %v4432, 4
        %v4434 = vrot.slane %v3687, 5
        %v4435 = vsel %vm1705, %v4433, %v4434
        %v4436 = vrot.slane %v4434, 4
        %v4437 = vrot.slane %v3688, 5
        %v4438 = vsel %vm1705, %v4436, %v4437
        %v4439 = vrot.slane %v4327, 5
        %v4440 = vrot.slane %v4439, 4
        %v4441 = vrot.slane %v3690, 5
        %v4442 = vsel %vm1705, %v4440, %v4441
        %v4443 = vrot.slane %v4441, 4
        %v4444 = vrot.slane %v3691, 5
        %v4445 = vsel %vm1705, %v4443, %v4444
        %v4446 = vrot.slane %v4328, 5
        %v4447 = vrot.slane %v4446, 4
        %v4448 = vrot.slane %v3693, 5
        %v4449 = vsel %vm1705, %v4447, %v4448
        %v4450 = vrot.slane %v4448, 4
        %v4451 = vrot.slane %v3694, 5
        %v4452 = vsel %vm1705, %v4450, %v4451
        %v4453 = vrot.slane %v4329, 5
        %v4454 = vrot.slane %v4453, 4
        %v4455 = vrot.slane %v3696, 5
        %v4456 = vsel %vm1705, %v4454, %v4455
        %v4457 = vrot.slane %v4455, 4
        %v4458 = vrot.slane %v3697, 5
        %v4459 = vsel %vm1705, %v4457, %v4458
        %v4460 = vrot.slane %v4330, 5
        %v4461 = vrot.slane %v4460, 4
        %v4462 = vrot.slane %v3699, 5
        %v4463 = vsel %vm1705, %v4461, %v4462
        %v4464 = vrot.slane %v4462, 4
        %v4465 = vrot.slane %v3700, 5
        %v4466 = vsel %vm1705, %v4464, %v4465
        %v4467 = vrot.slane %v4331, 5
        %v4468 = vrot.slane %v4467, 4
        %v4469 = vrot.slane %v3702, 5
        %v4470 = vsel %vm1705, %v4468, %v4469
        %v4471 = vrot.slane %v4469, 4
        %v4472 = vrot.slane %v3703, 5
        %v4473 = vsel %vm1705, %v4471, %v4472
        %v4474 = vrot.slane %v4332, 5
        %v4475 = vrot.slane %v4474, 4
        %v4476 = vrot.slane %v3705, 5
        %v4477 = vsel %vm1705, %v4475, %v4476
        %v4478 = vrot.slane %v4476, 4
        %v4479 = vrot.slane %v3706, 5
        %v4480 = vsel %vm1705, %v4478, %v4479
        %v4481 = vrot.slane %v4333, 5
        %v4482 = vrot.slane %v4481, 4
        %v4483 = vrot.slane %v3708, 5
        %v4484 = vsel %vm1705, %v4482, %v4483
        %v4485 = vrot.slane %v4483, 4
        %v4486 = vrot.slane %v3709, 5
        %v4487 = vsel %vm1705, %v4485, %v4486
        %v4488 = vrot.slane %v4334, 5
        %v4489 = vrot.slane %v4488, 4
        %v4490 = vrot.slane %v3711, 5
        %v4491 = vsel %vm1705, %v4489, %v4490
        %v4492 = vrot.slane %v4490, 4
        %v4493 = vrot.slane %v3712, 5
        %v4494 = vsel %vm1705, %v4492, %v4493
        %s4495 = scalar_lea.vmem %s1, 16
        %v4496 = vld [vmem:[%s4495] sm:$0x3]
        %v4497 = vunpack.c.l.b16 %v4386
        %v4498 = vunpack.c.l.b16 %v4389
        %v4499 = vunpack.c.l.b16 %v4393
        %v4500 = vunpack.c.l.b16 %v4396
        %v4501 = vunpack.c.l.b16 %v4400
        %v4502 = vunpack.c.l.b16 %v4403
        %v4503 = vunpack.c.l.b16 %v4407
        %v4504 = vunpack.c.l.b16 %v4410
        %v4505 = vunpack.c.l.b16 %v4414
        %v4506 = vunpack.c.l.b16 %v4417
        %v4507 = vunpack.c.l.b16 %v4421
        %v4508 = vunpack.c.l.b16 %v4424
        %v4509 = vunpack.c.l.b16 %v4428
        %v4510 = vunpack.c.l.b16 %v4431
        %v4511 = vunpack.c.l.b16 %v4435
        %v4512 = vunpack.c.l.b16 %v4438
        %v4513 = vunpack.c.l.b16 %v4442
        %v4514 = vunpack.c.l.b16 %v4445
        %v4515 = vunpack.c.l.b16 %v4449
        %v4516 = vunpack.c.l.b16 %v4452
        %v4517 = vunpack.c.l.b16 %v4456
        %v4518 = vunpack.c.l.b16 %v4459
        %v4519 = vunpack.c.l.b16 %v4463
        %v4520 = vunpack.c.l.b16 %v4466
        %v4521 = vunpack.c.l.b16 %v4470
        %v4522 = vunpack.c.l.b16 %v4473
        %v4523 = vunpack.c.l.b16 %v4477
        %v4524 = vunpack.c.l.b16 %v4480
        %v4525 = vunpack.c.l.b16 %v4484
        %v4526 = vunpack.c.l.b16 %v4487
        %v4527 = vunpack.c.l.b16 %v4491
        %v4528 = vunpack.c.l.b16 %v4494
        %v4529 = vpack.c.b16 %v4498, %v4497
        %v4530 = vpack.c.b16 %v4500, %v4499
        %v4531 = vpack.c.b16 %v4502, %v4501
        %v4532 = vpack.c.b16 %v4504, %v4503
        %v4533 = vpack.c.b16 %v4506, %v4505
        %v4534 = vpack.c.b16 %v4508, %v4507
        %v4535 = vpack.c.b16 %v4510, %v4509
        %v4536 = vpack.c.b16 %v4512, %v4511
        %v4537 = vpack.c.b16 %v4514, %v4513
        %v4538 = vpack.c.b16 %v4516, %v4515
        %v4539 = vpack.c.b16 %v4518, %v4517
        %v4540 = vpack.c.b16 %v4520, %v4519
        %v4541 = vpack.c.b16 %v4522, %v4521
        %v4542 = vpack.c.b16 %v4524, %v4523
        %v4543 = vpack.c.b16 %v4526, %v4525
        %v4544 = vpack.c.b16 %v4528, %v4527
        %v4546 = vsel %vm1293, %v4529, 0
        %v4549 = vsel %vm1293, %v4530, 0
        %v4552 = vsel %vm1293, %v4531, 0
        %v4555 = vsel %vm1293, %v4532, 0
        %v4558 = vsel %vm1293, %v4533, 0
        %v4561 = vsel %vm1293, %v4534, 0
        %v4564 = vsel %vm1293, %v4535, 0
        %v4567 = vsel %vm1293, %v4536, 0
        %v4570 = vsel %vm1293, %v4537, 0
        %v4573 = vsel %vm1293, %v4538, 0
        %v4576 = vsel %vm1293, %v4539, 0
        %v4579 = vsel %vm1293, %v4540, 0
        %v4582 = vsel %vm1293, %v4541, 0
        %v4585 = vsel %vm1293, %v4542, 0
        %v4588 = vsel %vm1293, %v4543, 0
        %v4591 = vsel %vm1293, %v4544, 0
        %v4594 = vsel %vm1342, %v4496, 0
        %4596 = vmatpush.bf16.msra.mxu0 0
        %4597 = vmatpush.bf16.msra.mxu0 0
        %4598 = vmatpush.bf16.msra.mxu0 0
        %4599 = vmatpush.bf16.msra.mxu0 0
        %4600 = vmatpush.bf16.msra.mxu0 0
        %4601 = vmatpush.bf16.msra.mxu0 0
        %4602 = vmatpush.bf16.msra.mxu0 0
        %4603 = vmatpush.bf16.msra.mxu0 %v4594
        %4604 = vmatmul.bf16.gmra.mxu0 %v4546
        %v4605 = vpop.f32.mrf.mxu0
        %v4606 = vadd.f32 0.0, %v4605
        %v4607 = vpop.f32.mrf.mxu0
        %v4608 = vadd.f32 0.0, %v4607
        %4609 = vmatmul.bf16.gmra.mxu0 %v4549
        %v4610 = vpop.f32.mrf.mxu0
        %v4611 = vadd.f32 0.0, %v4610
        %v4612 = vpop.f32.mrf.mxu0
        %v4613 = vadd.f32 0.0, %v4612
        %4614 = vmatmul.bf16.gmra.mxu0 %v4552
        %v4615 = vpop.f32.mrf.mxu0
        %v4616 = vadd.f32 0.0, %v4615
        %v4617 = vpop.f32.mrf.mxu0
        %v4618 = vadd.f32 0.0, %v4617
        %4619 = vmatmul.bf16.gmra.mxu0 %v4555
        %v4620 = vpop.f32.mrf.mxu0
        %v4621 = vadd.f32 0.0, %v4620
        %v4622 = vpop.f32.mrf.mxu0
        %v4623 = vadd.f32 0.0, %v4622
        %4624 = vmatmul.bf16.gmra.mxu0 %v4558
        %v4625 = vpop.f32.mrf.mxu0
        %v4626 = vadd.f32 0.0, %v4625
        %v4627 = vpop.f32.mrf.mxu0
        %v4628 = vadd.f32 0.0, %v4627
        %4629 = vmatmul.bf16.gmra.mxu0 %v4561
        %v4630 = vpop.f32.mrf.mxu0
        %v4631 = vadd.f32 0.0, %v4630
        %v4632 = vpop.f32.mrf.mxu0
        %v4633 = vadd.f32 0.0, %v4632
        %4634 = vmatmul.bf16.gmra.mxu0 %v4564
        %v4635 = vpop.f32.mrf.mxu0
        %v4636 = vadd.f32 0.0, %v4635
        %v4637 = vpop.f32.mrf.mxu0
        %v4638 = vadd.f32 0.0, %v4637
        %4639 = vmatmul.bf16.gmra.mxu0 %v4567
        %v4640 = vpop.f32.mrf.mxu0
        %v4641 = vadd.f32 0.0, %v4640
        %v4642 = vpop.f32.mrf.mxu0
        %v4643 = vadd.f32 0.0, %v4642
        %4644 = vmatmul.bf16.gmra.mxu0 %v4570
        %v4645 = vpop.f32.mrf.mxu0
        %v4646 = vadd.f32 0.0, %v4645
        %v4647 = vpop.f32.mrf.mxu0
        %v4648 = vadd.f32 0.0, %v4647
        %4649 = vmatmul.bf16.gmra.mxu0 %v4573
        %v4650 = vpop.f32.mrf.mxu0
        %v4651 = vadd.f32 0.0, %v4650
        %v4652 = vpop.f32.mrf.mxu0
        %v4653 = vadd.f32 0.0, %v4652
        %4654 = vmatmul.bf16.gmra.mxu0 %v4576
        %v4655 = vpop.f32.mrf.mxu0
        %v4656 = vadd.f32 0.0, %v4655
        %v4657 = vpop.f32.mrf.mxu0
        %v4658 = vadd.f32 0.0, %v4657
        %4659 = vmatmul.bf16.gmra.mxu0 %v4579
        %v4660 = vpop.f32.mrf.mxu0
        %v4661 = vadd.f32 0.0, %v4660
        %v4662 = vpop.f32.mrf.mxu0
        %v4663 = vadd.f32 0.0, %v4662
        %4664 = vmatmul.bf16.gmra.mxu0 %v4582
        %v4665 = vpop.f32.mrf.mxu0
        %v4666 = vadd.f32 0.0, %v4665
        %v4667 = vpop.f32.mrf.mxu0
        %v4668 = vadd.f32 0.0, %v4667
        %4669 = vmatmul.bf16.gmra.mxu0 %v4585
        %v4670 = vpop.f32.mrf.mxu0
        %v4671 = vadd.f32 0.0, %v4670
        %v4672 = vpop.f32.mrf.mxu0
        %v4673 = vadd.f32 0.0, %v4672
        %4674 = vmatmul.bf16.gmra.mxu0 %v4588
        %v4675 = vpop.f32.mrf.mxu0
        %v4676 = vadd.f32 0.0, %v4675
        %v4677 = vpop.f32.mrf.mxu0
        %v4678 = vadd.f32 0.0, %v4677
        %4679 = vmatmul.bf16.gmra.mxu0 %v4591
        %v4680 = vpop.f32.mrf.mxu0
        %v4681 = vadd.f32 0.0, %v4680
        %v4682 = vpop.f32.mrf.mxu0
        %v4683 = vadd.f32 0.0, %v4682
        %4684 = vdwg.mxu0
        %v4685 = vadd.f32 %v4287, %v4606
        %v4686 = vadd.f32 %v4288, %v4608
        %v4687 = vadd.f32 %v4289, %v4611
        %v4688 = vadd.f32 %v4290, %v4613
        %v4689 = vadd.f32 %v4291, %v4616
        %v4690 = vadd.f32 %v4292, %v4618
        %v4691 = vadd.f32 %v4293, %v4621
        %v4692 = vadd.f32 %v4294, %v4623
        %v4693 = vadd.f32 %v4295, %v4626
        %v4694 = vadd.f32 %v4296, %v4628
        %v4695 = vadd.f32 %v4297, %v4631
        %v4696 = vadd.f32 %v4298, %v4633
        %v4697 = vadd.f32 %v4299, %v4636
        %v4698 = vadd.f32 %v4300, %v4638
        %v4699 = vadd.f32 %v4301, %v4641
        %v4700 = vadd.f32 %v4302, %v4643
        %v4701 = vadd.f32 %v4303, %v4646
        %v4702 = vadd.f32 %v4304, %v4648
        %v4703 = vadd.f32 %v4305, %v4651
        %v4704 = vadd.f32 %v4306, %v4653
        %v4705 = vadd.f32 %v4307, %v4656
        %v4706 = vadd.f32 %v4308, %v4658
        %v4707 = vadd.f32 %v4309, %v4661
        %v4708 = vadd.f32 %v4310, %v4663
        %v4709 = vadd.f32 %v4311, %v4666
        %v4710 = vadd.f32 %v4312, %v4668
        %v4711 = vadd.f32 %v4313, %v4671
        %v4712 = vadd.f32 %v4314, %v4673
        %v4713 = vadd.f32 %v4315, %v4676
        %v4714 = vadd.f32 %v4316, %v4678
        %v4715 = vadd.f32 %v4317, %v4681
        %v4716 = vadd.f32 %v4318, %v4683
        %v4717 = vld [vmem:[%s3] sm:$0x1]
        %v4719 = vperm.slane %v4717, 0
        %v4721 = vmul.f32 %v4685, %v4719
        %v4722 = vmul.f32 %v4686, %v4719
        %v4723 = vmul.f32 %v4687, %v4719
        %v4724 = vmul.f32 %v4688, %v4719
        %v4725 = vmul.f32 %v4689, %v4719
        %v4726 = vmul.f32 %v4690, %v4719
        %v4727 = vmul.f32 %v4691, %v4719
        %v4728 = vmul.f32 %v4692, %v4719
        %v4729 = vmul.f32 %v4693, %v4719
        %v4730 = vmul.f32 %v4694, %v4719
        %v4731 = vmul.f32 %v4695, %v4719
        %v4732 = vmul.f32 %v4696, %v4719
        %v4733 = vmul.f32 %v4697, %v4719
        %v4734 = vmul.f32 %v4698, %v4719
        %v4735 = vmul.f32 %v4699, %v4719
        %v4736 = vmul.f32 %v4700, %v4719
        %v4737 = vmul.f32 %v4701, %v4719
        %v4738 = vmul.f32 %v4702, %v4719
        %v4739 = vmul.f32 %v4703, %v4719
        %v4740 = vmul.f32 %v4704, %v4719
        %v4741 = vmul.f32 %v4705, %v4719
        %v4742 = vmul.f32 %v4706, %v4719
        %v4743 = vmul.f32 %v4707, %v4719
        %v4744 = vmul.f32 %v4708, %v4719
        %v4745 = vmul.f32 %v4709, %v4719
        %v4746 = vmul.f32 %v4710, %v4719
        %v4747 = vmul.f32 %v4711, %v4719
        %v4748 = vmul.f32 %v4712, %v4719
        %v4749 = vmul.f32 %v4713, %v4719
        %v4750 = vmul.f32 %v4714, %v4719
        %v4751 = vmul.f32 %v4715, %v4719
        %v4752 = vmul.f32 %v4716, %v4719
        %v4753 = vld [vmem:[%s4] sm:$0x1]
        %v4755 = vperm.slane %v4753, 0
        %v4757 = vadd.f32 %v4721, %v4755
        %v4758 = vadd.f32 %v4722, %v4755
        %v4759 = vadd.f32 %v4723, %v4755
        %v4760 = vadd.f32 %v4724, %v4755
        %v4761 = vadd.f32 %v4725, %v4755
        %v4762 = vadd.f32 %v4726, %v4755
        %v4763 = vadd.f32 %v4727, %v4755
        %v4764 = vadd.f32 %v4728, %v4755
        %v4765 = vadd.f32 %v4729, %v4755
        %v4766 = vadd.f32 %v4730, %v4755
        %v4767 = vadd.f32 %v4731, %v4755
        %v4768 = vadd.f32 %v4732, %v4755
        %v4769 = vadd.f32 %v4733, %v4755
        %v4770 = vadd.f32 %v4734, %v4755
        %v4771 = vadd.f32 %v4735, %v4755
        %v4772 = vadd.f32 %v4736, %v4755
        %v4773 = vadd.f32 %v4737, %v4755
        %v4774 = vadd.f32 %v4738, %v4755
        %v4775 = vadd.f32 %v4739, %v4755
        %v4776 = vadd.f32 %v4740, %v4755
        %v4777 = vadd.f32 %v4741, %v4755
        %v4778 = vadd.f32 %v4742, %v4755
        %v4779 = vadd.f32 %v4743, %v4755
        %v4780 = vadd.f32 %v4744, %v4755
        %v4781 = vadd.f32 %v4745, %v4755
        %v4782 = vadd.f32 %v4746, %v4755
        %v4783 = vadd.f32 %v4747, %v4755
        %v4784 = vadd.f32 %v4748, %v4755
        %v4785 = vadd.f32 %v4749, %v4755
        %v4786 = vadd.f32 %v4750, %v4755
        %v4787 = vadd.f32 %v4751, %v4755
        %v4788 = vadd.f32 %v4752, %v4755
        %v4789 = vmax.f32 %v4757, 0.0
        %v4790 = vmax.f32 %v4758, 0.0
        %v4791 = vmax.f32 %v4759, 0.0
        %v4792 = vmax.f32 %v4760, 0.0
        %v4793 = vmax.f32 %v4761, 0.0
        %v4794 = vmax.f32 %v4762, 0.0
        %v4795 = vmax.f32 %v4763, 0.0
        %v4796 = vmax.f32 %v4764, 0.0
        %v4797 = vmax.f32 %v4765, 0.0
        %v4798 = vmax.f32 %v4766, 0.0
        %v4799 = vmax.f32 %v4767, 0.0
        %v4800 = vmax.f32 %v4768, 0.0
        %v4801 = vmax.f32 %v4769, 0.0
        %v4802 = vmax.f32 %v4770, 0.0
        %v4803 = vmax.f32 %v4771, 0.0
        %v4804 = vmax.f32 %v4772, 0.0
        %v4805 = vmax.f32 %v4773, 0.0
        %v4806 = vmax.f32 %v4774, 0.0
        %v4807 = vmax.f32 %v4775, 0.0
        %v4808 = vmax.f32 %v4776, 0.0
        %v4809 = vmax.f32 %v4777, 0.0
        %v4810 = vmax.f32 %v4778, 0.0
        %v4811 = vmax.f32 %v4779, 0.0
        %v4812 = vmax.f32 %v4780, 0.0
        %v4813 = vmax.f32 %v4781, 0.0
        %v4814 = vmax.f32 %v4782, 0.0
        %v4815 = vmax.f32 %v4783, 0.0
        %v4816 = vmax.f32 %v4784, 0.0
        %v4817 = vmax.f32 %v4785, 0.0
        %v4818 = vmax.f32 %v4786, 0.0
        %v4819 = vmax.f32 %v4787, 0.0
        %v4820 = vmax.f32 %v4788, 0.0
        %vm4821 = vcmask 257024
        %4822 = vst.msk [vmem:[#allocation3] sm:$0xf] %vm4821, 0
        %4823 = vst.msk [vmem:[#allocation3 + $0x4] sm:$0xf] %vm4821, 0
        %vm4824 = vcmask 253952
        %4825 = vst.msk [vmem:[#allocation3 + $0x8] sm:$0x1] %vm4824, 0
        %4826 = vst.msk [vmem:[#allocation3 + $0xc] sm:$0xf] %vm4821, 0
        %4827 = vst.msk [vmem:[#allocation3 + $0x10] sm:$0xf] %vm4821, 0
        %4828 = vst.msk [vmem:[#allocation3 + $0x14] sm:$0x1] %vm4824, 0
        %4829 = vst.msk [vmem:[#allocation3 + $0x18] sm:$0xf] %vm4821, 0
        %4830 = vst.msk [vmem:[#allocation3 + $0x1c] sm:$0xf] %vm4821, 0
        %4831 = vst.msk [vmem:[#allocation3 + $0x20] sm:$0x1] %vm4824, 0
        %4832 = vst.msk [vmem:[#allocation3 + $0x24] sm:$0xf] %vm4821, 0
        %4833 = vst.msk [vmem:[#allocation3 + $0x28] sm:$0xf] %vm4821, 0
        %4834 = vst.msk [vmem:[#allocation3 + $0x2c] sm:$0x1] %vm4824, 0
        %4835 = vst.msk [vmem:[#allocation3 + $0x30] sm:$0xf] %vm4821, 0
        %4836 = vst.msk [vmem:[#allocation3 + $0x34] sm:$0xf] %vm4821, 0
        %4837 = vst.msk [vmem:[#allocation3 + $0x38] sm:$0x1] %vm4824, 0
        %4838 = vst.msk [vmem:[#allocation3 + $0x3c] sm:$0xf] %vm4821, 0
        %4839 = vst.msk [vmem:[#allocation3 + $0x40] sm:$0xf] %vm4821, 0
        %4840 = vst.msk [vmem:[#allocation3 + $0x44] sm:$0x1] %vm4824, 0
        %4841 = vst.msk [vmem:[#allocation3 + $0x48] sm:$0xf] %vm4821, 0
        %4842 = vst.msk [vmem:[#allocation3 + $0x4c] sm:$0xf] %vm4821, 0
        %4843 = vst.msk [vmem:[#allocation3 + $0x50] sm:$0x1] %vm4824, 0
        %4844 = vst.msk [vmem:[#allocation3 + $0x54] sm:$0xf] %vm4821, 0
        %4845 = vst.msk [vmem:[#allocation3 + $0x58] sm:$0xf] %vm4821, 0
        %4846 = vst.msk [vmem:[#allocation3 + $0x5c] sm:$0x1] %vm4824, 0
        %4847 = vst.msk [vmem:[#allocation3 + $0x60] sm:$0xf] %vm4821, 0
        %4848 = vst.msk [vmem:[#allocation3 + $0x64] sm:$0xf] %vm4821, 0
        %4849 = vst.msk [vmem:[#allocation3 + $0x68] sm:$0x1] %vm4824, 0
        %4850 = vst.msk [vmem:[#allocation3 + $0x6c] sm:$0xf] %vm4821, 0
        %4851 = vst.msk [vmem:[#allocation3 + $0x70] sm:$0xf] %vm4821, 0
        %4852 = vst.msk [vmem:[#allocation3 + $0x74] sm:$0x1] %vm4824, 0
        %4853 = vst.msk [vmem:[#allocation3 + $0x78] sm:$0xf] %vm4821, 0
        %4854 = vst.msk [vmem:[#allocation3 + $0x7c] sm:$0xf] %vm4821, 0
        %4855 = vst.msk [vmem:[#allocation3 + $0x80] sm:$0x1] %vm4824, 0
        %4856 = vst.msk [vmem:[#allocation3 + $0x84] sm:$0xf] %vm4821, 0
        %4857 = vst.msk [vmem:[#allocation3 + $0x88] sm:$0xf] %vm4821, 0
        %4858 = vst.msk [vmem:[#allocation3 + $0x8c] sm:$0x1] %vm4824, 0
        %4859 = vst.msk [vmem:[#allocation3 + $0x90] sm:$0xf] %vm4821, 0
        %4860 = vst.msk [vmem:[#allocation3 + $0x94] sm:$0xf] %vm4821, 0
        %4861 = vst.msk [vmem:[#allocation3 + $0x98] sm:$0x1] %vm4824, 0
        %4862 = vst.msk [vmem:[#allocation3 + $0x9c] sm:$0xf] %vm4821, 0
        %4863 = vst.msk [vmem:[#allocation3 + $0xa0] sm:$0xf] %vm4821, 0
        %4864 = vst.msk [vmem:[#allocation3 + $0xa4] sm:$0x1] %vm4824, 0
        %4865 = vst.msk [vmem:[#allocation3 + $0xa8] sm:$0xf] %vm4821, 0
        %4866 = vst.msk [vmem:[#allocation3 + $0xac] sm:$0xf] %vm4821, 0
        %4867 = vst.msk [vmem:[#allocation3 + $0xb0] sm:$0x1] %vm4824, 0
        %4868 = vst.msk [vmem:[#allocation3 + $0xb4] sm:$0xf] %vm4821, 0
        %4869 = vst.msk [vmem:[#allocation3 + $0xb8] sm:$0xf] %vm4821, 0
        %4870 = vst.msk [vmem:[#allocation3 + $0xbc] sm:$0x1] %vm4824, 0
        %4871 = vst.msk [vmem:[#allocation3 + $0xc0] sm:$0xf] %vm4821, 0
        %4872 = vst.msk [vmem:[#allocation3 + $0xc4] sm:$0xf] %vm4821, 0
        %4873 = vst.msk [vmem:[#allocation3 + $0xc8] sm:$0x1] %vm4824, 0
        %4874 = vst.msk [vmem:[#allocation3 + $0xcc] sm:$0xf] %vm4821, 0
        %4875 = vst.msk [vmem:[#allocation3 + $0xd0] sm:$0xf] %vm4821, 0
        %4876 = vst.msk [vmem:[#allocation3 + $0xd4] sm:$0x1] %vm4824, 0
        %v4877 = vpack.c.bf16 %v4789, %v4789
        %v4878 = vpack.c.bf16 %v4790, %v4790
        %v4879 = vpack.c.bf16 %v4791, %v4791
        %v4880 = vpack.c.bf16 %v4792, %v4792
        %v4881 = vpack.c.bf16 %v4793, %v4793
        %v4882 = vpack.c.bf16 %v4794, %v4794
        %v4883 = vpack.c.bf16 %v4795, %v4795
        %v4884 = vpack.c.bf16 %v4796, %v4796
        %v4885 = vpack.c.bf16 %v4797, %v4797
        %v4886 = vpack.c.bf16 %v4798, %v4798
        %v4887 = vpack.c.bf16 %v4799, %v4799
        %v4888 = vpack.c.bf16 %v4800, %v4800
        %v4889 = vpack.c.bf16 %v4801, %v4801
        %v4890 = vpack.c.bf16 %v4802, %v4802
        %v4891 = vpack.c.bf16 %v4803, %v4803
        %v4892 = vpack.c.bf16 %v4804, %v4804
        %v4893 = vpack.c.bf16 %v4805, %v4805
        %v4894 = vpack.c.bf16 %v4806, %v4806
        %v4895 = vpack.c.bf16 %v4807, %v4807
        %v4896 = vpack.c.bf16 %v4808, %v4808
        %v4897 = vpack.c.bf16 %v4809, %v4809
        %v4898 = vpack.c.bf16 %v4810, %v4810
        %v4899 = vpack.c.bf16 %v4811, %v4811
        %v4900 = vpack.c.bf16 %v4812, %v4812
        %v4901 = vpack.c.bf16 %v4813, %v4813
        %v4902 = vpack.c.bf16 %v4814, %v4814
        %v4903 = vpack.c.bf16 %v4815, %v4815
        %v4904 = vpack.c.bf16 %v4816, %v4816
        %v4905 = vpack.c.bf16 %v4817, %v4817
        %v4906 = vpack.c.bf16 %v4818, %v4818
        %v4907 = vpack.c.bf16 %v4819, %v4819
        %v4908 = vpack.c.bf16 %v4820, %v4820
        %v4910 = vshrl.u32 %v4877, 16
        %v4912 = vrot.slane %v4910, 7
        %v4913 = vshll.u32 %v4877, 16
        %v4915 = vor.u32 %v4912, %v4913
        %v4916 = vrot.slane %v4912, 4
        %v4918 = vshrl.u32 %v4878, 16
        %v4920 = vrot.slane %v4918, 7
        %v4921 = vshll.u32 %v4878, 16
        %v4923 = vor.u32 %v4920, %v4921
        %v4924 = vsel %vm368, %v4916, %v4923
        %v4925 = vrot.slane %v4920, 4
        %v4927 = vshrl.u32 %v4879, 16
        %v4929 = vrot.slane %v4927, 7
        %v4930 = vshll.u32 %v4879, 16
        %v4932 = vor.u32 %v4929, %v4930
        %v4933 = vrot.slane %v4929, 4
        %v4935 = vshrl.u32 %v4880, 16
        %v4937 = vrot.slane %v4935, 7
        %v4938 = vshll.u32 %v4880, 16
        %v4940 = vor.u32 %v4937, %v4938
        %v4941 = vsel %vm368, %v4933, %v4940
        %v4942 = vrot.slane %v4937, 4
        %v4944 = vshrl.u32 %v4881, 16
        %v4946 = vrot.slane %v4944, 7
        %v4947 = vshll.u32 %v4881, 16
        %v4949 = vor.u32 %v4946, %v4947
        %v4950 = vrot.slane %v4946, 4
        %v4952 = vshrl.u32 %v4882, 16
        %v4954 = vrot.slane %v4952, 7
        %v4955 = vshll.u32 %v4882, 16
        %v4957 = vor.u32 %v4954, %v4955
        %v4958 = vsel %vm368, %v4950, %v4957
        %v4959 = vrot.slane %v4954, 4
        %v4961 = vshrl.u32 %v4883, 16
        %v4963 = vrot.slane %v4961, 7
        %v4964 = vshll.u32 %v4883, 16
        %v4966 = vor.u32 %v4963, %v4964
        %v4967 = vrot.slane %v4963, 4
        %v4969 = vshrl.u32 %v4884, 16
        %v4971 = vrot.slane %v4969, 7
        %v4972 = vshll.u32 %v4884, 16
        %v4974 = vor.u32 %v4971, %v4972
        %v4975 = vsel %vm368, %v4967, %v4974
        %v4976 = vrot.slane %v4971, 4
        %v4978 = vshrl.u32 %v4885, 16
        %v4980 = vrot.slane %v4978, 7
        %v4981 = vshll.u32 %v4885, 16
        %v4983 = vor.u32 %v4980, %v4981
        %v4984 = vrot.slane %v4980, 4
        %v4986 = vshrl.u32 %v4886, 16
        %v4988 = vrot.slane %v4986, 7
        %v4989 = vshll.u32 %v4886, 16
        %v4991 = vor.u32 %v4988, %v4989
        %v4992 = vsel %vm368, %v4984, %v4991
        %v4993 = vrot.slane %v4988, 4
        %v4995 = vshrl.u32 %v4887, 16
        %v4997 = vrot.slane %v4995, 7
        %v4998 = vshll.u32 %v4887, 16
        %v5000 = vor.u32 %v4997, %v4998
        %v5001 = vrot.slane %v4997, 4
        %v5003 = vshrl.u32 %v4888, 16
        %v5005 = vrot.slane %v5003, 7
        %v5006 = vshll.u32 %v4888, 16
        %v5008 = vor.u32 %v5005, %v5006
        %v5009 = vsel %vm368, %v5001, %v5008
        %v5010 = vrot.slane %v5005, 4
        %v5012 = vshrl.u32 %v4889, 16
        %v5014 = vrot.slane %v5012, 7
        %v5015 = vshll.u32 %v4889, 16
        %v5017 = vor.u32 %v5014, %v5015
        %v5018 = vrot.slane %v5014, 4
        %v5020 = vshrl.u32 %v4890, 16
        %v5022 = vrot.slane %v5020, 7
        %v5023 = vshll.u32 %v4890, 16
        %v5025 = vor.u32 %v5022, %v5023
        %v5026 = vsel %vm368, %v5018, %v5025
        %v5027 = vrot.slane %v5022, 4
        %v5029 = vshrl.u32 %v4891, 16
        %v5031 = vrot.slane %v5029, 7
        %v5032 = vshll.u32 %v4891, 16
        %v5034 = vor.u32 %v5031, %v5032
        %v5035 = vrot.slane %v5031, 4
        %v5037 = vshrl.u32 %v4892, 16
        %v5039 = vrot.slane %v5037, 7
        %v5040 = vshll.u32 %v4892, 16
        %v5042 = vor.u32 %v5039, %v5040
        %v5043 = vsel %vm368, %v5035, %v5042
        %v5044 = vrot.slane %v5039, 4
        %v5046 = vshrl.u32 %v4893, 16
        %v5048 = vrot.slane %v5046, 7
        %v5049 = vshll.u32 %v4893, 16
        %v5051 = vor.u32 %v5048, %v5049
        %v5052 = vrot.slane %v5048, 4
        %v5054 = vshrl.u32 %v4894, 16
        %v5056 = vrot.slane %v5054, 7
        %v5057 = vshll.u32 %v4894, 16
        %v5059 = vor.u32 %v5056, %v5057
        %v5060 = vsel %vm368, %v5052, %v5059
        %v5061 = vrot.slane %v5056, 4
        %v5063 = vshrl.u32 %v4895, 16
        %v5065 = vrot.slane %v5063, 7
        %v5066 = vshll.u32 %v4895, 16
        %v5068 = vor.u32 %v5065, %v5066
        %v5069 = vrot.slane %v5065, 4
        %v5071 = vshrl.u32 %v4896, 16
        %v5073 = vrot.slane %v5071, 7
        %v5074 = vshll.u32 %v4896, 16
        %v5076 = vor.u32 %v5073, %v5074
        %v5077 = vsel %vm368, %v5069, %v5076
        %v5078 = vrot.slane %v5073, 4
        %v5080 = vshrl.u32 %v4897, 16
        %v5082 = vrot.slane %v5080, 7
        %v5083 = vshll.u32 %v4897, 16
        %v5085 = vor.u32 %v5082, %v5083
        %v5086 = vrot.slane %v5082, 4
        %v5088 = vshrl.u32 %v4898, 16
        %v5090 = vrot.slane %v5088, 7
        %v5091 = vshll.u32 %v4898, 16
        %v5093 = vor.u32 %v5090, %v5091
        %v5094 = vsel %vm368, %v5086, %v5093
        %v5095 = vrot.slane %v5090, 4
        %v5097 = vshrl.u32 %v4899, 16
        %v5099 = vrot.slane %v5097, 7
        %v5100 = vshll.u32 %v4899, 16
        %v5102 = vor.u32 %v5099, %v5100
        %v5103 = vrot.slane %v5099, 4
        %v5105 = vshrl.u32 %v4900, 16
        %v5107 = vrot.slane %v5105, 7
        %v5108 = vshll.u32 %v4900, 16
        %v5110 = vor.u32 %v5107, %v5108
        %v5111 = vsel %vm368, %v5103, %v5110
        %v5112 = vrot.slane %v5107, 4
        %v5114 = vshrl.u32 %v4901, 16
        %v5116 = vrot.slane %v5114, 7
        %v5117 = vshll.u32 %v4901, 16
        %v5119 = vor.u32 %v5116, %v5117
        %v5120 = vrot.slane %v5116, 4
        %v5122 = vshrl.u32 %v4902, 16
        %v5124 = vrot.slane %v5122, 7
        %v5125 = vshll.u32 %v4902, 16
        %v5127 = vor.u32 %v5124, %v5125
        %v5128 = vsel %vm368, %v5120, %v5127
        %v5129 = vrot.slane %v5124, 4
        %v5131 = vshrl.u32 %v4903, 16
        %v5133 = vrot.slane %v5131, 7
        %v5134 = vshll.u32 %v4903, 16
        %v5136 = vor.u32 %v5133, %v5134
        %v5137 = vrot.slane %v5133, 4
        %v5139 = vshrl.u32 %v4904, 16
        %v5141 = vrot.slane %v5139, 7
        %v5142 = vshll.u32 %v4904, 16
        %v5144 = vor.u32 %v5141, %v5142
        %v5145 = vsel %vm368, %v5137, %v5144
        %v5146 = vrot.slane %v5141, 4
        %v5148 = vshrl.u32 %v4905, 16
        %v5150 = vrot.slane %v5148, 7
        %v5151 = vshll.u32 %v4905, 16
        %v5153 = vor.u32 %v5150, %v5151
        %v5154 = vrot.slane %v5150, 4
        %v5156 = vshrl.u32 %v4906, 16
        %v5158 = vrot.slane %v5156, 7
        %v5159 = vshll.u32 %v4906, 16
        %v5161 = vor.u32 %v5158, %v5159
        %v5162 = vsel %vm368, %v5154, %v5161
        %v5163 = vrot.slane %v5158, 4
        %v5165 = vshrl.u32 %v4907, 16
        %v5167 = vrot.slane %v5165, 7
        %v5168 = vshll.u32 %v4907, 16
        %v5170 = vor.u32 %v5167, %v5168
        %v5171 = vrot.slane %v5167, 4
        %v5173 = vshrl.u32 %v4908, 16
        %v5175 = vrot.slane %v5173, 7
        %v5176 = vshll.u32 %v4908, 16
        %v5178 = vor.u32 %v5175, %v5176
        %v5179 = vsel %vm368, %v5171, %v5178
        %v5180 = vrot.slane %v5175, 4
        %s5229 = scalar_lea.vmem [#allocation3], 12
        %vm5230 = vcmask 257024
        %vm5231 = vmand %vm5230, %vm691
        %v5232 = vld [vmem:[%s5229] sm:$0xf]
        %v5233 = vsel %vm5231, %v4915, %v5232
        %5234 = vst [vmem:[%s5229] sm:$0xf] %v5233
        %5235 = vst.msk [vmem:[%s5229 + $0x4] sm:$0xf] %vm4821, %v4924
        %vm5236 = vcmask 253952
        %vm5237 = vmand %vm5236, %vm366
        %v5238 = vld [vmem:[%s5229 + $0x8] sm:$0x1]
        %v5239 = vsel %vm5237, %v4925, %v5238
        %5240 = vst [vmem:[%s5229 + $0x8] sm:$0x1] %v5239
        %v5241 = vld [vmem:[%s5229 + $0xc] sm:$0xf]
        %v5242 = vsel %vm5231, %v4932, %v5241
        %5243 = vst [vmem:[%s5229 + $0xc] sm:$0xf] %v5242
        %5244 = vst.msk [vmem:[%s5229 + $0x10] sm:$0xf] %vm4821, %v4941
        %v5245 = vld [vmem:[%s5229 + $0x14] sm:$0x1]
        %v5246 = vsel %vm5237, %v4942, %v5245
        %5247 = vst [vmem:[%s5229 + $0x14] sm:$0x1] %v5246
        %v5248 = vld [vmem:[%s5229 + $0x18] sm:$0xf]
        %v5249 = vsel %vm5231, %v4949, %v5248
        %5250 = vst [vmem:[%s5229 + $0x18] sm:$0xf] %v5249
        %5251 = vst.msk [vmem:[%s5229 + $0x1c] sm:$0xf] %vm4821, %v4958
        %v5252 = vld [vmem:[%s5229 + $0x20] sm:$0x1]
        %v5253 = vsel %vm5237, %v4959, %v5252
        %5254 = vst [vmem:[%s5229 + $0x20] sm:$0x1] %v5253
        %v5255 = vld [vmem:[%s5229 + $0x24] sm:$0xf]
        %v5256 = vsel %vm5231, %v4966, %v5255
        %5257 = vst [vmem:[%s5229 + $0x24] sm:$0xf] %v5256
        %5258 = vst.msk [vmem:[%s5229 + $0x28] sm:$0xf] %vm4821, %v4975
        %v5259 = vld [vmem:[%s5229 + $0x2c] sm:$0x1]
        %v5260 = vsel %vm5237, %v4976, %v5259
        %5261 = vst [vmem:[%s5229 + $0x2c] sm:$0x1] %v5260
        %v5262 = vld [vmem:[%s5229 + $0x30] sm:$0xf]
        %v5263 = vsel %vm5231, %v4983, %v5262
        %5264 = vst [vmem:[%s5229 + $0x30] sm:$0xf] %v5263
        %5265 = vst.msk [vmem:[%s5229 + $0x34] sm:$0xf] %vm4821, %v4992
        %v5266 = vld [vmem:[%s5229 + $0x38] sm:$0x1]
        %v5267 = vsel %vm5237, %v4993, %v5266
        %5268 = vst [vmem:[%s5229 + $0x38] sm:$0x1] %v5267
        %v5269 = vld [vmem:[%s5229 + $0x3c] sm:$0xf]
        %v5270 = vsel %vm5231, %v5000, %v5269
        %5271 = vst [vmem:[%s5229 + $0x3c] sm:$0xf] %v5270
        %5272 = vst.msk [vmem:[%s5229 + $0x40] sm:$0xf] %vm4821, %v5009
        %v5273 = vld [vmem:[%s5229 + $0x44] sm:$0x1]
        %v5274 = vsel %vm5237, %v5010, %v5273
        %5275 = vst [vmem:[%s5229 + $0x44] sm:$0x1] %v5274
        %v5276 = vld [vmem:[%s5229 + $0x48] sm:$0xf]
        %v5277 = vsel %vm5231, %v5017, %v5276
        %5278 = vst [vmem:[%s5229 + $0x48] sm:$0xf] %v5277
        %5279 = vst.msk [vmem:[%s5229 + $0x4c] sm:$0xf] %vm4821, %v5026
        %v5280 = vld [vmem:[%s5229 + $0x50] sm:$0x1]
        %v5281 = vsel %vm5237, %v5027, %v5280
        %5282 = vst [vmem:[%s5229 + $0x50] sm:$0x1] %v5281
        %v5283 = vld [vmem:[%s5229 + $0x54] sm:$0xf]
        %v5284 = vsel %vm5231, %v5034, %v5283
        %5285 = vst [vmem:[%s5229 + $0x54] sm:$0xf] %v5284
        %5286 = vst.msk [vmem:[%s5229 + $0x58] sm:$0xf] %vm4821, %v5043
        %v5287 = vld [vmem:[%s5229 + $0x5c] sm:$0x1]
        %v5288 = vsel %vm5237, %v5044, %v5287
        %5289 = vst [vmem:[%s5229 + $0x5c] sm:$0x1] %v5288
        %v5290 = vld [vmem:[%s5229 + $0x60] sm:$0xf]
        %v5291 = vsel %vm5231, %v5051, %v5290
        %5292 = vst [vmem:[%s5229 + $0x60] sm:$0xf] %v5291
        %5293 = vst.msk [vmem:[%s5229 + $0x64] sm:$0xf] %vm4821, %v5060
        %v5294 = vld [vmem:[%s5229 + $0x68] sm:$0x1]
        %v5295 = vsel %vm5237, %v5061, %v5294
        %5296 = vst [vmem:[%s5229 + $0x68] sm:$0x1] %v5295
        %v5297 = vld [vmem:[%s5229 + $0x6c] sm:$0xf]
        %v5298 = vsel %vm5231, %v5068, %v5297
        %5299 = vst [vmem:[%s5229 + $0x6c] sm:$0xf] %v5298
        %5300 = vst.msk [vmem:[%s5229 + $0x70] sm:$0xf] %vm4821, %v5077
        %v5301 = vld [vmem:[%s5229 + $0x74] sm:$0x1]
        %v5302 = vsel %vm5237, %v5078, %v5301
        %5303 = vst [vmem:[%s5229 + $0x74] sm:$0x1] %v5302
        %v5304 = vld [vmem:[%s5229 + $0x78] sm:$0xf]
        %v5305 = vsel %vm5231, %v5085, %v5304
        %5306 = vst [vmem:[%s5229 + $0x78] sm:$0xf] %v5305
        %5307 = vst.msk [vmem:[%s5229 + $0x7c] sm:$0xf] %vm4821, %v5094
        %v5308 = vld [vmem:[%s5229 + $0x80] sm:$0x1]
        %v5309 = vsel %vm5237, %v5095, %v5308
        %5310 = vst [vmem:[%s5229 + $0x80] sm:$0x1] %v5309
        %v5311 = vld [vmem:[%s5229 + $0x84] sm:$0xf]
        %v5312 = vsel %vm5231, %v5102, %v5311
        %5313 = vst [vmem:[%s5229 + $0x84] sm:$0xf] %v5312
        %5314 = vst.msk [vmem:[%s5229 + $0x88] sm:$0xf] %vm4821, %v5111
        %v5315 = vld [vmem:[%s5229 + $0x8c] sm:$0x1]
        %v5316 = vsel %vm5237, %v5112, %v5315
        %5317 = vst [vmem:[%s5229 + $0x8c] sm:$0x1] %v5316
        %v5318 = vld [vmem:[%s5229 + $0x90] sm:$0xf]
        %v5319 = vsel %vm5231, %v5119, %v5318
        %5320 = vst [vmem:[%s5229 + $0x90] sm:$0xf] %v5319
        %5321 = vst.msk [vmem:[%s5229 + $0x94] sm:$0xf] %vm4821, %v5128
        %v5322 = vld [vmem:[%s5229 + $0x98] sm:$0x1]
        %v5323 = vsel %vm5237, %v5129, %v5322
        %5324 = vst [vmem:[%s5229 + $0x98] sm:$0x1] %v5323
        %v5325 = vld [vmem:[%s5229 + $0x9c] sm:$0xf]
        %v5326 = vsel %vm5231, %v5136, %v5325
        %5327 = vst [vmem:[%s5229 + $0x9c] sm:$0xf] %v5326
        %5328 = vst.msk [vmem:[%s5229 + $0xa0] sm:$0xf] %vm4821, %v5145
        %v5329 = vld [vmem:[%s5229 + $0xa4] sm:$0x1]
        %v5330 = vsel %vm5237, %v5146, %v5329
        %5331 = vst [vmem:[%s5229 + $0xa4] sm:$0x1] %v5330
        %v5332 = vld [vmem:[%s5229 + $0xa8] sm:$0xf]
        %v5333 = vsel %vm5231, %v5153, %v5332
        %5334 = vst [vmem:[%s5229 + $0xa8] sm:$0xf] %v5333
        %5335 = vst.msk [vmem:[%s5229 + $0xac] sm:$0xf] %vm4821, %v5162
        %v5336 = vld [vmem:[%s5229 + $0xb0] sm:$0x1]
        %v5337 = vsel %vm5237, %v5163, %v5336
        %5338 = vst [vmem:[%s5229 + $0xb0] sm:$0x1] %v5337
        %v5339 = vld [vmem:[%s5229 + $0xb4] sm:$0xf]
        %v5340 = vsel %vm5231, %v5170, %v5339
        %5341 = vst [vmem:[%s5229 + $0xb4] sm:$0xf] %v5340
        %5342 = vst.msk [vmem:[%s5229 + $0xb8] sm:$0xf] %vm4821, %v5179
        %v5343 = vld [vmem:[%s5229 + $0xbc] sm:$0x1]
        %v5344 = vsel %vm5237, %v5180, %v5343
        %5345 = vst [vmem:[%s5229 + $0xbc] sm:$0x1] %v5344
        %v5346 = vld [vmem:[#allocation3] sm:$0xf]
        %v5347 = vld [vmem:[#allocation3 + $0x4] sm:$0xf]
        %v5348 = vld [vmem:[#allocation3 + $0xc] sm:$0xf]
        %v5349 = vld [vmem:[#allocation3 + $0x10] sm:$0xf]
        %v5350 = vld [vmem:[#allocation3 + $0x18] sm:$0xf]
        %v5351 = vld [vmem:[#allocation3 + $0x1c] sm:$0xf]
        %v5352 = vld [vmem:[#allocation3 + $0x24] sm:$0xf]
        %v5353 = vld [vmem:[#allocation3 + $0x28] sm:$0xf]
        %v5354 = vld [vmem:[#allocation3 + $0x30] sm:$0xf]
        %v5355 = vld [vmem:[#allocation3 + $0x34] sm:$0xf]
        %v5356 = vld [vmem:[#allocation3 + $0x3c] sm:$0xf]
        %v5357 = vld [vmem:[#allocation3 + $0x40] sm:$0xf]
        %v5358 = vld [vmem:[#allocation3 + $0x48] sm:$0xf]
        %v5359 = vld [vmem:[#allocation3 + $0x4c] sm:$0xf]
        %v5360 = vld [vmem:[#allocation3 + $0x54] sm:$0xf]
        %v5361 = vld [vmem:[#allocation3 + $0x58] sm:$0xf]
        %v5362 = vld [vmem:[#allocation3 + $0x60] sm:$0xf]
        %v5363 = vld [vmem:[#allocation3 + $0x64] sm:$0xf]
        %v5364 = vld [vmem:[#allocation3 + $0x6c] sm:$0xf]
        %v5365 = vld [vmem:[#allocation3 + $0x70] sm:$0xf]
        %v5366 = vld [vmem:[#allocation3 + $0x78] sm:$0xf]
        %v5367 = vld [vmem:[#allocation3 + $0x7c] sm:$0xf]
        %v5368 = vld [vmem:[#allocation3 + $0x84] sm:$0xf]
        %v5369 = vld [vmem:[#allocation3 + $0x88] sm:$0xf]
        %v5370 = vld [vmem:[#allocation3 + $0x90] sm:$0xf]
        %v5371 = vld [vmem:[#allocation3 + $0x94] sm:$0xf]
        %v5372 = vld [vmem:[#allocation3 + $0x9c] sm:$0xf]
        %v5373 = vld [vmem:[#allocation3 + $0xa0] sm:$0xf]
        %v5374 = vld [vmem:[#allocation3 + $0xa8] sm:$0xf]
        %v5375 = vld [vmem:[#allocation3 + $0xac] sm:$0xf]
        %v5376 = vld [vmem:[#allocation3 + $0xb4] sm:$0xf]
        %v5377 = vld [vmem:[#allocation3 + $0xb8] sm:$0xf]
        %v5378 = vld [vmem:[%s2] sm:$0xf]
        %v5379 = vld [vmem:[%s2 + $0x4] sm:$0xf]
        %v5380 = vld [vmem:[%s2 + $0x8] sm:$0xf]
        %v5381 = vld [vmem:[%s2 + $0xc] sm:$0xf]
        %v5382 = vld [vmem:[#allocation3 + $0x8] sm:$0x1]
        %v5383 = vld [vmem:[#allocation3 + $0x14] sm:$0x1]
        %v5384 = vld [vmem:[#allocation3 + $0x20] sm:$0x1]
        %v5385 = vld [vmem:[#allocation3 + $0x2c] sm:$0x1]
        %v5386 = vld [vmem:[#allocation3 + $0x38] sm:$0x1]
        %v5387 = vld [vmem:[#allocation3 + $0x44] sm:$0x1]
        %v5388 = vld [vmem:[#allocation3 + $0x50] sm:$0x1]
        %v5389 = vld [vmem:[#allocation3 + $0x5c] sm:$0x1]
        %v5390 = vld [vmem:[#allocation3 + $0x68] sm:$0x1]
        %v5391 = vld [vmem:[#allocation3 + $0x74] sm:$0x1]
        %v5392 = vld [vmem:[#allocation3 + $0x80] sm:$0x1]
        %v5393 = vld [vmem:[#allocation3 + $0x8c] sm:$0x1]
        %v5394 = vld [vmem:[#allocation3 + $0x98] sm:$0x1]
        %v5395 = vld [vmem:[#allocation3 + $0xa4] sm:$0x1]
        %v5396 = vld [vmem:[#allocation3 + $0xb0] sm:$0x1]
        %v5397 = vld [vmem:[#allocation3 + $0xbc] sm:$0x1]
        %v5399 = vshrl.u32 %v5346, 16
        %v5401 = vrot.slane %v5399, 4
        %v5402 = vshll.u32 %v5346, 16
        %v5404 = vrot.slane %v5402, 5
        %v5405 = vor.u32 %v5401, %v5404
        %v5406 = vrot.slane %v5405, 4
        %v5408 = vshll.u32 %v5347, 16
        %v5410 = vrot.slane %v5408, 5
        %v5411 = vsel %vm858, %v5406, %v5410
        %v5412 = vshrl.u32 %v5347, 16
        %v5414 = vrot.slane %v5412, 4
        %v5415 = vor.u32 %v5414, %v5410
        %v5416 = vrot.slane %v5415, 4
        %v5418 = vshll.u32 %v5382, 16
        %v5420 = vrot.slane %v5418, 5
        %v5421 = vsel %vm858, %v5416, %v5420
        %v5423 = vshrl.u32 %v5348, 16
        %v5425 = vrot.slane %v5423, 4
        %v5426 = vshll.u32 %v5348, 16
        %v5428 = vrot.slane %v5426, 5
        %v5429 = vor.u32 %v5425, %v5428
        %v5430 = vrot.slane %v5429, 4
        %v5432 = vshll.u32 %v5349, 16
        %v5434 = vrot.slane %v5432, 5
        %v5435 = vsel %vm858, %v5430, %v5434
        %v5436 = vshrl.u32 %v5349, 16
        %v5438 = vrot.slane %v5436, 4
        %v5439 = vor.u32 %v5438, %v5434
        %v5440 = vrot.slane %v5439, 4
        %v5442 = vshll.u32 %v5383, 16
        %v5444 = vrot.slane %v5442, 5
        %v5445 = vsel %vm858, %v5440, %v5444
        %v5447 = vshrl.u32 %v5350, 16
        %v5449 = vrot.slane %v5447, 4
        %v5450 = vshll.u32 %v5350, 16
        %v5452 = vrot.slane %v5450, 5
        %v5453 = vor.u32 %v5449, %v5452
        %v5454 = vrot.slane %v5453, 4
        %v5456 = vshll.u32 %v5351, 16
        %v5458 = vrot.slane %v5456, 5
        %v5459 = vsel %vm858, %v5454, %v5458
        %v5460 = vshrl.u32 %v5351, 16
        %v5462 = vrot.slane %v5460, 4
        %v5463 = vor.u32 %v5462, %v5458
        %v5464 = vrot.slane %v5463, 4
        %v5466 = vshll.u32 %v5384, 16
        %v5468 = vrot.slane %v5466, 5
        %v5469 = vsel %vm858, %v5464, %v5468
        %v5471 = vshrl.u32 %v5352, 16
        %v5473 = vrot.slane %v5471, 4
        %v5474 = vshll.u32 %v5352, 16
        %v5476 = vrot.slane %v5474, 5
        %v5477 = vor.u32 %v5473, %v5476
        %v5478 = vrot.slane %v5477, 4
        %v5480 = vshll.u32 %v5353, 16
        %v5482 = vrot.slane %v5480, 5
        %v5483 = vsel %vm858, %v5478, %v5482
        %v5484 = vshrl.u32 %v5353, 16
        %v5486 = vrot.slane %v5484, 4
        %v5487 = vor.u32 %v5486, %v5482
        %v5488 = vrot.slane %v5487, 4
        %v5490 = vshll.u32 %v5385, 16
        %v5492 = vrot.slane %v5490, 5
        %v5493 = vsel %vm858, %v5488, %v5492
        %v5495 = vshrl.u32 %v5354, 16
        %v5497 = vrot.slane %v5495, 4
        %v5498 = vshll.u32 %v5354, 16
        %v5500 = vrot.slane %v5498, 5
        %v5501 = vor.u32 %v5497, %v5500
        %v5502 = vrot.slane %v5501, 4
        %v5504 = vshll.u32 %v5355, 16
        %v5506 = vrot.slane %v5504, 5
        %v5507 = vsel %vm858, %v5502, %v5506
        %v5508 = vshrl.u32 %v5355, 16
        %v5510 = vrot.slane %v5508, 4
        %v5511 = vor.u32 %v5510, %v5506
        %v5512 = vrot.slane %v5511, 4
        %v5514 = vshll.u32 %v5386, 16
        %v5516 = vrot.slane %v5514, 5
        %v5517 = vsel %vm858, %v5512, %v5516
        %v5519 = vshrl.u32 %v5356, 16
        %v5521 = vrot.slane %v5519, 4
        %v5522 = vshll.u32 %v5356, 16
        %v5524 = vrot.slane %v5522, 5
        %v5525 = vor.u32 %v5521, %v5524
        %v5526 = vrot.slane %v5525, 4
        %v5528 = vshll.u32 %v5357, 16
        %v5530 = vrot.slane %v5528, 5
        %v5531 = vsel %vm858, %v5526, %v5530
        %v5532 = vshrl.u32 %v5357, 16
        %v5534 = vrot.slane %v5532, 4
        %v5535 = vor.u32 %v5534, %v5530
        %v5536 = vrot.slane %v5535, 4
        %v5538 = vshll.u32 %v5387, 16
        %v5540 = vrot.slane %v5538, 5
        %v5541 = vsel %vm858, %v5536, %v5540
        %v5543 = vshrl.u32 %v5358, 16
        %v5545 = vrot.slane %v5543, 4
        %v5546 = vshll.u32 %v5358, 16
        %v5548 = vrot.slane %v5546, 5
        %v5549 = vor.u32 %v5545, %v5548
        %v5550 = vrot.slane %v5549, 4
        %v5552 = vshll.u32 %v5359, 16
        %v5554 = vrot.slane %v5552, 5
        %v5555 = vsel %vm858, %v5550, %v5554
        %v5556 = vshrl.u32 %v5359, 16
        %v5558 = vrot.slane %v5556, 4
        %v5559 = vor.u32 %v5558, %v5554
        %v5560 = vrot.slane %v5559, 4
        %v5562 = vshll.u32 %v5388, 16
        %v5564 = vrot.slane %v5562, 5
        %v5565 = vsel %vm858, %v5560, %v5564
        %v5567 = vshrl.u32 %v5360, 16
        %v5569 = vrot.slane %v5567, 4
        %v5570 = vshll.u32 %v5360, 16
        %v5572 = vrot.slane %v5570, 5
        %v5573 = vor.u32 %v5569, %v5572
        %v5574 = vrot.slane %v5573, 4
        %v5576 = vshll.u32 %v5361, 16
        %v5578 = vrot.slane %v5576, 5
        %v5579 = vsel %vm858, %v5574, %v5578
        %v5580 = vshrl.u32 %v5361, 16
        %v5582 = vrot.slane %v5580, 4
        %v5583 = vor.u32 %v5582, %v5578
        %v5584 = vrot.slane %v5583, 4
        %v5586 = vshll.u32 %v5389, 16
        %v5588 = vrot.slane %v5586, 5
        %v5589 = vsel %vm858, %v5584, %v5588
        %v5591 = vshrl.u32 %v5362, 16
        %v5593 = vrot.slane %v5591, 4
        %v5594 = vshll.u32 %v5362, 16
        %v5596 = vrot.slane %v5594, 5
        %v5597 = vor.u32 %v5593, %v5596
        %v5598 = vrot.slane %v5597, 4
        %v5600 = vshll.u32 %v5363, 16
        %v5602 = vrot.slane %v5600, 5
        %v5603 = vsel %vm858, %v5598, %v5602
        %v5604 = vshrl.u32 %v5363, 16
        %v5606 = vrot.slane %v5604, 4
        %v5607 = vor.u32 %v5606, %v5602
        %v5608 = vrot.slane %v5607, 4
        %v5610 = vshll.u32 %v5390, 16
        %v5612 = vrot.slane %v5610, 5
        %v5613 = vsel %vm858, %v5608, %v5612
        %v5615 = vshrl.u32 %v5364, 16
        %v5617 = vrot.slane %v5615, 4
        %v5618 = vshll.u32 %v5364, 16
        %v5620 = vrot.slane %v5618, 5
        %v5621 = vor.u32 %v5617, %v5620
        %v5622 = vrot.slane %v5621, 4
        %v5624 = vshll.u32 %v5365, 16
        %v5626 = vrot.slane %v5624, 5
        %v5627 = vsel %vm858, %v5622, %v5626
        %v5628 = vshrl.u32 %v5365, 16
        %v5630 = vrot.slane %v5628, 4
        %v5631 = vor.u32 %v5630, %v5626
        %v5632 = vrot.slane %v5631, 4
        %v5634 = vshll.u32 %v5391, 16
        %v5636 = vrot.slane %v5634, 5
        %v5637 = vsel %vm858, %v5632, %v5636
        %v5639 = vshrl.u32 %v5366, 16
        %v5641 = vrot.slane %v5639, 4
        %v5642 = vshll.u32 %v5366, 16
        %v5644 = vrot.slane %v5642, 5
        %v5645 = vor.u32 %v5641, %v5644
        %v5646 = vrot.slane %v5645, 4
        %v5648 = vshll.u32 %v5367, 16
        %v5650 = vrot.slane %v5648, 5
        %v5651 = vsel %vm858, %v5646, %v5650
        %v5652 = vshrl.u32 %v5367, 16
        %v5654 = vrot.slane %v5652, 4
        %v5655 = vor.u32 %v5654, %v5650
        %v5656 = vrot.slane %v5655, 4
        %v5658 = vshll.u32 %v5392, 16
        %v5660 = vrot.slane %v5658, 5
        %v5661 = vsel %vm858, %v5656, %v5660
        %v5663 = vshrl.u32 %v5368, 16
        %v5665 = vrot.slane %v5663, 4
        %v5666 = vshll.u32 %v5368, 16
        %v5668 = vrot.slane %v5666, 5
        %v5669 = vor.u32 %v5665, %v5668
        %v5670 = vrot.slane %v5669, 4
        %v5672 = vshll.u32 %v5369, 16
        %v5674 = vrot.slane %v5672, 5
        %v5675 = vsel %vm858, %v5670, %v5674
        %v5676 = vshrl.u32 %v5369, 16
        %v5678 = vrot.slane %v5676, 4
        %v5679 = vor.u32 %v5678, %v5674
        %v5680 = vrot.slane %v5679, 4
        %v5682 = vshll.u32 %v5393, 16
        %v5684 = vrot.slane %v5682, 5
        %v5685 = vsel %vm858, %v5680, %v5684
        %v5687 = vshrl.u32 %v5370, 16
        %v5689 = vrot.slane %v5687, 4
        %v5690 = vshll.u32 %v5370, 16
        %v5692 = vrot.slane %v5690, 5
        %v5693 = vor.u32 %v5689, %v5692
        %v5694 = vrot.slane %v5693, 4
        %v5696 = vshll.u32 %v5371, 16
        %v5698 = vrot.slane %v5696, 5
        %v5699 = vsel %vm858, %v5694, %v5698
        %v5700 = vshrl.u32 %v5371, 16
        %v5702 = vrot.slane %v5700, 4
        %v5703 = vor.u32 %v5702, %v5698
        %v5704 = vrot.slane %v5703, 4
        %v5706 = vshll.u32 %v5394, 16
        %v5708 = vrot.slane %v5706, 5
        %v5709 = vsel %vm858, %v5704, %v5708
        %v5711 = vshrl.u32 %v5372, 16
        %v5713 = vrot.slane %v5711, 4
        %v5714 = vshll.u32 %v5372, 16
        %v5716 = vrot.slane %v5714, 5
        %v5717 = vor.u32 %v5713, %v5716
        %v5718 = vrot.slane %v5717, 4
        %v5720 = vshll.u32 %v5373, 16
        %v5722 = vrot.slane %v5720, 5
        %v5723 = vsel %vm858, %v5718, %v5722
        %v5724 = vshrl.u32 %v5373, 16
        %v5726 = vrot.slane %v5724, 4
        %v5727 = vor.u32 %v5726, %v5722
        %v5728 = vrot.slane %v5727, 4
        %v5730 = vshll.u32 %v5395, 16
        %v5732 = vrot.slane %v5730, 5
        %v5733 = vsel %vm858, %v5728, %v5732
        %v5735 = vshrl.u32 %v5374, 16
        %v5737 = vrot.slane %v5735, 4
        %v5738 = vshll.u32 %v5374, 16
        %v5740 = vrot.slane %v5738, 5
        %v5741 = vor.u32 %v5737, %v5740
        %v5742 = vrot.slane %v5741, 4
        %v5744 = vshll.u32 %v5375, 16
        %v5746 = vrot.slane %v5744, 5
        %v5747 = vsel %vm858, %v5742, %v5746
        %v5748 = vshrl.u32 %v5375, 16
        %v5750 = vrot.slane %v5748, 4
        %v5751 = vor.u32 %v5750, %v5746
        %v5752 = vrot.slane %v5751, 4
        %v5754 = vshll.u32 %v5396, 16
        %v5756 = vrot.slane %v5754, 5
        %v5757 = vsel %vm858, %v5752, %v5756
        %v5759 = vshrl.u32 %v5376, 16
        %v5761 = vrot.slane %v5759, 4
        %v5762 = vshll.u32 %v5376, 16
        %v5764 = vrot.slane %v5762, 5
        %v5765 = vor.u32 %v5761, %v5764
        %v5766 = vrot.slane %v5765, 4
        %v5768 = vshll.u32 %v5377, 16
        %v5770 = vrot.slane %v5768, 5
        %v5771 = vsel %vm858, %v5766, %v5770
        %v5772 = vshrl.u32 %v5377, 16
        %v5774 = vrot.slane %v5772, 4
        %v5775 = vor.u32 %v5774, %v5770
        %v5776 = vrot.slane %v5775, 4
        %v5778 = vshll.u32 %v5397, 16
        %v5780 = vrot.slane %v5778, 5
        %v5781 = vsel %vm858, %v5776, %v5780
        %s5782 = scalar_lea.vmem %s2, 16
        %v5783 = vld [vmem:[%s5782] sm:$0xf]
        %v5784 = vld [vmem:[%s5782 + $0x4] sm:$0xf]
        %v5785 = vld [vmem:[%s5782 + $0x8] sm:$0xf]
        %v5786 = vld [vmem:[%s5782 + $0xc] sm:$0xf]
        %v5787 = vunpack.c.l.b16 %v5411
        %v5788 = vunpack.c.l.b16 %v5421
        %v5789 = vunpack.c.l.b16 %v5435
        %v5790 = vunpack.c.l.b16 %v5445
        %v5791 = vunpack.c.l.b16 %v5459
        %v5792 = vunpack.c.l.b16 %v5469
        %v5793 = vunpack.c.l.b16 %v5483
        %v5794 = vunpack.c.l.b16 %v5493
        %v5795 = vunpack.c.l.b16 %v5507
        %v5796 = vunpack.c.l.b16 %v5517
        %v5797 = vunpack.c.l.b16 %v5531
        %v5798 = vunpack.c.l.b16 %v5541
        %v5799 = vunpack.c.l.b16 %v5555
        %v5800 = vunpack.c.l.b16 %v5565
        %v5801 = vunpack.c.l.b16 %v5579
        %v5802 = vunpack.c.l.b16 %v5589
        %v5803 = vunpack.c.l.b16 %v5603
        %v5804 = vunpack.c.l.b16 %v5613
        %v5805 = vunpack.c.l.b16 %v5627
        %v5806 = vunpack.c.l.b16 %v5637
        %v5807 = vunpack.c.l.b16 %v5651
        %v5808 = vunpack.c.l.b16 %v5661
        %v5809 = vunpack.c.l.b16 %v5675
        %v5810 = vunpack.c.l.b16 %v5685
        %v5811 = vunpack.c.l.b16 %v5699
        %v5812 = vunpack.c.l.b16 %v5709
        %v5813 = vunpack.c.l.b16 %v5723
        %v5814 = vunpack.c.l.b16 %v5733
        %v5815 = vunpack.c.l.b16 %v5747
        %v5816 = vunpack.c.l.b16 %v5757
        %v5817 = vunpack.c.l.b16 %v5771
        %v5818 = vunpack.c.l.b16 %v5781
        %v5819 = vpack.c.b16 %v5788, %v5787
        %v5820 = vpack.c.b16 %v5790, %v5789
        %v5821 = vpack.c.b16 %v5792, %v5791
        %v5822 = vpack.c.b16 %v5794, %v5793
        %v5823 = vpack.c.b16 %v5796, %v5795
        %v5824 = vpack.c.b16 %v5798, %v5797
        %v5825 = vpack.c.b16 %v5800, %v5799
        %v5826 = vpack.c.b16 %v5802, %v5801
        %v5827 = vpack.c.b16 %v5804, %v5803
        %v5828 = vpack.c.b16 %v5806, %v5805
        %v5829 = vpack.c.b16 %v5808, %v5807
        %v5830 = vpack.c.b16 %v5810, %v5809
        %v5831 = vpack.c.b16 %v5812, %v5811
        %v5832 = vpack.c.b16 %v5814, %v5813
        %v5833 = vpack.c.b16 %v5816, %v5815
        %v5834 = vpack.c.b16 %v5818, %v5817
        %v5839 = vunpack.c.l.b16 %v5783
        %v5840 = vunpack.c.l.b16 %v5784
        %v5841 = vunpack.c.l.b16 %v5785
        %v5842 = vunpack.c.l.b16 %v5786
        %v5843 = vpack.c.b16 %v5840, %v5839
        %v5844 = vpack.c.b16 %v5842, %v5841
        %vm5847 = vcmask 261120
        %v5849 = vsel %vm5847, %v5819, 0
        %v5852 = vsel %vm5847, %v5820, 0
        %v5855 = vsel %vm5847, %v5821, 0
        %v5858 = vsel %vm5847, %v5822, 0
        %v5861 = vsel %vm5847, %v5823, 0
        %v5864 = vsel %vm5847, %v5824, 0
        %v5867 = vsel %vm5847, %v5825, 0
        %v5870 = vsel %vm5847, %v5826, 0
        %v5873 = vsel %vm5847, %v5827, 0
        %v5876 = vsel %vm5847, %v5828, 0
        %v5879 = vsel %vm5847, %v5829, 0
        %v5882 = vsel %vm5847, %v5830, 0
        %v5885 = vsel %vm5847, %v5831, 0
        %v5888 = vsel %vm5847, %v5832, 0
        %v5891 = vsel %vm5847, %v5833, 0
        %v5894 = vsel %vm5847, %v5834, 0
        %5896 = vmatpush.bf16.msra.mxu0 0
        %5897 = vmatpush.bf16.msra.mxu0 0
        %5898 = vmatpush.bf16.msra.mxu0 0
        %5899 = vmatpush.bf16.msra.mxu0 0
        %5900 = vmatpush.bf16.msra.mxu0 0
        %5901 = vmatpush.bf16.msra.mxu0 0
        %5902 = vmatpush.bf16.msra.mxu0 %v5844
        %5903 = vmatpush.bf16.msra.mxu0 %v5843
        %5904 = vmatmul.bf16.gmra.mxu0 %v5849
        %v5905 = vpop.f32.mrf.mxu0
        %v5906 = vadd.f32 0.0, %v5905
        %v5907 = vpop.f32.mrf.mxu0
        %v5908 = vadd.f32 0.0, %v5907
        %5909 = vmatmul.bf16.gmra.mxu0 %v5852
        %v5910 = vpop.f32.mrf.mxu0
        %v5911 = vadd.f32 0.0, %v5910
        %v5912 = vpop.f32.mrf.mxu0
        %v5913 = vadd.f32 0.0, %v5912
        %5914 = vmatmul.bf16.gmra.mxu0 %v5855
        %v5915 = vpop.f32.mrf.mxu0
        %v5916 = vadd.f32 0.0, %v5915
        %v5917 = vpop.f32.mrf.mxu0
        %v5918 = vadd.f32 0.0, %v5917
        %5919 = vmatmul.bf16.gmra.mxu0 %v5858
        %v5920 = vpop.f32.mrf.mxu0
        %v5921 = vadd.f32 0.0, %v5920
        %v5922 = vpop.f32.mrf.mxu0
        %v5923 = vadd.f32 0.0, %v5922
        %5924 = vmatmul.bf16.gmra.mxu0 %v5861
        %v5925 = vpop.f32.mrf.mxu0
        %v5926 = vadd.f32 0.0, %v5925
        %v5927 = vpop.f32.mrf.mxu0
        %v5928 = vadd.f32 0.0, %v5927
        %5929 = vmatmul.bf16.gmra.mxu0 %v5864
        %v5930 = vpop.f32.mrf.mxu0
        %v5931 = vadd.f32 0.0, %v5930
        %v5932 = vpop.f32.mrf.mxu0
        %v5933 = vadd.f32 0.0, %v5932
        %5934 = vmatmul.bf16.gmra.mxu0 %v5867
        %v5935 = vpop.f32.mrf.mxu0
        %v5936 = vadd.f32 0.0, %v5935
        %v5937 = vpop.f32.mrf.mxu0
        %v5938 = vadd.f32 0.0, %v5937
        %5939 = vmatmul.bf16.gmra.mxu0 %v5870
        %v5940 = vpop.f32.mrf.mxu0
        %v5941 = vadd.f32 0.0, %v5940
        %v5942 = vpop.f32.mrf.mxu0
        %v5943 = vadd.f32 0.0, %v5942
        %5944 = vmatmul.bf16.gmra.mxu0 %v5873
        %v5945 = vpop.f32.mrf.mxu0
        %v5946 = vadd.f32 0.0, %v5945
        %v5947 = vpop.f32.mrf.mxu0
        %v5948 = vadd.f32 0.0, %v5947
        %5949 = vmatmul.bf16.gmra.mxu0 %v5876
        %v5950 = vpop.f32.mrf.mxu0
        %v5951 = vadd.f32 0.0, %v5950
        %v5952 = vpop.f32.mrf.mxu0
        %v5953 = vadd.f32 0.0, %v5952
        %5954 = vmatmul.bf16.gmra.mxu0 %v5879
        %v5955 = vpop.f32.mrf.mxu0
        %v5956 = vadd.f32 0.0, %v5955
        %v5957 = vpop.f32.mrf.mxu0
        %v5958 = vadd.f32 0.0, %v5957
        %5959 = vmatmul.bf16.gmra.mxu0 %v5882
        %v5960 = vpop.f32.mrf.mxu0
        %v5961 = vadd.f32 0.0, %v5960
        %v5962 = vpop.f32.mrf.mxu0
        %v5963 = vadd.f32 0.0, %v5962
        %5964 = vmatmul.bf16.gmra.mxu0 %v5885
        %v5965 = vpop.f32.mrf.mxu0
        %v5966 = vadd.f32 0.0, %v5965
        %v5967 = vpop.f32.mrf.mxu0
        %v5968 = vadd.f32 0.0, %v5967
        %5969 = vmatmul.bf16.gmra.mxu0 %v5888
        %v5970 = vpop.f32.mrf.mxu0
        %v5971 = vadd.f32 0.0, %v5970
        %v5972 = vpop.f32.mrf.mxu0
        %v5973 = vadd.f32 0.0, %v5972
        %5974 = vmatmul.bf16.gmra.mxu0 %v5891
        %v5975 = vpop.f32.mrf.mxu0
        %v5976 = vadd.f32 0.0, %v5975
        %v5977 = vpop.f32.mrf.mxu0
        %v5978 = vadd.f32 0.0, %v5977
        %5979 = vmatmul.bf16.gmra.mxu0 %v5894
        %v5980 = vpop.f32.mrf.mxu0
        %v5981 = vadd.f32 0.0, %v5980
        %v5982 = vpop.f32.mrf.mxu0
        %v5983 = vadd.f32 0.0, %v5982
        %5984 = vdwg.mxu0
        %v6017 = vunpack.c.l.b16 %v5346
        %v6018 = vunpack.c.l.b16 %v5347
        %v6019 = vunpack.c.l.b16 %v5348
        %v6020 = vunpack.c.l.b16 %v5349
        %v6021 = vunpack.c.l.b16 %v5350
        %v6022 = vunpack.c.l.b16 %v5351
        %v6023 = vunpack.c.l.b16 %v5352
        %v6024 = vunpack.c.l.b16 %v5353
        %v6025 = vunpack.c.l.b16 %v5354
        %v6026 = vunpack.c.l.b16 %v5355
        %v6027 = vunpack.c.l.b16 %v5356
        %v6028 = vunpack.c.l.b16 %v5357
        %v6029 = vunpack.c.l.b16 %v5358
        %v6030 = vunpack.c.l.b16 %v5359
        %v6031 = vunpack.c.l.b16 %v5360
        %v6032 = vunpack.c.l.b16 %v5361
        %v6033 = vunpack.c.l.b16 %v5362
        %v6034 = vunpack.c.l.b16 %v5363
        %v6035 = vunpack.c.l.b16 %v5364
        %v6036 = vunpack.c.l.b16 %v5365
        %v6037 = vunpack.c.l.b16 %v5366
        %v6038 = vunpack.c.l.b16 %v5367
        %v6039 = vunpack.c.l.b16 %v5368
        %v6040 = vunpack.c.l.b16 %v5369
        %v6041 = vunpack.c.l.b16 %v5370
        %v6042 = vunpack.c.l.b16 %v5371
        %v6043 = vunpack.c.l.b16 %v5372
        %v6044 = vunpack.c.l.b16 %v5373
        %v6045 = vunpack.c.l.b16 %v5374
        %v6046 = vunpack.c.l.b16 %v5375
        %v6047 = vunpack.c.l.b16 %v5376
        %v6048 = vunpack.c.l.b16 %v5377
        %v6049 = vpack.c.b16 %v6018, %v6017
        %v6050 = vpack.c.b16 %v6020, %v6019
        %v6051 = vpack.c.b16 %v6022, %v6021
        %v6052 = vpack.c.b16 %v6024, %v6023
        %v6053 = vpack.c.b16 %v6026, %v6025
        %v6054 = vpack.c.b16 %v6028, %v6027
        %v6055 = vpack.c.b16 %v6030, %v6029
        %v6056 = vpack.c.b16 %v6032, %v6031
        %v6057 = vpack.c.b16 %v6034, %v6033
        %v6058 = vpack.c.b16 %v6036, %v6035
        %v6059 = vpack.c.b16 %v6038, %v6037
        %v6060 = vpack.c.b16 %v6040, %v6039
        %v6061 = vpack.c.b16 %v6042, %v6041
        %v6062 = vpack.c.b16 %v6044, %v6043
        %v6063 = vpack.c.b16 %v6046, %v6045
        %v6064 = vpack.c.b16 %v6048, %v6047
        %v6069 = vunpack.c.l.b16 %v5378
        %v6070 = vunpack.c.l.b16 %v5379
        %v6071 = vunpack.c.l.b16 %v5380
        %v6072 = vunpack.c.l.b16 %v5381
        %v6073 = vpack.c.b16 %v6070, %v6069
        %v6074 = vpack.c.b16 %v6072, %v6071
        %v6078 = vsel %vm5847, %v6049, 0
        %v6081 = vsel %vm5847, %v6050, 0
        %v6084 = vsel %vm5847, %v6051, 0
        %v6087 = vsel %vm5847, %v6052, 0
        %v6090 = vsel %vm5847, %v6053, 0
        %v6093 = vsel %vm5847, %v6054, 0
        %v6096 = vsel %vm5847, %v6055, 0
        %v6099 = vsel %vm5847, %v6056, 0
        %v6102 = vsel %vm5847, %v6057, 0
        %v6105 = vsel %vm5847, %v6058, 0
        %v6108 = vsel %vm5847, %v6059, 0
        %v6111 = vsel %vm5847, %v6060, 0
        %v6114 = vsel %vm5847, %v6061, 0
        %v6117 = vsel %vm5847, %v6062, 0
        %v6120 = vsel %vm5847, %v6063, 0
        %v6123 = vsel %vm5847, %v6064, 0
        %6125 = vmatpush.bf16.msra.mxu0 0
        %6126 = vmatpush.bf16.msra.mxu0 0
        %6127 = vmatpush.bf16.msra.mxu0 0
        %6128 = vmatpush.bf16.msra.mxu0 0
        %6129 = vmatpush.bf16.msra.mxu0 0
        %6130 = vmatpush.bf16.msra.mxu0 0
        %6131 = vmatpush.bf16.msra.mxu0 %v6074
        %6132 = vmatpush.bf16.msra.mxu0 %v6073
        %6133 = vmatmul.bf16.gmra.mxu0 %v6078
        %v6134 = vpop.f32.mrf.mxu0
        %v6135 = vadd.f32 %v5906, %v6134
        %v6136 = vpop.f32.mrf.mxu0
        %v6137 = vadd.f32 %v5908, %v6136
        %6138 = vmatmul.bf16.gmra.mxu0 %v6081
        %v6139 = vpop.f32.mrf.mxu0
        %v6140 = vadd.f32 %v5911, %v6139
        %v6141 = vpop.f32.mrf.mxu0
        %v6142 = vadd.f32 %v5913, %v6141
        %6143 = vmatmul.bf16.gmra.mxu0 %v6084
        %v6144 = vpop.f32.mrf.mxu0
        %v6145 = vadd.f32 %v5916, %v6144
        %v6146 = vpop.f32.mrf.mxu0
        %v6147 = vadd.f32 %v5918, %v6146
        %6148 = vmatmul.bf16.gmra.mxu0 %v6087
        %v6149 = vpop.f32.mrf.mxu0
        %v6150 = vadd.f32 %v5921, %v6149
        %v6151 = vpop.f32.mrf.mxu0
        %v6152 = vadd.f32 %v5923, %v6151
        %6153 = vmatmul.bf16.gmra.mxu0 %v6090
        %v6154 = vpop.f32.mrf.mxu0
        %v6155 = vadd.f32 %v5926, %v6154
        %v6156 = vpop.f32.mrf.mxu0
        %v6157 = vadd.f32 %v5928, %v6156
        %6158 = vmatmul.bf16.gmra.mxu0 %v6093
        %v6159 = vpop.f32.mrf.mxu0
        %v6160 = vadd.f32 %v5931, %v6159
        %v6161 = vpop.f32.mrf.mxu0
        %v6162 = vadd.f32 %v5933, %v6161
        %6163 = vmatmul.bf16.gmra.mxu0 %v6096
        %v6164 = vpop.f32.mrf.mxu0
        %v6165 = vadd.f32 %v5936, %v6164
        %v6166 = vpop.f32.mrf.mxu0
        %v6167 = vadd.f32 %v5938, %v6166
        %6168 = vmatmul.bf16.gmra.mxu0 %v6099
        %v6169 = vpop.f32.mrf.mxu0
        %v6170 = vadd.f32 %v5941, %v6169
        %v6171 = vpop.f32.mrf.mxu0
        %v6172 = vadd.f32 %v5943, %v6171
        %6173 = vmatmul.bf16.gmra.mxu0 %v6102
        %v6174 = vpop.f32.mrf.mxu0
        %v6175 = vadd.f32 %v5946, %v6174
        %v6176 = vpop.f32.mrf.mxu0
        %v6177 = vadd.f32 %v5948, %v6176
        %6178 = vmatmul.bf16.gmra.mxu0 %v6105
        %v6179 = vpop.f32.mrf.mxu0
        %v6180 = vadd.f32 %v5951, %v6179
        %v6181 = vpop.f32.mrf.mxu0
        %v6182 = vadd.f32 %v5953, %v6181
        %6183 = vmatmul.bf16.gmra.mxu0 %v6108
        %v6184 = vpop.f32.mrf.mxu0
        %v6185 = vadd.f32 %v5956, %v6184
        %v6186 = vpop.f32.mrf.mxu0
        %v6187 = vadd.f32 %v5958, %v6186
        %6188 = vmatmul.bf16.gmra.mxu0 %v6111
        %v6189 = vpop.f32.mrf.mxu0
        %v6190 = vadd.f32 %v5961, %v6189
        %v6191 = vpop.f32.mrf.mxu0
        %v6192 = vadd.f32 %v5963, %v6191
        %6193 = vmatmul.bf16.gmra.mxu0 %v6114
        %v6194 = vpop.f32.mrf.mxu0
        %v6195 = vadd.f32 %v5966, %v6194
        %v6196 = vpop.f32.mrf.mxu0
        %v6197 = vadd.f32 %v5968, %v6196
        %6198 = vmatmul.bf16.gmra.mxu0 %v6117
        %v6199 = vpop.f32.mrf.mxu0
        %v6200 = vadd.f32 %v5971, %v6199
        %v6201 = vpop.f32.mrf.mxu0
        %v6202 = vadd.f32 %v5973, %v6201
        %6203 = vmatmul.bf16.gmra.mxu0 %v6120
        %v6204 = vpop.f32.mrf.mxu0
        %v6205 = vadd.f32 %v5976, %v6204
        %v6206 = vpop.f32.mrf.mxu0
        %v6207 = vadd.f32 %v5978, %v6206
        %6208 = vmatmul.bf16.gmra.mxu0 %v6123
        %v6209 = vpop.f32.mrf.mxu0
        %v6210 = vadd.f32 %v5981, %v6209
        %v6211 = vpop.f32.mrf.mxu0
        %v6212 = vadd.f32 %v5983, %v6211
        %6213 = vdwg.mxu0
        %v6214 = vld [vmem:[#allocation3] sm:$0xe]
        %v6215 = vld [vmem:[#allocation3 + $0xc] sm:$0xe]
        %v6216 = vld [vmem:[#allocation3 + $0x18] sm:$0xe]
        %v6217 = vld [vmem:[#allocation3 + $0x24] sm:$0xe]
        %v6218 = vld [vmem:[#allocation3 + $0x30] sm:$0xe]
        %v6219 = vld [vmem:[#allocation3 + $0x3c] sm:$0xe]
        %v6220 = vld [vmem:[#allocation3 + $0x48] sm:$0xe]
        %v6221 = vld [vmem:[#allocation3 + $0x54] sm:$0xe]
        %v6222 = vld [vmem:[#allocation3 + $0x60] sm:$0xe]
        %v6223 = vld [vmem:[#allocation3 + $0x6c] sm:$0xe]
        %v6224 = vld [vmem:[#allocation3 + $0x78] sm:$0xe]
        %v6225 = vld [vmem:[#allocation3 + $0x84] sm:$0xe]
        %v6226 = vld [vmem:[#allocation3 + $0x90] sm:$0xe]
        %v6227 = vld [vmem:[#allocation3 + $0x9c] sm:$0xe]
        %v6228 = vld [vmem:[#allocation3 + $0xa8] sm:$0xe]
        %v6229 = vld [vmem:[#allocation3 + $0xb4] sm:$0xe]
        %v6262 = vrot.slane %v6214, 5
        %v6263 = vrot.slane %v6262, 4
        %v6264 = vrot.slane %v5347, 5
        %v6265 = vsel %vm1705, %v6263, %v6264
        %v6266 = vrot.slane %v6264, 4
        %v6267 = vrot.slane %v5382, 5
        %v6268 = vsel %vm1705, %v6266, %v6267
        %v6269 = vrot.slane %v6215, 5
        %v6270 = vrot.slane %v6269, 4
        %v6271 = vrot.slane %v5349, 5
        %v6272 = vsel %vm1705, %v6270, %v6271
        %v6273 = vrot.slane %v6271, 4
        %v6274 = vrot.slane %v5383, 5
        %v6275 = vsel %vm1705, %v6273, %v6274
        %v6276 = vrot.slane %v6216, 5
        %v6277 = vrot.slane %v6276, 4
        %v6278 = vrot.slane %v5351, 5
        %v6279 = vsel %vm1705, %v6277, %v6278
        %v6280 = vrot.slane %v6278, 4
        %v6281 = vrot.slane %v5384, 5
        %v6282 = vsel %vm1705, %v6280, %v6281
        %v6283 = vrot.slane %v6217, 5
        %v6284 = vrot.slane %v6283, 4
        %v6285 = vrot.slane %v5353, 5
        %v6286 = vsel %vm1705, %v6284, %v6285
        %v6287 = vrot.slane %v6285, 4
        %v6288 = vrot.slane %v5385, 5
        %v6289 = vsel %vm1705, %v6287, %v6288
        %v6290 = vrot.slane %v6218, 5
        %v6291 = vrot.slane %v6290, 4
        %v6292 = vrot.slane %v5355, 5
        %v6293 = vsel %vm1705, %v6291, %v6292
        %v6294 = vrot.slane %v6292, 4
        %v6295 = vrot.slane %v5386, 5
        %v6296 = vsel %vm1705, %v6294, %v6295
        %v6297 = vrot.slane %v6219, 5
        %v6298 = vrot.slane %v6297, 4
        %v6299 = vrot.slane %v5357, 5
        %v6300 = vsel %vm1705, %v6298, %v6299
        %v6301 = vrot.slane %v6299, 4
        %v6302 = vrot.slane %v5387, 5
        %v6303 = vsel %vm1705, %v6301, %v6302
        %v6304 = vrot.slane %v6220, 5
        %v6305 = vrot.slane %v6304, 4
        %v6306 = vrot.slane %v5359, 5
        %v6307 = vsel %vm1705, %v6305, %v6306
        %v6308 = vrot.slane %v6306, 4
        %v6309 = vrot.slane %v5388, 5
        %v6310 = vsel %vm1705, %v6308, %v6309
        %v6311 = vrot.slane %v6221, 5
        %v6312 = vrot.slane %v6311, 4
        %v6313 = vrot.slane %v5361, 5
        %v6314 = vsel %vm1705, %v6312, %v6313
        %v6315 = vrot.slane %v6313, 4
        %v6316 = vrot.slane %v5389, 5
        %v6317 = vsel %vm1705, %v6315, %v6316
        %v6318 = vrot.slane %v6222, 5
        %v6319 = vrot.slane %v6318, 4
        %v6320 = vrot.slane %v5363, 5
        %v6321 = vsel %vm1705, %v6319, %v6320
        %v6322 = vrot.slane %v6320, 4
        %v6323 = vrot.slane %v5390, 5
        %v6324 = vsel %vm1705, %v6322, %v6323
        %v6325 = vrot.slane %v6223, 5
        %v6326 = vrot.slane %v6325, 4
        %v6327 = vrot.slane %v5365, 5
        %v6328 = vsel %vm1705, %v6326, %v6327
        %v6329 = vrot.slane %v6327, 4
        %v6330 = vrot.slane %v5391, 5
        %v6331 = vsel %vm1705, %v6329, %v6330
        %v6332 = vrot.slane %v6224, 5
        %v6333 = vrot.slane %v6332, 4
        %v6334 = vrot.slane %v5367, 5
        %v6335 = vsel %vm1705, %v6333, %v6334
        %v6336 = vrot.slane %v6334, 4
        %v6337 = vrot.slane %v5392, 5
        %v6338 = vsel %vm1705, %v6336, %v6337
        %v6339 = vrot.slane %v6225, 5
        %v6340 = vrot.slane %v6339, 4
        %v6341 = vrot.slane %v5369, 5
        %v6342 = vsel %vm1705, %v6340, %v6341
        %v6343 = vrot.slane %v6341, 4
        %v6344 = vrot.slane %v5393, 5
        %v6345 = vsel %vm1705, %v6343, %v6344
        %v6346 = vrot.slane %v6226, 5
        %v6347 = vrot.slane %v6346, 4
        %v6348 = vrot.slane %v5371, 5
        %v6349 = vsel %vm1705, %v6347, %v6348
        %v6350 = vrot.slane %v6348, 4
        %v6351 = vrot.slane %v5394, 5
        %v6352 = vsel %vm1705, %v6350, %v6351
        %v6353 = vrot.slane %v6227, 5
        %v6354 = vrot.slane %v6353, 4
        %v6355 = vrot.slane %v5373, 5
        %v6356 = vsel %vm1705, %v6354, %v6355
        %v6357 = vrot.slane %v6355, 4
        %v6358 = vrot.slane %v5395, 5
        %v6359 = vsel %vm1705, %v6357, %v6358
        %v6360 = vrot.slane %v6228, 5
        %v6361 = vrot.slane %v6360, 4
        %v6362 = vrot.slane %v5375, 5
        %v6363 = vsel %vm1705, %v6361, %v6362
        %v6364 = vrot.slane %v6362, 4
        %v6365 = vrot.slane %v5396, 5
        %v6366 = vsel %vm1705, %v6364, %v6365
        %v6367 = vrot.slane %v6229, 5
        %v6368 = vrot.slane %v6367, 4
        %v6369 = vrot.slane %v5377, 5
        %v6370 = vsel %vm1705, %v6368, %v6369
        %v6371 = vrot.slane %v6369, 4
        %v6372 = vrot.slane %v5397, 5
        %v6373 = vsel %vm1705, %v6371, %v6372
        %s6374 = scalar_lea.vmem %s2, 32
        %v6375 = vld [vmem:[%s6374] sm:$0xf]
        %v6376 = vld [vmem:[%s6374 + $0x4] sm:$0xf]
        %v6377 = vld [vmem:[%s6374 + $0x8] sm:$0xf]
        %v6378 = vld [vmem:[%s6374 + $0xc] sm:$0xf]
        %v6379 = vunpack.c.l.b16 %v6265
        %v6380 = vunpack.c.l.b16 %v6268
        %v6381 = vunpack.c.l.b16 %v6272
        %v6382 = vunpack.c.l.b16 %v6275
        %v6383 = vunpack.c.l.b16 %v6279
        %v6384 = vunpack.c.l.b16 %v6282
        %v6385 = vunpack.c.l.b16 %v6286
        %v6386 = vunpack.c.l.b16 %v6289
        %v6387 = vunpack.c.l.b16 %v6293
        %v6388 = vunpack.c.l.b16 %v6296
        %v6389 = vunpack.c.l.b16 %v6300
        %v6390 = vunpack.c.l.b16 %v6303
        %v6391 = vunpack.c.l.b16 %v6307
        %v6392 = vunpack.c.l.b16 %v6310
        %v6393 = vunpack.c.l.b16 %v6314
        %v6394 = vunpack.c.l.b16 %v6317
        %v6395 = vunpack.c.l.b16 %v6321
        %v6396 = vunpack.c.l.b16 %v6324
        %v6397 = vunpack.c.l.b16 %v6328
        %v6398 = vunpack.c.l.b16 %v6331
        %v6399 = vunpack.c.l.b16 %v6335
        %v6400 = vunpack.c.l.b16 %v6338
        %v6401 = vunpack.c.l.b16 %v6342
        %v6402 = vunpack.c.l.b16 %v6345
        %v6403 = vunpack.c.l.b16 %v6349
        %v6404 = vunpack.c.l.b16 %v6352
        %v6405 = vunpack.c.l.b16 %v6356
        %v6406 = vunpack.c.l.b16 %v6359
        %v6407 = vunpack.c.l.b16 %v6363
        %v6408 = vunpack.c.l.b16 %v6366
        %v6409 = vunpack.c.l.b16 %v6370
        %v6410 = vunpack.c.l.b16 %v6373
        %v6411 = vpack.c.b16 %v6380, %v6379
        %v6412 = vpack.c.b16 %v6382, %v6381
        %v6413 = vpack.c.b16 %v6384, %v6383
        %v6414 = vpack.c.b16 %v6386, %v6385
        %v6415 = vpack.c.b16 %v6388, %v6387
        %v6416 = vpack.c.b16 %v6390, %v6389
        %v6417 = vpack.c.b16 %v6392, %v6391
        %v6418 = vpack.c.b16 %v6394, %v6393
        %v6419 = vpack.c.b16 %v6396, %v6395
        %v6420 = vpack.c.b16 %v6398, %v6397
        %v6421 = vpack.c.b16 %v6400, %v6399
        %v6422 = vpack.c.b16 %v6402, %v6401
        %v6423 = vpack.c.b16 %v6404, %v6403
        %v6424 = vpack.c.b16 %v6406, %v6405
        %v6425 = vpack.c.b16 %v6408, %v6407
        %v6426 = vpack.c.b16 %v6410, %v6409
        %v6431 = vunpack.c.l.b16 %v6375
        %v6432 = vunpack.c.l.b16 %v6376
        %v6433 = vunpack.c.l.b16 %v6377
        %v6434 = vunpack.c.l.b16 %v6378
        %v6435 = vpack.c.b16 %v6432, %v6431
        %v6436 = vpack.c.b16 %v6434, %v6433
        %v6440 = vsel %vm5847, %v6411, 0
        %v6443 = vsel %vm5847, %v6412, 0
        %v6446 = vsel %vm5847, %v6413, 0
        %v6449 = vsel %vm5847, %v6414, 0
        %v6452 = vsel %vm5847, %v6415, 0
        %v6455 = vsel %vm5847, %v6416, 0
        %v6458 = vsel %vm5847, %v6417, 0
        %v6461 = vsel %vm5847, %v6418, 0
        %v6464 = vsel %vm5847, %v6419, 0
        %v6467 = vsel %vm5847, %v6420, 0
        %v6470 = vsel %vm5847, %v6421, 0
        %v6473 = vsel %vm5847, %v6422, 0
        %v6476 = vsel %vm5847, %v6423, 0
        %v6479 = vsel %vm5847, %v6424, 0
        %v6482 = vsel %vm5847, %v6425, 0
        %v6485 = vsel %vm5847, %v6426, 0
        %6487 = vmatpush.bf16.msra.mxu0 0
        %6488 = vmatpush.bf16.msra.mxu0 0
        %6489 = vmatpush.bf16.msra.mxu0 0
        %6490 = vmatpush.bf16.msra.mxu0 0
        %6491 = vmatpush.bf16.msra.mxu0 0
        %6492 = vmatpush.bf16.msra.mxu0 0
        %6493 = vmatpush.bf16.msra.mxu0 %v6436
        %6494 = vmatpush.bf16.msra.mxu0 %v6435
        %6495 = vmatmul.bf16.gmra.mxu0 %v6440
        %v6496 = vpop.f32.mrf.mxu0
        %v6497 = vadd.f32 0.0, %v6496
        %v6498 = vpop.f32.mrf.mxu0
        %v6499 = vadd.f32 0.0, %v6498
        %6500 = vmatmul.bf16.gmra.mxu0 %v6443
        %v6501 = vpop.f32.mrf.mxu0
        %v6502 = vadd.f32 0.0, %v6501
        %v6503 = vpop.f32.mrf.mxu0
        %v6504 = vadd.f32 0.0, %v6503
        %6505 = vmatmul.bf16.gmra.mxu0 %v6446
        %v6506 = vpop.f32.mrf.mxu0
        %v6507 = vadd.f32 0.0, %v6506
        %v6508 = vpop.f32.mrf.mxu0
        %v6509 = vadd.f32 0.0, %v6508
        %6510 = vmatmul.bf16.gmra.mxu0 %v6449
        %v6511 = vpop.f32.mrf.mxu0
        %v6512 = vadd.f32 0.0, %v6511
        %v6513 = vpop.f32.mrf.mxu0
        %v6514 = vadd.f32 0.0, %v6513
        %6515 = vmatmul.bf16.gmra.mxu0 %v6452
        %v6516 = vpop.f32.mrf.mxu0
        %v6517 = vadd.f32 0.0, %v6516
        %v6518 = vpop.f32.mrf.mxu0
        %v6519 = vadd.f32 0.0, %v6518
        %6520 = vmatmul.bf16.gmra.mxu0 %v6455
        %v6521 = vpop.f32.mrf.mxu0
        %v6522 = vadd.f32 0.0, %v6521
        %v6523 = vpop.f32.mrf.mxu0
        %v6524 = vadd.f32 0.0, %v6523
        %6525 = vmatmul.bf16.gmra.mxu0 %v6458
        %v6526 = vpop.f32.mrf.mxu0
        %v6527 = vadd.f32 0.0, %v6526
        %v6528 = vpop.f32.mrf.mxu0
        %v6529 = vadd.f32 0.0, %v6528
        %6530 = vmatmul.bf16.gmra.mxu0 %v6461
        %v6531 = vpop.f32.mrf.mxu0
        %v6532 = vadd.f32 0.0, %v6531
        %v6533 = vpop.f32.mrf.mxu0
        %v6534 = vadd.f32 0.0, %v6533
        %6535 = vmatmul.bf16.gmra.mxu0 %v6464
        %v6536 = vpop.f32.mrf.mxu0
        %v6537 = vadd.f32 0.0, %v6536
        %v6538 = vpop.f32.mrf.mxu0
        %v6539 = vadd.f32 0.0, %v6538
        %6540 = vmatmul.bf16.gmra.mxu0 %v6467
        %v6541 = vpop.f32.mrf.mxu0
        %v6542 = vadd.f32 0.0, %v6541
        %v6543 = vpop.f32.mrf.mxu0
        %v6544 = vadd.f32 0.0, %v6543
        %6545 = vmatmul.bf16.gmra.mxu0 %v6470
        %v6546 = vpop.f32.mrf.mxu0
        %v6547 = vadd.f32 0.0, %v6546
        %v6548 = vpop.f32.mrf.mxu0
        %v6549 = vadd.f32 0.0, %v6548
        %6550 = vmatmul.bf16.gmra.mxu0 %v6473
        %v6551 = vpop.f32.mrf.mxu0
        %v6552 = vadd.f32 0.0, %v6551
        %v6553 = vpop.f32.mrf.mxu0
        %v6554 = vadd.f32 0.0, %v6553
        %6555 = vmatmul.bf16.gmra.mxu0 %v6476
        %v6556 = vpop.f32.mrf.mxu0
        %v6557 = vadd.f32 0.0, %v6556
        %v6558 = vpop.f32.mrf.mxu0
        %v6559 = vadd.f32 0.0, %v6558
        %6560 = vmatmul.bf16.gmra.mxu0 %v6479
        %v6561 = vpop.f32.mrf.mxu0
        %v6562 = vadd.f32 0.0, %v6561
        %v6563 = vpop.f32.mrf.mxu0
        %v6564 = vadd.f32 0.0, %v6563
        %6565 = vmatmul.bf16.gmra.mxu0 %v6482
        %v6566 = vpop.f32.mrf.mxu0
        %v6567 = vadd.f32 0.0, %v6566
        %v6568 = vpop.f32.mrf.mxu0
        %v6569 = vadd.f32 0.0, %v6568
        %6570 = vmatmul.bf16.gmra.mxu0 %v6485
        %v6571 = vpop.f32.mrf.mxu0
        %v6572 = vadd.f32 0.0, %v6571
        %v6573 = vpop.f32.mrf.mxu0
        %v6574 = vadd.f32 0.0, %v6573
        %6575 = vdwg.mxu0
        %v6576 = vadd.f32 %v6135, %v6497
        %v6577 = vadd.f32 %v6137, %v6499
        %v6578 = vadd.f32 %v6140, %v6502
        %v6579 = vadd.f32 %v6142, %v6504
        %v6580 = vadd.f32 %v6145, %v6507
        %v6581 = vadd.f32 %v6147, %v6509
        %v6582 = vadd.f32 %v6150, %v6512
        %v6583 = vadd.f32 %v6152, %v6514
        %v6584 = vadd.f32 %v6155, %v6517
        %v6585 = vadd.f32 %v6157, %v6519
        %v6586 = vadd.f32 %v6160, %v6522
        %v6587 = vadd.f32 %v6162, %v6524
        %v6588 = vadd.f32 %v6165, %v6527
        %v6589 = vadd.f32 %v6167, %v6529
        %v6590 = vadd.f32 %v6170, %v6532
        %v6591 = vadd.f32 %v6172, %v6534
        %v6592 = vadd.f32 %v6175, %v6537
        %v6593 = vadd.f32 %v6177, %v6539
        %v6594 = vadd.f32 %v6180, %v6542
        %v6595 = vadd.f32 %v6182, %v6544
        %v6596 = vadd.f32 %v6185, %v6547
        %v6597 = vadd.f32 %v6187, %v6549
        %v6598 = vadd.f32 %v6190, %v6552
        %v6599 = vadd.f32 %v6192, %v6554
        %v6600 = vadd.f32 %v6195, %v6557
        %v6601 = vadd.f32 %v6197, %v6559
        %v6602 = vadd.f32 %v6200, %v6562
        %v6603 = vadd.f32 %v6202, %v6564
        %v6604 = vadd.f32 %v6205, %v6567
        %v6605 = vadd.f32 %v6207, %v6569
        %v6606 = vadd.f32 %v6210, %v6572
        %v6607 = vadd.f32 %v6212, %v6574
        %v6608 = vld [vmem:[%s5229] sm:$0xf]
        %v6609 = vld [vmem:[%s5229 + $0x4] sm:$0xf]
        %v6610 = vld [vmem:[%s5229 + $0xc] sm:$0xf]
        %v6611 = vld [vmem:[%s5229 + $0x10] sm:$0xf]
        %v6612 = vld [vmem:[%s5229 + $0x18] sm:$0xf]
        %v6613 = vld [vmem:[%s5229 + $0x1c] sm:$0xf]
        %v6614 = vld [vmem:[%s5229 + $0x24] sm:$0xf]
        %v6615 = vld [vmem:[%s5229 + $0x28] sm:$0xf]
        %v6616 = vld [vmem:[%s5229 + $0x30] sm:$0xf]
        %v6617 = vld [vmem:[%s5229 + $0x34] sm:$0xf]
        %v6618 = vld [vmem:[%s5229 + $0x3c] sm:$0xf]
        %v6619 = vld [vmem:[%s5229 + $0x40] sm:$0xf]
        %v6620 = vld [vmem:[%s5229 + $0x48] sm:$0xf]
        %v6621 = vld [vmem:[%s5229 + $0x4c] sm:$0xf]
        %v6622 = vld [vmem:[%s5229 + $0x54] sm:$0xf]
        %v6623 = vld [vmem:[%s5229 + $0x58] sm:$0xf]
        %v6624 = vld [vmem:[%s5229 + $0x60] sm:$0xf]
        %v6625 = vld [vmem:[%s5229 + $0x64] sm:$0xf]
        %v6626 = vld [vmem:[%s5229 + $0x6c] sm:$0xf]
        %v6627 = vld [vmem:[%s5229 + $0x70] sm:$0xf]
        %v6628 = vld [vmem:[%s5229 + $0x78] sm:$0xf]
        %v6629 = vld [vmem:[%s5229 + $0x7c] sm:$0xf]
        %v6630 = vld [vmem:[%s5229 + $0x84] sm:$0xf]
        %v6631 = vld [vmem:[%s5229 + $0x88] sm:$0xf]
        %v6632 = vld [vmem:[%s5229 + $0x90] sm:$0xf]
        %v6633 = vld [vmem:[%s5229 + $0x94] sm:$0xf]
        %v6634 = vld [vmem:[%s5229 + $0x9c] sm:$0xf]
        %v6635 = vld [vmem:[%s5229 + $0xa0] sm:$0xf]
        %v6636 = vld [vmem:[%s5229 + $0xa8] sm:$0xf]
        %v6637 = vld [vmem:[%s5229 + $0xac] sm:$0xf]
        %v6638 = vld [vmem:[%s5229 + $0xb4] sm:$0xf]
        %v6639 = vld [vmem:[%s5229 + $0xb8] sm:$0xf]
        %s6640 = scalar_lea.vmem %s2, 48
        %v6641 = vld [vmem:[%s6640] sm:$0xf]
        %v6642 = vld [vmem:[%s6640 + $0x4] sm:$0xf]
        %v6643 = vld [vmem:[%s6640 + $0x8] sm:$0xf]
        %v6644 = vld [vmem:[%s6640 + $0xc] sm:$0xf]
        %v6677 = vunpack.c.l.b16 %v6608
        %v6678 = vunpack.c.l.b16 %v6609
        %v6679 = vunpack.c.l.b16 %v6610
        %v6680 = vunpack.c.l.b16 %v6611
        %v6681 = vunpack.c.l.b16 %v6612
        %v6682 = vunpack.c.l.b16 %v6613
        %v6683 = vunpack.c.l.b16 %v6614
        %v6684 = vunpack.c.l.b16 %v6615
        %v6685 = vunpack.c.l.b16 %v6616
        %v6686 = vunpack.c.l.b16 %v6617
        %v6687 = vunpack.c.l.b16 %v6618
        %v6688 = vunpack.c.l.b16 %v6619
        %v6689 = vunpack.c.l.b16 %v6620
        %v6690 = vunpack.c.l.b16 %v6621
        %v6691 = vunpack.c.l.b16 %v6622
        %v6692 = vunpack.c.l.b16 %v6623
        %v6693 = vunpack.c.l.b16 %v6624
        %v6694 = vunpack.c.l.b16 %v6625
        %v6695 = vunpack.c.l.b16 %v6626
        %v6696 = vunpack.c.l.b16 %v6627
        %v6697 = vunpack.c.l.b16 %v6628
        %v6698 = vunpack.c.l.b16 %v6629
        %v6699 = vunpack.c.l.b16 %v6630
        %v6700 = vunpack.c.l.b16 %v6631
        %v6701 = vunpack.c.l.b16 %v6632
        %v6702 = vunpack.c.l.b16 %v6633
        %v6703 = vunpack.c.l.b16 %v6634
        %v6704 = vunpack.c.l.b16 %v6635
        %v6705 = vunpack.c.l.b16 %v6636
        %v6706 = vunpack.c.l.b16 %v6637
        %v6707 = vunpack.c.l.b16 %v6638
        %v6708 = vunpack.c.l.b16 %v6639
        %v6709 = vpack.c.b16 %v6678, %v6677
        %v6710 = vpack.c.b16 %v6680, %v6679
        %v6711 = vpack.c.b16 %v6682, %v6681
        %v6712 = vpack.c.b16 %v6684, %v6683
        %v6713 = vpack.c.b16 %v6686, %v6685
        %v6714 = vpack.c.b16 %v6688, %v6687
        %v6715 = vpack.c.b16 %v6690, %v6689
        %v6716 = vpack.c.b16 %v6692, %v6691
        %v6717 = vpack.c.b16 %v6694, %v6693
        %v6718 = vpack.c.b16 %v6696, %v6695
        %v6719 = vpack.c.b16 %v6698, %v6697
        %v6720 = vpack.c.b16 %v6700, %v6699
        %v6721 = vpack.c.b16 %v6702, %v6701
        %v6722 = vpack.c.b16 %v6704, %v6703
        %v6723 = vpack.c.b16 %v6706, %v6705
        %v6724 = vpack.c.b16 %v6708, %v6707
        %v6729 = vunpack.c.l.b16 %v6641
        %v6730 = vunpack.c.l.b16 %v6642
        %v6731 = vunpack.c.l.b16 %v6643
        %v6732 = vunpack.c.l.b16 %v6644
        %v6733 = vpack.c.b16 %v6730, %v6729
        %v6734 = vpack.c.b16 %v6732, %v6731
        %v6738 = vsel %vm5847, %v6709, 0
        %v6741 = vsel %vm5847, %v6710, 0
        %v6744 = vsel %vm5847, %v6711, 0
        %v6747 = vsel %vm5847, %v6712, 0
        %v6750 = vsel %vm5847, %v6713, 0
        %v6753 = vsel %vm5847, %v6714, 0
        %v6756 = vsel %vm5847, %v6715, 0
        %v6759 = vsel %vm5847, %v6716, 0
        %v6762 = vsel %vm5847, %v6717, 0
        %v6765 = vsel %vm5847, %v6718, 0
        %v6768 = vsel %vm5847, %v6719, 0
        %v6771 = vsel %vm5847, %v6720, 0
        %v6774 = vsel %vm5847, %v6721, 0
        %v6777 = vsel %vm5847, %v6722, 0
        %v6780 = vsel %vm5847, %v6723, 0
        %v6783 = vsel %vm5847, %v6724, 0
        %6785 = vmatpush.bf16.msra.mxu0 0
        %6786 = vmatpush.bf16.msra.mxu0 0
        %6787 = vmatpush.bf16.msra.mxu0 0
        %6788 = vmatpush.bf16.msra.mxu0 0
        %6789 = vmatpush.bf16.msra.mxu0 0
        %6790 = vmatpush.bf16.msra.mxu0 0
        %6791 = vmatpush.bf16.msra.mxu0 %v6734
        %6792 = vmatpush.bf16.msra.mxu0 %v6733
        %6793 = vmatmul.bf16.gmra.mxu0 %v6738
        %v6794 = vpop.f32.mrf.mxu0
        %v6795 = vadd.f32 0.0, %v6794
        %v6796 = vpop.f32.mrf.mxu0
        %v6797 = vadd.f32 0.0, %v6796
        %6798 = vmatmul.bf16.gmra.mxu0 %v6741
        %v6799 = vpop.f32.mrf.mxu0
        %v6800 = vadd.f32 0.0, %v6799
        %v6801 = vpop.f32.mrf.mxu0
        %v6802 = vadd.f32 0.0, %v6801
        %6803 = vmatmul.bf16.gmra.mxu0 %v6744
        %v6804 = vpop.f32.mrf.mxu0
        %v6805 = vadd.f32 0.0, %v6804
        %v6806 = vpop.f32.mrf.mxu0
        %v6807 = vadd.f32 0.0, %v6806
        %6808 = vmatmul.bf16.gmra.mxu0 %v6747
        %v6809 = vpop.f32.mrf.mxu0
        %v6810 = vadd.f32 0.0, %v6809
        %v6811 = vpop.f32.mrf.mxu0
        %v6812 = vadd.f32 0.0, %v6811
        %6813 = vmatmul.bf16.gmra.mxu0 %v6750
        %v6814 = vpop.f32.mrf.mxu0
        %v6815 = vadd.f32 0.0, %v6814
        %v6816 = vpop.f32.mrf.mxu0
        %v6817 = vadd.f32 0.0, %v6816
        %6818 = vmatmul.bf16.gmra.mxu0 %v6753
        %v6819 = vpop.f32.mrf.mxu0
        %v6820 = vadd.f32 0.0, %v6819
        %v6821 = vpop.f32.mrf.mxu0
        %v6822 = vadd.f32 0.0, %v6821
        %6823 = vmatmul.bf16.gmra.mxu0 %v6756
        %v6824 = vpop.f32.mrf.mxu0
        %v6825 = vadd.f32 0.0, %v6824
        %v6826 = vpop.f32.mrf.mxu0
        %v6827 = vadd.f32 0.0, %v6826
        %6828 = vmatmul.bf16.gmra.mxu0 %v6759
        %v6829 = vpop.f32.mrf.mxu0
        %v6830 = vadd.f32 0.0, %v6829
        %v6831 = vpop.f32.mrf.mxu0
        %v6832 = vadd.f32 0.0, %v6831
        %6833 = vmatmul.bf16.gmra.mxu0 %v6762
        %v6834 = vpop.f32.mrf.mxu0
        %v6835 = vadd.f32 0.0, %v6834
        %v6836 = vpop.f32.mrf.mxu0
        %v6837 = vadd.f32 0.0, %v6836
        %6838 = vmatmul.bf16.gmra.mxu0 %v6765
        %v6839 = vpop.f32.mrf.mxu0
        %v6840 = vadd.f32 0.0, %v6839
        %v6841 = vpop.f32.mrf.mxu0
        %v6842 = vadd.f32 0.0, %v6841
        %6843 = vmatmul.bf16.gmra.mxu0 %v6768
        %v6844 = vpop.f32.mrf.mxu0
        %v6845 = vadd.f32 0.0, %v6844
        %v6846 = vpop.f32.mrf.mxu0
        %v6847 = vadd.f32 0.0, %v6846
        %6848 = vmatmul.bf16.gmra.mxu0 %v6771
        %v6849 = vpop.f32.mrf.mxu0
        %v6850 = vadd.f32 0.0, %v6849
        %v6851 = vpop.f32.mrf.mxu0
        %v6852 = vadd.f32 0.0, %v6851
        %6853 = vmatmul.bf16.gmra.mxu0 %v6774
        %v6854 = vpop.f32.mrf.mxu0
        %v6855 = vadd.f32 0.0, %v6854
        %v6856 = vpop.f32.mrf.mxu0
        %v6857 = vadd.f32 0.0, %v6856
        %6858 = vmatmul.bf16.gmra.mxu0 %v6777
        %v6859 = vpop.f32.mrf.mxu0
        %v6860 = vadd.f32 0.0, %v6859
        %v6861 = vpop.f32.mrf.mxu0
        %v6862 = vadd.f32 0.0, %v6861
        %6863 = vmatmul.bf16.gmra.mxu0 %v6780
        %v6864 = vpop.f32.mrf.mxu0
        %v6865 = vadd.f32 0.0, %v6864
        %v6866 = vpop.f32.mrf.mxu0
        %v6867 = vadd.f32 0.0, %v6866
        %6868 = vmatmul.bf16.gmra.mxu0 %v6783
        %v6869 = vpop.f32.mrf.mxu0
        %v6870 = vadd.f32 0.0, %v6869
        %v6871 = vpop.f32.mrf.mxu0
        %v6872 = vadd.f32 0.0, %v6871
        %6873 = vdwg.mxu0
        %v6874 = vadd.f32 %v6576, %v6795
        %v6875 = vadd.f32 %v6577, %v6797
        %v6876 = vadd.f32 %v6578, %v6800
        %v6877 = vadd.f32 %v6579, %v6802
        %v6878 = vadd.f32 %v6580, %v6805
        %v6879 = vadd.f32 %v6581, %v6807
        %v6880 = vadd.f32 %v6582, %v6810
        %v6881 = vadd.f32 %v6583, %v6812
        %v6882 = vadd.f32 %v6584, %v6815
        %v6883 = vadd.f32 %v6585, %v6817
        %v6884 = vadd.f32 %v6586, %v6820
        %v6885 = vadd.f32 %v6587, %v6822
        %v6886 = vadd.f32 %v6588, %v6825
        %v6887 = vadd.f32 %v6589, %v6827
        %v6888 = vadd.f32 %v6590, %v6830
        %v6889 = vadd.f32 %v6591, %v6832
        %v6890 = vadd.f32 %v6592, %v6835
        %v6891 = vadd.f32 %v6593, %v6837
        %v6892 = vadd.f32 %v6594, %v6840
        %v6893 = vadd.f32 %v6595, %v6842
        %v6894 = vadd.f32 %v6596, %v6845
        %v6895 = vadd.f32 %v6597, %v6847
        %v6896 = vadd.f32 %v6598, %v6850
        %v6897 = vadd.f32 %v6599, %v6852
        %v6898 = vadd.f32 %v6600, %v6855
        %v6899 = vadd.f32 %v6601, %v6857
        %v6900 = vadd.f32 %v6602, %v6860
        %v6901 = vadd.f32 %v6603, %v6862
        %v6902 = vadd.f32 %v6604, %v6865
        %v6903 = vadd.f32 %v6605, %v6867
        %v6904 = vadd.f32 %v6606, %v6870
        %v6905 = vadd.f32 %v6607, %v6872
        %v6906 = vld [vmem:[%s5229] sm:$0xf]
        %v6907 = vld [vmem:[%s5229 + $0x4] sm:$0xf]
        %v6908 = vld [vmem:[%s5229 + $0x8] sm:$0x1]
        %v6909 = vld [vmem:[%s5229 + $0xc] sm:$0xf]
        %v6910 = vld [vmem:[%s5229 + $0x10] sm:$0xf]
        %v6911 = vld [vmem:[%s5229 + $0x14] sm:$0x1]
        %v6912 = vld [vmem:[%s5229 + $0x18] sm:$0xf]
        %v6913 = vld [vmem:[%s5229 + $0x1c] sm:$0xf]
        %v6914 = vld [vmem:[%s5229 + $0x20] sm:$0x1]
        %v6915 = vld [vmem:[%s5229 + $0x24] sm:$0xf]
        %v6916 = vld [vmem:[%s5229 + $0x28] sm:$0xf]
        %v6917 = vld [vmem:[%s5229 + $0x2c] sm:$0x1]
        %v6918 = vld [vmem:[%s5229 + $0x30] sm:$0xf]
        %v6919 = vld [vmem:[%s5229 + $0x34] sm:$0xf]
        %v6920 = vld [vmem:[%s5229 + $0x38] sm:$0x1]
        %v6921 = vld [vmem:[%s5229 + $0x3c] sm:$0xf]
        %v6922 = vld [vmem:[%s5229 + $0x40] sm:$0xf]
        %v6923 = vld [vmem:[%s5229 + $0x44] sm:$0x1]
        %v6924 = vld [vmem:[%s5229 + $0x48] sm:$0xf]
        %v6925 = vld [vmem:[%s5229 + $0x4c] sm:$0xf]
        %v6926 = vld [vmem:[%s5229 + $0x50] sm:$0x1]
        %v6927 = vld [vmem:[%s5229 + $0x54] sm:$0xf]
        %v6928 = vld [vmem:[%s5229 + $0x58] sm:$0xf]
        %v6929 = vld [vmem:[%s5229 + $0x5c] sm:$0x1]
        %v6930 = vld [vmem:[%s5229 + $0x60] sm:$0xf]
        %v6931 = vld [vmem:[%s5229 + $0x64] sm:$0xf]
        %v6932 = vld [vmem:[%s5229 + $0x68] sm:$0x1]
        %v6933 = vld [vmem:[%s5229 + $0x6c] sm:$0xf]
        %v6934 = vld [vmem:[%s5229 + $0x70] sm:$0xf]
        %v6935 = vld [vmem:[%s5229 + $0x74] sm:$0x1]
        %v6936 = vld [vmem:[%s5229 + $0x78] sm:$0xf]
        %v6937 = vld [vmem:[%s5229 + $0x7c] sm:$0xf]
        %v6938 = vld [vmem:[%s5229 + $0x80] sm:$0x1]
        %v6939 = vld [vmem:[%s5229 + $0x84] sm:$0xf]
        %v6940 = vld [vmem:[%s5229 + $0x88] sm:$0xf]
        %v6941 = vld [vmem:[%s5229 + $0x8c] sm:$0x1]
        %v6942 = vld [vmem:[%s5229 + $0x90] sm:$0xf]
        %v6943 = vld [vmem:[%s5229 + $0x94] sm:$0xf]
        %v6944 = vld [vmem:[%s5229 + $0x98] sm:$0x1]
        %v6945 = vld [vmem:[%s5229 + $0x9c] sm:$0xf]
        %v6946 = vld [vmem:[%s5229 + $0xa0] sm:$0xf]
        %v6947 = vld [vmem:[%s5229 + $0xa4] sm:$0x1]
        %v6948 = vld [vmem:[%s5229 + $0xa8] sm:$0xf]
        %v6949 = vld [vmem:[%s5229 + $0xac] sm:$0xf]
        %v6950 = vld [vmem:[%s5229 + $0xb0] sm:$0x1]
        %v6951 = vld [vmem:[%s5229 + $0xb4] sm:$0xf]
        %v6952 = vld [vmem:[%s5229 + $0xb8] sm:$0xf]
        %v6953 = vld [vmem:[%s5229 + $0xbc] sm:$0x1]
        %v6955 = vshrl.u32 %v6906, 16
        %v6957 = vrot.slane %v6955, 4
        %v6958 = vshll.u32 %v6906, 16
        %v6960 = vrot.slane %v6958, 5
        %v6961 = vor.u32 %v6957, %v6960
        %v6962 = vrot.slane %v6961, 4
        %v6964 = vshll.u32 %v6907, 16
        %v6966 = vrot.slane %v6964, 5
        %v6967 = vsel %vm858, %v6962, %v6966
        %v6968 = vshrl.u32 %v6907, 16
        %v6970 = vrot.slane %v6968, 4
        %v6971 = vor.u32 %v6970, %v6966
        %v6972 = vrot.slane %v6971, 4
        %v6974 = vshll.u32 %v6908, 16
        %v6976 = vrot.slane %v6974, 5
        %v6977 = vsel %vm858, %v6972, %v6976
        %v6979 = vshrl.u32 %v6909, 16
        %v6981 = vrot.slane %v6979, 4
        %v6982 = vshll.u32 %v6909, 16
        %v6984 = vrot.slane %v6982, 5
        %v6985 = vor.u32 %v6981, %v6984
        %v6986 = vrot.slane %v6985, 4
        %v6988 = vshll.u32 %v6910, 16
        %v6990 = vrot.slane %v6988, 5
        %v6991 = vsel %vm858, %v6986, %v6990
        %v6992 = vshrl.u32 %v6910, 16
        %v6994 = vrot.slane %v6992, 4
        %v6995 = vor.u32 %v6994, %v6990
        %v6996 = vrot.slane %v6995, 4
        %v6998 = vshll.u32 %v6911, 16
        %v7000 = vrot.slane %v6998, 5
        %v7001 = vsel %vm858, %v6996, %v7000
        %v7003 = vshrl.u32 %v6912, 16
        %v7005 = vrot.slane %v7003, 4
        %v7006 = vshll.u32 %v6912, 16
        %v7008 = vrot.slane %v7006, 5
        %v7009 = vor.u32 %v7005, %v7008
        %v7010 = vrot.slane %v7009, 4
        %v7012 = vshll.u32 %v6913, 16
        %v7014 = vrot.slane %v7012, 5
        %v7015 = vsel %vm858, %v7010, %v7014
        %v7016 = vshrl.u32 %v6913, 16
        %v7018 = vrot.slane %v7016, 4
        %v7019 = vor.u32 %v7018, %v7014
        %v7020 = vrot.slane %v7019, 4
        %v7022 = vshll.u32 %v6914, 16
        %v7024 = vrot.slane %v7022, 5
        %v7025 = vsel %vm858, %v7020, %v7024
        %v7027 = vshrl.u32 %v6915, 16
        %v7029 = vrot.slane %v7027, 4
        %v7030 = vshll.u32 %v6915, 16
        %v7032 = vrot.slane %v7030, 5
        %v7033 = vor.u32 %v7029, %v7032
        %v7034 = vrot.slane %v7033, 4
        %v7036 = vshll.u32 %v6916, 16
        %v7038 = vrot.slane %v7036, 5
        %v7039 = vsel %vm858, %v7034, %v7038
        %v7040 = vshrl.u32 %v6916, 16
        %v7042 = vrot.slane %v7040, 4
        %v7043 = vor.u32 %v7042, %v7038
        %v7044 = vrot.slane %v7043, 4
        %v7046 = vshll.u32 %v6917, 16
        %v7048 = vrot.slane %v7046, 5
        %v7049 = vsel %vm858, %v7044, %v7048
        %v7051 = vshrl.u32 %v6918, 16
        %v7053 = vrot.slane %v7051, 4
        %v7054 = vshll.u32 %v6918, 16
        %v7056 = vrot.slane %v7054, 5
        %v7057 = vor.u32 %v7053, %v7056
        %v7058 = vrot.slane %v7057, 4
        %v7060 = vshll.u32 %v6919, 16
        %v7062 = vrot.slane %v7060, 5
        %v7063 = vsel %vm858, %v7058, %v7062
        %v7064 = vshrl.u32 %v6919, 16
        %v7066 = vrot.slane %v7064, 4
        %v7067 = vor.u32 %v7066, %v7062
        %v7068 = vrot.slane %v7067, 4
        %v7070 = vshll.u32 %v6920, 16
        %v7072 = vrot.slane %v7070, 5
        %v7073 = vsel %vm858, %v7068, %v7072
        %v7075 = vshrl.u32 %v6921, 16
        %v7077 = vrot.slane %v7075, 4
        %v7078 = vshll.u32 %v6921, 16
        %v7080 = vrot.slane %v7078, 5
        %v7081 = vor.u32 %v7077, %v7080
        %v7082 = vrot.slane %v7081, 4
        %v7084 = vshll.u32 %v6922, 16
        %v7086 = vrot.slane %v7084, 5
        %v7087 = vsel %vm858, %v7082, %v7086
        %v7088 = vshrl.u32 %v6922, 16
        %v7090 = vrot.slane %v7088, 4
        %v7091 = vor.u32 %v7090, %v7086
        %v7092 = vrot.slane %v7091, 4
        %v7094 = vshll.u32 %v6923, 16
        %v7096 = vrot.slane %v7094, 5
        %v7097 = vsel %vm858, %v7092, %v7096
        %v7099 = vshrl.u32 %v6924, 16
        %v7101 = vrot.slane %v7099, 4
        %v7102 = vshll.u32 %v6924, 16
        %v7104 = vrot.slane %v7102, 5
        %v7105 = vor.u32 %v7101, %v7104
        %v7106 = vrot.slane %v7105, 4
        %v7108 = vshll.u32 %v6925, 16
        %v7110 = vrot.slane %v7108, 5
        %v7111 = vsel %vm858, %v7106, %v7110
        %v7112 = vshrl.u32 %v6925, 16
        %v7114 = vrot.slane %v7112, 4
        %v7115 = vor.u32 %v7114, %v7110
        %v7116 = vrot.slane %v7115, 4
        %v7118 = vshll.u32 %v6926, 16
        %v7120 = vrot.slane %v7118, 5
        %v7121 = vsel %vm858, %v7116, %v7120
        %v7123 = vshrl.u32 %v6927, 16
        %v7125 = vrot.slane %v7123, 4
        %v7126 = vshll.u32 %v6927, 16
        %v7128 = vrot.slane %v7126, 5
        %v7129 = vor.u32 %v7125, %v7128
        %v7130 = vrot.slane %v7129, 4
        %v7132 = vshll.u32 %v6928, 16
        %v7134 = vrot.slane %v7132, 5
        %v7135 = vsel %vm858, %v7130, %v7134
        %v7136 = vshrl.u32 %v6928, 16
        %v7138 = vrot.slane %v7136, 4
        %v7139 = vor.u32 %v7138, %v7134
        %v7140 = vrot.slane %v7139, 4
        %v7142 = vshll.u32 %v6929, 16
        %v7144 = vrot.slane %v7142, 5
        %v7145 = vsel %vm858, %v7140, %v7144
        %v7147 = vshrl.u32 %v6930, 16
        %v7149 = vrot.slane %v7147, 4
        %v7150 = vshll.u32 %v6930, 16
        %v7152 = vrot.slane %v7150, 5
        %v7153 = vor.u32 %v7149, %v7152
        %v7154 = vrot.slane %v7153, 4
        %v7156 = vshll.u32 %v6931, 16
        %v7158 = vrot.slane %v7156, 5
        %v7159 = vsel %vm858, %v7154, %v7158
        %v7160 = vshrl.u32 %v6931, 16
        %v7162 = vrot.slane %v7160, 4
        %v7163 = vor.u32 %v7162, %v7158
        %v7164 = vrot.slane %v7163, 4
        %v7166 = vshll.u32 %v6932, 16
        %v7168 = vrot.slane %v7166, 5
        %v7169 = vsel %vm858, %v7164, %v7168
        %v7171 = vshrl.u32 %v6933, 16
        %v7173 = vrot.slane %v7171, 4
        %v7174 = vshll.u32 %v6933, 16
        %v7176 = vrot.slane %v7174, 5
        %v7177 = vor.u32 %v7173, %v7176
        %v7178 = vrot.slane %v7177, 4
        %v7180 = vshll.u32 %v6934, 16
        %v7182 = vrot.slane %v7180, 5
        %v7183 = vsel %vm858, %v7178, %v7182
        %v7184 = vshrl.u32 %v6934, 16
        %v7186 = vrot.slane %v7184, 4
        %v7187 = vor.u32 %v7186, %v7182
        %v7188 = vrot.slane %v7187, 4
        %v7190 = vshll.u32 %v6935, 16
        %v7192 = vrot.slane %v7190, 5
        %v7193 = vsel %vm858, %v7188, %v7192
        %v7195 = vshrl.u32 %v6936, 16
        %v7197 = vrot.slane %v7195, 4
        %v7198 = vshll.u32 %v6936, 16
        %v7200 = vrot.slane %v7198, 5
        %v7201 = vor.u32 %v7197, %v7200
        %v7202 = vrot.slane %v7201, 4
        %v7204 = vshll.u32 %v6937, 16
        %v7206 = vrot.slane %v7204, 5
        %v7207 = vsel %vm858, %v7202, %v7206
        %v7208 = vshrl.u32 %v6937, 16
        %v7210 = vrot.slane %v7208, 4
        %v7211 = vor.u32 %v7210, %v7206
        %v7212 = vrot.slane %v7211, 4
        %v7214 = vshll.u32 %v6938, 16
        %v7216 = vrot.slane %v7214, 5
        %v7217 = vsel %vm858, %v7212, %v7216
        %v7219 = vshrl.u32 %v6939, 16
        %v7221 = vrot.slane %v7219, 4
        %v7222 = vshll.u32 %v6939, 16
        %v7224 = vrot.slane %v7222, 5
        %v7225 = vor.u32 %v7221, %v7224
        %v7226 = vrot.slane %v7225, 4
        %v7228 = vshll.u32 %v6940, 16
        %v7230 = vrot.slane %v7228, 5
        %v7231 = vsel %vm858, %v7226, %v7230
        %v7232 = vshrl.u32 %v6940, 16
        %v7234 = vrot.slane %v7232, 4
        %v7235 = vor.u32 %v7234, %v7230
        %v7236 = vrot.slane %v7235, 4
        %v7238 = vshll.u32 %v6941, 16
        %v7240 = vrot.slane %v7238, 5
        %v7241 = vsel %vm858, %v7236, %v7240
        %v7243 = vshrl.u32 %v6942, 16
        %v7245 = vrot.slane %v7243, 4
        %v7246 = vshll.u32 %v6942, 16
        %v7248 = vrot.slane %v7246, 5
        %v7249 = vor.u32 %v7245, %v7248
        %v7250 = vrot.slane %v7249, 4
        %v7252 = vshll.u32 %v6943, 16
        %v7254 = vrot.slane %v7252, 5
        %v7255 = vsel %vm858, %v7250, %v7254
        %v7256 = vshrl.u32 %v6943, 16
        %v7258 = vrot.slane %v7256, 4
        %v7259 = vor.u32 %v7258, %v7254
        %v7260 = vrot.slane %v7259, 4
        %v7262 = vshll.u32 %v6944, 16
        %v7264 = vrot.slane %v7262, 5
        %v7265 = vsel %vm858, %v7260, %v7264
        %v7267 = vshrl.u32 %v6945, 16
        %v7269 = vrot.slane %v7267, 4
        %v7270 = vshll.u32 %v6945, 16
        %v7272 = vrot.slane %v7270, 5
        %v7273 = vor.u32 %v7269, %v7272
        %v7274 = vrot.slane %v7273, 4
        %v7276 = vshll.u32 %v6946, 16
        %v7278 = vrot.slane %v7276, 5
        %v7279 = vsel %vm858, %v7274, %v7278
        %v7280 = vshrl.u32 %v6946, 16
        %v7282 = vrot.slane %v7280, 4
        %v7283 = vor.u32 %v7282, %v7278
        %v7284 = vrot.slane %v7283, 4
        %v7286 = vshll.u32 %v6947, 16
        %v7288 = vrot.slane %v7286, 5
        %v7289 = vsel %vm858, %v7284, %v7288
        %v7291 = vshrl.u32 %v6948, 16
        %v7293 = vrot.slane %v7291, 4
        %v7294 = vshll.u32 %v6948, 16
        %v7296 = vrot.slane %v7294, 5
        %v7297 = vor.u32 %v7293, %v7296
        %v7298 = vrot.slane %v7297, 4
        %v7300 = vshll.u32 %v6949, 16
        %v7302 = vrot.slane %v7300, 5
        %v7303 = vsel %vm858, %v7298, %v7302
        %v7304 = vshrl.u32 %v6949, 16
        %v7306 = vrot.slane %v7304, 4
        %v7307 = vor.u32 %v7306, %v7302
        %v7308 = vrot.slane %v7307, 4
        %v7310 = vshll.u32 %v6950, 16
        %v7312 = vrot.slane %v7310, 5
        %v7313 = vsel %vm858, %v7308, %v7312
        %v7315 = vshrl.u32 %v6951, 16
        %v7317 = vrot.slane %v7315, 4
        %v7318 = vshll.u32 %v6951, 16
        %v7320 = vrot.slane %v7318, 5
        %v7321 = vor.u32 %v7317, %v7320
        %v7322 = vrot.slane %v7321, 4
        %v7324 = vshll.u32 %v6952, 16
        %v7326 = vrot.slane %v7324, 5
        %v7327 = vsel %vm858, %v7322, %v7326
        %v7328 = vshrl.u32 %v6952, 16
        %v7330 = vrot.slane %v7328, 4
        %v7331 = vor.u32 %v7330, %v7326
        %v7332 = vrot.slane %v7331, 4
        %v7334 = vshll.u32 %v6953, 16
        %v7336 = vrot.slane %v7334, 5
        %v7337 = vsel %vm858, %v7332, %v7336
        %s7338 = scalar_lea.vmem %s2, 64
        %v7339 = vld [vmem:[%s7338] sm:$0xf]
        %v7340 = vld [vmem:[%s7338 + $0x4] sm:$0xf]
        %v7341 = vld [vmem:[%s7338 + $0x8] sm:$0xf]
        %v7342 = vld [vmem:[%s7338 + $0xc] sm:$0xf]
        %v7343 = vunpack.c.l.b16 %v6967
        %v7344 = vunpack.c.l.b16 %v6977
        %v7345 = vunpack.c.l.b16 %v6991
        %v7346 = vunpack.c.l.b16 %v7001
        %v7347 = vunpack.c.l.b16 %v7015
        %v7348 = vunpack.c.l.b16 %v7025
        %v7349 = vunpack.c.l.b16 %v7039
        %v7350 = vunpack.c.l.b16 %v7049
        %v7351 = vunpack.c.l.b16 %v7063
        %v7352 = vunpack.c.l.b16 %v7073
        %v7353 = vunpack.c.l.b16 %v7087
        %v7354 = vunpack.c.l.b16 %v7097
        %v7355 = vunpack.c.l.b16 %v7111
        %v7356 = vunpack.c.l.b16 %v7121
        %v7357 = vunpack.c.l.b16 %v7135
        %v7358 = vunpack.c.l.b16 %v7145
        %v7359 = vunpack.c.l.b16 %v7159
        %v7360 = vunpack.c.l.b16 %v7169
        %v7361 = vunpack.c.l.b16 %v7183
        %v7362 = vunpack.c.l.b16 %v7193
        %v7363 = vunpack.c.l.b16 %v7207
        %v7364 = vunpack.c.l.b16 %v7217
        %v7365 = vunpack.c.l.b16 %v7231
        %v7366 = vunpack.c.l.b16 %v7241
        %v7367 = vunpack.c.l.b16 %v7255
        %v7368 = vunpack.c.l.b16 %v7265
        %v7369 = vunpack.c.l.b16 %v7279
        %v7370 = vunpack.c.l.b16 %v7289
        %v7371 = vunpack.c.l.b16 %v7303
        %v7372 = vunpack.c.l.b16 %v7313
        %v7373 = vunpack.c.l.b16 %v7327
        %v7374 = vunpack.c.l.b16 %v7337
        %v7375 = vpack.c.b16 %v7344, %v7343
        %v7376 = vpack.c.b16 %v7346, %v7345
        %v7377 = vpack.c.b16 %v7348, %v7347
        %v7378 = vpack.c.b16 %v7350, %v7349
        %v7379 = vpack.c.b16 %v7352, %v7351
        %v7380 = vpack.c.b16 %v7354, %v7353
        %v7381 = vpack.c.b16 %v7356, %v7355
        %v7382 = vpack.c.b16 %v7358, %v7357
        %v7383 = vpack.c.b16 %v7360, %v7359
        %v7384 = vpack.c.b16 %v7362, %v7361
        %v7385 = vpack.c.b16 %v7364, %v7363
        %v7386 = vpack.c.b16 %v7366, %v7365
        %v7387 = vpack.c.b16 %v7368, %v7367
        %v7388 = vpack.c.b16 %v7370, %v7369
        %v7389 = vpack.c.b16 %v7372, %v7371
        %v7390 = vpack.c.b16 %v7374, %v7373
        %v7395 = vunpack.c.l.b16 %v7339
        %v7396 = vunpack.c.l.b16 %v7340
        %v7397 = vunpack.c.l.b16 %v7341
        %v7398 = vunpack.c.l.b16 %v7342
        %v7399 = vpack.c.b16 %v7396, %v7395
        %v7400 = vpack.c.b16 %v7398, %v7397
        %v7404 = vsel %vm5847, %v7375, 0
        %v7407 = vsel %vm5847, %v7376, 0
        %v7410 = vsel %vm5847, %v7377, 0
        %v7413 = vsel %vm5847, %v7378, 0
        %v7416 = vsel %vm5847, %v7379, 0
        %v7419 = vsel %vm5847, %v7380, 0
        %v7422 = vsel %vm5847, %v7381, 0
        %v7425 = vsel %vm5847, %v7382, 0
        %v7428 = vsel %vm5847, %v7383, 0
        %v7431 = vsel %vm5847, %v7384, 0
        %v7434 = vsel %vm5847, %v7385, 0
        %v7437 = vsel %vm5847, %v7386, 0
        %v7440 = vsel %vm5847, %v7387, 0
        %v7443 = vsel %vm5847, %v7388, 0
        %v7446 = vsel %vm5847, %v7389, 0
        %v7449 = vsel %vm5847, %v7390, 0
        %7451 = vmatpush.bf16.msra.mxu0 0
        %7452 = vmatpush.bf16.msra.mxu0 0
        %7453 = vmatpush.bf16.msra.mxu0 0
        %7454 = vmatpush.bf16.msra.mxu0 0
        %7455 = vmatpush.bf16.msra.mxu0 0
        %7456 = vmatpush.bf16.msra.mxu0 0
        %7457 = vmatpush.bf16.msra.mxu0 %v7400
        %7458 = vmatpush.bf16.msra.mxu0 %v7399
        %7459 = vmatmul.bf16.gmra.mxu0 %v7404
        %v7460 = vpop.f32.mrf.mxu0
        %v7461 = vadd.f32 0.0, %v7460
        %v7462 = vpop.f32.mrf.mxu0
        %v7463 = vadd.f32 0.0, %v7462
        %7464 = vmatmul.bf16.gmra.mxu0 %v7407
        %v7465 = vpop.f32.mrf.mxu0
        %v7466 = vadd.f32 0.0, %v7465
        %v7467 = vpop.f32.mrf.mxu0
        %v7468 = vadd.f32 0.0, %v7467
        %7469 = vmatmul.bf16.gmra.mxu0 %v7410
        %v7470 = vpop.f32.mrf.mxu0
        %v7471 = vadd.f32 0.0, %v7470
        %v7472 = vpop.f32.mrf.mxu0
        %v7473 = vadd.f32 0.0, %v7472
        %7474 = vmatmul.bf16.gmra.mxu0 %v7413
        %v7475 = vpop.f32.mrf.mxu0
        %v7476 = vadd.f32 0.0, %v7475
        %v7477 = vpop.f32.mrf.mxu0
        %v7478 = vadd.f32 0.0, %v7477
        %7479 = vmatmul.bf16.gmra.mxu0 %v7416
        %v7480 = vpop.f32.mrf.mxu0
        %v7481 = vadd.f32 0.0, %v7480
        %v7482 = vpop.f32.mrf.mxu0
        %v7483 = vadd.f32 0.0, %v7482
        %7484 = vmatmul.bf16.gmra.mxu0 %v7419
        %v7485 = vpop.f32.mrf.mxu0
        %v7486 = vadd.f32 0.0, %v7485
        %v7487 = vpop.f32.mrf.mxu0
        %v7488 = vadd.f32 0.0, %v7487
        %7489 = vmatmul.bf16.gmra.mxu0 %v7422
        %v7490 = vpop.f32.mrf.mxu0
        %v7491 = vadd.f32 0.0, %v7490
        %v7492 = vpop.f32.mrf.mxu0
        %v7493 = vadd.f32 0.0, %v7492
        %7494 = vmatmul.bf16.gmra.mxu0 %v7425
        %v7495 = vpop.f32.mrf.mxu0
        %v7496 = vadd.f32 0.0, %v7495
        %v7497 = vpop.f32.mrf.mxu0
        %v7498 = vadd.f32 0.0, %v7497
        %7499 = vmatmul.bf16.gmra.mxu0 %v7428
        %v7500 = vpop.f32.mrf.mxu0
        %v7501 = vadd.f32 0.0, %v7500
        %v7502 = vpop.f32.mrf.mxu0
        %v7503 = vadd.f32 0.0, %v7502
        %7504 = vmatmul.bf16.gmra.mxu0 %v7431
        %v7505 = vpop.f32.mrf.mxu0
        %v7506 = vadd.f32 0.0, %v7505
        %v7507 = vpop.f32.mrf.mxu0
        %v7508 = vadd.f32 0.0, %v7507
        %7509 = vmatmul.bf16.gmra.mxu0 %v7434
        %v7510 = vpop.f32.mrf.mxu0
        %v7511 = vadd.f32 0.0, %v7510
        %v7512 = vpop.f32.mrf.mxu0
        %v7513 = vadd.f32 0.0, %v7512
        %7514 = vmatmul.bf16.gmra.mxu0 %v7437
        %v7515 = vpop.f32.mrf.mxu0
        %v7516 = vadd.f32 0.0, %v7515
        %v7517 = vpop.f32.mrf.mxu0
        %v7518 = vadd.f32 0.0, %v7517
        %7519 = vmatmul.bf16.gmra.mxu0 %v7440
        %v7520 = vpop.f32.mrf.mxu0
        %v7521 = vadd.f32 0.0, %v7520
        %v7522 = vpop.f32.mrf.mxu0
        %v7523 = vadd.f32 0.0, %v7522
        %7524 = vmatmul.bf16.gmra.mxu0 %v7443
        %v7525 = vpop.f32.mrf.mxu0
        %v7526 = vadd.f32 0.0, %v7525
        %v7527 = vpop.f32.mrf.mxu0
        %v7528 = vadd.f32 0.0, %v7527
        %7529 = vmatmul.bf16.gmra.mxu0 %v7446
        %v7530 = vpop.f32.mrf.mxu0
        %v7531 = vadd.f32 0.0, %v7530
        %v7532 = vpop.f32.mrf.mxu0
        %v7533 = vadd.f32 0.0, %v7532
        %7534 = vmatmul.bf16.gmra.mxu0 %v7449
        %v7535 = vpop.f32.mrf.mxu0
        %v7536 = vadd.f32 0.0, %v7535
        %v7537 = vpop.f32.mrf.mxu0
        %v7538 = vadd.f32 0.0, %v7537
        %7539 = vdwg.mxu0
        %v7540 = vadd.f32 %v6874, %v7461
        %v7541 = vadd.f32 %v6875, %v7463
        %v7542 = vadd.f32 %v6876, %v7466
        %v7543 = vadd.f32 %v6877, %v7468
        %v7544 = vadd.f32 %v6878, %v7471
        %v7545 = vadd.f32 %v6879, %v7473
        %v7546 = vadd.f32 %v6880, %v7476
        %v7547 = vadd.f32 %v6881, %v7478
        %v7548 = vadd.f32 %v6882, %v7481
        %v7549 = vadd.f32 %v6883, %v7483
        %v7550 = vadd.f32 %v6884, %v7486
        %v7551 = vadd.f32 %v6885, %v7488
        %v7552 = vadd.f32 %v6886, %v7491
        %v7553 = vadd.f32 %v6887, %v7493
        %v7554 = vadd.f32 %v6888, %v7496
        %v7555 = vadd.f32 %v6889, %v7498
        %v7556 = vadd.f32 %v6890, %v7501
        %v7557 = vadd.f32 %v6891, %v7503
        %v7558 = vadd.f32 %v6892, %v7506
        %v7559 = vadd.f32 %v6893, %v7508
        %v7560 = vadd.f32 %v6894, %v7511
        %v7561 = vadd.f32 %v6895, %v7513
        %v7562 = vadd.f32 %v6896, %v7516
        %v7563 = vadd.f32 %v6897, %v7518
        %v7564 = vadd.f32 %v6898, %v7521
        %v7565 = vadd.f32 %v6899, %v7523
        %v7566 = vadd.f32 %v6900, %v7526
        %v7567 = vadd.f32 %v6901, %v7528
        %v7568 = vadd.f32 %v6902, %v7531
        %v7569 = vadd.f32 %v6903, %v7533
        %v7570 = vadd.f32 %v6904, %v7536
        %v7571 = vadd.f32 %v6905, %v7538
        %v7572 = vld [vmem:[%s5229] sm:$0xe]
        %v7573 = vld [vmem:[%s5229 + $0xc] sm:$0xe]
        %v7574 = vld [vmem:[%s5229 + $0x18] sm:$0xe]
        %v7575 = vld [vmem:[%s5229 + $0x24] sm:$0xe]
        %v7576 = vld [vmem:[%s5229 + $0x30] sm:$0xe]
        %v7577 = vld [vmem:[%s5229 + $0x3c] sm:$0xe]
        %v7578 = vld [vmem:[%s5229 + $0x48] sm:$0xe]
        %v7579 = vld [vmem:[%s5229 + $0x54] sm:$0xe]
        %v7580 = vld [vmem:[%s5229 + $0x60] sm:$0xe]
        %v7581 = vld [vmem:[%s5229 + $0x6c] sm:$0xe]
        %v7582 = vld [vmem:[%s5229 + $0x78] sm:$0xe]
        %v7583 = vld [vmem:[%s5229 + $0x84] sm:$0xe]
        %v7584 = vld [vmem:[%s5229 + $0x90] sm:$0xe]
        %v7585 = vld [vmem:[%s5229 + $0x9c] sm:$0xe]
        %v7586 = vld [vmem:[%s5229 + $0xa8] sm:$0xe]
        %v7587 = vld [vmem:[%s5229 + $0xb4] sm:$0xe]
        %v7636 = vrot.slane %v7572, 5
        %v7637 = vrot.slane %v7636, 4
        %v7638 = vrot.slane %v6907, 5
        %v7639 = vsel %vm1705, %v7637, %v7638
        %v7640 = vrot.slane %v7638, 4
        %v7641 = vrot.slane %v6908, 5
        %v7642 = vsel %vm1705, %v7640, %v7641
        %v7643 = vrot.slane %v7573, 5
        %v7644 = vrot.slane %v7643, 4
        %v7645 = vrot.slane %v6910, 5
        %v7646 = vsel %vm1705, %v7644, %v7645
        %v7647 = vrot.slane %v7645, 4
        %v7648 = vrot.slane %v6911, 5
        %v7649 = vsel %vm1705, %v7647, %v7648
        %v7650 = vrot.slane %v7574, 5
        %v7651 = vrot.slane %v7650, 4
        %v7652 = vrot.slane %v6913, 5
        %v7653 = vsel %vm1705, %v7651, %v7652
        %v7654 = vrot.slane %v7652, 4
        %v7655 = vrot.slane %v6914, 5
        %v7656 = vsel %vm1705, %v7654, %v7655
        %v7657 = vrot.slane %v7575, 5
        %v7658 = vrot.slane %v7657, 4
        %v7659 = vrot.slane %v6916, 5
        %v7660 = vsel %vm1705, %v7658, %v7659
        %v7661 = vrot.slane %v7659, 4
        %v7662 = vrot.slane %v6917, 5
        %v7663 = vsel %vm1705, %v7661, %v7662
        %v7664 = vrot.slane %v7576, 5
        %v7665 = vrot.slane %v7664, 4
        %v7666 = vrot.slane %v6919, 5
        %v7667 = vsel %vm1705, %v7665, %v7666
        %v7668 = vrot.slane %v7666, 4
        %v7669 = vrot.slane %v6920, 5
        %v7670 = vsel %vm1705, %v7668, %v7669
        %v7671 = vrot.slane %v7577, 5
        %v7672 = vrot.slane %v7671, 4
        %v7673 = vrot.slane %v6922, 5
        %v7674 = vsel %vm1705, %v7672, %v7673
        %v7675 = vrot.slane %v7673, 4
        %v7676 = vrot.slane %v6923, 5
        %v7677 = vsel %vm1705, %v7675, %v7676
        %v7678 = vrot.slane %v7578, 5
        %v7679 = vrot.slane %v7678, 4
        %v7680 = vrot.slane %v6925, 5
        %v7681 = vsel %vm1705, %v7679, %v7680
        %v7682 = vrot.slane %v7680, 4
        %v7683 = vrot.slane %v6926, 5
        %v7684 = vsel %vm1705, %v7682, %v7683
        %v7685 = vrot.slane %v7579, 5
        %v7686 = vrot.slane %v7685, 4
        %v7687 = vrot.slane %v6928, 5
        %v7688 = vsel %vm1705, %v7686, %v7687
        %v7689 = vrot.slane %v7687, 4
        %v7690 = vrot.slane %v6929, 5
        %v7691 = vsel %vm1705, %v7689, %v7690
        %v7692 = vrot.slane %v7580, 5
        %v7693 = vrot.slane %v7692, 4
        %v7694 = vrot.slane %v6931, 5
        %v7695 = vsel %vm1705, %v7693, %v7694
        %v7696 = vrot.slane %v7694, 4
        %v7697 = vrot.slane %v6932, 5
        %v7698 = vsel %vm1705, %v7696, %v7697
        %v7699 = vrot.slane %v7581, 5
        %v7700 = vrot.slane %v7699, 4
        %v7701 = vrot.slane %v6934, 5
        %v7702 = vsel %vm1705, %v7700, %v7701
        %v7703 = vrot.slane %v7701, 4
        %v7704 = vrot.slane %v6935, 5
        %v7705 = vsel %vm1705, %v7703, %v7704
        %v7706 = vrot.slane %v7582, 5
        %v7707 = vrot.slane %v7706, 4
        %v7708 = vrot.slane %v6937, 5
        %v7709 = vsel %vm1705, %v7707, %v7708
        %v7710 = vrot.slane %v7708, 4
        %v7711 = vrot.slane %v6938, 5
        %v7712 = vsel %vm1705, %v7710, %v7711
        %v7713 = vrot.slane %v7583, 5
        %v7714 = vrot.slane %v7713, 4
        %v7715 = vrot.slane %v6940, 5
        %v7716 = vsel %vm1705, %v7714, %v7715
        %v7717 = vrot.slane %v7715, 4
        %v7718 = vrot.slane %v6941, 5
        %v7719 = vsel %vm1705, %v7717, %v7718
        %v7720 = vrot.slane %v7584, 5
        %v7721 = vrot.slane %v7720, 4
        %v7722 = vrot.slane %v6943, 5
        %v7723 = vsel %vm1705, %v7721, %v7722
        %v7724 = vrot.slane %v7722, 4
        %v7725 = vrot.slane %v6944, 5
        %v7726 = vsel %vm1705, %v7724, %v7725
        %v7727 = vrot.slane %v7585, 5
        %v7728 = vrot.slane %v7727, 4
        %v7729 = vrot.slane %v6946, 5
        %v7730 = vsel %vm1705, %v7728, %v7729
        %v7731 = vrot.slane %v7729, 4
        %v7732 = vrot.slane %v6947, 5
        %v7733 = vsel %vm1705, %v7731, %v7732
        %v7734 = vrot.slane %v7586, 5
        %v7735 = vrot.slane %v7734, 4
        %v7736 = vrot.slane %v6949, 5
        %v7737 = vsel %vm1705, %v7735, %v7736
        %v7738 = vrot.slane %v7736, 4
        %v7739 = vrot.slane %v6950, 5
        %v7740 = vsel %vm1705, %v7738, %v7739
        %v7741 = vrot.slane %v7587, 5
        %v7742 = vrot.slane %v7741, 4
        %v7743 = vrot.slane %v6952, 5
        %v7744 = vsel %vm1705, %v7742, %v7743
        %v7745 = vrot.slane %v7743, 4
        %v7746 = vrot.slane %v6953, 5
        %v7747 = vsel %vm1705, %v7745, %v7746
        %s7748 = scalar_lea.vmem %s2, 80
        %v7749 = vld [vmem:[%s7748] sm:$0xf]
        %v7750 = vld [vmem:[%s7748 + $0x4] sm:$0xf]
        %v7751 = vld [vmem:[%s7748 + $0x8] sm:$0xf]
        %v7752 = vld [vmem:[%s7748 + $0xc] sm:$0xf]
        %v7753 = vunpack.c.l.b16 %v7639
        %v7754 = vunpack.c.l.b16 %v7642
        %v7755 = vunpack.c.l.b16 %v7646
        %v7756 = vunpack.c.l.b16 %v7649
        %v7757 = vunpack.c.l.b16 %v7653
        %v7758 = vunpack.c.l.b16 %v7656
        %v7759 = vunpack.c.l.b16 %v7660
        %v7760 = vunpack.c.l.b16 %v7663
        %v7761 = vunpack.c.l.b16 %v7667
        %v7762 = vunpack.c.l.b16 %v7670
        %v7763 = vunpack.c.l.b16 %v7674
        %v7764 = vunpack.c.l.b16 %v7677
        %v7765 = vunpack.c.l.b16 %v7681
        %v7766 = vunpack.c.l.b16 %v7684
        %v7767 = vunpack.c.l.b16 %v7688
        %v7768 = vunpack.c.l.b16 %v7691
        %v7769 = vunpack.c.l.b16 %v7695
        %v7770 = vunpack.c.l.b16 %v7698
        %v7771 = vunpack.c.l.b16 %v7702
        %v7772 = vunpack.c.l.b16 %v7705
        %v7773 = vunpack.c.l.b16 %v7709
        %v7774 = vunpack.c.l.b16 %v7712
        %v7775 = vunpack.c.l.b16 %v7716
        %v7776 = vunpack.c.l.b16 %v7719
        %v7777 = vunpack.c.l.b16 %v7723
        %v7778 = vunpack.c.l.b16 %v7726
        %v7779 = vunpack.c.l.b16 %v7730
        %v7780 = vunpack.c.l.b16 %v7733
        %v7781 = vunpack.c.l.b16 %v7737
        %v7782 = vunpack.c.l.b16 %v7740
        %v7783 = vunpack.c.l.b16 %v7744
        %v7784 = vunpack.c.l.b16 %v7747
        %v7785 = vpack.c.b16 %v7754, %v7753
        %v7786 = vpack.c.b16 %v7756, %v7755
        %v7787 = vpack.c.b16 %v7758, %v7757
        %v7788 = vpack.c.b16 %v7760, %v7759
        %v7789 = vpack.c.b16 %v7762, %v7761
        %v7790 = vpack.c.b16 %v7764, %v7763
        %v7791 = vpack.c.b16 %v7766, %v7765
        %v7792 = vpack.c.b16 %v7768, %v7767
        %v7793 = vpack.c.b16 %v7770, %v7769
        %v7794 = vpack.c.b16 %v7772, %v7771
        %v7795 = vpack.c.b16 %v7774, %v7773
        %v7796 = vpack.c.b16 %v7776, %v7775
        %v7797 = vpack.c.b16 %v7778, %v7777
        %v7798 = vpack.c.b16 %v7780, %v7779
        %v7799 = vpack.c.b16 %v7782, %v7781
        %v7800 = vpack.c.b16 %v7784, %v7783
        %v7805 = vunpack.c.l.b16 %v7749
        %v7806 = vunpack.c.l.b16 %v7750
        %v7807 = vunpack.c.l.b16 %v7751
        %v7808 = vunpack.c.l.b16 %v7752
        %v7809 = vpack.c.b16 %v7806, %v7805
        %v7810 = vpack.c.b16 %v7808, %v7807
        %v7814 = vsel %vm5847, %v7785, 0
        %v7817 = vsel %vm5847, %v7786, 0
        %v7820 = vsel %vm5847, %v7787, 0
        %v7823 = vsel %vm5847, %v7788, 0
        %v7826 = vsel %vm5847, %v7789, 0
        %v7829 = vsel %vm5847, %v7790, 0
        %v7832 = vsel %vm5847, %v7791, 0
        %v7835 = vsel %vm5847, %v7792, 0
        %v7838 = vsel %vm5847, %v7793, 0
        %v7841 = vsel %vm5847, %v7794, 0
        %v7844 = vsel %vm5847, %v7795, 0
        %v7847 = vsel %vm5847, %v7796, 0
        %v7850 = vsel %vm5847, %v7797, 0
        %v7853 = vsel %vm5847, %v7798, 0
        %v7856 = vsel %vm5847, %v7799, 0
        %v7859 = vsel %vm5847, %v7800, 0
        %7861 = vmatpush.bf16.msra.mxu0 0
        %7862 = vmatpush.bf16.msra.mxu0 0
        %7863 = vmatpush.bf16.msra.mxu0 0
        %7864 = vmatpush.bf16.msra.mxu0 0
        %7865 = vmatpush.bf16.msra.mxu0 0
        %7866 = vmatpush.bf16.msra.mxu0 0
        %7867 = vmatpush.bf16.msra.mxu0 %v7810
        %7868 = vmatpush.bf16.msra.mxu0 %v7809
        %7869 = vmatmul.bf16.gmra.mxu0 %v7814
        %v7870 = vpop.f32.mrf.mxu0
        %v7871 = vadd.f32 0.0, %v7870
        %v7872 = vpop.f32.mrf.mxu0
        %v7873 = vadd.f32 0.0, %v7872
        %7874 = vmatmul.bf16.gmra.mxu0 %v7817
        %v7875 = vpop.f32.mrf.mxu0
        %v7876 = vadd.f32 0.0, %v7875
        %v7877 = vpop.f32.mrf.mxu0
        %v7878 = vadd.f32 0.0, %v7877
        %7879 = vmatmul.bf16.gmra.mxu0 %v7820
        %v7880 = vpop.f32.mrf.mxu0
        %v7881 = vadd.f32 0.0, %v7880
        %v7882 = vpop.f32.mrf.mxu0
        %v7883 = vadd.f32 0.0, %v7882
        %7884 = vmatmul.bf16.gmra.mxu0 %v7823
        %v7885 = vpop.f32.mrf.mxu0
        %v7886 = vadd.f32 0.0, %v7885
        %v7887 = vpop.f32.mrf.mxu0
        %v7888 = vadd.f32 0.0, %v7887
        %7889 = vmatmul.bf16.gmra.mxu0 %v7826
        %v7890 = vpop.f32.mrf.mxu0
        %v7891 = vadd.f32 0.0, %v7890
        %v7892 = vpop.f32.mrf.mxu0
        %v7893 = vadd.f32 0.0, %v7892
        %7894 = vmatmul.bf16.gmra.mxu0 %v7829
        %v7895 = vpop.f32.mrf.mxu0
        %v7896 = vadd.f32 0.0, %v7895
        %v7897 = vpop.f32.mrf.mxu0
        %v7898 = vadd.f32 0.0, %v7897
        %7899 = vmatmul.bf16.gmra.mxu0 %v7832
        %v7900 = vpop.f32.mrf.mxu0
        %v7901 = vadd.f32 0.0, %v7900
        %v7902 = vpop.f32.mrf.mxu0
        %v7903 = vadd.f32 0.0, %v7902
        %7904 = vmatmul.bf16.gmra.mxu0 %v7835
        %v7905 = vpop.f32.mrf.mxu0
        %v7906 = vadd.f32 0.0, %v7905
        %v7907 = vpop.f32.mrf.mxu0
        %v7908 = vadd.f32 0.0, %v7907
        %7909 = vmatmul.bf16.gmra.mxu0 %v7838
        %v7910 = vpop.f32.mrf.mxu0
        %v7911 = vadd.f32 0.0, %v7910
        %v7912 = vpop.f32.mrf.mxu0
        %v7913 = vadd.f32 0.0, %v7912
        %7914 = vmatmul.bf16.gmra.mxu0 %v7841
        %v7915 = vpop.f32.mrf.mxu0
        %v7916 = vadd.f32 0.0, %v7915
        %v7917 = vpop.f32.mrf.mxu0
        %v7918 = vadd.f32 0.0, %v7917
        %7919 = vmatmul.bf16.gmra.mxu0 %v7844
        %v7920 = vpop.f32.mrf.mxu0
        %v7921 = vadd.f32 0.0, %v7920
        %v7922 = vpop.f32.mrf.mxu0
        %v7923 = vadd.f32 0.0, %v7922
        %7924 = vmatmul.bf16.gmra.mxu0 %v7847
        %v7925 = vpop.f32.mrf.mxu0
        %v7926 = vadd.f32 0.0, %v7925
        %v7927 = vpop.f32.mrf.mxu0
        %v7928 = vadd.f32 0.0, %v7927
        %7929 = vmatmul.bf16.gmra.mxu0 %v7850
        %v7930 = vpop.f32.mrf.mxu0
        %v7931 = vadd.f32 0.0, %v7930
        %v7932 = vpop.f32.mrf.mxu0
        %v7933 = vadd.f32 0.0, %v7932
        %7934 = vmatmul.bf16.gmra.mxu0 %v7853
        %v7935 = vpop.f32.mrf.mxu0
        %v7936 = vadd.f32 0.0, %v7935
        %v7937 = vpop.f32.mrf.mxu0
        %v7938 = vadd.f32 0.0, %v7937
        %7939 = vmatmul.bf16.gmra.mxu0 %v7856
        %v7940 = vpop.f32.mrf.mxu0
        %v7941 = vadd.f32 0.0, %v7940
        %v7942 = vpop.f32.mrf.mxu0
        %v7943 = vadd.f32 0.0, %v7942
        %7944 = vmatmul.bf16.gmra.mxu0 %v7859
        %v7945 = vpop.f32.mrf.mxu0
        %v7946 = vadd.f32 0.0, %v7945
        %v7947 = vpop.f32.mrf.mxu0
        %v7948 = vadd.f32 0.0, %v7947
        %7949 = vdwg.mxu0
        %v7950 = vadd.f32 %v7540, %v7871
        %v7951 = vadd.f32 %v7541, %v7873
        %v7952 = vadd.f32 %v7542, %v7876
        %v7953 = vadd.f32 %v7543, %v7878
        %v7954 = vadd.f32 %v7544, %v7881
        %v7955 = vadd.f32 %v7545, %v7883
        %v7956 = vadd.f32 %v7546, %v7886
        %v7957 = vadd.f32 %v7547, %v7888
        %v7958 = vadd.f32 %v7548, %v7891
        %v7959 = vadd.f32 %v7549, %v7893
        %v7960 = vadd.f32 %v7550, %v7896
        %v7961 = vadd.f32 %v7551, %v7898
        %v7962 = vadd.f32 %v7552, %v7901
        %v7963 = vadd.f32 %v7553, %v7903
        %v7964 = vadd.f32 %v7554, %v7906
        %v7965 = vadd.f32 %v7555, %v7908
        %v7966 = vadd.f32 %v7556, %v7911
        %v7967 = vadd.f32 %v7557, %v7913
        %v7968 = vadd.f32 %v7558, %v7916
        %v7969 = vadd.f32 %v7559, %v7918
        %v7970 = vadd.f32 %v7560, %v7921
        %v7971 = vadd.f32 %v7561, %v7923
        %v7972 = vadd.f32 %v7562, %v7926
        %v7973 = vadd.f32 %v7563, %v7928
        %v7974 = vadd.f32 %v7564, %v7931
        %v7975 = vadd.f32 %v7565, %v7933
        %v7976 = vadd.f32 %v7566, %v7936
        %v7977 = vadd.f32 %v7567, %v7938
        %v7978 = vadd.f32 %v7568, %v7941
        %v7979 = vadd.f32 %v7569, %v7943
        %v7980 = vadd.f32 %v7570, %v7946
        %v7981 = vadd.f32 %v7571, %v7948
        %s7982 = scalar_lea.vmem [#allocation3], 24
        %v7983 = vld [vmem:[%s7982] sm:$0xf]
        %v7984 = vld [vmem:[%s7982 + $0x4] sm:$0xf]
        %v7985 = vld [vmem:[%s7982 + $0xc] sm:$0xf]
        %v7986 = vld [vmem:[%s7982 + $0x10] sm:$0xf]
        %v7987 = vld [vmem:[%s7982 + $0x18] sm:$0xf]
        %v7988 = vld [vmem:[%s7982 + $0x1c] sm:$0xf]
        %v7989 = vld [vmem:[%s7982 + $0x24] sm:$0xf]
        %v7990 = vld [vmem:[%s7982 + $0x28] sm:$0xf]
        %v7991 = vld [vmem:[%s7982 + $0x30] sm:$0xf]
        %v7992 = vld [vmem:[%s7982 + $0x34] sm:$0xf]
        %v7993 = vld [vmem:[%s7982 + $0x3c] sm:$0xf]
        %v7994 = vld [vmem:[%s7982 + $0x40] sm:$0xf]
        %v7995 = vld [vmem:[%s7982 + $0x48] sm:$0xf]
        %v7996 = vld [vmem:[%s7982 + $0x4c] sm:$0xf]
        %v7997 = vld [vmem:[%s7982 + $0x54] sm:$0xf]
        %v7998 = vld [vmem:[%s7982 + $0x58] sm:$0xf]
        %v7999 = vld [vmem:[%s7982 + $0x60] sm:$0xf]
        %v8000 = vld [vmem:[%s7982 + $0x64] sm:$0xf]
        %v8001 = vld [vmem:[%s7982 + $0x6c] sm:$0xf]
        %v8002 = vld [vmem:[%s7982 + $0x70] sm:$0xf]
        %v8003 = vld [vmem:[%s7982 + $0x78] sm:$0xf]
        %v8004 = vld [vmem:[%s7982 + $0x7c] sm:$0xf]
        %v8005 = vld [vmem:[%s7982 + $0x84] sm:$0xf]
        %v8006 = vld [vmem:[%s7982 + $0x88] sm:$0xf]
        %v8007 = vld [vmem:[%s7982 + $0x90] sm:$0xf]
        %v8008 = vld [vmem:[%s7982 + $0x94] sm:$0xf]
        %v8009 = vld [vmem:[%s7982 + $0x9c] sm:$0xf]
        %v8010 = vld [vmem:[%s7982 + $0xa0] sm:$0xf]
        %v8011 = vld [vmem:[%s7982 + $0xa8] sm:$0xf]
        %v8012 = vld [vmem:[%s7982 + $0xac] sm:$0xf]
        %v8013 = vld [vmem:[%s7982 + $0xb4] sm:$0xf]
        %v8014 = vld [vmem:[%s7982 + $0xb8] sm:$0xf]
        %s8015 = scalar_lea.vmem %s2, 96
        %v8016 = vld [vmem:[%s8015] sm:$0xf]
        %v8017 = vld [vmem:[%s8015 + $0x4] sm:$0xf]
        %v8018 = vld [vmem:[%s8015 + $0x8] sm:$0xf]
        %v8019 = vld [vmem:[%s8015 + $0xc] sm:$0xf]
        %v8052 = vunpack.c.l.b16 %v7983
        %v8053 = vunpack.c.l.b16 %v7984
        %v8054 = vunpack.c.l.b16 %v7985
        %v8055 = vunpack.c.l.b16 %v7986
        %v8056 = vunpack.c.l.b16 %v7987
        %v8057 = vunpack.c.l.b16 %v7988
        %v8058 = vunpack.c.l.b16 %v7989
        %v8059 = vunpack.c.l.b16 %v7990
        %v8060 = vunpack.c.l.b16 %v7991
        %v8061 = vunpack.c.l.b16 %v7992
        %v8062 = vunpack.c.l.b16 %v7993
        %v8063 = vunpack.c.l.b16 %v7994
        %v8064 = vunpack.c.l.b16 %v7995
        %v8065 = vunpack.c.l.b16 %v7996
        %v8066 = vunpack.c.l.b16 %v7997
        %v8067 = vunpack.c.l.b16 %v7998
        %v8068 = vunpack.c.l.b16 %v7999
        %v8069 = vunpack.c.l.b16 %v8000
        %v8070 = vunpack.c.l.b16 %v8001
        %v8071 = vunpack.c.l.b16 %v8002
        %v8072 = vunpack.c.l.b16 %v8003
        %v8073 = vunpack.c.l.b16 %v8004
        %v8074 = vunpack.c.l.b16 %v8005
        %v8075 = vunpack.c.l.b16 %v8006
        %v8076 = vunpack.c.l.b16 %v8007
        %v8077 = vunpack.c.l.b16 %v8008
        %v8078 = vunpack.c.l.b16 %v8009
        %v8079 = vunpack.c.l.b16 %v8010
        %v8080 = vunpack.c.l.b16 %v8011
        %v8081 = vunpack.c.l.b16 %v8012
        %v8082 = vunpack.c.l.b16 %v8013
        %v8083 = vunpack.c.l.b16 %v8014
        %v8084 = vpack.c.b16 %v8053, %v8052
        %v8085 = vpack.c.b16 %v8055, %v8054
        %v8086 = vpack.c.b16 %v8057, %v8056
        %v8087 = vpack.c.b16 %v8059, %v8058
        %v8088 = vpack.c.b16 %v8061, %v8060
        %v8089 = vpack.c.b16 %v8063, %v8062
        %v8090 = vpack.c.b16 %v8065, %v8064
        %v8091 = vpack.c.b16 %v8067, %v8066
        %v8092 = vpack.c.b16 %v8069, %v8068
        %v8093 = vpack.c.b16 %v8071, %v8070
        %v8094 = vpack.c.b16 %v8073, %v8072
        %v8095 = vpack.c.b16 %v8075, %v8074
        %v8096 = vpack.c.b16 %v8077, %v8076
        %v8097 = vpack.c.b16 %v8079, %v8078
        %v8098 = vpack.c.b16 %v8081, %v8080
        %v8099 = vpack.c.b16 %v8083, %v8082
        %v8104 = vunpack.c.l.b16 %v8016
        %v8105 = vunpack.c.l.b16 %v8017
        %v8106 = vunpack.c.l.b16 %v8018
        %v8107 = vunpack.c.l.b16 %v8019
        %v8108 = vpack.c.b16 %v8105, %v8104
        %v8109 = vpack.c.b16 %v8107, %v8106
        %v8113 = vsel %vm5847, %v8084, 0
        %v8116 = vsel %vm5847, %v8085, 0
        %v8119 = vsel %vm5847, %v8086, 0
        %v8122 = vsel %vm5847, %v8087, 0
        %v8125 = vsel %vm5847, %v8088, 0
        %v8128 = vsel %vm5847, %v8089, 0
        %v8131 = vsel %vm5847, %v8090, 0
        %v8134 = vsel %vm5847, %v8091, 0
        %v8137 = vsel %vm5847, %v8092, 0
        %v8140 = vsel %vm5847, %v8093, 0
        %v8143 = vsel %vm5847, %v8094, 0
        %v8146 = vsel %vm5847, %v8095, 0
        %v8149 = vsel %vm5847, %v8096, 0
        %v8152 = vsel %vm5847, %v8097, 0
        %v8155 = vsel %vm5847, %v8098, 0
        %v8158 = vsel %vm5847, %v8099, 0
        %8160 = vmatpush.bf16.msra.mxu0 0
        %8161 = vmatpush.bf16.msra.mxu0 0
        %8162 = vmatpush.bf16.msra.mxu0 0
        %8163 = vmatpush.bf16.msra.mxu0 0
        %8164 = vmatpush.bf16.msra.mxu0 0
        %8165 = vmatpush.bf16.msra.mxu0 0
        %8166 = vmatpush.bf16.msra.mxu0 %v8109
        %8167 = vmatpush.bf16.msra.mxu0 %v8108
        %8168 = vmatmul.bf16.gmra.mxu0 %v8113
        %v8169 = vpop.f32.mrf.mxu0
        %v8170 = vadd.f32 0.0, %v8169
        %v8171 = vpop.f32.mrf.mxu0
        %v8172 = vadd.f32 0.0, %v8171
        %8173 = vmatmul.bf16.gmra.mxu0 %v8116
        %v8174 = vpop.f32.mrf.mxu0
        %v8175 = vadd.f32 0.0, %v8174
        %v8176 = vpop.f32.mrf.mxu0
        %v8177 = vadd.f32 0.0, %v8176
        %8178 = vmatmul.bf16.gmra.mxu0 %v8119
        %v8179 = vpop.f32.mrf.mxu0
        %v8180 = vadd.f32 0.0, %v8179
        %v8181 = vpop.f32.mrf.mxu0
        %v8182 = vadd.f32 0.0, %v8181
        %8183 = vmatmul.bf16.gmra.mxu0 %v8122
        %v8184 = vpop.f32.mrf.mxu0
        %v8185 = vadd.f32 0.0, %v8184
        %v8186 = vpop.f32.mrf.mxu0
        %v8187 = vadd.f32 0.0, %v8186
        %8188 = vmatmul.bf16.gmra.mxu0 %v8125
        %v8189 = vpop.f32.mrf.mxu0
        %v8190 = vadd.f32 0.0, %v8189
        %v8191 = vpop.f32.mrf.mxu0
        %v8192 = vadd.f32 0.0, %v8191
        %8193 = vmatmul.bf16.gmra.mxu0 %v8128
        %v8194 = vpop.f32.mrf.mxu0
        %v8195 = vadd.f32 0.0, %v8194
        %v8196 = vpop.f32.mrf.mxu0
        %v8197 = vadd.f32 0.0, %v8196
        %8198 = vmatmul.bf16.gmra.mxu0 %v8131
        %v8199 = vpop.f32.mrf.mxu0
        %v8200 = vadd.f32 0.0, %v8199
        %v8201 = vpop.f32.mrf.mxu0
        %v8202 = vadd.f32 0.0, %v8201
        %8203 = vmatmul.bf16.gmra.mxu0 %v8134
        %v8204 = vpop.f32.mrf.mxu0
        %v8205 = vadd.f32 0.0, %v8204
        %v8206 = vpop.f32.mrf.mxu0
        %v8207 = vadd.f32 0.0, %v8206
        %8208 = vmatmul.bf16.gmra.mxu0 %v8137
        %v8209 = vpop.f32.mrf.mxu0
        %v8210 = vadd.f32 0.0, %v8209
        %v8211 = vpop.f32.mrf.mxu0
        %v8212 = vadd.f32 0.0, %v8211
        %8213 = vmatmul.bf16.gmra.mxu0 %v8140
        %v8214 = vpop.f32.mrf.mxu0
        %v8215 = vadd.f32 0.0, %v8214
        %v8216 = vpop.f32.mrf.mxu0
        %v8217 = vadd.f32 0.0, %v8216
        %8218 = vmatmul.bf16.gmra.mxu0 %v8143
        %v8219 = vpop.f32.mrf.mxu0
        %v8220 = vadd.f32 0.0, %v8219
        %v8221 = vpop.f32.mrf.mxu0
        %v8222 = vadd.f32 0.0, %v8221
        %8223 = vmatmul.bf16.gmra.mxu0 %v8146
        %v8224 = vpop.f32.mrf.mxu0
        %v8225 = vadd.f32 0.0, %v8224
        %v8226 = vpop.f32.mrf.mxu0
        %v8227 = vadd.f32 0.0, %v8226
        %8228 = vmatmul.bf16.gmra.mxu0 %v8149
        %v8229 = vpop.f32.mrf.mxu0
        %v8230 = vadd.f32 0.0, %v8229
        %v8231 = vpop.f32.mrf.mxu0
        %v8232 = vadd.f32 0.0, %v8231
        %8233 = vmatmul.bf16.gmra.mxu0 %v8152
        %v8234 = vpop.f32.mrf.mxu0
        %v8235 = vadd.f32 0.0, %v8234
        %v8236 = vpop.f32.mrf.mxu0
        %v8237 = vadd.f32 0.0, %v8236
        %8238 = vmatmul.bf16.gmra.mxu0 %v8155
        %v8239 = vpop.f32.mrf.mxu0
        %v8240 = vadd.f32 0.0, %v8239
        %v8241 = vpop.f32.mrf.mxu0
        %v8242 = vadd.f32 0.0, %v8241
        %8243 = vmatmul.bf16.gmra.mxu0 %v8158
        %v8244 = vpop.f32.mrf.mxu0
        %v8245 = vadd.f32 0.0, %v8244
        %v8246 = vpop.f32.mrf.mxu0
        %v8247 = vadd.f32 0.0, %v8246
        %8248 = vdwg.mxu0
        %v8249 = vadd.f32 %v7950, %v8170
        %v8250 = vadd.f32 %v7951, %v8172
        %v8251 = vadd.f32 %v7952, %v8175
        %v8252 = vadd.f32 %v7953, %v8177
        %v8253 = vadd.f32 %v7954, %v8180
        %v8254 = vadd.f32 %v7955, %v8182
        %v8255 = vadd.f32 %v7956, %v8185
        %v8256 = vadd.f32 %v7957, %v8187
        %v8257 = vadd.f32 %v7958, %v8190
        %v8258 = vadd.f32 %v7959, %v8192
        %v8259 = vadd.f32 %v7960, %v8195
        %v8260 = vadd.f32 %v7961, %v8197
        %v8261 = vadd.f32 %v7962, %v8200
        %v8262 = vadd.f32 %v7963, %v8202
        %v8263 = vadd.f32 %v7964, %v8205
        %v8264 = vadd.f32 %v7965, %v8207
        %v8265 = vadd.f32 %v7966, %v8210
        %v8266 = vadd.f32 %v7967, %v8212
        %v8267 = vadd.f32 %v7968, %v8215
        %v8268 = vadd.f32 %v7969, %v8217
        %v8269 = vadd.f32 %v7970, %v8220
        %v8270 = vadd.f32 %v7971, %v8222
        %v8271 = vadd.f32 %v7972, %v8225
        %v8272 = vadd.f32 %v7973, %v8227
        %v8273 = vadd.f32 %v7974, %v8230
        %v8274 = vadd.f32 %v7975, %v8232
        %v8275 = vadd.f32 %v7976, %v8235
        %v8276 = vadd.f32 %v7977, %v8237
        %v8277 = vadd.f32 %v7978, %v8240
        %v8278 = vadd.f32 %v7979, %v8242
        %v8279 = vadd.f32 %v7980, %v8245
        %v8280 = vadd.f32 %v7981, %v8247
        %v8281 = vld [vmem:[%s7982] sm:$0xf]
        %v8282 = vld [vmem:[%s7982 + $0x4] sm:$0xf]
        %v8283 = vld [vmem:[%s7982 + $0x8] sm:$0x1]
        %v8284 = vld [vmem:[%s7982 + $0xc] sm:$0xf]
        %v8285 = vld [vmem:[%s7982 + $0x10] sm:$0xf]
        %v8286 = vld [vmem:[%s7982 + $0x14] sm:$0x1]
        %v8287 = vld [vmem:[%s7982 + $0x18] sm:$0xf]
        %v8288 = vld [vmem:[%s7982 + $0x1c] sm:$0xf]
        %v8289 = vld [vmem:[%s7982 + $0x20] sm:$0x1]
        %v8290 = vld [vmem:[%s7982 + $0x24] sm:$0xf]
        %v8291 = vld [vmem:[%s7982 + $0x28] sm:$0xf]
        %v8292 = vld [vmem:[%s7982 + $0x2c] sm:$0x1]
        %v8293 = vld [vmem:[%s7982 + $0x30] sm:$0xf]
        %v8294 = vld [vmem:[%s7982 + $0x34] sm:$0xf]
        %v8295 = vld [vmem:[%s7982 + $0x38] sm:$0x1]
        %v8296 = vld [vmem:[%s7982 + $0x3c] sm:$0xf]
        %v8297 = vld [vmem:[%s7982 + $0x40] sm:$0xf]
        %v8298 = vld [vmem:[%s7982 + $0x44] sm:$0x1]
        %v8299 = vld [vmem:[%s7982 + $0x48] sm:$0xf]
        %v8300 = vld [vmem:[%s7982 + $0x4c] sm:$0xf]
        %v8301 = vld [vmem:[%s7982 + $0x50] sm:$0x1]
        %v8302 = vld [vmem:[%s7982 + $0x54] sm:$0xf]
        %v8303 = vld [vmem:[%s7982 + $0x58] sm:$0xf]
        %v8304 = vld [vmem:[%s7982 + $0x5c] sm:$0x1]
        %v8305 = vld [vmem:[%s7982 + $0x60] sm:$0xf]
        %v8306 = vld [vmem:[%s7982 + $0x64] sm:$0xf]
        %v8307 = vld [vmem:[%s7982 + $0x68] sm:$0x1]
        %v8308 = vld [vmem:[%s7982 + $0x6c] sm:$0xf]
        %v8309 = vld [vmem:[%s7982 + $0x70] sm:$0xf]
        %v8310 = vld [vmem:[%s7982 + $0x74] sm:$0x1]
        %v8311 = vld [vmem:[%s7982 + $0x78] sm:$0xf]
        %v8312 = vld [vmem:[%s7982 + $0x7c] sm:$0xf]
        %v8313 = vld [vmem:[%s7982 + $0x80] sm:$0x1]
        %v8314 = vld [vmem:[%s7982 + $0x84] sm:$0xf]
        %v8315 = vld [vmem:[%s7982 + $0x88] sm:$0xf]
        %v8316 = vld [vmem:[%s7982 + $0x8c] sm:$0x1]
        %v8317 = vld [vmem:[%s7982 + $0x90] sm:$0xf]
        %v8318 = vld [vmem:[%s7982 + $0x94] sm:$0xf]
        %v8319 = vld [vmem:[%s7982 + $0x98] sm:$0x1]
        %v8320 = vld [vmem:[%s7982 + $0x9c] sm:$0xf]
        %v8321 = vld [vmem:[%s7982 + $0xa0] sm:$0xf]
        %v8322 = vld [vmem:[%s7982 + $0xa4] sm:$0x1]
        %v8323 = vld [vmem:[%s7982 + $0xa8] sm:$0xf]
        %v8324 = vld [vmem:[%s7982 + $0xac] sm:$0xf]
        %v8325 = vld [vmem:[%s7982 + $0xb0] sm:$0x1]
        %v8326 = vld [vmem:[%s7982 + $0xb4] sm:$0xf]
        %v8327 = vld [vmem:[%s7982 + $0xb8] sm:$0xf]
        %v8328 = vld [vmem:[%s7982 + $0xbc] sm:$0x1]
        %v8330 = vshrl.u32 %v8281, 16
        %v8332 = vrot.slane %v8330, 4
        %v8333 = vshll.u32 %v8281, 16
        %v8335 = vrot.slane %v8333, 5
        %v8336 = vor.u32 %v8332, %v8335
        %v8337 = vrot.slane %v8336, 4
        %v8339 = vshll.u32 %v8282, 16
        %v8341 = vrot.slane %v8339, 5
        %v8342 = vsel %vm858, %v8337, %v8341
        %v8343 = vshrl.u32 %v8282, 16
        %v8345 = vrot.slane %v8343, 4
        %v8346 = vor.u32 %v8345, %v8341
        %v8347 = vrot.slane %v8346, 4
        %v8349 = vshll.u32 %v8283, 16
        %v8351 = vrot.slane %v8349, 5
        %v8352 = vsel %vm858, %v8347, %v8351
        %v8354 = vshrl.u32 %v8284, 16
        %v8356 = vrot.slane %v8354, 4
        %v8357 = vshll.u32 %v8284, 16
        %v8359 = vrot.slane %v8357, 5
        %v8360 = vor.u32 %v8356, %v8359
        %v8361 = vrot.slane %v8360, 4
        %v8363 = vshll.u32 %v8285, 16
        %v8365 = vrot.slane %v8363, 5
        %v8366 = vsel %vm858, %v8361, %v8365
        %v8367 = vshrl.u32 %v8285, 16
        %v8369 = vrot.slane %v8367, 4
        %v8370 = vor.u32 %v8369, %v8365
        %v8371 = vrot.slane %v8370, 4
        %v8373 = vshll.u32 %v8286, 16
        %v8375 = vrot.slane %v8373, 5
        %v8376 = vsel %vm858, %v8371, %v8375
        %v8378 = vshrl.u32 %v8287, 16
        %v8380 = vrot.slane %v8378, 4
        %v8381 = vshll.u32 %v8287, 16
        %v8383 = vrot.slane %v8381, 5
        %v8384 = vor.u32 %v8380, %v8383
        %v8385 = vrot.slane %v8384, 4
        %v8387 = vshll.u32 %v8288, 16
        %v8389 = vrot.slane %v8387, 5
        %v8390 = vsel %vm858, %v8385, %v8389
        %v8391 = vshrl.u32 %v8288, 16
        %v8393 = vrot.slane %v8391, 4
        %v8394 = vor.u32 %v8393, %v8389
        %v8395 = vrot.slane %v8394, 4
        %v8397 = vshll.u32 %v8289, 16
        %v8399 = vrot.slane %v8397, 5
        %v8400 = vsel %vm858, %v8395, %v8399
        %v8402 = vshrl.u32 %v8290, 16
        %v8404 = vrot.slane %v8402, 4
        %v8405 = vshll.u32 %v8290, 16
        %v8407 = vrot.slane %v8405, 5
        %v8408 = vor.u32 %v8404, %v8407
        %v8409 = vrot.slane %v8408, 4
        %v8411 = vshll.u32 %v8291, 16
        %v8413 = vrot.slane %v8411, 5
        %v8414 = vsel %vm858, %v8409, %v8413
        %v8415 = vshrl.u32 %v8291, 16
        %v8417 = vrot.slane %v8415, 4
        %v8418 = vor.u32 %v8417, %v8413
        %v8419 = vrot.slane %v8418, 4
        %v8421 = vshll.u32 %v8292, 16
        %v8423 = vrot.slane %v8421, 5
        %v8424 = vsel %vm858, %v8419, %v8423
        %v8426 = vshrl.u32 %v8293, 16
        %v8428 = vrot.slane %v8426, 4
        %v8429 = vshll.u32 %v8293, 16
        %v8431 = vrot.slane %v8429, 5
        %v8432 = vor.u32 %v8428, %v8431
        %v8433 = vrot.slane %v8432, 4
        %v8435 = vshll.u32 %v8294, 16
        %v8437 = vrot.slane %v8435, 5
        %v8438 = vsel %vm858, %v8433, %v8437
        %v8439 = vshrl.u32 %v8294, 16
        %v8441 = vrot.slane %v8439, 4
        %v8442 = vor.u32 %v8441, %v8437
        %v8443 = vrot.slane %v8442, 4
        %v8445 = vshll.u32 %v8295, 16
        %v8447 = vrot.slane %v8445, 5
        %v8448 = vsel %vm858, %v8443, %v8447
        %v8450 = vshrl.u32 %v8296, 16
        %v8452 = vrot.slane %v8450, 4
        %v8453 = vshll.u32 %v8296, 16
        %v8455 = vrot.slane %v8453, 5
        %v8456 = vor.u32 %v8452, %v8455
        %v8457 = vrot.slane %v8456, 4
        %v8459 = vshll.u32 %v8297, 16
        %v8461 = vrot.slane %v8459, 5
        %v8462 = vsel %vm858, %v8457, %v8461
        %v8463 = vshrl.u32 %v8297, 16
        %v8465 = vrot.slane %v8463, 4
        %v8466 = vor.u32 %v8465, %v8461
        %v8467 = vrot.slane %v8466, 4
        %v8469 = vshll.u32 %v8298, 16
        %v8471 = vrot.slane %v8469, 5
        %v8472 = vsel %vm858, %v8467, %v8471
        %v8474 = vshrl.u32 %v8299, 16
        %v8476 = vrot.slane %v8474, 4
        %v8477 = vshll.u32 %v8299, 16
        %v8479 = vrot.slane %v8477, 5
        %v8480 = vor.u32 %v8476, %v8479
        %v8481 = vrot.slane %v8480, 4
        %v8483 = vshll.u32 %v8300, 16
        %v8485 = vrot.slane %v8483, 5
        %v8486 = vsel %vm858, %v8481, %v8485
        %v8487 = vshrl.u32 %v8300, 16
        %v8489 = vrot.slane %v8487, 4
        %v8490 = vor.u32 %v8489, %v8485
        %v8491 = vrot.slane %v8490, 4
        %v8493 = vshll.u32 %v8301, 16
        %v8495 = vrot.slane %v8493, 5
        %v8496 = vsel %vm858, %v8491, %v8495
        %v8498 = vshrl.u32 %v8302, 16
        %v8500 = vrot.slane %v8498, 4
        %v8501 = vshll.u32 %v8302, 16
        %v8503 = vrot.slane %v8501, 5
        %v8504 = vor.u32 %v8500, %v8503
        %v8505 = vrot.slane %v8504, 4
        %v8507 = vshll.u32 %v8303, 16
        %v8509 = vrot.slane %v8507, 5
        %v8510 = vsel %vm858, %v8505, %v8509
        %v8511 = vshrl.u32 %v8303, 16
        %v8513 = vrot.slane %v8511, 4
        %v8514 = vor.u32 %v8513, %v8509
        %v8515 = vrot.slane %v8514, 4
        %v8517 = vshll.u32 %v8304, 16
        %v8519 = vrot.slane %v8517, 5
        %v8520 = vsel %vm858, %v8515, %v8519
        %v8522 = vshrl.u32 %v8305, 16
        %v8524 = vrot.slane %v8522, 4
        %v8525 = vshll.u32 %v8305, 16
        %v8527 = vrot.slane %v8525, 5
        %v8528 = vor.u32 %v8524, %v8527
        %v8529 = vrot.slane %v8528, 4
        %v8531 = vshll.u32 %v8306, 16
        %v8533 = vrot.slane %v8531, 5
        %v8534 = vsel %vm858, %v8529, %v8533
        %v8535 = vshrl.u32 %v8306, 16
        %v8537 = vrot.slane %v8535, 4
        %v8538 = vor.u32 %v8537, %v8533
        %v8539 = vrot.slane %v8538, 4
        %v8541 = vshll.u32 %v8307, 16
        %v8543 = vrot.slane %v8541, 5
        %v8544 = vsel %vm858, %v8539, %v8543
        %v8546 = vshrl.u32 %v8308, 16
        %v8548 = vrot.slane %v8546, 4
        %v8549 = vshll.u32 %v8308, 16
        %v8551 = vrot.slane %v8549, 5
        %v8552 = vor.u32 %v8548, %v8551
        %v8553 = vrot.slane %v8552, 4
        %v8555 = vshll.u32 %v8309, 16
        %v8557 = vrot.slane %v8555, 5
        %v8558 = vsel %vm858, %v8553, %v8557
        %v8559 = vshrl.u32 %v8309, 16
        %v8561 = vrot.slane %v8559, 4
        %v8562 = vor.u32 %v8561, %v8557
        %v8563 = vrot.slane %v8562, 4
        %v8565 = vshll.u32 %v8310, 16
        %v8567 = vrot.slane %v8565, 5
        %v8568 = vsel %vm858, %v8563, %v8567
        %v8570 = vshrl.u32 %v8311, 16
        %v8572 = vrot.slane %v8570, 4
        %v8573 = vshll.u32 %v8311, 16
        %v8575 = vrot.slane %v8573, 5
        %v8576 = vor.u32 %v8572, %v8575
        %v8577 = vrot.slane %v8576, 4
        %v8579 = vshll.u32 %v8312, 16
        %v8581 = vrot.slane %v8579, 5
        %v8582 = vsel %vm858, %v8577, %v8581
        %v8583 = vshrl.u32 %v8312, 16
        %v8585 = vrot.slane %v8583, 4
        %v8586 = vor.u32 %v8585, %v8581
        %v8587 = vrot.slane %v8586, 4
        %v8589 = vshll.u32 %v8313, 16
        %v8591 = vrot.slane %v8589, 5
        %v8592 = vsel %vm858, %v8587, %v8591
        %v8594 = vshrl.u32 %v8314, 16
        %v8596 = vrot.slane %v8594, 4
        %v8597 = vshll.u32 %v8314, 16
        %v8599 = vrot.slane %v8597, 5
        %v8600 = vor.u32 %v8596, %v8599
        %v8601 = vrot.slane %v8600, 4
        %v8603 = vshll.u32 %v8315, 16
        %v8605 = vrot.slane %v8603, 5
        %v8606 = vsel %vm858, %v8601, %v8605
        %v8607 = vshrl.u32 %v8315, 16
        %v8609 = vrot.slane %v8607, 4
        %v8610 = vor.u32 %v8609, %v8605
        %v8611 = vrot.slane %v8610, 4
        %v8613 = vshll.u32 %v8316, 16
        %v8615 = vrot.slane %v8613, 5
        %v8616 = vsel %vm858, %v8611, %v8615
        %v8618 = vshrl.u32 %v8317, 16
        %v8620 = vrot.slane %v8618, 4
        %v8621 = vshll.u32 %v8317, 16
        %v8623 = vrot.slane %v8621, 5
        %v8624 = vor.u32 %v8620, %v8623
        %v8625 = vrot.slane %v8624, 4
        %v8627 = vshll.u32 %v8318, 16
        %v8629 = vrot.slane %v8627, 5
        %v8630 = vsel %vm858, %v8625, %v8629
        %v8631 = vshrl.u32 %v8318, 16
        %v8633 = vrot.slane %v8631, 4
        %v8634 = vor.u32 %v8633, %v8629
        %v8635 = vrot.slane %v8634, 4
        %v8637 = vshll.u32 %v8319, 16
        %v8639 = vrot.slane %v8637, 5
        %v8640 = vsel %vm858, %v8635, %v8639
        %v8642 = vshrl.u32 %v8320, 16
        %v8644 = vrot.slane %v8642, 4
        %v8645 = vshll.u32 %v8320, 16
        %v8647 = vrot.slane %v8645, 5
        %v8648 = vor.u32 %v8644, %v8647
        %v8649 = vrot.slane %v8648, 4
        %v8651 = vshll.u32 %v8321, 16
        %v8653 = vrot.slane %v8651, 5
        %v8654 = vsel %vm858, %v8649, %v8653
        %v8655 = vshrl.u32 %v8321, 16
        %v8657 = vrot.slane %v8655, 4
        %v8658 = vor.u32 %v8657, %v8653
        %v8659 = vrot.slane %v8658, 4
        %v8661 = vshll.u32 %v8322, 16
        %v8663 = vrot.slane %v8661, 5
        %v8664 = vsel %vm858, %v8659, %v8663
        %v8666 = vshrl.u32 %v8323, 16
        %v8668 = vrot.slane %v8666, 4
        %v8669 = vshll.u32 %v8323, 16
        %v8671 = vrot.slane %v8669, 5
        %v8672 = vor.u32 %v8668, %v8671
        %v8673 = vrot.slane %v8672, 4
        %v8675 = vshll.u32 %v8324, 16
        %v8677 = vrot.slane %v8675, 5
        %v8678 = vsel %vm858, %v8673, %v8677
        %v8679 = vshrl.u32 %v8324, 16
        %v8681 = vrot.slane %v8679, 4
        %v8682 = vor.u32 %v8681, %v8677
        %v8683 = vrot.slane %v8682, 4
        %v8685 = vshll.u32 %v8325, 16
        %v8687 = vrot.slane %v8685, 5
        %v8688 = vsel %vm858, %v8683, %v8687
        %v8690 = vshrl.u32 %v8326, 16
        %v8692 = vrot.slane %v8690, 4
        %v8693 = vshll.u32 %v8326, 16
        %v8695 = vrot.slane %v8693, 5
        %v8696 = vor.u32 %v8692, %v8695
        %v8697 = vrot.slane %v8696, 4
        %v8699 = vshll.u32 %v8327, 16
        %v8701 = vrot.slane %v8699, 5
        %v8702 = vsel %vm858, %v8697, %v8701
        %v8703 = vshrl.u32 %v8327, 16
        %v8705 = vrot.slane %v8703, 4
        %v8706 = vor.u32 %v8705, %v8701
        %v8707 = vrot.slane %v8706, 4
        %v8709 = vshll.u32 %v8328, 16
        %v8711 = vrot.slane %v8709, 5
        %v8712 = vsel %vm858, %v8707, %v8711
        %s8713 = scalar_lea.vmem %s2, 112
        %v8714 = vld [vmem:[%s8713] sm:$0xf]
        %v8715 = vld [vmem:[%s8713 + $0x4] sm:$0xf]
        %v8716 = vld [vmem:[%s8713 + $0x8] sm:$0xf]
        %v8717 = vld [vmem:[%s8713 + $0xc] sm:$0xf]
        %v8718 = vunpack.c.l.b16 %v8342
        %v8719 = vunpack.c.l.b16 %v8352
        %v8720 = vunpack.c.l.b16 %v8366
        %v8721 = vunpack.c.l.b16 %v8376
        %v8722 = vunpack.c.l.b16 %v8390
        %v8723 = vunpack.c.l.b16 %v8400
        %v8724 = vunpack.c.l.b16 %v8414
        %v8725 = vunpack.c.l.b16 %v8424
        %v8726 = vunpack.c.l.b16 %v8438
        %v8727 = vunpack.c.l.b16 %v8448
        %v8728 = vunpack.c.l.b16 %v8462
        %v8729 = vunpack.c.l.b16 %v8472
        %v8730 = vunpack.c.l.b16 %v8486
        %v8731 = vunpack.c.l.b16 %v8496
        %v8732 = vunpack.c.l.b16 %v8510
        %v8733 = vunpack.c.l.b16 %v8520
        %v8734 = vunpack.c.l.b16 %v8534
        %v8735 = vunpack.c.l.b16 %v8544
        %v8736 = vunpack.c.l.b16 %v8558
        %v8737 = vunpack.c.l.b16 %v8568
        %v8738 = vunpack.c.l.b16 %v8582
        %v8739 = vunpack.c.l.b16 %v8592
        %v8740 = vunpack.c.l.b16 %v8606
        %v8741 = vunpack.c.l.b16 %v8616
        %v8742 = vunpack.c.l.b16 %v8630
        %v8743 = vunpack.c.l.b16 %v8640
        %v8744 = vunpack.c.l.b16 %v8654
        %v8745 = vunpack.c.l.b16 %v8664
        %v8746 = vunpack.c.l.b16 %v8678
        %v8747 = vunpack.c.l.b16 %v8688
        %v8748 = vunpack.c.l.b16 %v8702
        %v8749 = vunpack.c.l.b16 %v8712
        %v8750 = vpack.c.b16 %v8719, %v8718
        %v8751 = vpack.c.b16 %v8721, %v8720
        %v8752 = vpack.c.b16 %v8723, %v8722
        %v8753 = vpack.c.b16 %v8725, %v8724
        %v8754 = vpack.c.b16 %v8727, %v8726
        %v8755 = vpack.c.b16 %v8729, %v8728
        %v8756 = vpack.c.b16 %v8731, %v8730
        %v8757 = vpack.c.b16 %v8733, %v8732
        %v8758 = vpack.c.b16 %v8735, %v8734
        %v8759 = vpack.c.b16 %v8737, %v8736
        %v8760 = vpack.c.b16 %v8739, %v8738
        %v8761 = vpack.c.b16 %v8741, %v8740
        %v8762 = vpack.c.b16 %v8743, %v8742
        %v8763 = vpack.c.b16 %v8745, %v8744
        %v8764 = vpack.c.b16 %v8747, %v8746
        %v8765 = vpack.c.b16 %v8749, %v8748
        %v8770 = vunpack.c.l.b16 %v8714
        %v8771 = vunpack.c.l.b16 %v8715
        %v8772 = vunpack.c.l.b16 %v8716
        %v8773 = vunpack.c.l.b16 %v8717
        %v8774 = vpack.c.b16 %v8771, %v8770
        %v8775 = vpack.c.b16 %v8773, %v8772
        %v8779 = vsel %vm5847, %v8750, 0
        %v8782 = vsel %vm5847, %v8751, 0
        %v8785 = vsel %vm5847, %v8752, 0
        %v8788 = vsel %vm5847, %v8753, 0
        %v8791 = vsel %vm5847, %v8754, 0
        %v8794 = vsel %vm5847, %v8755, 0
        %v8797 = vsel %vm5847, %v8756, 0
        %v8800 = vsel %vm5847, %v8757, 0
        %v8803 = vsel %vm5847, %v8758, 0
        %v8806 = vsel %vm5847, %v8759, 0
        %v8809 = vsel %vm5847, %v8760, 0
        %v8812 = vsel %vm5847, %v8761, 0
        %v8815 = vsel %vm5847, %v8762, 0
        %v8818 = vsel %vm5847, %v8763, 0
        %v8821 = vsel %vm5847, %v8764, 0
        %v8824 = vsel %vm5847, %v8765, 0
        %8826 = vmatpush.bf16.msra.mxu0 0
        %8827 = vmatpush.bf16.msra.mxu0 0
        %8828 = vmatpush.bf16.msra.mxu0 0
        %8829 = vmatpush.bf16.msra.mxu0 0
        %8830 = vmatpush.bf16.msra.mxu0 0
        %8831 = vmatpush.bf16.msra.mxu0 0
        %8832 = vmatpush.bf16.msra.mxu0 %v8775
        %8833 = vmatpush.bf16.msra.mxu0 %v8774
        %8834 = vmatmul.bf16.gmra.mxu0 %v8779
        %v8835 = vpop.f32.mrf.mxu0
        %v8836 = vadd.f32 0.0, %v8835
        %v8837 = vpop.f32.mrf.mxu0
        %v8838 = vadd.f32 0.0, %v8837
        %8839 = vmatmul.bf16.gmra.mxu0 %v8782
        %v8840 = vpop.f32.mrf.mxu0
        %v8841 = vadd.f32 0.0, %v8840
        %v8842 = vpop.f32.mrf.mxu0
        %v8843 = vadd.f32 0.0, %v8842
        %8844 = vmatmul.bf16.gmra.mxu0 %v8785
        %v8845 = vpop.f32.mrf.mxu0
        %v8846 = vadd.f32 0.0, %v8845
        %v8847 = vpop.f32.mrf.mxu0
        %v8848 = vadd.f32 0.0, %v8847
        %8849 = vmatmul.bf16.gmra.mxu0 %v8788
        %v8850 = vpop.f32.mrf.mxu0
        %v8851 = vadd.f32 0.0, %v8850
        %v8852 = vpop.f32.mrf.mxu0
        %v8853 = vadd.f32 0.0, %v8852
        %8854 = vmatmul.bf16.gmra.mxu0 %v8791
        %v8855 = vpop.f32.mrf.mxu0
        %v8856 = vadd.f32 0.0, %v8855
        %v8857 = vpop.f32.mrf.mxu0
        %v8858 = vadd.f32 0.0, %v8857
        %8859 = vmatmul.bf16.gmra.mxu0 %v8794
        %v8860 = vpop.f32.mrf.mxu0
        %v8861 = vadd.f32 0.0, %v8860
        %v8862 = vpop.f32.mrf.mxu0
        %v8863 = vadd.f32 0.0, %v8862
        %8864 = vmatmul.bf16.gmra.mxu0 %v8797
        %v8865 = vpop.f32.mrf.mxu0
        %v8866 = vadd.f32 0.0, %v8865
        %v8867 = vpop.f32.mrf.mxu0
        %v8868 = vadd.f32 0.0, %v8867
        %8869 = vmatmul.bf16.gmra.mxu0 %v8800
        %v8870 = vpop.f32.mrf.mxu0
        %v8871 = vadd.f32 0.0, %v8870
        %v8872 = vpop.f32.mrf.mxu0
        %v8873 = vadd.f32 0.0, %v8872
        %8874 = vmatmul.bf16.gmra.mxu0 %v8803
        %v8875 = vpop.f32.mrf.mxu0
        %v8876 = vadd.f32 0.0, %v8875
        %v8877 = vpop.f32.mrf.mxu0
        %v8878 = vadd.f32 0.0, %v8877
        %8879 = vmatmul.bf16.gmra.mxu0 %v8806
        %v8880 = vpop.f32.mrf.mxu0
        %v8881 = vadd.f32 0.0, %v8880
        %v8882 = vpop.f32.mrf.mxu0
        %v8883 = vadd.f32 0.0, %v8882
        %8884 = vmatmul.bf16.gmra.mxu0 %v8809
        %v8885 = vpop.f32.mrf.mxu0
        %v8886 = vadd.f32 0.0, %v8885
        %v8887 = vpop.f32.mrf.mxu0
        %v8888 = vadd.f32 0.0, %v8887
        %8889 = vmatmul.bf16.gmra.mxu0 %v8812
        %v8890 = vpop.f32.mrf.mxu0
        %v8891 = vadd.f32 0.0, %v8890
        %v8892 = vpop.f32.mrf.mxu0
        %v8893 = vadd.f32 0.0, %v8892
        %8894 = vmatmul.bf16.gmra.mxu0 %v8815
        %v8895 = vpop.f32.mrf.mxu0
        %v8896 = vadd.f32 0.0, %v8895
        %v8897 = vpop.f32.mrf.mxu0
        %v8898 = vadd.f32 0.0, %v8897
        %8899 = vmatmul.bf16.gmra.mxu0 %v8818
        %v8900 = vpop.f32.mrf.mxu0
        %v8901 = vadd.f32 0.0, %v8900
        %v8902 = vpop.f32.mrf.mxu0
        %v8903 = vadd.f32 0.0, %v8902
        %8904 = vmatmul.bf16.gmra.mxu0 %v8821
        %v8905 = vpop.f32.mrf.mxu0
        %v8906 = vadd.f32 0.0, %v8905
        %v8907 = vpop.f32.mrf.mxu0
        %v8908 = vadd.f32 0.0, %v8907
        %8909 = vmatmul.bf16.gmra.mxu0 %v8824
        %v8910 = vpop.f32.mrf.mxu0
        %v8911 = vadd.f32 0.0, %v8910
        %v8912 = vpop.f32.mrf.mxu0
        %v8913 = vadd.f32 0.0, %v8912
        %8914 = vdwg.mxu0
        %v8915 = vadd.f32 %v8249, %v8836
        %v8916 = vadd.f32 %v8250, %v8838
        %v8917 = vadd.f32 %v8251, %v8841
        %v8918 = vadd.f32 %v8252, %v8843
        %v8919 = vadd.f32 %v8253, %v8846
        %v8920 = vadd.f32 %v8254, %v8848
        %v8921 = vadd.f32 %v8255, %v8851
        %v8922 = vadd.f32 %v8256, %v8853
        %v8923 = vadd.f32 %v8257, %v8856
        %v8924 = vadd.f32 %v8258, %v8858
        %v8925 = vadd.f32 %v8259, %v8861
        %v8926 = vadd.f32 %v8260, %v8863
        %v8927 = vadd.f32 %v8261, %v8866
        %v8928 = vadd.f32 %v8262, %v8868
        %v8929 = vadd.f32 %v8263, %v8871
        %v8930 = vadd.f32 %v8264, %v8873
        %v8931 = vadd.f32 %v8265, %v8876
        %v8932 = vadd.f32 %v8266, %v8878
        %v8933 = vadd.f32 %v8267, %v8881
        %v8934 = vadd.f32 %v8268, %v8883
        %v8935 = vadd.f32 %v8269, %v8886
        %v8936 = vadd.f32 %v8270, %v8888
        %v8937 = vadd.f32 %v8271, %v8891
        %v8938 = vadd.f32 %v8272, %v8893
        %v8939 = vadd.f32 %v8273, %v8896
        %v8940 = vadd.f32 %v8274, %v8898
        %v8941 = vadd.f32 %v8275, %v8901
        %v8942 = vadd.f32 %v8276, %v8903
        %v8943 = vadd.f32 %v8277, %v8906
        %v8944 = vadd.f32 %v8278, %v8908
        %v8945 = vadd.f32 %v8279, %v8911
        %v8946 = vadd.f32 %v8280, %v8913
        %v8947 = vld [vmem:[%s7982] sm:$0xe]
        %v8948 = vld [vmem:[%s7982 + $0xc] sm:$0xe]
        %v8949 = vld [vmem:[%s7982 + $0x18] sm:$0xe]
        %v8950 = vld [vmem:[%s7982 + $0x24] sm:$0xe]
        %v8951 = vld [vmem:[%s7982 + $0x30] sm:$0xe]
        %v8952 = vld [vmem:[%s7982 + $0x3c] sm:$0xe]
        %v8953 = vld [vmem:[%s7982 + $0x48] sm:$0xe]
        %v8954 = vld [vmem:[%s7982 + $0x54] sm:$0xe]
        %v8955 = vld [vmem:[%s7982 + $0x60] sm:$0xe]
        %v8956 = vld [vmem:[%s7982 + $0x6c] sm:$0xe]
        %v8957 = vld [vmem:[%s7982 + $0x78] sm:$0xe]
        %v8958 = vld [vmem:[%s7982 + $0x84] sm:$0xe]
        %v8959 = vld [vmem:[%s7982 + $0x90] sm:$0xe]
        %v8960 = vld [vmem:[%s7982 + $0x9c] sm:$0xe]
        %v8961 = vld [vmem:[%s7982 + $0xa8] sm:$0xe]
        %v8962 = vld [vmem:[%s7982 + $0xb4] sm:$0xe]
        %v9011 = vrot.slane %v8947, 5
        %v9012 = vrot.slane %v9011, 4
        %v9013 = vrot.slane %v8282, 5
        %v9014 = vsel %vm1705, %v9012, %v9013
        %v9015 = vrot.slane %v9013, 4
        %v9016 = vrot.slane %v8283, 5
        %v9017 = vsel %vm1705, %v9015, %v9016
        %v9018 = vrot.slane %v8948, 5
        %v9019 = vrot.slane %v9018, 4
        %v9020 = vrot.slane %v8285, 5
        %v9021 = vsel %vm1705, %v9019, %v9020
        %v9022 = vrot.slane %v9020, 4
        %v9023 = vrot.slane %v8286, 5
        %v9024 = vsel %vm1705, %v9022, %v9023
        %v9025 = vrot.slane %v8949, 5
        %v9026 = vrot.slane %v9025, 4
        %v9027 = vrot.slane %v8288, 5
        %v9028 = vsel %vm1705, %v9026, %v9027
        %v9029 = vrot.slane %v9027, 4
        %v9030 = vrot.slane %v8289, 5
        %v9031 = vsel %vm1705, %v9029, %v9030
        %v9032 = vrot.slane %v8950, 5
        %v9033 = vrot.slane %v9032, 4
        %v9034 = vrot.slane %v8291, 5
        %v9035 = vsel %vm1705, %v9033, %v9034
        %v9036 = vrot.slane %v9034, 4
        %v9037 = vrot.slane %v8292, 5
        %v9038 = vsel %vm1705, %v9036, %v9037
        %v9039 = vrot.slane %v8951, 5
        %v9040 = vrot.slane %v9039, 4
        %v9041 = vrot.slane %v8294, 5
        %v9042 = vsel %vm1705, %v9040, %v9041
        %v9043 = vrot.slane %v9041, 4
        %v9044 = vrot.slane %v8295, 5
        %v9045 = vsel %vm1705, %v9043, %v9044
        %v9046 = vrot.slane %v8952, 5
        %v9047 = vrot.slane %v9046, 4
        %v9048 = vrot.slane %v8297, 5
        %v9049 = vsel %vm1705, %v9047, %v9048
        %v9050 = vrot.slane %v9048, 4
        %v9051 = vrot.slane %v8298, 5
        %v9052 = vsel %vm1705, %v9050, %v9051
        %v9053 = vrot.slane %v8953, 5
        %v9054 = vrot.slane %v9053, 4
        %v9055 = vrot.slane %v8300, 5
        %v9056 = vsel %vm1705, %v9054, %v9055
        %v9057 = vrot.slane %v9055, 4
        %v9058 = vrot.slane %v8301, 5
        %v9059 = vsel %vm1705, %v9057, %v9058
        %v9060 = vrot.slane %v8954, 5
        %v9061 = vrot.slane %v9060, 4
        %v9062 = vrot.slane %v8303, 5
        %v9063 = vsel %vm1705, %v9061, %v9062
        %v9064 = vrot.slane %v9062, 4
        %v9065 = vrot.slane %v8304, 5
        %v9066 = vsel %vm1705, %v9064, %v9065
        %v9067 = vrot.slane %v8955, 5
        %v9068 = vrot.slane %v9067, 4
        %v9069 = vrot.slane %v8306, 5
        %v9070 = vsel %vm1705, %v9068, %v9069
        %v9071 = vrot.slane %v9069, 4
        %v9072 = vrot.slane %v8307, 5
        %v9073 = vsel %vm1705, %v9071, %v9072
        %v9074 = vrot.slane %v8956, 5
        %v9075 = vrot.slane %v9074, 4
        %v9076 = vrot.slane %v8309, 5
        %v9077 = vsel %vm1705, %v9075, %v9076
        %v9078 = vrot.slane %v9076, 4
        %v9079 = vrot.slane %v8310, 5
        %v9080 = vsel %vm1705, %v9078, %v9079
        %v9081 = vrot.slane %v8957, 5
        %v9082 = vrot.slane %v9081, 4
        %v9083 = vrot.slane %v8312, 5
        %v9084 = vsel %vm1705, %v9082, %v9083
        %v9085 = vrot.slane %v9083, 4
        %v9086 = vrot.slane %v8313, 5
        %v9087 = vsel %vm1705, %v9085, %v9086
        %v9088 = vrot.slane %v8958, 5
        %v9089 = vrot.slane %v9088, 4
        %v9090 = vrot.slane %v8315, 5
        %v9091 = vsel %vm1705, %v9089, %v9090
        %v9092 = vrot.slane %v9090, 4
        %v9093 = vrot.slane %v8316, 5
        %v9094 = vsel %vm1705, %v9092, %v9093
        %v9095 = vrot.slane %v8959, 5
        %v9096 = vrot.slane %v9095, 4
        %v9097 = vrot.slane %v8318, 5
        %v9098 = vsel %vm1705, %v9096, %v9097
        %v9099 = vrot.slane %v9097, 4
        %v9100 = vrot.slane %v8319, 5
        %v9101 = vsel %vm1705, %v9099, %v9100
        %v9102 = vrot.slane %v8960, 5
        %v9103 = vrot.slane %v9102, 4
        %v9104 = vrot.slane %v8321, 5
        %v9105 = vsel %vm1705, %v9103, %v9104
        %v9106 = vrot.slane %v9104, 4
        %v9107 = vrot.slane %v8322, 5
        %v9108 = vsel %vm1705, %v9106, %v9107
        %v9109 = vrot.slane %v8961, 5
        %v9110 = vrot.slane %v9109, 4
        %v9111 = vrot.slane %v8324, 5
        %v9112 = vsel %vm1705, %v9110, %v9111
        %v9113 = vrot.slane %v9111, 4
        %v9114 = vrot.slane %v8325, 5
        %v9115 = vsel %vm1705, %v9113, %v9114
        %v9116 = vrot.slane %v8962, 5
        %v9117 = vrot.slane %v9116, 4
        %v9118 = vrot.slane %v8327, 5
        %v9119 = vsel %vm1705, %v9117, %v9118
        %v9120 = vrot.slane %v9118, 4
        %v9121 = vrot.slane %v8328, 5
        %v9122 = vsel %vm1705, %v9120, %v9121
        %s9123 = scalar_lea.vmem %s2, 128
        %v9124 = vld [vmem:[%s9123] sm:$0xf]
        %v9125 = vld [vmem:[%s9123 + $0x4] sm:$0xf]
        %v9126 = vld [vmem:[%s9123 + $0x8] sm:$0xf]
        %v9127 = vld [vmem:[%s9123 + $0xc] sm:$0xf]
        %v9128 = vunpack.c.l.b16 %v9014
        %v9129 = vunpack.c.l.b16 %v9017
        %v9130 = vunpack.c.l.b16 %v9021
        %v9131 = vunpack.c.l.b16 %v9024
        %v9132 = vunpack.c.l.b16 %v9028
        %v9133 = vunpack.c.l.b16 %v9031
        %v9134 = vunpack.c.l.b16 %v9035
        %v9135 = vunpack.c.l.b16 %v9038
        %v9136 = vunpack.c.l.b16 %v9042
        %v9137 = vunpack.c.l.b16 %v9045
        %v9138 = vunpack.c.l.b16 %v9049
        %v9139 = vunpack.c.l.b16 %v9052
        %v9140 = vunpack.c.l.b16 %v9056
        %v9141 = vunpack.c.l.b16 %v9059
        %v9142 = vunpack.c.l.b16 %v9063
        %v9143 = vunpack.c.l.b16 %v9066
        %v9144 = vunpack.c.l.b16 %v9070
        %v9145 = vunpack.c.l.b16 %v9073
        %v9146 = vunpack.c.l.b16 %v9077
        %v9147 = vunpack.c.l.b16 %v9080
        %v9148 = vunpack.c.l.b16 %v9084
        %v9149 = vunpack.c.l.b16 %v9087
        %v9150 = vunpack.c.l.b16 %v9091
        %v9151 = vunpack.c.l.b16 %v9094
        %v9152 = vunpack.c.l.b16 %v9098
        %v9153 = vunpack.c.l.b16 %v9101
        %v9154 = vunpack.c.l.b16 %v9105
        %v9155 = vunpack.c.l.b16 %v9108
        %v9156 = vunpack.c.l.b16 %v9112
        %v9157 = vunpack.c.l.b16 %v9115
        %v9158 = vunpack.c.l.b16 %v9119
        %v9159 = vunpack.c.l.b16 %v9122
        %v9160 = vpack.c.b16 %v9129, %v9128
        %v9161 = vpack.c.b16 %v9131, %v9130
        %v9162 = vpack.c.b16 %v9133, %v9132
        %v9163 = vpack.c.b16 %v9135, %v9134
        %v9164 = vpack.c.b16 %v9137, %v9136
        %v9165 = vpack.c.b16 %v9139, %v9138
        %v9166 = vpack.c.b16 %v9141, %v9140
        %v9167 = vpack.c.b16 %v9143, %v9142
        %v9168 = vpack.c.b16 %v9145, %v9144
        %v9169 = vpack.c.b16 %v9147, %v9146
        %v9170 = vpack.c.b16 %v9149, %v9148
        %v9171 = vpack.c.b16 %v9151, %v9150
        %v9172 = vpack.c.b16 %v9153, %v9152
        %v9173 = vpack.c.b16 %v9155, %v9154
        %v9174 = vpack.c.b16 %v9157, %v9156
        %v9175 = vpack.c.b16 %v9159, %v9158
        %v9180 = vunpack.c.l.b16 %v9124
        %v9181 = vunpack.c.l.b16 %v9125
        %v9182 = vunpack.c.l.b16 %v9126
        %v9183 = vunpack.c.l.b16 %v9127
        %v9184 = vpack.c.b16 %v9181, %v9180
        %v9185 = vpack.c.b16 %v9183, %v9182
        %v9189 = vsel %vm5847, %v9160, 0
        %v9192 = vsel %vm5847, %v9161, 0
        %v9195 = vsel %vm5847, %v9162, 0
        %v9198 = vsel %vm5847, %v9163, 0
        %v9201 = vsel %vm5847, %v9164, 0
        %v9204 = vsel %vm5847, %v9165, 0
        %v9207 = vsel %vm5847, %v9166, 0
        %v9210 = vsel %vm5847, %v9167, 0
        %v9213 = vsel %vm5847, %v9168, 0
        %v9216 = vsel %vm5847, %v9169, 0
        %v9219 = vsel %vm5847, %v9170, 0
        %v9222 = vsel %vm5847, %v9171, 0
        %v9225 = vsel %vm5847, %v9172, 0
        %v9228 = vsel %vm5847, %v9173, 0
        %v9231 = vsel %vm5847, %v9174, 0
        %v9234 = vsel %vm5847, %v9175, 0
        %9236 = vmatpush.bf16.msra.mxu0 0
        %9237 = vmatpush.bf16.msra.mxu0 0
        %9238 = vmatpush.bf16.msra.mxu0 0
        %9239 = vmatpush.bf16.msra.mxu0 0
        %9240 = vmatpush.bf16.msra.mxu0 0
        %9241 = vmatpush.bf16.msra.mxu0 0
        %9242 = vmatpush.bf16.msra.mxu0 %v9185
        %9243 = vmatpush.bf16.msra.mxu0 %v9184
        %9244 = vmatmul.bf16.gmra.mxu0 %v9189
        %v9245 = vpop.f32.mrf.mxu0
        %v9246 = vadd.f32 0.0, %v9245
        %v9247 = vpop.f32.mrf.mxu0
        %v9248 = vadd.f32 0.0, %v9247
        %9249 = vmatmul.bf16.gmra.mxu0 %v9192
        %v9250 = vpop.f32.mrf.mxu0
        %v9251 = vadd.f32 0.0, %v9250
        %v9252 = vpop.f32.mrf.mxu0
        %v9253 = vadd.f32 0.0, %v9252
        %9254 = vmatmul.bf16.gmra.mxu0 %v9195
        %v9255 = vpop.f32.mrf.mxu0
        %v9256 = vadd.f32 0.0, %v9255
        %v9257 = vpop.f32.mrf.mxu0
        %v9258 = vadd.f32 0.0, %v9257
        %9259 = vmatmul.bf16.gmra.mxu0 %v9198
        %v9260 = vpop.f32.mrf.mxu0
        %v9261 = vadd.f32 0.0, %v9260
        %v9262 = vpop.f32.mrf.mxu0
        %v9263 = vadd.f32 0.0, %v9262
        %9264 = vmatmul.bf16.gmra.mxu0 %v9201
        %v9265 = vpop.f32.mrf.mxu0
        %v9266 = vadd.f32 0.0, %v9265
        %v9267 = vpop.f32.mrf.mxu0
        %v9268 = vadd.f32 0.0, %v9267
        %9269 = vmatmul.bf16.gmra.mxu0 %v9204
        %v9270 = vpop.f32.mrf.mxu0
        %v9271 = vadd.f32 0.0, %v9270
        %v9272 = vpop.f32.mrf.mxu0
        %v9273 = vadd.f32 0.0, %v9272
        %9274 = vmatmul.bf16.gmra.mxu0 %v9207
        %v9275 = vpop.f32.mrf.mxu0
        %v9276 = vadd.f32 0.0, %v9275
        %v9277 = vpop.f32.mrf.mxu0
        %v9278 = vadd.f32 0.0, %v9277
        %9279 = vmatmul.bf16.gmra.mxu0 %v9210
        %v9280 = vpop.f32.mrf.mxu0
        %v9281 = vadd.f32 0.0, %v9280
        %v9282 = vpop.f32.mrf.mxu0
        %v9283 = vadd.f32 0.0, %v9282
        %9284 = vmatmul.bf16.gmra.mxu0 %v9213
        %v9285 = vpop.f32.mrf.mxu0
        %v9286 = vadd.f32 0.0, %v9285
        %v9287 = vpop.f32.mrf.mxu0
        %v9288 = vadd.f32 0.0, %v9287
        %9289 = vmatmul.bf16.gmra.mxu0 %v9216
        %v9290 = vpop.f32.mrf.mxu0
        %v9291 = vadd.f32 0.0, %v9290
        %v9292 = vpop.f32.mrf.mxu0
        %v9293 = vadd.f32 0.0, %v9292
        %9294 = vmatmul.bf16.gmra.mxu0 %v9219
        %v9295 = vpop.f32.mrf.mxu0
        %v9296 = vadd.f32 0.0, %v9295
        %v9297 = vpop.f32.mrf.mxu0
        %v9298 = vadd.f32 0.0, %v9297
        %9299 = vmatmul.bf16.gmra.mxu0 %v9222
        %v9300 = vpop.f32.mrf.mxu0
        %v9301 = vadd.f32 0.0, %v9300
        %v9302 = vpop.f32.mrf.mxu0
        %v9303 = vadd.f32 0.0, %v9302
        %9304 = vmatmul.bf16.gmra.mxu0 %v9225
        %v9305 = vpop.f32.mrf.mxu0
        %v9306 = vadd.f32 0.0, %v9305
        %v9307 = vpop.f32.mrf.mxu0
        %v9308 = vadd.f32 0.0, %v9307
        %9309 = vmatmul.bf16.gmra.mxu0 %v9228
        %v9310 = vpop.f32.mrf.mxu0
        %v9311 = vadd.f32 0.0, %v9310
        %v9312 = vpop.f32.mrf.mxu0
        %v9313 = vadd.f32 0.0, %v9312
        %9314 = vmatmul.bf16.gmra.mxu0 %v9231
        %v9315 = vpop.f32.mrf.mxu0
        %v9316 = vadd.f32 0.0, %v9315
        %v9317 = vpop.f32.mrf.mxu0
        %v9318 = vadd.f32 0.0, %v9317
        %9319 = vmatmul.bf16.gmra.mxu0 %v9234
        %v9320 = vpop.f32.mrf.mxu0
        %v9321 = vadd.f32 0.0, %v9320
        %v9322 = vpop.f32.mrf.mxu0
        %v9323 = vadd.f32 0.0, %v9322
        %9324 = vdwg.mxu0
        %v9325 = vadd.f32 %v8915, %v9246
        %v9326 = vadd.f32 %v8916, %v9248
        %v9327 = vadd.f32 %v8917, %v9251
        %v9328 = vadd.f32 %v8918, %v9253
        %v9329 = vadd.f32 %v8919, %v9256
        %v9330 = vadd.f32 %v8920, %v9258
        %v9331 = vadd.f32 %v8921, %v9261
        %v9332 = vadd.f32 %v8922, %v9263
        %v9333 = vadd.f32 %v8923, %v9266
        %v9334 = vadd.f32 %v8924, %v9268
        %v9335 = vadd.f32 %v8925, %v9271
        %v9336 = vadd.f32 %v8926, %v9273
        %v9337 = vadd.f32 %v8927, %v9276
        %v9338 = vadd.f32 %v8928, %v9278
        %v9339 = vadd.f32 %v8929, %v9281
        %v9340 = vadd.f32 %v8930, %v9283
        %v9341 = vadd.f32 %v8931, %v9286
        %v9342 = vadd.f32 %v8932, %v9288
        %v9343 = vadd.f32 %v8933, %v9291
        %v9344 = vadd.f32 %v8934, %v9293
        %v9345 = vadd.f32 %v8935, %v9296
        %v9346 = vadd.f32 %v8936, %v9298
        %v9347 = vadd.f32 %v8937, %v9301
        %v9348 = vadd.f32 %v8938, %v9303
        %v9349 = vadd.f32 %v8939, %v9306
        %v9350 = vadd.f32 %v8940, %v9308
        %v9351 = vadd.f32 %v8941, %v9311
        %v9352 = vadd.f32 %v8942, %v9313
        %v9353 = vadd.f32 %v8943, %v9316
        %v9354 = vadd.f32 %v8944, %v9318
        %v9355 = vadd.f32 %v8945, %v9321
        %v9356 = vadd.f32 %v8946, %v9323
        %v9357 = vld [vmem:[%s5] sm:$0x1]
        %v9359 = vperm.slane %v9357, 0
        %v9361 = vmul.f32 %v9325, %v9359
        %v9362 = vmul.f32 %v9326, %v9359
        %v9363 = vmul.f32 %v9327, %v9359
        %v9364 = vmul.f32 %v9328, %v9359
        %v9365 = vmul.f32 %v9329, %v9359
        %v9366 = vmul.f32 %v9330, %v9359
        %v9367 = vmul.f32 %v9331, %v9359
        %v9368 = vmul.f32 %v9332, %v9359
        %v9369 = vmul.f32 %v9333, %v9359
        %v9370 = vmul.f32 %v9334, %v9359
        %v9371 = vmul.f32 %v9335, %v9359
        %v9372 = vmul.f32 %v9336, %v9359
        %v9373 = vmul.f32 %v9337, %v9359
        %v9374 = vmul.f32 %v9338, %v9359
        %v9375 = vmul.f32 %v9339, %v9359
        %v9376 = vmul.f32 %v9340, %v9359
        %v9377 = vmul.f32 %v9341, %v9359
        %v9378 = vmul.f32 %v9342, %v9359
        %v9379 = vmul.f32 %v9343, %v9359
        %v9380 = vmul.f32 %v9344, %v9359
        %v9381 = vmul.f32 %v9345, %v9359
        %v9382 = vmul.f32 %v9346, %v9359
        %v9383 = vmul.f32 %v9347, %v9359
        %v9384 = vmul.f32 %v9348, %v9359
        %v9385 = vmul.f32 %v9349, %v9359
        %v9386 = vmul.f32 %v9350, %v9359
        %v9387 = vmul.f32 %v9351, %v9359
        %v9388 = vmul.f32 %v9352, %v9359
        %v9389 = vmul.f32 %v9353, %v9359
        %v9390 = vmul.f32 %v9354, %v9359
        %v9391 = vmul.f32 %v9355, %v9359
        %v9392 = vmul.f32 %v9356, %v9359
        %v9393 = vld [vmem:[%s6] sm:$0x1]
        %v9395 = vperm.slane %v9393, 0
        %v9397 = vadd.f32 %v9361, %v9395
        %v9398 = vadd.f32 %v9362, %v9395
        %v9399 = vadd.f32 %v9363, %v9395
        %v9400 = vadd.f32 %v9364, %v9395
        %v9401 = vadd.f32 %v9365, %v9395
        %v9402 = vadd.f32 %v9366, %v9395
        %v9403 = vadd.f32 %v9367, %v9395
        %v9404 = vadd.f32 %v9368, %v9395
        %v9405 = vadd.f32 %v9369, %v9395
        %v9406 = vadd.f32 %v9370, %v9395
        %v9407 = vadd.f32 %v9371, %v9395
        %v9408 = vadd.f32 %v9372, %v9395
        %v9409 = vadd.f32 %v9373, %v9395
        %v9410 = vadd.f32 %v9374, %v9395
        %v9411 = vadd.f32 %v9375, %v9395
        %v9412 = vadd.f32 %v9376, %v9395
        %v9413 = vadd.f32 %v9377, %v9395
        %v9414 = vadd.f32 %v9378, %v9395
        %v9415 = vadd.f32 %v9379, %v9395
        %v9416 = vadd.f32 %v9380, %v9395
        %v9417 = vadd.f32 %v9381, %v9395
        %v9418 = vadd.f32 %v9382, %v9395
        %v9419 = vadd.f32 %v9383, %v9395
        %v9420 = vadd.f32 %v9384, %v9395
        %v9421 = vadd.f32 %v9385, %v9395
        %v9422 = vadd.f32 %v9386, %v9395
        %v9423 = vadd.f32 %v9387, %v9395
        %v9424 = vadd.f32 %v9388, %v9395
        %v9425 = vadd.f32 %v9389, %v9395
        %v9426 = vadd.f32 %v9390, %v9395
        %v9427 = vadd.f32 %v9391, %v9395
        %v9428 = vadd.f32 %v9392, %v9395
        %v9429 = vmax.f32 %v9397, 0.0
        %v9430 = vmax.f32 %v9398, 0.0
        %v9431 = vmax.f32 %v9399, 0.0
        %v9432 = vmax.f32 %v9400, 0.0
        %v9433 = vmax.f32 %v9401, 0.0
        %v9434 = vmax.f32 %v9402, 0.0
        %v9435 = vmax.f32 %v9403, 0.0
        %v9436 = vmax.f32 %v9404, 0.0
        %v9437 = vmax.f32 %v9405, 0.0
        %v9438 = vmax.f32 %v9406, 0.0
        %v9439 = vmax.f32 %v9407, 0.0
        %v9440 = vmax.f32 %v9408, 0.0
        %v9441 = vmax.f32 %v9409, 0.0
        %v9442 = vmax.f32 %v9410, 0.0
        %v9443 = vmax.f32 %v9411, 0.0
        %v9444 = vmax.f32 %v9412, 0.0
        %v9445 = vmax.f32 %v9413, 0.0
        %v9446 = vmax.f32 %v9414, 0.0
        %v9447 = vmax.f32 %v9415, 0.0
        %v9448 = vmax.f32 %v9416, 0.0
        %v9449 = vmax.f32 %v9417, 0.0
        %v9450 = vmax.f32 %v9418, 0.0
        %v9451 = vmax.f32 %v9419, 0.0
        %v9452 = vmax.f32 %v9420, 0.0
        %v9453 = vmax.f32 %v9421, 0.0
        %v9454 = vmax.f32 %v9422, 0.0
        %v9455 = vmax.f32 %v9423, 0.0
        %v9456 = vmax.f32 %v9424, 0.0
        %v9457 = vmax.f32 %v9425, 0.0
        %v9458 = vmax.f32 %v9426, 0.0
        %v9459 = vmax.f32 %v9427, 0.0
        %v9460 = vmax.f32 %v9428, 0.0
        %9461 = vst.msk [vmem:[%s271] sm:$0xff] %vm5847, %v9429
        %9462 = vst.msk [vmem:[%s271 + $0x8] sm:$0xff] %vm5847, %v9430
        %9463 = vst.msk [vmem:[%s271 + $0x10] sm:$0xff] %vm5847, %v9431
        %9464 = vst.msk [vmem:[%s271 + $0x18] sm:$0xff] %vm5847, %v9432
        %9465 = vst.msk [vmem:[%s271 + $0x20] sm:$0xff] %vm5847, %v9433
        %9466 = vst.msk [vmem:[%s271 + $0x28] sm:$0xff] %vm5847, %v9434
        %9467 = vst.msk [vmem:[%s271 + $0x30] sm:$0xff] %vm5847, %v9435
        %9468 = vst.msk [vmem:[%s271 + $0x38] sm:$0xff] %vm5847, %v9436
        %9469 = vst.msk [vmem:[%s271 + $0x40] sm:$0xff] %vm5847, %v9437
        %9470 = vst.msk [vmem:[%s271 + $0x48] sm:$0xff] %vm5847, %v9438
        %9471 = vst.msk [vmem:[%s271 + $0x50] sm:$0xff] %vm5847, %v9439
        %9472 = vst.msk [vmem:[%s271 + $0x58] sm:$0xff] %vm5847, %v9440
        %9473 = vst.msk [vmem:[%s271 + $0x60] sm:$0xff] %vm5847, %v9441
        %9474 = vst.msk [vmem:[%s271 + $0x68] sm:$0xff] %vm5847, %v9442
        %9475 = vst.msk [vmem:[%s271 + $0x70] sm:$0xff] %vm5847, %v9443
        %9476 = vst.msk [vmem:[%s271 + $0x78] sm:$0xff] %vm5847, %v9444
        %9477 = vst.msk [vmem:[%s271 + $0x80] sm:$0xff] %vm5847, %v9445
        %9478 = vst.msk [vmem:[%s271 + $0x88] sm:$0xff] %vm5847, %v9446
        %9479 = vst.msk [vmem:[%s271 + $0x90] sm:$0xff] %vm5847, %v9447
        %9480 = vst.msk [vmem:[%s271 + $0x98] sm:$0xff] %vm5847, %v9448
        %9481 = vst.msk [vmem:[%s271 + $0xa0] sm:$0xff] %vm5847, %v9449
        %9482 = vst.msk [vmem:[%s271 + $0xa8] sm:$0xff] %vm5847, %v9450
        %9483 = vst.msk [vmem:[%s271 + $0xb0] sm:$0xff] %vm5847, %v9451
        %9484 = vst.msk [vmem:[%s271 + $0xb8] sm:$0xff] %vm5847, %v9452
        %9485 = vst.msk [vmem:[%s271 + $0xc0] sm:$0xff] %vm5847, %v9453
        %9486 = vst.msk [vmem:[%s271 + $0xc8] sm:$0xff] %vm5847, %v9454
        %9487 = vst.msk [vmem:[%s271 + $0xd0] sm:$0xff] %vm5847, %v9455
        %9488 = vst.msk [vmem:[%s271 + $0xd8] sm:$0xff] %vm5847, %v9456
        %9489 = vst.msk [vmem:[%s271 + $0xe0] sm:$0xff] %vm5847, %v9457
        %9490 = vst.msk [vmem:[%s271 + $0xe8] sm:$0xff] %vm5847, %v9458
        %9491 = vst.msk [vmem:[%s271 + $0xf0] sm:$0xff] %vm5847, %v9459
        %9492 = vst.msk [vmem:[%s271 + $0xf8] sm:$0xff] %vm5847, %v9460
        %s9493 = sand.u32 %s181, 1
        %s9494 = scalar_lea.sflag [#allocation5], %s9493
        %s9495 = sand.u32 %s181, 1
        %s9496 = smul.addr %s9495, 256
        %s9497 = scalar_lea.vmem [#allocation4], %s9496
        // Predicated region
        $region49: #{conv_block_forward.1} parent=47 // pred_check
          %p9498 = pneg %p191
        $region50: #{conv_block_forward.1} parent=47 // pred_check_branch
          %9500 = sbr.rel (%p9498) target = $region52
        $region51: #{conv_block_forward.1} parent=47 // pred_region
          %9502 = vsyncadd %s9494, 0
          %s9503 = smul.addr %s21, 32
          %s9504 = smul.addr %s9503, 8
          %s9505 = scalar_lea.hbm %s7, %s9504
          %s9506 = sshll.u32 %s9497, 4
          %s9507 = int_to_ptr.vmem [resolvable:$true] %s9506
          %s9508 = sshll.u32 %s9505, 4
          %s9509 = int_to_ptr.hbm [resolvable:$true] %s9508
          %9514 = dma.vmem_to_hbm [thread:$0]  %s9507, 4096, %s9509, %s9494, 128, 128, 8
        $region52: #{conv_block_forward.1} parent=47 // pred_fallthru
          _
      $region48: #{conv_block_forward.1} parent=5 // pred_fallthru
        _
      %p9515 = scmp.le.s32.totalorder 2, %s16
      // Predicated region
      $region53: #{conv_block_forward.1} parent=5 // pred_check
        %p9516 = pneg %p9515
      $region54: #{conv_block_forward.1} parent=5 // pred_check_branch
        %9518 = sbr.rel (%p9516) target = $region56
      $region55: #{conv_block_forward.1} parent=5 // pred_region
        %s9519 = ssub.s32 %s16, 2
        // Predicated region
        $region57: #{conv_block_forward.1} parent=55 // pred_check
          %p9520 = pneg %p197
        $region58: #{conv_block_forward.1} parent=55 // pred_check_branch
          %9522 = sbr.rel (%p9520) target = $region60
        $region59: #{conv_block_forward.1} parent=55 // pred_region
          %s9523 = sand.u32 %s182, 1
          %s9524 = scalar_lea.sflag [#allocation5], %s9523
          %s9525 = sand.u32 %s182, 1
          %s9526 = smul.addr %s9525, 256
          %s9527 = scalar_lea.vmem [#allocation4], %s9526
          %9529 = dma.done %s9524, 4096
        $region60: #{conv_block_forward.1} parent=55 // pred_fallthru
          _
      $region56: #{conv_block_forward.1} parent=5 // pred_fallthru
        _
    $region6: #{conv_block_forward.1} parent=1 // loop_footer
      %s20 = sadd.s32 1, %s16
    $region7: #{conv_block_forward.1} parent=1 // loop_footer_branch
      %15 = sbr.rel target = $region3
    $region8: #{conv_block_forward.1} parent=1 // loop_exit
      _
    %9530 = vsyncpa [#allocation5], 1
    %s9531 = scalar_lea.sflag [#allocation5], 1
    %9532 = vsyncpa %s9531, 1

</llo_original>
